<compile_context>
chip_gen: v7x
topology: tpu7x:2x2x1
jax: 0.10.0
libtpu: 0.0.40
codegen_flags: <defaults>
</compile_context>

<pallas_src>
import functools

import jax
import jax.numpy as jnp
from jax.experimental import pallas as pl
from jax.experimental.pallas import tpu as pltpu

VMEM_LIMIT = 32 * 1024 * 1024  # safe on v5e/v6e (128 MiB) and v7x (64 MiB)


# ---------------------------------------------------------------------------
# Kernel A: sub-pixel 4x4/stride-2 transposed conv, one input row per grid step.
#   inputs : three (1, 1, W+2, Cin) row blocks of the zero-padded input (rows h, h+1, h+2)
#            and the per-parity weight stack (4, 4*Cin, Co).
#   outputs: (1, 1, W, 4*Co) parity-major output row (lane-concatenated parities)
#            and, for BN layers, (1, 1, 2, Co) partial [sum; sum_sq] statistics.
# ---------------------------------------------------------------------------
def _deconv_s2_kernel(x0_ref, x1_ref, x2_ref, w_ref, y_ref, st_ref=None, *,
                      wdim, act, with_stats):
    rows = (x0_ref[0, 0], x1_ref[0, 0], x2_ref[0, 0])          # each (W+2, Cin) bf16
    # 3x3 static window slices of the three padded rows (column offsets 0, 1, 2).
    win = [[rows[a][b:b + wdim, :] for b in (0, 1, 2)] for a in (0, 1, 2)]

    parts = []
    for py in (0, 1):
        for px in (0, 1):
            # taps (dy, dx) in order (0,0),(0,1),(1,0),(1,1) -> matches weight concat order
            lhs = jnp.concatenate(
                [win[py][px], win[py][px + 1],
                 win[py + 1][px], win[py + 1][px + 1]], axis=-1)        # (W, 4*Cin) bf16
            parts.append(jnp.dot(lhs, w_ref[2 * py + px],
                                 preferred_element_type=jnp.float32))   # (W, Co) f32

    if with_stats:
        tot = parts[0] + parts[1] + parts[2] + parts[3]
        sq = (parts[0] * parts[0] + parts[1] * parts[1]
              + parts[2] * parts[2] + parts[3] * parts[3])
        st_ref[0, 0] = jnp.concatenate(
            [jnp.sum(tot, axis=0, keepdims=True),
             jnp.sum(sq, axis=0, keepdims=True)], axis=0)               # (2, Co)

    y = jnp.concatenate(parts, axis=-1)                                 # (W, 4*Co) f32
    if act == "tanh":
        y = jnp.tanh(y)                                                 # only real lanes
    y_ref[0, 0] = y.astype(y_ref.dtype)


def deconv_s2(xp, wstack, cout, act, with_stats):
    """xp: (N, H+2, W+2, Cin) bf16 zero-padded input. Returns (y_pm, stats_or_None)."""
    N, Hp2, Wp2, cin = xp.shape
    H, W = Hp2 - 2, Wp2 - 2

    y_struct = jax.ShapeDtypeStruct((N, H, W, 4 * cout), jnp.bfloat16)
    y_spec = pl.BlockSpec((1, 1, W, 4 * cout), lambda n, h: (n, h, 0, 0))
    if with_stats:
        out_shape = (y_struct, jax.ShapeDtypeStruct((N, H, 2, cout), jnp.float32))
        out_specs = (y_spec, pl.BlockSpec((1, 1, 2, cout), lambda n, h: (n, h, 0, 0)))
    else:
        out_shape = y_struct
        out_specs = y_spec

    res = pl.pallas_call(
        functools.partial(_deconv_s2_kernel, wdim=W, act=act, with_stats=with_stats),
        out_shape=out_shape,
        grid_spec=pltpu.PrefetchScalarGridSpec(
            num_scalar_prefetch=0,
            grid=(N, H),
            in_specs=[
                pl.BlockSpec((1, 1, Wp2, cin), lambda n, h: (n, h, 0, 0)),
                pl.BlockSpec((1, 1, Wp2, cin), lambda n, h: (n, h + 1, 0, 0)),
                pl.BlockSpec((1, 1, Wp2, cin), lambda n, h: (n, h + 2, 0, 0)),
                pl.BlockSpec((4, 4 * cin, cout), lambda n, h: (0, 0, 0)),
            ],
            out_specs=out_specs,
        ),
        compiler_params=pltpu.CompilerParams(
            dimension_semantics=("parallel", "parallel"),
            vmem_limit_bytes=VMEM_LIMIT,
        ),
    )(xp, xp, xp, wstack)

    if with_stats:
        return res[0], res[1]
    return res, None


# ---------------------------------------------------------------------------
# Kernel B: lane-dense per-channel affine (BatchNorm apply) + activation on the
#           (rows, lanes) view of the parity-major output (lanes multiple of 128 here).
# ---------------------------------------------------------------------------
def _bn_act_kernel(y_ref, scale_ref, shift_ref, o_ref, *, act):
    y = y_ref[...].astype(jnp.float32)
    out = y * scale_ref[...] + shift_ref[...]
    if act == "relu":
        out = jnp.maximum(out, 0.0)
    elif act == "tanh":
        out = jnp.tanh(out)
    o_ref[...] = out.astype(o_ref.dtype)


def _pick_row_tile(rows, lanes, budget_bytes=8 << 20, cap=2048):
    """Row tile for the BN/activation pass.

    Full-array blocks are always layout-legal (block dims == array dims); only tile when
    the slab is large, and only with tiles that respect the (16,128) bf16 tiling: a
    multiple of 16 rows that evenly divides `rows`, lanes a multiple of 128.  Falls back
    to the legal full-row block instead of an illegal / oversized non-divisor tile.
    """
    per_row = lanes * 10  # ~ bf16 in + bf16 out + f32 intermediate, double-buffered
    if rows * per_row <= budget_bytes or lanes % 128 != 0:
        return rows
    limit = min(rows, cap)
    for t in range(limit - limit % 16, 0, -16):
        if rows % t == 0 and t * per_row <= budget_bytes:
            return t
    return rows


def bn_act_lane_dense(y2, scale_row, shift_row, act, out_dtype=jnp.bfloat16):
    R, L = y2.shape
    tile = _pick_row_tile(R, L)
    return pl.pallas_call(
        functools.partial(_bn_act_kernel, act=act),
        out_shape=jax.ShapeDtypeStruct((R, L), out_dtype),
        grid_spec=pltpu.PrefetchScalarGridSpec(
            num_scalar_prefetch=0,
            grid=(R // tile,),
            in_specs=[
                pl.BlockSpec((tile, L), lambda i: (i, 0)),
                pl.BlockSpec((1, L), lambda i: (0, 0)),
                pl.BlockSpec((1, L), lambda i: (0, 0)),
            ],
            out_specs=pl.BlockSpec((tile, L), lambda i: (i, 0)),
        ),
        compiler_params=pltpu.CompilerParams(
            dimension_semantics=("parallel",),
            vmem_limit_bytes=VMEM_LIMIT,
        ),
    )(y2, scale_row, shift_row)


# ---------------------------------------------------------------------------
# Kernel C: layer-0 ConvTranspose2d(nz, ngf*8, 4, 1, 0) on a 1x1 input == one matmul.
# ---------------------------------------------------------------------------
def _matmul_kernel(x_ref, w_ref, o_ref):
    o_ref[...] = jnp.dot(x_ref[...], w_ref[...],
                         preferred_element_type=jnp.float32).astype(o_ref.dtype)


def matmul_pallas(x2, wmat):
    N, K = x2.shape
    M = wmat.shape[1]
    return pl.pallas_call(
        _matmul_kernel,
        out_shape=jax.ShapeDtypeStruct((N, M), jnp.bfloat16),
        grid_spec=pltpu.PrefetchScalarGridSpec(
            num_scalar_prefetch=0,
            grid=(1,),
            in_specs=[pl.BlockSpec((N, K), lambda i: (0, 0)),
                      pl.BlockSpec((K, M), lambda i: (0, 0))],
            out_specs=pl.BlockSpec((N, M), lambda i: (0, 0)),
        ),
        compiler_params=pltpu.CompilerParams(
            dimension_semantics=("arbitrary",),
            vmem_limit_bytes=VMEM_LIMIT,
        ),
    )(x2, wmat)


# ---------------------------------------------------------------------------
# Parameters.
# ---------------------------------------------------------------------------
def _subpixel_weight_stack(wt):
    """wt: PyTorch ConvTranspose2d weight (Cin, Co, 4, 4).

    Output pixel (2h+py, 2w+px) = sum_{dy,dx} x[h-1+py+dy, w-1+px+dx] * wt[:, :, 3-py-2dy, 3-px-2dx].
    Returns (4, 4*Cin, Co): parity p = 2*py+px, taps concatenated along Cin in order
    (dy,dx) = (0,0),(0,1),(1,0),(1,1) -- matching the kernel's lhs concatenation.
    """
    mats = []
    for py in (0, 1):
        for px in (0, 1):
            taps = [wt[:, :, 3 - py - 2 * dy, 3 - px - 2 * dx]
                    for dy in (0, 1) for dx in (0, 1)]
            mats.append(jnp.concatenate(taps, axis=0))          # (4*Cin, Co)
    return jnp.stack(mats, axis=0)                               # (4, 4*Cin, Co)


def make_params(key, nz, nc, ngf):
    chans = [nz, ngf * 8, ngf * 4, ngf * 2, ngf, ngf // 2, nc]
    params = {"nz": nz, "c0": chans[1]}
    raw = []

    # layer 0: ConvTranspose2d(nz, ngf*8, 4, 1, 0)
    key, sub = jax.random.split(key)
    wt0 = 0.02 * jax.random.normal(sub, (nz, chans[1], 4, 4), jnp.float32)
    wt0 = wt0.astype(jnp.bfloat16).astype(jnp.float32)           # round once (also used by ref)
    params["w0"] = (jnp.transpose(wt0, (0, 2, 3, 1))
                    .reshape(nz, 16 * chans[1]).astype(jnp.bfloat16))
    params["g0"] = jnp.ones((chans[1],), jnp.float32)
    params["b0"] = jnp.zeros((chans[1],), jnp.float32)
    raw.append(dict(wt=wt0, k=4, s=1, p=0, bn=True,
                    gamma=params["g0"], beta=params["b0"]))

    layers = []
    for li in range(1, 6):
        cin, cout = chans[li], chans[li + 1]
        key, sub = jax.random.split(key)
        wt = 0.02 * jax.random.normal(sub, (cin, cout, 4, 4), jnp.float32)
        wt = wt.astype(jnp.bfloat16).astype(jnp.float32)
        has_bn = li < 5
        gamma = jnp.ones((cout,), jnp.float32) if has_bn else None
        beta = jnp.zeros((cout,), jnp.float32) if has_bn else None
        layers.append(dict(
            w=_subpixel_weight_stack(wt).astype(jnp.bfloat16),
            cout=cout, bn=has_bn, gamma=gamma, beta=beta,
            act="none" if has_bn else "tanh",
        ))
        raw.append(dict(wt=wt, k=4, s=2, p=1, bn=has_bn, gamma=gamma, beta=beta))
    params["layers"] = layers
    params["raw"] = raw
    return params


def _bn_scale_shift(gamma, beta, mean, var, eps=1e-5):
    scale = gamma * jax.lax.rsqrt(var + eps)
    shift = beta - mean * scale
    return scale, shift


# ---------------------------------------------------------------------------
# Forward pass.
# ---------------------------------------------------------------------------
def dcgan_generator_forward(x_nchw, params):
    N = x_nchw.shape[0]
    nz, c0 = params["nz"], params["c0"]

    # --- layer 0: 1x1 input deconv == matmul (Pallas), BN stats on the tiny output in JAX.
    x2 = x_nchw.reshape(N, nz).astype(jnp.bfloat16)
    y0 = matmul_pallas(x2, params["w0"])                         # (N, 16*c0) bf16
    y0f = y0.astype(jnp.float32).reshape(N, 16, c0)
    mean0 = jnp.mean(y0f, axis=(0, 1))
    var0 = jnp.var(y0f, axis=(0, 1))
    scale0, shift0 = _bn_scale_shift(params["g0"], params["b0"], mean0, var0)
    a0 = bn_act_lane_dense(y0,
                           jnp.tile(scale0, 16)[None, :],
                           jnp.tile(shift0, 16)[None, :],
                           "relu", jnp.bfloat16)
    img = a0.reshape(N, 4, 4, c0)                                # true NHWC bf16

    # --- layers 1..5: sub-pixel 4x4/stride-2 deconv (+ BN + ReLU, final layer + Tanh).
    for layer in params["layers"]:
        H, W = img.shape[1], img.shape[2]
        co = layer["cout"]
        xp = jnp.pad(img, ((0, 0), (1, 1), (1, 1), (0, 0)))      # bf16 zero-padded
        y_pm, st = deconv_s2(xp, layer["w"], co, act=layer["act"],
                             with_stats=layer["bn"])
        if layer["bn"]:
            cnt = jnp.float32(N * H * W * 4)
            ssum = jnp.sum(st[:, :, 0, :], axis=(0, 1))
            ssq = jnp.sum(st[:, :, 1, :], axis=(0, 1))
            mean = ssum / cnt
            var = jnp.maximum(ssq / cnt - mean * mean, 0.0)      # biased var, clamped
            scale, shift = _bn_scale_shift(layer["gamma"], layer["beta"], mean, var)
            y2 = y_pm.reshape(N * H, W * 4 * co)                 # pure reshape, lane-dense
            a2 = bn_act_lane_dense(y2,
                                   jnp.tile(scale, 4 * W)[None, :],
                                   jnp.tile(shift, 4 * W)[None, :],
                                   "relu", jnp.bfloat16)
            y_pm = a2.reshape(N, H, W, 4 * co)
        # parity-major -> true NHWC; XLA fuses this with the next layer's pad (or the
        # final NCHW transpose), so the pixel shuffle is never a standalone HBM pass.
        img = (y_pm.reshape(N, H, W, 2, 2, co)
               .transpose(0, 1, 3, 2, 4, 5)
               .reshape(N, 2 * H, 2 * W, co))

    return jnp.transpose(img, (0, 3, 1, 2)).astype(jnp.float32)  # NHWC -> NCHW


# ---------------------------------------------------------------------------
# Pure-XLA reference (exact ConvTranspose2d-equivalent) to validate the sub-pixel mapping.
# ---------------------------------------------------------------------------
def _reference_forward(x, params):
    y = x
    for lr in params["raw"]:
        wt, k, s, p = lr["wt"], lr["k"], lr["s"], lr["p"]
        rhs = jnp.transpose(wt, (1, 0, 2, 3))[:, :, ::-1, ::-1]   # (Co, Cin, k, k) flipped
        y = jax.lax.conv_general_dilated(
            y, rhs, window_strides=(1, 1),
            padding=[(k - 1 - p, k - 1 - p)] * 2, lhs_dilation=(s, s),
            dimension_numbers=("NCHW", "OIHW", "NCHW"),
            precision=jax.lax.Precision.HIGHEST)
        if lr["bn"]:
            mean = jnp.mean(y, axis=(0, 2, 3), keepdims=True)
            var = jnp.var(y, axis=(0, 2, 3), keepdims=True)
            y = ((y - mean) * jax.lax.rsqrt(var + 1e-5)
                 * lr["gamma"].reshape(1, -1, 1, 1) + lr["beta"].reshape(1, -1, 1, 1))
            y = jnp.maximum(y, 0.0)
        else:
            y = jnp.tanh(y)
    return y


if __name__ == "__main__":
    B, nz, nc, ngf = 2, 16, 3, 8                 # small demo config
    key = jax.random.PRNGKey(0)
    kx, kp = jax.random.split(key)
    x = jax.random.normal(kx, (B, nz, 1, 1), jnp.float32)   # latent, NCHW like PyTorch
    params = make_params(kp, nz, nc, ngf)

    fwd = jax.jit(functools.partial(dcgan_generator_forward, params=params))
    out = jax.block_until_ready(fwd(x))

    assert out.shape == (B, nc, 128, 128), out.shape
    assert out.dtype == jnp.float32
    assert bool(jnp.all(jnp.isfinite(out)))
    assert bool(jnp.all(jnp.abs(out) <= 1.0))    # tanh output range

    # Numerical check of the sub-pixel decomposition / BN path against the exact
    # ConvTranspose2d-equivalent XLA reference (bf16-rounded weights, generous tolerance
    # for the bf16 activation path).
    ref = jax.block_until_ready(jax.jit(
        functools.partial(_reference_forward, params=params))(x))
    err = float(jnp.max(jnp.abs(out - ref)))
    assert err < 5e-2, f"max abs diff vs reference = {err}"

    print("KERNEL_OK")
</pallas_src>

<mosaic_0001>
module attributes {stable_mosaic.version = 11 : i64} {
  func.func @_matmul_kernel(%arg0: i32, %arg1: memref<2x16xbf16, #tpu.memory_space<vmem>>, %arg2: memref<16x1024xbf16, #tpu.memory_space<vmem>>, %arg3: memref<2x1024xbf16, #tpu.memory_space<vmem>>) attributes {dimension_semantics = [#tpu.dimension_semantics<arbitrary>], iteration_bounds = array<i64: 1>, scalar_prefetch = 0 : i64, scratch_operands = 0 : i64, tpu.core_type = #tpu.core_type<tc>, window_params = [{pipeline_mode = #tpu.pipeline_mode<synchronous>, transform_indices = @transform_0, window_bounds = array<i64: 2, 16>}, {pipeline_mode = #tpu.pipeline_mode<synchronous>, transform_indices = @transform_1, window_bounds = array<i64: 16, 1024>}, {pipeline_mode = #tpu.pipeline_mode<synchronous>, transform_indices = @transform_2, window_bounds = array<i64: 2, 1024>}]} {
    %c0 = arith.constant 0 : index
    %c0_0 = arith.constant 0 : index
    %0 = vector.load %arg1[%c0, %c0_0] : memref<2x16xbf16, #tpu.memory_space<vmem>>, vector<2x16xbf16>
    %c0_1 = arith.constant 0 : index
    %c0_2 = arith.constant 0 : index
    %1 = vector.load %arg2[%c0_1, %c0_2] : memref<16x1024xbf16, #tpu.memory_space<vmem>>, vector<16x1024xbf16>
    %cst = arith.constant dense<0.000000e+00> : vector<2x1024xf32>
    %2 = tpu.matmul %0, %1, %cst {dimension_numbers = #tpu.dot_dimension_numbers<[1], [0], [0], [1], [0, 0, 1, 1], [], []>} : vector<2x16xbf16>, vector<16x1024xbf16>, vector<2x1024xf32> -> vector<2x1024xf32>
    %3 = arith.truncf %2 : vector<2x1024xf32> to vector<2x1024xbf16>
    %c0_3 = arith.constant 0 : index
    %c0_4 = arith.constant 0 : index
    %4 = vector.load %arg3[%c0_3, %c0_4] : memref<2x1024xbf16, #tpu.memory_space<vmem>>, vector<2x1024xbf16>
    tpu.vector_store %arg3[%c0_3, %c0_4], %3 {strides = array<i32>} : memref<2x1024xbf16, #tpu.memory_space<vmem>>, vector<2x1024xbf16>,
    return
  }
  func.func @transform_0(%arg0: i32) -> (i32, i32) {
    %c0_i32 = arith.constant 0 : i32
    %c0_i32_0 = arith.constant 0 : i32
    %c0_i32_1 = arith.constant 0 : i32
    return %c0_i32, %c0_i32_0 : i32, i32
  }
  func.func @transform_1(%arg0: i32) -> (i32, i32) {
    %c0_i32 = arith.constant 0 : i32
    %c0_i32_0 = arith.constant 0 : i32
    %c0_i32_1 = arith.constant 0 : i32
    return %c0_i32, %c0_i32_0 : i32, i32
  }
  func.func @transform_2(%arg0: i32) -> (i32, i32) {
    %c0_i32 = arith.constant 0 : i32
    %c0_i32_0 = arith.constant 0 : i32
    %c0_i32_1 = arith.constant 0 : i32
    return %c0_i32, %c0_i32_0 : i32, i32
  }
}

module attributes {stable_mosaic.version = 11 : i64} {
  func.func @_bn_act_kernel(%arg0: i32, %arg1: memref<2x1024xbf16, #tpu.memory_space<vmem>>, %arg2: memref<1x1024xf32, #tpu.memory_space<vmem>>, %arg3: memref<1x1024xf32, #tpu.memory_space<vmem>>, %arg4: memref<2x1024xbf16, #tpu.memory_space<vmem>>) attributes {dimension_semantics = [#tpu.dimension_semantics<parallel>], iteration_bounds = array<i64: 1>, scalar_prefetch = 0 : i64, scratch_operands = 0 : i64, tpu.core_type = #tpu.core_type<tc>, window_params = [{transform_indices = @transform_0, window_bounds = array<i64: 2, 1024>}, {pipeline_mode = #tpu.pipeline_mode<synchronous>, transform_indices = @transform_1, window_bounds = array<i64: 1, 1024>}, {pipeline_mode = #tpu.pipeline_mode<synchronous>, transform_indices = @transform_2, window_bounds = array<i64: 1, 1024>}, {transform_indices = @transform_3, window_bounds = array<i64: 2, 1024>}]} {
    %c0 = arith.constant 0 : index
    %c0_0 = arith.constant 0 : index
    %0 = vector.load %arg1[%c0, %c0_0] : memref<2x1024xbf16, #tpu.memory_space<vmem>>, vector<2x1024xbf16>
    %1 = arith.extf %0 : vector<2x1024xbf16> to vector<2x1024xf32>
    %c0_1 = arith.constant 0 : index
    %c0_2 = arith.constant 0 : index
    %2 = vector.load %arg2[%c0_1, %c0_2] : memref<1x1024xf32, #tpu.memory_space<vmem>>, vector<1x1024xf32>
    %3 = vector.broadcast %2 : vector<1x1024xf32> to vector<2x1024xf32>
    %4 = arith.mulf %1, %3 : vector<2x1024xf32>
    %c0_3 = arith.constant 0 : index
    %c0_4 = arith.constant 0 : index
    %5 = vector.load %arg3[%c0_3, %c0_4] : memref<1x1024xf32, #tpu.memory_space<vmem>>, vector<1x1024xf32>
    %6 = vector.broadcast %5 : vector<1x1024xf32> to vector<2x1024xf32>
    %7 = arith.addf %4, %6 : vector<2x1024xf32>
    %cst = arith.constant 0.000000e+00 : f32
    %8 = vector.broadcast %cst : f32 to vector<2x1024xf32>
    %9 = arith.maximumf %7, %8 : vector<2x1024xf32>
    %10 = arith.truncf %9 : vector<2x1024xf32> to vector<2x1024xbf16>
    %c0_5 = arith.constant 0 : index
    %c0_6 = arith.constant 0 : index
    %11 = vector.load %arg4[%c0_5, %c0_6] : memref<2x1024xbf16, #tpu.memory_space<vmem>>, vector<2x1024xbf16>
    tpu.vector_store %arg4[%c0_5, %c0_6], %10 {strides = array<i32>} : memref<2x1024xbf16, #tpu.memory_space<vmem>>, vector<2x1024xbf16>,
    return
  }
  func.func @transform_0(%arg0: i32) -> (i32, i32) {
    %c0_i32 = arith.constant 0 : i32
    %c0_i32_0 = arith.constant 0 : i32
    return %arg0, %c0_i32 : i32, i32
  }
  func.func @transform_1(%arg0: i32) -> (i32, i32) {
    %c0_i32 = arith.constant 0 : i32
    %c0_i32_0 = arith.constant 0 : i32
    %c0_i32_1 = arith.constant 0 : i32
    return %c0_i32, %c0_i32_0 : i32, i32
  }
  func.func @transform_2(%arg0: i32) -> (i32, i32) {
    %c0_i32 = arith.constant 0 : i32
    %c0_i32_0 = arith.constant 0 : i32
    %c0_i32_1 = arith.constant 0 : i32
    return %c0_i32, %c0_i32_0 : i32, i32
  }
  func.func @transform_3(%arg0: i32) -> (i32, i32) {
    %c0_i32 = arith.constant 0 : i32
    %c0_i32_0 = arith.constant 0 : i32
    return %arg0, %c0_i32 : i32, i32
  }
}

module attributes {stable_mosaic.version = 11 : i64} {
  func.func @_deconv_s2_kernel(%arg0: i32, %arg1: i32, %arg2: memref<1x1x6x64xbf16, #tpu.memory_space<vmem>>, %arg3: memref<1x1x6x64xbf16, #tpu.memory_space<vmem>>, %arg4: memref<1x1x6x64xbf16, #tpu.memory_space<vmem>>, %arg5: memref<4x256x32xbf16, #tpu.memory_space<vmem>>, %arg6: memref<1x1x4x128xbf16, #tpu.memory_space<vmem>>, %arg7: memref<1x1x2x32xf32, #tpu.memory_space<vmem>>) attributes {dimension_semantics = [#tpu.dimension_semantics<parallel>, #tpu.dimension_semantics<parallel>], iteration_bounds = array<i64: 2, 4>, scalar_prefetch = 0 : i64, scratch_operands = 0 : i64, tpu.core_type = #tpu.core_type<tc>, window_params = [{transform_indices = @transform_0, window_bounds = array<i64: 1, 1, 6, 64>}, {transform_indices = @transform_1, window_bounds = array<i64: 1, 1, 6, 64>}, {transform_indices = @transform_2, window_bounds = array<i64: 1, 1, 6, 64>}, {pipeline_mode = #tpu.pipeline_mode<synchronous>, transform_indices = @transform_3, window_bounds = array<i64: 4, 256, 32>}, {transform_indices = @transform_4, window_bounds = array<i64: 1, 1, 4, 128>}, {transform_indices = @transform_5, window_bounds = array<i64: 1, 1, 2, 32>}]} {
    %c0 = arith.constant 0 : index
    %c0_0 = arith.constant 0 : index
    %c0_1 = arith.constant 0 : index
    %c0_2 = arith.constant 0 : index
    %0 = vector.load %arg2[%c0, %c0_0, %c0_1, %c0_2] : memref<1x1x6x64xbf16, #tpu.memory_space<vmem>>, vector<1x1x6x64xbf16>
    %1 = vector.shape_cast %0 : vector<1x1x6x64xbf16> to vector<6x64xbf16>
    %c0_3 = arith.constant 0 : index
    %c0_4 = arith.constant 0 : index
    %c0_5 = arith.constant 0 : index
    %c0_6 = arith.constant 0 : index
    %2 = vector.load %arg3[%c0_3, %c0_4, %c0_5, %c0_6] : memref<1x1x6x64xbf16, #tpu.memory_space<vmem>>, vector<1x1x6x64xbf16>
    %3 = vector.shape_cast %2 : vector<1x1x6x64xbf16> to vector<6x64xbf16>
    %c0_7 = arith.constant 0 : index
    %c0_8 = arith.constant 0 : index
    %c0_9 = arith.constant 0 : index
    %c0_10 = arith.constant 0 : index
    %4 = vector.load %arg4[%c0_7, %c0_8, %c0_9, %c0_10] : memref<1x1x6x64xbf16, #tpu.memory_space<vmem>>, vector<1x1x6x64xbf16>
    %5 = vector.shape_cast %4 : vector<1x1x6x64xbf16> to vector<6x64xbf16>
    %6 = vector.extract_strided_slice %1 {offsets = [0, 0], sizes = [4, 64], strides = [1, 1]} : vector<6x64xbf16> to vector<4x64xbf16>
    %7 = vector.extract_strided_slice %1 {offsets = [1, 0], sizes = [4, 64], strides = [1, 1]} : vector<6x64xbf16> to vector<4x64xbf16>
    %8 = vector.extract_strided_slice %1 {offsets = [2, 0], sizes = [4, 64], strides = [1, 1]} : vector<6x64xbf16> to vector<4x64xbf16>
    %9 = vector.extract_strided_slice %3 {offsets = [0, 0], sizes = [4, 64], strides = [1, 1]} : vector<6x64xbf16> to vector<4x64xbf16>
    %10 = vector.extract_strided_slice %3 {offsets = [1, 0], sizes = [4, 64], strides = [1, 1]} : vector<6x64xbf16> to vector<4x64xbf16>
    %11 = vector.extract_strided_slice %3 {offsets = [2, 0], sizes = [4, 64], strides = [1, 1]} : vector<6x64xbf16> to vector<4x64xbf16>
    %12 = vector.extract_strided_slice %5 {offsets = [0, 0], sizes = [4, 64], strides = [1, 1]} : vector<6x64xbf16> to vector<4x64xbf16>
    %13 = vector.extract_strided_slice %5 {offsets = [1, 0], sizes = [4, 64], strides = [1, 1]} : vector<6x64xbf16> to vector<4x64xbf16>
    %14 = vector.extract_strided_slice %5 {offsets = [2, 0], sizes = [4, 64], strides = [1, 1]} : vector<6x64xbf16> to vector<4x64xbf16>
    %15 = tpu.concatenate %6, %7, %9, %10 in 1 : vector<4x64xbf16>, vector<4x64xbf16>, vector<4x64xbf16>, vector<4x64xbf16> -> vector<4x256xbf16>
    %c0_11 = arith.constant 0 : index
    %c0_12 = arith.constant 0 : index
    %c0_13 = arith.constant 0 : index
    %16 = vector.load %arg5[%c0_11, %c0_12, %c0_13] : memref<4x256x32xbf16, #tpu.memory_space<vmem>>, vector<1x256x32xbf16>
    %17 = vector.shape_cast %16 : vector<1x256x32xbf16> to vector<256x32xbf16>
    %cst = arith.constant dense<0.000000e+00> : vector<4x32xf32>
    %18 = tpu.matmul %15, %17, %cst {dimension_numbers = #tpu.dot_dimension_numbers<[1], [0], [0], [1], [0, 0, 1, 1], [], []>} : vector<4x256xbf16>, vector<256x32xbf16>, vector<4x32xf32> -> vector<4x32xf32>
    %19 = tpu.concatenate %7, %8, %10, %11 in 1 : vector<4x64xbf16>, vector<4x64xbf16>, vector<4x64xbf16>, vector<4x64xbf16> -> vector<4x256xbf16>
    %c1 = arith.constant 1 : index
    %c0_14 = arith.constant 0 : index
    %c0_15 = arith.constant 0 : index
    %20 = vector.load %arg5[%c1, %c0_14, %c0_15] : memref<4x256x32xbf16, #tpu.memory_space<vmem>>, vector<1x256x32xbf16>
    %21 = vector.shape_cast %20 : vector<1x256x32xbf16> to vector<256x32xbf16>
    %cst_16 = arith.constant dense<0.000000e+00> : vector<4x32xf32>
    %22 = tpu.matmul %19, %21, %cst_16 {dimension_numbers = #tpu.dot_dimension_numbers<[1], [0], [0], [1], [0, 0, 1, 1], [], []>} : vector<4x256xbf16>, vector<256x32xbf16>, vector<4x32xf32> -> vector<4x32xf32>
    %23 = tpu.concatenate %9, %10, %12, %13 in 1 : vector<4x64xbf16>, vector<4x64xbf16>, vector<4x64xbf16>, vector<4x64xbf16> -> vector<4x256xbf16>
    %c2 = arith.constant 2 : index
    %c0_17 = arith.constant 0 : index
    %c0_18 = arith.constant 0 : index
    %24 = vector.load %arg5[%c2, %c0_17, %c0_18] : memref<4x256x32xbf16, #tpu.memory_space<vmem>>, vector<1x256x32xbf16>
    %25 = vector.shape_cast %24 : vector<1x256x32xbf16> to vector<256x32xbf16>
    %cst_19 = arith.constant dense<0.000000e+00> : vector<4x32xf32>
    %26 = tpu.matmul %23, %25, %cst_19 {dimension_numbers = #tpu.dot_dimension_numbers<[1], [0], [0], [1], [0, 0, 1, 1], [], []>} : vector<4x256xbf16>, vector<256x32xbf16>, vector<4x32xf32> -> vector<4x32xf32>
    %27 = tpu.concatenate %10, %11, %13, %14 in 1 : vector<4x64xbf16>, vector<4x64xbf16>, vector<4x64xbf16>, vector<4x64xbf16> -> vector<4x256xbf16>
    %c3 = arith.constant 3 : index
    %c0_20 = arith.constant 0 : index
    %c0_21 = arith.constant 0 : index
    %28 = vector.load %arg5[%c3, %c0_20, %c0_21] : memref<4x256x32xbf16, #tpu.memory_space<vmem>>, vector<1x256x32xbf16>
    %29 = vector.shape_cast %28 : vector<1x256x32xbf16> to vector<256x32xbf16>
    %cst_22 = arith.constant dense<0.000000e+00> : vector<4x32xf32>
    %30 = tpu.matmul %27, %29, %cst_22 {dimension_numbers = #tpu.dot_dimension_numbers<[1], [0], [0], [1], [0, 0, 1, 1], [], []>} : vector<4x256xbf16>, vector<256x32xbf16>, vector<4x32xf32> -> vector<4x32xf32>
    %31 = arith.addf %18, %22 : vector<4x32xf32>
    %32 = arith.addf %31, %26 : vector<4x32xf32>
    %33 = arith.addf %32, %30 : vector<4x32xf32>
    %34 = arith.mulf %18, %18 : vector<4x32xf32>
    %35 = arith.mulf %22, %22 : vector<4x32xf32>
    %36 = arith.addf %34, %35 : vector<4x32xf32>
    %37 = arith.mulf %26, %26 : vector<4x32xf32>
    %38 = arith.addf %36, %37 : vector<4x32xf32>
    %39 = arith.mulf %30, %30 : vector<4x32xf32>
    %40 = arith.addf %38, %39 : vector<4x32xf32>
    %cst_23 = arith.constant dense<0.000000e+00> : vector<32xf32>
    %41 = vector.multi_reduction <add>, %33, %cst_23 [0] : vector<4x32xf32> to vector<32xf32>
    %42 = vector.shape_cast %41 : vector<32xf32> to vector<1x32xf32>
    %cst_24 = arith.constant dense<0.000000e+00> : vector<32xf32>
    %43 = vector.multi_reduction <add>, %40, %cst_24 [0] : vector<4x32xf32> to vector<32xf32>
    %44 = vector.shape_cast %43 : vector<32xf32> to vector<1x32xf32>
    %45 = tpu.concatenate %42, %44 in 0 : vector<1x32xf32>, vector<1x32xf32> -> vector<2x32xf32>
    %c0_25 = arith.constant 0 : index
    %c0_26 = arith.constant 0 : index
    %c0_27 = arith.constant 0 : index
    %c0_28 = arith.constant 0 : index
    %46 = vector.load %arg7[%c0_25, %c0_26, %c0_27, %c0_28] : memref<1x1x2x32xf32, #tpu.memory_space<vmem>>, vector<1x1x2x32xf32>
    %47 = vector.shape_cast %46 : vector<1x1x2x32xf32> to vector<2x32xf32>
    %48 = vector.shape_cast %45 : vector<2x32xf32> to vector<1x1x2x32xf32>
    tpu.vector_store %arg7[%c0_25, %c0_26, %c0_27, %c0_28], %48 {strides = array<i32>} : memref<1x1x2x32xf32, #tpu.memory_space<vmem>>, vector<1x1x2x32xf32>,
    %49 = tpu.concatenate %18, %22, %26, %30 in 1 : vector<4x32xf32>, vector<4x32xf32>, vector<4x32xf32>, vector<4x32xf32> -> vector<4x128xf32>
    %50 = arith.truncf %49 : vector<4x128xf32> to vector<4x128xbf16>
    %c0_29 = arith.constant 0 : index
    %c0_30 = arith.constant 0 : index
    %c0_31 = arith.constant 0 : index
    %c0_32 = arith.constant 0 : index
    %51 = vector.load %arg6[%c0_29, %c0_30, %c0_31, %c0_32] : memref<1x1x4x128xbf16, #tpu.memory_space<vmem>>, vector<1x1x4x128xbf16>
    %52 = vector.shape_cast %51 : vector<1x1x4x128xbf16> to vector<4x128xbf16>
    %53 = vector.shape_cast %50 : vector<4x128xbf16> to vector<1x1x4x128xbf16>
    tpu.vector_store %arg6[%c0_29, %c0_30, %c0_31, %c0_32], %53 {strides = array<i32>} : memref<1x1x4x128xbf16, #tpu.memory_space<vmem>>, vector<1x1x4x128xbf16>,
    return
  }
  func.func @transform_0(%arg0: i32, %arg1: i32) -> (i32, i32, i32, i32) {
    %c0_i32 = arith.constant 0 : i32
    %c0_i32_0 = arith.constant 0 : i32
    %c0_i32_1 = arith.constant 0 : i32
    return %arg0, %arg1, %c0_i32, %c0_i32_0 : i32, i32, i32, i32
  }
  func.func @transform_1(%arg0: i32, %arg1: i32) -> (i32, i32, i32, i32) {
    %c1_i32 = arith.constant 1 : i32
    %0 = arith.addi %arg1, %c1_i32 : i32
    %c0_i32 = arith.constant 0 : i32
    %c0_i32_0 = arith.constant 0 : i32
    %c0_i32_1 = arith.constant 0 : i32
    return %arg0, %0, %c0_i32, %c0_i32_0 : i32, i32, i32, i32
  }
  func.func @transform_2(%arg0: i32, %arg1: i32) -> (i32, i32, i32, i32) {
    %c2_i32 = arith.constant 2 : i32
    %0 = arith.addi %arg1, %c2_i32 : i32
    %c0_i32 = arith.constant 0 : i32
    %c0_i32_0 = arith.constant 0 : i32
    %c0_i32_1 = arith.constant 0 : i32
    return %arg0, %0, %c0_i32, %c0_i32_0 : i32, i32, i32, i32
  }
  func.func @transform_3(%arg0: i32, %arg1: i32) -> (i32, i32, i32) {
    %c0_i32 = arith.constant 0 : i32
    %c0_i32_0 = arith.constant 0 : i32
    %c0_i32_1 = arith.constant 0 : i32
    %c0_i32_2 = arith.constant 0 : i32
    return %c0_i32, %c0_i32_0, %c0_i32_1 : i32, i32, i32
  }
  func.func @transform_4(%arg0: i32, %arg1: i32) -> (i32, i32, i32, i32) {
    %c0_i32 = arith.constant 0 : i32
    %c0_i32_0 = arith.constant 0 : i32
    %c0_i32_1 = arith.constant 0 : i32
    return %arg0, %arg1, %c0_i32, %c0_i32_0 : i32, i32, i32, i32
  }
  func.func @transform_5(%arg0: i32, %arg1: i32) -> (i32, i32, i32, i32) {
    %c0_i32 = arith.constant 0 : i32
    %c0_i32_0 = arith.constant 0 : i32
    %c0_i32_1 = arith.constant 0 : i32
    return %arg0, %arg1, %c0_i32, %c0_i32_0 : i32, i32, i32, i32
  }
}

module attributes {stable_mosaic.version = 11 : i64} {
  func.func @_bn_act_kernel(%arg0: i32, %arg1: memref<8x512xbf16, #tpu.memory_space<vmem>>, %arg2: memref<1x512xf32, #tpu.memory_space<vmem>>, %arg3: memref<1x512xf32, #tpu.memory_space<vmem>>, %arg4: memref<8x512xbf16, #tpu.memory_space<vmem>>) attributes {dimension_semantics = [#tpu.dimension_semantics<parallel>], iteration_bounds = array<i64: 1>, scalar_prefetch = 0 : i64, scratch_operands = 0 : i64, tpu.core_type = #tpu.core_type<tc>, window_params = [{transform_indices = @transform_0, window_bounds = array<i64: 8, 512>}, {pipeline_mode = #tpu.pipeline_mode<synchronous>, transform_indices = @transform_1, window_bounds = array<i64: 1, 512>}, {pipeline_mode = #tpu.pipeline_mode<synchronous>, transform_indices = @transform_2, window_bounds = array<i64: 1, 512>}, {transform_indices = @transform_3, window_bounds = array<i64: 8, 512>}]} {
    %c0 = arith.constant 0 : index
    %c0_0 = arith.constant 0 : index
    %0 = vector.load %arg1[%c0, %c0_0] : memref<8x512xbf16, #tpu.memory_space<vmem>>, vector<8x512xbf16>
    %1 = arith.extf %0 : vector<8x512xbf16> to vector<8x512xf32>
    %c0_1 = arith.constant 0 : index
    %c0_2 = arith.constant 0 : index
    %2 = vector.load %arg2[%c0_1, %c0_2] : memref<1x512xf32, #tpu.memory_space<vmem>>, vector<1x512xf32>
    %3 = vector.broadcast %2 : vector<1x512xf32> to vector<8x512xf32>
    %4 = arith.mulf %1, %3 : vector<8x512xf32>
    %c0_3 = arith.constant 0 : index
    %c0_4 = arith.constant 0 : index
    %5 = vector.load %arg3[%c0_3, %c0_4] : memref<1x512xf32, #tpu.memory_space<vmem>>, vector<1x512xf32>
    %6 = vector.broadcast %5 : vector<1x512xf32> to vector<8x512xf32>
    %7 = arith.addf %4, %6 : vector<8x512xf32>
    %cst = arith.constant 0.000000e+00 : f32
    %8 = vector.broadcast %cst : f32 to vector<8x512xf32>
    %9 = arith.maximumf %7, %8 : vector<8x512xf32>
    %10 = arith.truncf %9 : vector<8x512xf32> to vector<8x512xbf16>
    %c0_5 = arith.constant 0 : index
    %c0_6 = arith.constant 0 : index
    %11 = vector.load %arg4[%c0_5, %c0_6] : memref<8x512xbf16, #tpu.memory_space<vmem>>, vector<8x512xbf16>
    tpu.vector_store %arg4[%c0_5, %c0_6], %10 {strides = array<i32>} : memref<8x512xbf16, #tpu.memory_space<vmem>>, vector<8x512xbf16>,
    return
  }
  func.func @transform_0(%arg0: i32) -> (i32, i32) {
    %c0_i32 = arith.constant 0 : i32
    %c0_i32_0 = arith.constant 0 : i32
    return %arg0, %c0_i32 : i32, i32
  }
  func.func @transform_1(%arg0: i32) -> (i32, i32) {
    %c0_i32 = arith.constant 0 : i32
    %c0_i32_0 = arith.constant 0 : i32
    %c0_i32_1 = arith.constant 0 : i32
    return %c0_i32, %c0_i32_0 : i32, i32
  }
  func.func @transform_2(%arg0: i32) -> (i32, i32) {
    %c0_i32 = arith.constant 0 : i32
    %c0_i32_0 = arith.constant 0 : i32
    %c0_i32_1 = arith.constant 0 : i32
    return %c0_i32, %c0_i32_0 : i32, i32
  }
  func.func @transform_3(%arg0: i32) -> (i32, i32) {
    %c0_i32 = arith.constant 0 : i32
    %c0_i32_0 = arith.constant 0 : i32
    return %arg0, %c0_i32 : i32, i32
  }
}

module attributes {stable_mosaic.version = 11 : i64} {
  func.func @_deconv_s2_kernel(%arg0: i32, %arg1: i32, %arg2: memref<1x1x10x32xbf16, #tpu.memory_space<vmem>>, %arg3: memref<1x1x10x32xbf16, #tpu.memory_space<vmem>>, %arg4: memref<1x1x10x32xbf16, #tpu.memory_space<vmem>>, %arg5: memref<4x128x16xbf16, #tpu.memory_space<vmem>>, %arg6: memref<1x1x8x64xbf16, #tpu.memory_space<vmem>>, %arg7: memref<1x1x2x16xf32, #tpu.memory_space<vmem>>) attributes {dimension_semantics = [#tpu.dimension_semantics<parallel>, #tpu.dimension_semantics<parallel>], iteration_bounds = array<i64: 2, 8>, scalar_prefetch = 0 : i64, scratch_operands = 0 : i64, tpu.core_type = #tpu.core_type<tc>, window_params = [{transform_indices = @transform_0, window_bounds = array<i64: 1, 1, 10, 32>}, {transform_indices = @transform_1, window_bounds = array<i64: 1, 1, 10, 32>}, {transform_indices = @transform_2, window_bounds = array<i64: 1, 1, 10, 32>}, {pipeline_mode = #tpu.pipeline_mode<synchronous>, transform_indices = @transform_3, window_bounds = array<i64: 4, 128, 16>}, {transform_indices = @transform_4, window_bounds = array<i64: 1, 1, 8, 64>}, {transform_indices = @transform_5, window_bounds = array<i64: 1, 1, 2, 16>}]} {
    %c0 = arith.constant 0 : index
    %c0_0 = arith.constant 0 : index
    %c0_1 = arith.constant 0 : index
    %c0_2 = arith.constant 0 : index
    %0 = vector.load %arg2[%c0, %c0_0, %c0_1, %c0_2] : memref<1x1x10x32xbf16, #tpu.memory_space<vmem>>, vector<1x1x10x32xbf16>
    %1 = vector.shape_cast %0 : vector<1x1x10x32xbf16> to vector<10x32xbf16>
    %c0_3 = arith.constant 0 : index
    %c0_4 = arith.constant 0 : index
    %c0_5 = arith.constant 0 : index
    %c0_6 = arith.constant 0 : index
    %2 = vector.load %arg3[%c0_3, %c0_4, %c0_5, %c0_6] : memref<1x1x10x32xbf16, #tpu.memory_space<vmem>>, vector<1x1x10x32xbf16>
    %3 = vector.shape_cast %2 : vector<1x1x10x32xbf16> to vector<10x32xbf16>
    %c0_7 = arith.constant 0 : index
    %c0_8 = arith.constant 0 : index
    %c0_9 = arith.constant 0 : index
    %c0_10 = arith.constant 0 : index
    %4 = vector.load %arg4[%c0_7, %c0_8, %c0_9, %c0_10] : memref<1x1x10x32xbf16, #tpu.memory_space<vmem>>, vector<1x1x10x32xbf16>
    %5 = vector.shape_cast %4 : vector<1x1x10x32xbf16> to vector<10x32xbf16>
    %6 = vector.extract_strided_slice %1 {offsets = [0, 0], sizes = [8, 32], strides = [1, 1]} : vector<10x32xbf16> to vector<8x32xbf16>
    %7 = vector.extract_strided_slice %1 {offsets = [1, 0], sizes = [8, 32], strides = [1, 1]} : vector<10x32xbf16> to vector<8x32xbf16>
    %8 = vector.extract_strided_slice %1 {offsets = [2, 0], sizes = [8, 32], strides = [1, 1]} : vector<10x32xbf16> to vector<8x32xbf16>
    %9 = vector.extract_strided_slice %3 {offsets = [0, 0], sizes = [8, 32], strides = [1, 1]} : vector<10x32xbf16> to vector<8x32xbf16>
    %10 = vector.extract_strided_slice %3 {offsets = [1, 0], sizes = [8, 32], strides = [1, 1]} : vector<10x32xbf16> to vector<8x32xbf16>
    %11 = vector.extract_strided_slice %3 {offsets = [2, 0], sizes = [8, 32], strides = [1, 1]} : vector<10x32xbf16> to vector<8x32xbf16>
    %12 = vector.extract_strided_slice %5 {offsets = [0, 0], sizes = [8, 32], strides = [1, 1]} : vector<10x32xbf16> to vector<8x32xbf16>
    %13 = vector.extract_strided_slice %5 {offsets = [1, 0], sizes = [8, 32], strides = [1, 1]} : vector<10x32xbf16> to vector<8x32xbf16>
    %14 = vector.extract_strided_slice %5 {offsets = [2, 0], sizes = [8, 32], strides = [1, 1]} : vector<10x32xbf16> to vector<8x32xbf16>
    %15 = tpu.concatenate %6, %7, %9, %10 in 1 : vector<8x32xbf16>, vector<8x32xbf16>, vector<8x32xbf16>, vector<8x32xbf16> -> vector<8x128xbf16>
    %c0_11 = arith.constant 0 : index
    %c0_12 = arith.constant 0 : index
    %c0_13 = arith.constant 0 : index
    %16 = vector.load %arg5[%c0_11, %c0_12, %c0_13] : memref<4x128x16xbf16, #tpu.memory_space<vmem>>, vector<1x128x16xbf16>
    %17 = vector.shape_cast %16 : vector<1x128x16xbf16> to vector<128x16xbf16>
    %cst = arith.constant dense<0.000000e+00> : vector<8x16xf32>
    %18 = tpu.matmul %15, %17, %cst {dimension_numbers = #tpu.dot_dimension_numbers<[1], [0], [0], [1], [0, 0, 1, 1], [], []>} : vector<8x128xbf16>, vector<128x16xbf16>, vector<8x16xf32> -> vector<8x16xf32>
    %19 = tpu.concatenate %7, %8, %10, %11 in 1 : vector<8x32xbf16>, vector<8x32xbf16>, vector<8x32xbf16>, vector<8x32xbf16> -> vector<8x128xbf16>
    %c1 = arith.constant 1 : index
    %c0_14 = arith.constant 0 : index
    %c0_15 = arith.constant 0 : index
    %20 = vector.load %arg5[%c1, %c0_14, %c0_15] : memref<4x128x16xbf16, #tpu.memory_space<vmem>>, vector<1x128x16xbf16>
    %21 = vector.shape_cast %20 : vector<1x128x16xbf16> to vector<128x16xbf16>
    %cst_16 = arith.constant dense<0.000000e+00> : vector<8x16xf32>
    %22 = tpu.matmul %19, %21, %cst_16 {dimension_numbers = #tpu.dot_dimension_numbers<[1], [0], [0], [1], [0, 0, 1, 1], [], []>} : vector<8x128xbf16>, vector<128x16xbf16>, vector<8x16xf32> -> vector<8x16xf32>
    %23 = tpu.concatenate %9, %10, %12, %13 in 1 : vector<8x32xbf16>, vector<8x32xbf16>, vector<8x32xbf16>, vector<8x32xbf16> -> vector<8x128xbf16>
    %c2 = arith.constant 2 : index
    %c0_17 = arith.constant 0 : index
    %c0_18 = arith.constant 0 : index
    %24 = vector.load %arg5[%c2, %c0_17, %c0_18] : memref<4x128x16xbf16, #tpu.memory_space<vmem>>, vector<1x128x16xbf16>
    %25 = vector.shape_cast %24 : vector<1x128x16xbf16> to vector<128x16xbf16>
    %cst_19 = arith.constant dense<0.000000e+00> : vector<8x16xf32>
    %26 = tpu.matmul %23, %25, %cst_19 {dimension_numbers = #tpu.dot_dimension_numbers<[1], [0], [0], [1], [0, 0, 1, 1], [], []>} : vector<8x128xbf16>, vector<128x16xbf16>, vector<8x16xf32> -> vector<8x16xf32>
    %27 = tpu.concatenate %10, %11, %13, %14 in 1 : vector<8x32xbf16>, vector<8x32xbf16>, vector<8x32xbf16>, vector<8x32xbf16> -> vector<8x128xbf16>
    %c3 = arith.constant 3 : index
    %c0_20 = arith.constant 0 : index
    %c0_21 = arith.constant 0 : index
    %28 = vector.load %arg5[%c3, %c0_20, %c0_21] : memref<4x128x16xbf16, #tpu.memory_space<vmem>>, vector<1x128x16xbf16>
    %29 = vector.shape_cast %28 : vector<1x128x16xbf16> to vector<128x16xbf16>
    %cst_22 = arith.constant dense<0.000000e+00> : vector<8x16xf32>
    %30 = tpu.matmul %27, %29, %cst_22 {dimension_numbers = #tpu.dot_dimension_numbers<[1], [0], [0], [1], [0, 0, 1, 1], [], []>} : vector<8x128xbf16>, vector<128x16xbf16>, vector<8x16xf32> -> vector<8x16xf32>
    %31 = arith.addf %18, %22 : vector<8x16xf32>
    %32 = arith.addf %31, %26 : vector<8x16xf32>
    %33 = arith.addf %32, %30 : vector<8x16xf32>
    %34 = arith.mulf %18, %18 : vector<8x16xf32>
    %35 = arith.mulf %22, %22 : vector<8x16xf32>
    %36 = arith.addf %34, %35 : vector<8x16xf32>
    %37 = arith.mulf %26, %26 : vector<8x16xf32>
    %38 = arith.addf %36, %37 : vector<8x16xf32>
    %39 = arith.mulf %30, %30 : vector<8x16xf32>
    %40 = arith.addf %38, %39 : vector<8x16xf32>
    %cst_23 = arith.constant dense<0.000000e+00> : vector<16xf32>
    %41 = vector.multi_reduction <add>, %33, %cst_23 [0] : vector<8x16xf32> to vector<16xf32>
    %42 = vector.shape_cast %41 : vector<16xf32> to vector<1x16xf32>
    %cst_24 = arith.constant dense<0.000000e+00> : vector<16xf32>
    %43 = vector.multi_reduction <add>, %40, %cst_24 [0] : vector<8x16xf32> to vector<16xf32>
    %44 = vector.shape_cast %43 : vector<16xf32> to vector<1x16xf32>
    %45 = tpu.concatenate %42, %44 in 0 : vector<1x16xf32>, vector<1x16xf32> -> vector<2x16xf32>
    %c0_25 = arith.constant 0 : index
    %c0_26 = arith.constant 0 : index
    %c0_27 = arith.constant 0 : index
    %c0_28 = arith.constant 0 : index
    %46 = vector.load %arg7[%c0_25, %c0_26, %c0_27, %c0_28] : memref<1x1x2x16xf32, #tpu.memory_space<vmem>>, vector<1x1x2x16xf32>
    %47 = vector.shape_cast %46 : vector<1x1x2x16xf32> to vector<2x16xf32>
    %48 = vector.shape_cast %45 : vector<2x16xf32> to vector<1x1x2x16xf32>
    tpu.vector_store %arg7[%c0_25, %c0_26, %c0_27, %c0_28], %48 {strides = array<i32>} : memref<1x1x2x16xf32, #tpu.memory_space<vmem>>, vector<1x1x2x16xf32>,
    %49 = tpu.concatenate %18, %22, %26, %30 in 1 : vector<8x16xf32>, vector<8x16xf32>, vector<8x16xf32>, vector<8x16xf32> -> vector<8x64xf32>
    %50 = arith.truncf %49 : vector<8x64xf32> to vector<8x64xbf16>
    %c0_29 = arith.constant 0 : index
    %c0_30 = arith.constant 0 : index
    %c0_31 = arith.constant 0 : index
    %c0_32 = arith.constant 0 : index
    %51 = vector.load %arg6[%c0_29, %c0_30, %c0_31, %c0_32] : memref<1x1x8x64xbf16, #tpu.memory_space<vmem>>, vector<1x1x8x64xbf16>
    %52 = vector.shape_cast %51 : vector<1x1x8x64xbf16> to vector<8x64xbf16>
    %53 = vector.shape_cast %50 : vector<8x64xbf16> to vector<1x1x8x64xbf16>
    tpu.vector_store %arg6[%c0_29, %c0_30, %c0_31, %c0_32], %53 {strides = array<i32>} : memref<1x1x8x64xbf16, #tpu.memory_space<vmem>>, vector<1x1x8x64xbf16>,
    return
  }
  func.func @transform_0(%arg0: i32, %arg1: i32) -> (i32, i32, i32, i32) {
    %c0_i32 = arith.constant 0 : i32
    %c0_i32_0 = arith.constant 0 : i32
    %c0_i32_1 = arith.constant 0 : i32
    return %arg0, %arg1, %c0_i32, %c0_i32_0 : i32, i32, i32, i32
  }
  func.func @transform_1(%arg0: i32, %arg1: i32) -> (i32, i32, i32, i32) {
    %c1_i32 = arith.constant 1 : i32
    %0 = arith.addi %arg1, %c1_i32 : i32
    %c0_i32 = arith.constant 0 : i32
    %c0_i32_0 = arith.constant 0 : i32
    %c0_i32_1 = arith.constant 0 : i32
    return %arg0, %0, %c0_i32, %c0_i32_0 : i32, i32, i32, i32
  }
  func.func @transform_2(%arg0: i32, %arg1: i32) -> (i32, i32, i32, i32) {
    %c2_i32 = arith.constant 2 : i32
    %0 = arith.addi %arg1, %c2_i32 : i32
    %c0_i32 = arith.constant 0 : i32
    %c0_i32_0 = arith.constant 0 : i32
    %c0_i32_1 = arith.constant 0 : i32
    return %arg0, %0, %c0_i32, %c0_i32_0 : i32, i32, i32, i32
  }
  func.func @transform_3(%arg0: i32, %arg1: i32) -> (i32, i32, i32) {
    %c0_i32 = arith.constant 0 : i32
    %c0_i32_0 = arith.constant 0 : i32
    %c0_i32_1 = arith.constant 0 : i32
    %c0_i32_2 = arith.constant 0 : i32
    return %c0_i32, %c0_i32_0, %c0_i32_1 : i32, i32, i32
  }
  func.func @transform_4(%arg0: i32, %arg1: i32) -> (i32, i32, i32, i32) {
    %c0_i32 = arith.constant 0 : i32
    %c0_i32_0 = arith.constant 0 : i32
    %c0_i32_1 = arith.constant 0 : i32
    return %arg0, %arg1, %c0_i32, %c0_i32_0 : i32, i32, i32, i32
  }
  func.func @transform_5(%arg0: i32, %arg1: i32) -> (i32, i32, i32, i32) {
    %c0_i32 = arith.constant 0 : i32
    %c0_i32_0 = arith.constant 0 : i32
    %c0_i32_1 = arith.constant 0 : i32
    return %arg0, %arg1, %c0_i32, %c0_i32_0 : i32, i32, i32, i32
  }
}

module attributes {stable_mosaic.version = 11 : i64} {
  func.func @_bn_act_kernel(%arg0: i32, %arg1: memref<16x512xbf16, #tpu.memory_space<vmem>>, %arg2: memref<1x512xf32, #tpu.memory_space<vmem>>, %arg3: memref<1x512xf32, #tpu.memory_space<vmem>>, %arg4: memref<16x512xbf16, #tpu.memory_space<vmem>>) attributes {dimension_semantics = [#tpu.dimension_semantics<parallel>], iteration_bounds = array<i64: 1>, scalar_prefetch = 0 : i64, scratch_operands = 0 : i64, tpu.core_type = #tpu.core_type<tc>, window_params = [{transform_indices = @transform_0, window_bounds = array<i64: 16, 512>}, {pipeline_mode = #tpu.pipeline_mode<synchronous>, transform_indices = @transform_1, window_bounds = array<i64: 1, 512>}, {pipeline_mode = #tpu.pipeline_mode<synchronous>, transform_indices = @transform_2, window_bounds = array<i64: 1, 512>}, {transform_indices = @transform_3, window_bounds = array<i64: 16, 512>}]} {
    %c0 = arith.constant 0 : index
    %c0_0 = arith.constant 0 : index
    %0 = vector.load %arg1[%c0, %c0_0] : memref<16x512xbf16, #tpu.memory_space<vmem>>, vector<16x512xbf16>
    %1 = arith.extf %0 : vector<16x512xbf16> to vector<16x512xf32>
    %c0_1 = arith.constant 0 : index
    %c0_2 = arith.constant 0 : index
    %2 = vector.load %arg2[%c0_1, %c0_2] : memref<1x512xf32, #tpu.memory_space<vmem>>, vector<1x512xf32>
    %3 = vector.broadcast %2 : vector<1x512xf32> to vector<16x512xf32>
    %4 = arith.mulf %1, %3 : vector<16x512xf32>
    %c0_3 = arith.constant 0 : index
    %c0_4 = arith.constant 0 : index
    %5 = vector.load %arg3[%c0_3, %c0_4] : memref<1x512xf32, #tpu.memory_space<vmem>>, vector<1x512xf32>
    %6 = vector.broadcast %5 : vector<1x512xf32> to vector<16x512xf32>
    %7 = arith.addf %4, %6 : vector<16x512xf32>
    %cst = arith.constant 0.000000e+00 : f32
    %8 = vector.broadcast %cst : f32 to vector<16x512xf32>
    %9 = arith.maximumf %7, %8 : vector<16x512xf32>
    %10 = arith.truncf %9 : vector<16x512xf32> to vector<16x512xbf16>
    %c0_5 = arith.constant 0 : index
    %c0_6 = arith.constant 0 : index
    %11 = vector.load %arg4[%c0_5, %c0_6] : memref<16x512xbf16, #tpu.memory_space<vmem>>, vector<16x512xbf16>
    tpu.vector_store %arg4[%c0_5, %c0_6], %10 {strides = array<i32>} : memref<16x512xbf16, #tpu.memory_space<vmem>>, vector<16x512xbf16>,
    return
  }
  func.func @transform_0(%arg0: i32) -> (i32, i32) {
    %c0_i32 = arith.constant 0 : i32
    %c0_i32_0 = arith.constant 0 : i32
    return %arg0, %c0_i32 : i32, i32
  }
  func.func @transform_1(%arg0: i32) -> (i32, i32) {
    %c0_i32 = arith.constant 0 : i32
    %c0_i32_0 = arith.constant 0 : i32
    %c0_i32_1 = arith.constant 0 : i32
    return %c0_i32, %c0_i32_0 : i32, i32
  }
  func.func @transform_2(%arg0: i32) -> (i32, i32) {
    %c0_i32 = arith.constant 0 : i32
    %c0_i32_0 = arith.constant 0 : i32
    %c0_i32_1 = arith.constant 0 : i32
    return %c0_i32, %c0_i32_0 : i32, i32
  }
  func.func @transform_3(%arg0: i32) -> (i32, i32) {
    %c0_i32 = arith.constant 0 : i32
    %c0_i32_0 = arith.constant 0 : i32
    return %arg0, %c0_i32 : i32, i32
  }
}

module attributes {stable_mosaic.version = 11 : i64} {
  func.func @_deconv_s2_kernel(%arg0: i32, %arg1: i32, %arg2: memref<1x1x18x16xbf16, #tpu.memory_space<vmem>>, %arg3: memref<1x1x18x16xbf16, #tpu.memory_space<vmem>>, %arg4: memref<1x1x18x16xbf16, #tpu.memory_space<vmem>>, %arg5: memref<4x64x8xbf16, #tpu.memory_space<vmem>>, %arg6: memref<1x1x16x32xbf16, #tpu.memory_space<vmem>>, %arg7: memref<1x1x2x8xf32, #tpu.memory_space<vmem>>) attributes {dimension_semantics = [#tpu.dimension_semantics<parallel>, #tpu.dimension_semantics<parallel>], iteration_bounds = array<i64: 2, 16>, scalar_prefetch = 0 : i64, scratch_operands = 0 : i64, tpu.core_type = #tpu.core_type<tc>, window_params = [{transform_indices = @transform_0, window_bounds = array<i64: 1, 1, 18, 16>}, {transform_indices = @transform_1, window_bounds = array<i64: 1, 1, 18, 16>}, {transform_indices = @transform_2, window_bounds = array<i64: 1, 1, 18, 16>}, {pipeline_mode = #tpu.pipeline_mode<synchronous>, transform_indices = @transform_3, window_bounds = array<i64: 4, 64, 8>}, {transform_indices = @transform_4, window_bounds = array<i64: 1, 1, 16, 32>}, {transform_indices = @transform_5, window_bounds = array<i64: 1, 1, 2, 8>}]} {
    %c0 = arith.constant 0 : index
    %c0_0 = arith.constant 0 : index
    %c0_1 = arith.constant 0 : index
    %c0_2 = arith.constant 0 : index
    %0 = vector.load %arg2[%c0, %c0_0, %c0_1, %c0_2] : memref<1x1x18x16xbf16, #tpu.memory_space<vmem>>, vector<1x1x18x16xbf16>
    %1 = vector.shape_cast %0 : vector<1x1x18x16xbf16> to vector<18x16xbf16>
    %c0_3 = arith.constant 0 : index
    %c0_4 = arith.constant 0 : index
    %c0_5 = arith.constant 0 : index
    %c0_6 = arith.constant 0 : index
    %2 = vector.load %arg3[%c0_3, %c0_4, %c0_5, %c0_6] : memref<1x1x18x16xbf16, #tpu.memory_space<vmem>>, vector<1x1x18x16xbf16>
    %3 = vector.shape_cast %2 : vector<1x1x18x16xbf16> to vector<18x16xbf16>
    %c0_7 = arith.constant 0 : index
    %c0_8 = arith.constant 0 : index
    %c0_9 = arith.constant 0 : index
    %c0_10 = arith.constant 0 : index
    %4 = vector.load %arg4[%c0_7, %c0_8, %c0_9, %c0_10] : memref<1x1x18x16xbf16, #tpu.memory_space<vmem>>, vector<1x1x18x16xbf16>
    %5 = vector.shape_cast %4 : vector<1x1x18x16xbf16> to vector<18x16xbf16>
    %6 = vector.extract_strided_slice %1 {offsets = [0, 0], sizes = [16, 16], strides = [1, 1]} : vector<18x16xbf16> to vector<16x16xbf16>
    %7 = vector.extract_strided_slice %1 {offsets = [1, 0], sizes = [16, 16], strides = [1, 1]} : vector<18x16xbf16> to vector<16x16xbf16>
    %8 = vector.extract_strided_slice %1 {offsets = [2, 0], sizes = [16, 16], strides = [1, 1]} : vector<18x16xbf16> to vector<16x16xbf16>
    %9 = vector.extract_strided_slice %3 {offsets = [0, 0], sizes = [16, 16], strides = [1, 1]} : vector<18x16xbf16> to vector<16x16xbf16>
    %10 = vector.extract_strided_slice %3 {offsets = [1, 0], sizes = [16, 16], strides = [1, 1]} : vector<18x16xbf16> to vector<16x16xbf16>
    %11 = vector.extract_strided_slice %3 {offsets = [2, 0], sizes = [16, 16], strides = [1, 1]} : vector<18x16xbf16> to vector<16x16xbf16>
    %12 = vector.extract_strided_slice %5 {offsets = [0, 0], sizes = [16, 16], strides = [1, 1]} : vector<18x16xbf16> to vector<16x16xbf16>
    %13 = vector.extract_strided_slice %5 {offsets = [1, 0], sizes = [16, 16], strides = [1, 1]} : vector<18x16xbf16> to vector<16x16xbf16>
    %14 = vector.extract_strided_slice %5 {offsets = [2, 0], sizes = [16, 16], strides = [1, 1]} : vector<18x16xbf16> to vector<16x16xbf16>
    %15 = tpu.concatenate %6, %7, %9, %10 in 1 : vector<16x16xbf16>, vector<16x16xbf16>, vector<16x16xbf16>, vector<16x16xbf16> -> vector<16x64xbf16>
    %c0_11 = arith.constant 0 : index
    %c0_12 = arith.constant 0 : index
    %c0_13 = arith.constant 0 : index
    %16 = vector.load %arg5[%c0_11, %c0_12, %c0_13] : memref<4x64x8xbf16, #tpu.memory_space<vmem>>, vector<1x64x8xbf16>
    %17 = vector.shape_cast %16 : vector<1x64x8xbf16> to vector<64x8xbf16>
    %cst = arith.constant dense<0.000000e+00> : vector<16x8xf32>
    %18 = tpu.matmul %15, %17, %cst {dimension_numbers = #tpu.dot_dimension_numbers<[1], [0], [0], [1], [0, 0, 1, 1], [], []>} : vector<16x64xbf16>, vector<64x8xbf16>, vector<16x8xf32> -> vector<16x8xf32>
    %19 = tpu.concatenate %7, %8, %10, %11 in 1 : vector<16x16xbf16>, vector<16x16xbf16>, vector<16x16xbf16>, vector<16x16xbf16> -> vector<16x64xbf16>
    %c1 = arith.constant 1 : index
    %c0_14 = arith.constant 0 : index
    %c0_15 = arith.constant 0 : index
    %20 = vector.load %arg5[%c1, %c0_14, %c0_15] : memref<4x64x8xbf16, #tpu.memory_space<vmem>>, vector<1x64x8xbf16>
    %21 = vector.shape_cast %20 : vector<1x64x8xbf16> to vector<64x8xbf16>
    %cst_16 = arith.constant dense<0.000000e+00> : vector<16x8xf32>
    %22 = tpu.matmul %19, %21, %cst_16 {dimension_numbers = #tpu.dot_dimension_numbers<[1], [0], [0], [1], [0, 0, 1, 1], [], []>} : vector<16x64xbf16>, vector<64x8xbf16>, vector<16x8xf32> -> vector<16x8xf32>
    %23 = tpu.concatenate %9, %10, %12, %13 in 1 : vector<16x16xbf16>, vector<16x16xbf16>, vector<16x16xbf16>, vector<16x16xbf16> -> vector<16x64xbf16>
    %c2 = arith.constant 2 : index
    %c0_17 = arith.constant 0 : index
    %c0_18 = arith.constant 0 : index
    %24 = vector.load %arg5[%c2, %c0_17, %c0_18] : memref<4x64x8xbf16, #tpu.memory_space<vmem>>, vector<1x64x8xbf16>
    %25 = vector.shape_cast %24 : vector<1x64x8xbf16> to vector<64x8xbf16>
    %cst_19 = arith.constant dense<0.000000e+00> : vector<16x8xf32>
    %26 = tpu.matmul %23, %25, %cst_19 {dimension_numbers = #tpu.dot_dimension_numbers<[1], [0], [0], [1], [0, 0, 1, 1], [], []>} : vector<16x64xbf16>, vector<64x8xbf16>, vector<16x8xf32> -> vector<16x8xf32>
    %27 = tpu.concatenate %10, %11, %13, %14 in 1 : vector<16x16xbf16>, vector<16x16xbf16>, vector<16x16xbf16>, vector<16x16xbf16> -> vector<16x64xbf16>
    %c3 = arith.constant 3 : index
    %c0_20 = arith.constant 0 : index
    %c0_21 = arith.constant 0 : index
    %28 = vector.load %arg5[%c3, %c0_20, %c0_21] : memref<4x64x8xbf16, #tpu.memory_space<vmem>>, vector<1x64x8xbf16>
    %29 = vector.shape_cast %28 : vector<1x64x8xbf16> to vector<64x8xbf16>
    %cst_22 = arith.constant dense<0.000000e+00> : vector<16x8xf32>
    %30 = tpu.matmul %27, %29, %cst_22 {dimension_numbers = #tpu.dot_dimension_numbers<[1], [0], [0], [1], [0, 0, 1, 1], [], []>} : vector<16x64xbf16>, vector<64x8xbf16>, vector<16x8xf32> -> vector<16x8xf32>
    %31 = arith.addf %18, %22 : vector<16x8xf32>
    %32 = arith.addf %31, %26 : vector<16x8xf32>
    %33 = arith.addf %32, %30 : vector<16x8xf32>
    %34 = arith.mulf %18, %18 : vector<16x8xf32>
    %35 = arith.mulf %22, %22 : vector<16x8xf32>
    %36 = arith.addf %34, %35 : vector<16x8xf32>
    %37 = arith.mulf %26, %26 : vector<16x8xf32>
    %38 = arith.addf %36, %37 : vector<16x8xf32>
    %39 = arith.mulf %30, %30 : vector<16x8xf32>
    %40 = arith.addf %38, %39 : vector<16x8xf32>
    %cst_23 = arith.constant dense<0.000000e+00> : vector<8xf32>
    %41 = vector.multi_reduction <add>, %33, %cst_23 [0] : vector<16x8xf32> to vector<8xf32>
    %42 = vector.shape_cast %41 : vector<8xf32> to vector<1x8xf32>
    %cst_24 = arith.constant dense<0.000000e+00> : vector<8xf32>
    %43 = vector.multi_reduction <add>, %40, %cst_24 [0] : vector<16x8xf32> to vector<8xf32>
    %44 = vector.shape_cast %43 : vector<8xf32> to vector<1x8xf32>
    %45 = tpu.concatenate %42, %44 in 0 : vector<1x8xf32>, vector<1x8xf32> -> vector<2x8xf32>
    %c0_25 = arith.constant 0 : index
    %c0_26 = arith.constant 0 : index
    %c0_27 = arith.constant 0 : index
    %c0_28 = arith.constant 0 : index
    %46 = vector.load %arg7[%c0_25, %c0_26, %c0_27, %c0_28] : memref<1x1x2x8xf32, #tpu.memory_space<vmem>>, vector<1x1x2x8xf32>
    %47 = vector.shape_cast %46 : vector<1x1x2x8xf32> to vector<2x8xf32>
    %48 = vector.shape_cast %45 : vector<2x8xf32> to vector<1x1x2x8xf32>
    tpu.vector_store %arg7[%c0_25, %c0_26, %c0_27, %c0_28], %48 {strides = array<i32>} : memref<1x1x2x8xf32, #tpu.memory_space<vmem>>, vector<1x1x2x8xf32>,
    %49 = tpu.concatenate %18, %22, %26, %30 in 1 : vector<16x8xf32>, vector<16x8xf32>, vector<16x8xf32>, vector<16x8xf32> -> vector<16x32xf32>
    %50 = arith.truncf %49 : vector<16x32xf32> to vector<16x32xbf16>
    %c0_29 = arith.constant 0 : index
    %c0_30 = arith.constant 0 : index
    %c0_31 = arith.constant 0 : index
    %c0_32 = arith.constant 0 : index
    %51 = vector.load %arg6[%c0_29, %c0_30, %c0_31, %c0_32] : memref<1x1x16x32xbf16, #tpu.memory_space<vmem>>, vector<1x1x16x32xbf16>
    %52 = vector.shape_cast %51 : vector<1x1x16x32xbf16> to vector<16x32xbf16>
    %53 = vector.shape_cast %50 : vector<16x32xbf16> to vector<1x1x16x32xbf16>
    tpu.vector_store %arg6[%c0_29, %c0_30, %c0_31, %c0_32], %53 {strides = array<i32>} : memref<1x1x16x32xbf16, #tpu.memory_space<vmem>>, vector<1x1x16x32xbf16>,
    return
  }
  func.func @transform_0(%arg0: i32, %arg1: i32) -> (i32, i32, i32, i32) {
    %c0_i32 = arith.constant 0 : i32
    %c0_i32_0 = arith.constant 0 : i32
    %c0_i32_1 = arith.constant 0 : i32
    return %arg0, %arg1, %c0_i32, %c0_i32_0 : i32, i32, i32, i32
  }
  func.func @transform_1(%arg0: i32, %arg1: i32) -> (i32, i32, i32, i32) {
    %c1_i32 = arith.constant 1 : i32
    %0 = arith.addi %arg1, %c1_i32 : i32
    %c0_i32 = arith.constant 0 : i32
    %c0_i32_0 = arith.constant 0 : i32
    %c0_i32_1 = arith.constant 0 : i32
    return %arg0, %0, %c0_i32, %c0_i32_0 : i32, i32, i32, i32
  }
  func.func @transform_2(%arg0: i32, %arg1: i32) -> (i32, i32, i32, i32) {
    %c2_i32 = arith.constant 2 : i32
    %0 = arith.addi %arg1, %c2_i32 : i32
    %c0_i32 = arith.constant 0 : i32
    %c0_i32_0 = arith.constant 0 : i32
    %c0_i32_1 = arith.constant 0 : i32
    return %arg0, %0, %c0_i32, %c0_i32_0 : i32, i32, i32, i32
  }
  func.func @transform_3(%arg0: i32, %arg1: i32) -> (i32, i32, i32) {
    %c0_i32 = arith.constant 0 : i32
    %c0_i32_0 = arith.constant 0 : i32
    %c0_i32_1 = arith.constant 0 : i32
    %c0_i32_2 = arith.constant 0 : i32
    return %c0_i32, %c0_i32_0, %c0_i32_1 : i32, i32, i32
  }
  func.func @transform_4(%arg0: i32, %arg1: i32) -> (i32, i32, i32, i32) {
    %c0_i32 = arith.constant 0 : i32
    %c0_i32_0 = arith.constant 0 : i32
    %c0_i32_1 = arith.constant 0 : i32
    return %arg0, %arg1, %c0_i32, %c0_i32_0 : i32, i32, i32, i32
  }
  func.func @transform_5(%arg0: i32, %arg1: i32) -> (i32, i32, i32, i32) {
    %c0_i32 = arith.constant 0 : i32
    %c0_i32_0 = arith.constant 0 : i32
    %c0_i32_1 = arith.constant 0 : i32
    return %arg0, %arg1, %c0_i32, %c0_i32_0 : i32, i32, i32, i32
  }
}

module attributes {stable_mosaic.version = 11 : i64} {
  func.func @_bn_act_kernel(%arg0: i32, %arg1: memref<32x512xbf16, #tpu.memory_space<vmem>>, %arg2: memref<1x512xf32, #tpu.memory_space<vmem>>, %arg3: memref<1x512xf32, #tpu.memory_space<vmem>>, %arg4: memref<32x512xbf16, #tpu.memory_space<vmem>>) attributes {dimension_semantics = [#tpu.dimension_semantics<parallel>], iteration_bounds = array<i64: 1>, scalar_prefetch = 0 : i64, scratch_operands = 0 : i64, tpu.core_type = #tpu.core_type<tc>, window_params = [{transform_indices = @transform_0, window_bounds = array<i64: 32, 512>}, {pipeline_mode = #tpu.pipeline_mode<synchronous>, transform_indices = @transform_1, window_bounds = array<i64: 1, 512>}, {pipeline_mode = #tpu.pipeline_mode<synchronous>, transform_indices = @transform_2, window_bounds = array<i64: 1, 512>}, {transform_indices = @transform_3, window_bounds = array<i64: 32, 512>}]} {
    %c0 = arith.constant 0 : index
    %c0_0 = arith.constant 0 : index
    %0 = vector.load %arg1[%c0, %c0_0] : memref<32x512xbf16, #tpu.memory_space<vmem>>, vector<32x512xbf16>
    %1 = arith.extf %0 : vector<32x512xbf16> to vector<32x512xf32>
    %c0_1 = arith.constant 0 : index
    %c0_2 = arith.constant 0 : index
    %2 = vector.load %arg2[%c0_1, %c0_2] : memref<1x512xf32, #tpu.memory_space<vmem>>, vector<1x512xf32>
    %3 = vector.broadcast %2 : vector<1x512xf32> to vector<32x512xf32>
    %4 = arith.mulf %1, %3 : vector<32x512xf32>
    %c0_3 = arith.constant 0 : index
    %c0_4 = arith.constant 0 : index
    %5 = vector.load %arg3[%c0_3, %c0_4] : memref<1x512xf32, #tpu.memory_space<vmem>>, vector<1x512xf32>
    %6 = vector.broadcast %5 : vector<1x512xf32> to vector<32x512xf32>
    %7 = arith.addf %4, %6 : vector<32x512xf32>
    %cst = arith.constant 0.000000e+00 : f32
    %8 = vector.broadcast %cst : f32 to vector<32x512xf32>
    %9 = arith.maximumf %7, %8 : vector<32x512xf32>
    %10 = arith.truncf %9 : vector<32x512xf32> to vector<32x512xbf16>
    %c0_5 = arith.constant 0 : index
    %c0_6 = arith.constant 0 : index
    %11 = vector.load %arg4[%c0_5, %c0_6] : memref<32x512xbf16, #tpu.memory_space<vmem>>, vector<32x512xbf16>
    tpu.vector_store %arg4[%c0_5, %c0_6], %10 {strides = array<i32>} : memref<32x512xbf16, #tpu.memory_space<vmem>>, vector<32x512xbf16>,
    return
  }
  func.func @transform_0(%arg0: i32) -> (i32, i32) {
    %c0_i32 = arith.constant 0 : i32
    %c0_i32_0 = arith.constant 0 : i32
    return %arg0, %c0_i32 : i32, i32
  }
  func.func @transform_1(%arg0: i32) -> (i32, i32) {
    %c0_i32 = arith.constant 0 : i32
    %c0_i32_0 = arith.constant 0 : i32
    %c0_i32_1 = arith.constant 0 : i32
    return %c0_i32, %c0_i32_0 : i32, i32
  }
  func.func @transform_2(%arg0: i32) -> (i32, i32) {
    %c0_i32 = arith.constant 0 : i32
    %c0_i32_0 = arith.constant 0 : i32
    %c0_i32_1 = arith.constant 0 : i32
    return %c0_i32, %c0_i32_0 : i32, i32
  }
  func.func @transform_3(%arg0: i32) -> (i32, i32) {
    %c0_i32 = arith.constant 0 : i32
    %c0_i32_0 = arith.constant 0 : i32
    return %arg0, %c0_i32 : i32, i32
  }
}

module attributes {stable_mosaic.version = 11 : i64} {
  func.func @_deconv_s2_kernel(%arg0: i32, %arg1: i32, %arg2: memref<1x1x34x8xbf16, #tpu.memory_space<vmem>>, %arg3: memref<1x1x34x8xbf16, #tpu.memory_space<vmem>>, %arg4: memref<1x1x34x8xbf16, #tpu.memory_space<vmem>>, %arg5: memref<4x32x4xbf16, #tpu.memory_space<vmem>>, %arg6: memref<1x1x32x16xbf16, #tpu.memory_space<vmem>>, %arg7: memref<1x1x2x4xf32, #tpu.memory_space<vmem>>) attributes {dimension_semantics = [#tpu.dimension_semantics<parallel>, #tpu.dimension_semantics<parallel>], iteration_bounds = array<i64: 2, 32>, scalar_prefetch = 0 : i64, scratch_operands = 0 : i64, tpu.core_type = #tpu.core_type<tc>, window_params = [{transform_indices = @transform_0, window_bounds = array<i64: 1, 1, 34, 8>}, {transform_indices = @transform_1, window_bounds = array<i64: 1, 1, 34, 8>}, {transform_indices = @transform_2, window_bounds = array<i64: 1, 1, 34, 8>}, {pipeline_mode = #tpu.pipeline_mode<synchronous>, transform_indices = @transform_3, window_bounds = array<i64: 4, 32, 4>}, {transform_indices = @transform_4, window_bounds = array<i64: 1, 1, 32, 16>}, {transform_indices = @transform_5, window_bounds = array<i64: 1, 1, 2, 4>}]} {
    %c0 = arith.constant 0 : index
    %c0_0 = arith.constant 0 : index
    %c0_1 = arith.constant 0 : index
    %c0_2 = arith.constant 0 : index
    %0 = vector.load %arg2[%c0, %c0_0, %c0_1, %c0_2] : memref<1x1x34x8xbf16, #tpu.memory_space<vmem>>, vector<1x1x34x8xbf16>
    %1 = vector.shape_cast %0 : vector<1x1x34x8xbf16> to vector<34x8xbf16>
    %c0_3 = arith.constant 0 : index
    %c0_4 = arith.constant 0 : index
    %c0_5 = arith.constant 0 : index
    %c0_6 = arith.constant 0 : index
    %2 = vector.load %arg3[%c0_3, %c0_4, %c0_5, %c0_6] : memref<1x1x34x8xbf16, #tpu.memory_space<vmem>>, vector<1x1x34x8xbf16>
    %3 = vector.shape_cast %2 : vector<1x1x34x8xbf16> to vector<34x8xbf16>
    %c0_7 = arith.constant 0 : index
    %c0_8 = arith.constant 0 : index
    %c0_9 = arith.constant 0 : index
    %c0_10 = arith.constant 0 : index
    %4 = vector.load %arg4[%c0_7, %c0_8, %c0_9, %c0_10] : memref<1x1x34x8xbf16, #tpu.memory_space<vmem>>, vector<1x1x34x8xbf16>
    %5 = vector.shape_cast %4 : vector<1x1x34x8xbf16> to vector<34x8xbf16>
    %6 = vector.extract_strided_slice %1 {offsets = [0, 0], sizes = [32, 8], strides = [1, 1]} : vector<34x8xbf16> to vector<32x8xbf16>
    %7 = vector.extract_strided_slice %1 {offsets = [1, 0], sizes = [32, 8], strides = [1, 1]} : vector<34x8xbf16> to vector<32x8xbf16>
    %8 = vector.extract_strided_slice %1 {offsets = [2, 0], sizes = [32, 8], strides = [1, 1]} : vector<34x8xbf16> to vector<32x8xbf16>
    %9 = vector.extract_strided_slice %3 {offsets = [0, 0], sizes = [32, 8], strides = [1, 1]} : vector<34x8xbf16> to vector<32x8xbf16>
    %10 = vector.extract_strided_slice %3 {offsets = [1, 0], sizes = [32, 8], strides = [1, 1]} : vector<34x8xbf16> to vector<32x8xbf16>
    %11 = vector.extract_strided_slice %3 {offsets = [2, 0], sizes = [32, 8], strides = [1, 1]} : vector<34x8xbf16> to vector<32x8xbf16>
    %12 = vector.extract_strided_slice %5 {offsets = [0, 0], sizes = [32, 8], strides = [1, 1]} : vector<34x8xbf16> to vector<32x8xbf16>
    %13 = vector.extract_strided_slice %5 {offsets = [1, 0], sizes = [32, 8], strides = [1, 1]} : vector<34x8xbf16> to vector<32x8xbf16>
    %14 = vector.extract_strided_slice %5 {offsets = [2, 0], sizes = [32, 8], strides = [1, 1]} : vector<34x8xbf16> to vector<32x8xbf16>
    %15 = tpu.concatenate %6, %7, %9, %10 in 1 : vector<32x8xbf16>, vector<32x8xbf16>, vector<32x8xbf16>, vector<32x8xbf16> -> vector<32x32xbf16>
    %c0_11 = arith.constant 0 : index
    %c0_12 = arith.constant 0 : index
    %c0_13 = arith.constant 0 : index
    %16 = vector.load %arg5[%c0_11, %c0_12, %c0_13] : memref<4x32x4xbf16, #tpu.memory_space<vmem>>, vector<1x32x4xbf16>
    %17 = vector.shape_cast %16 : vector<1x32x4xbf16> to vector<32x4xbf16>
    %cst = arith.constant dense<0.000000e+00> : vector<32x4xf32>
    %18 = tpu.matmul %15, %17, %cst {dimension_numbers = #tpu.dot_dimension_numbers<[1], [0], [0], [1], [0, 0, 1, 1], [], []>} : vector<32x32xbf16>, vector<32x4xbf16>, vector<32x4xf32> -> vector<32x4xf32>
    %19 = tpu.concatenate %7, %8, %10, %11 in 1 : vector<32x8xbf16>, vector<32x8xbf16>, vector<32x8xbf16>, vector<32x8xbf16> -> vector<32x32xbf16>
    %c1 = arith.constant 1 : index
    %c0_14 = arith.constant 0 : index
    %c0_15 = arith.constant 0 : index
    %20 = vector.load %arg5[%c1, %c0_14, %c0_15] : memref<4x32x4xbf16, #tpu.memory_space<vmem>>, vector<1x32x4xbf16>
    %21 = vector.shape_cast %20 : vector<1x32x4xbf16> to vector<32x4xbf16>
    %cst_16 = arith.constant dense<0.000000e+00> : vector<32x4xf32>
    %22 = tpu.matmul %19, %21, %cst_16 {dimension_numbers = #tpu.dot_dimension_numbers<[1], [0], [0], [1], [0, 0, 1, 1], [], []>} : vector<32x32xbf16>, vector<32x4xbf16>, vector<32x4xf32> -> vector<32x4xf32>
    %23 = tpu.concatenate %9, %10, %12, %13 in 1 : vector<32x8xbf16>, vector<32x8xbf16>, vector<32x8xbf16>, vector<32x8xbf16> -> vector<32x32xbf16>
    %c2 = arith.constant 2 : index
    %c0_17 = arith.constant 0 : index
    %c0_18 = arith.constant 0 : index
    %24 = vector.load %arg5[%c2, %c0_17, %c0_18] : memref<4x32x4xbf16, #tpu.memory_space<vmem>>, vector<1x32x4xbf16>
    %25 = vector.shape_cast %24 : vector<1x32x4xbf16> to vector<32x4xbf16>
    %cst_19 = arith.constant dense<0.000000e+00> : vector<32x4xf32>
    %26 = tpu.matmul %23, %25, %cst_19 {dimension_numbers = #tpu.dot_dimension_numbers<[1], [0], [0], [1], [0, 0, 1, 1], [], []>} : vector<32x32xbf16>, vector<32x4xbf16>, vector<32x4xf32> -> vector<32x4xf32>
    %27 = tpu.concatenate %10, %11, %13, %14 in 1 : vector<32x8xbf16>, vector<32x8xbf16>, vector<32x8xbf16>, vector<32x8xbf16> -> vector<32x32xbf16>
    %c3 = arith.constant 3 : index
    %c0_20 = arith.constant 0 : index
    %c0_21 = arith.constant 0 : index
    %28 = vector.load %arg5[%c3, %c0_20, %c0_21] : memref<4x32x4xbf16, #tpu.memory_space<vmem>>, vector<1x32x4xbf16>
    %29 = vector.shape_cast %28 : vector<1x32x4xbf16> to vector<32x4xbf16>
    %cst_22 = arith.constant dense<0.000000e+00> : vector<32x4xf32>
    %30 = tpu.matmul %27, %29, %cst_22 {dimension_numbers = #tpu.dot_dimension_numbers<[1], [0], [0], [1], [0, 0, 1, 1], [], []>} : vector<32x32xbf16>, vector<32x4xbf16>, vector<32x4xf32> -> vector<32x4xf32>
    %31 = arith.addf %18, %22 : vector<32x4xf32>
    %32 = arith.addf %31, %26 : vector<32x4xf32>
    %33 = arith.addf %32, %30 : vector<32x4xf32>
    %34 = arith.mulf %18, %18 : vector<32x4xf32>
    %35 = arith.mulf %22, %22 : vector<32x4xf32>
    %36 = arith.addf %34, %35 : vector<32x4xf32>
    %37 = arith.mulf %26, %26 : vector<32x4xf32>
    %38 = arith.addf %36, %37 : vector<32x4xf32>
    %39 = arith.mulf %30, %30 : vector<32x4xf32>
    %40 = arith.addf %38, %39 : vector<32x4xf32>
    %cst_23 = arith.constant dense<0.000000e+00> : vector<4xf32>
    %41 = vector.multi_reduction <add>, %33, %cst_23 [0] : vector<32x4xf32> to vector<4xf32>
    %42 = vector.shape_cast %41 : vector<4xf32> to vector<1x4xf32>
    %cst_24 = arith.constant dense<0.000000e+00> : vector<4xf32>
    %43 = vector.multi_reduction <add>, %40, %cst_24 [0] : vector<32x4xf32> to vector<4xf32>
    %44 = vector.shape_cast %43 : vector<4xf32> to vector<1x4xf32>
    %45 = tpu.concatenate %42, %44 in 0 : vector<1x4xf32>, vector<1x4xf32> -> vector<2x4xf32>
    %c0_25 = arith.constant 0 : index
    %c0_26 = arith.constant 0 : index
    %c0_27 = arith.constant 0 : index
    %c0_28 = arith.constant 0 : index
    %46 = vector.load %arg7[%c0_25, %c0_26, %c0_27, %c0_28] : memref<1x1x2x4xf32, #tpu.memory_space<vmem>>, vector<1x1x2x4xf32>
    %47 = vector.shape_cast %46 : vector<1x1x2x4xf32> to vector<2x4xf32>
    %48 = vector.shape_cast %45 : vector<2x4xf32> to vector<1x1x2x4xf32>
    tpu.vector_store %arg7[%c0_25, %c0_26, %c0_27, %c0_28], %48 {strides = array<i32>} : memref<1x1x2x4xf32, #tpu.memory_space<vmem>>, vector<1x1x2x4xf32>,
    %49 = tpu.concatenate %18, %22, %26, %30 in 1 : vector<32x4xf32>, vector<32x4xf32>, vector<32x4xf32>, vector<32x4xf32> -> vector<32x16xf32>
    %50 = arith.truncf %49 : vector<32x16xf32> to vector<32x16xbf16>
    %c0_29 = arith.constant 0 : index
    %c0_30 = arith.constant 0 : index
    %c0_31 = arith.constant 0 : index
    %c0_32 = arith.constant 0 : index
    %51 = vector.load %arg6[%c0_29, %c0_30, %c0_31, %c0_32] : memref<1x1x32x16xbf16, #tpu.memory_space<vmem>>, vector<1x1x32x16xbf16>
    %52 = vector.shape_cast %51 : vector<1x1x32x16xbf16> to vector<32x16xbf16>
    %53 = vector.shape_cast %50 : vector<32x16xbf16> to vector<1x1x32x16xbf16>
    tpu.vector_store %arg6[%c0_29, %c0_30, %c0_31, %c0_32], %53 {strides = array<i32>} : memref<1x1x32x16xbf16, #tpu.memory_space<vmem>>, vector<1x1x32x16xbf16>,
    return
  }
  func.func @transform_0(%arg0: i32, %arg1: i32) -> (i32, i32, i32, i32) {
    %c0_i32 = arith.constant 0 : i32
    %c0_i32_0 = arith.constant 0 : i32
    %c0_i32_1 = arith.constant 0 : i32
    return %arg0, %arg1, %c0_i32, %c0_i32_0 : i32, i32, i32, i32
  }
  func.func @transform_1(%arg0: i32, %arg1: i32) -> (i32, i32, i32, i32) {
    %c1_i32 = arith.constant 1 : i32
    %0 = arith.addi %arg1, %c1_i32 : i32
    %c0_i32 = arith.constant 0 : i32
    %c0_i32_0 = arith.constant 0 : i32
    %c0_i32_1 = arith.constant 0 : i32
    return %arg0, %0, %c0_i32, %c0_i32_0 : i32, i32, i32, i32
  }
  func.func @transform_2(%arg0: i32, %arg1: i32) -> (i32, i32, i32, i32) {
    %c2_i32 = arith.constant 2 : i32
    %0 = arith.addi %arg1, %c2_i32 : i32
    %c0_i32 = arith.constant 0 : i32
    %c0_i32_0 = arith.constant 0 : i32
    %c0_i32_1 = arith.constant 0 : i32
    return %arg0, %0, %c0_i32, %c0_i32_0 : i32, i32, i32, i32
  }
  func.func @transform_3(%arg0: i32, %arg1: i32) -> (i32, i32, i32) {
    %c0_i32 = arith.constant 0 : i32
    %c0_i32_0 = arith.constant 0 : i32
    %c0_i32_1 = arith.constant 0 : i32
    %c0_i32_2 = arith.constant 0 : i32
    return %c0_i32, %c0_i32_0, %c0_i32_1 : i32, i32, i32
  }
  func.func @transform_4(%arg0: i32, %arg1: i32) -> (i32, i32, i32, i32) {
    %c0_i32 = arith.constant 0 : i32
    %c0_i32_0 = arith.constant 0 : i32
    %c0_i32_1 = arith.constant 0 : i32
    return %arg0, %arg1, %c0_i32, %c0_i32_0 : i32, i32, i32, i32
  }
  func.func @transform_5(%arg0: i32, %arg1: i32) -> (i32, i32, i32, i32) {
    %c0_i32 = arith.constant 0 : i32
    %c0_i32_0 = arith.constant 0 : i32
    %c0_i32_1 = arith.constant 0 : i32
    return %arg0, %arg1, %c0_i32, %c0_i32_0 : i32, i32, i32, i32
  }
}

module attributes {stable_mosaic.version = 11 : i64} {
  func.func @_bn_act_kernel(%arg0: i32, %arg1: memref<64x512xbf16, #tpu.memory_space<vmem>>, %arg2: memref<1x512xf32, #tpu.memory_space<vmem>>, %arg3: memref<1x512xf32, #tpu.memory_space<vmem>>, %arg4: memref<64x512xbf16, #tpu.memory_space<vmem>>) attributes {dimension_semantics = [#tpu.dimension_semantics<parallel>], iteration_bounds = array<i64: 1>, scalar_prefetch = 0 : i64, scratch_operands = 0 : i64, tpu.core_type = #tpu.core_type<tc>, window_params = [{transform_indices = @transform_0, window_bounds = array<i64: 64, 512>}, {pipeline_mode = #tpu.pipeline_mode<synchronous>, transform_indices = @transform_1, window_bounds = array<i64: 1, 512>}, {pipeline_mode = #tpu.pipeline_mode<synchronous>, transform_indices = @transform_2, window_bounds = array<i64: 1, 512>}, {transform_indices = @transform_3, window_bounds = array<i64: 64, 512>}]} {
    %c0 = arith.constant 0 : index
    %c0_0 = arith.constant 0 : index
    %0 = vector.load %arg1[%c0, %c0_0] : memref<64x512xbf16, #tpu.memory_space<vmem>>, vector<64x512xbf16>
    %1 = arith.extf %0 : vector<64x512xbf16> to vector<64x512xf32>
    %c0_1 = arith.constant 0 : index
    %c0_2 = arith.constant 0 : index
    %2 = vector.load %arg2[%c0_1, %c0_2] : memref<1x512xf32, #tpu.memory_space<vmem>>, vector<1x512xf32>
    %3 = vector.broadcast %2 : vector<1x512xf32> to vector<64x512xf32>
    %4 = arith.mulf %1, %3 : vector<64x512xf32>
    %c0_3 = arith.constant 0 : index
    %c0_4 = arith.constant 0 : index
    %5 = vector.load %arg3[%c0_3, %c0_4] : memref<1x512xf32, #tpu.memory_space<vmem>>, vector<1x512xf32>
    %6 = vector.broadcast %5 : vector<1x512xf32> to vector<64x512xf32>
    %7 = arith.addf %4, %6 : vector<64x512xf32>
    %cst = arith.constant 0.000000e+00 : f32
    %8 = vector.broadcast %cst : f32 to vector<64x512xf32>
    %9 = arith.maximumf %7, %8 : vector<64x512xf32>
    %10 = arith.truncf %9 : vector<64x512xf32> to vector<64x512xbf16>
    %c0_5 = arith.constant 0 : index
    %c0_6 = arith.constant 0 : index
    %11 = vector.load %arg4[%c0_5, %c0_6] : memref<64x512xbf16, #tpu.memory_space<vmem>>, vector<64x512xbf16>
    tpu.vector_store %arg4[%c0_5, %c0_6], %10 {strides = array<i32>} : memref<64x512xbf16, #tpu.memory_space<vmem>>, vector<64x512xbf16>,
    return
  }
  func.func @transform_0(%arg0: i32) -> (i32, i32) {
    %c0_i32 = arith.constant 0 : i32
    %c0_i32_0 = arith.constant 0 : i32
    return %arg0, %c0_i32 : i32, i32
  }
  func.func @transform_1(%arg0: i32) -> (i32, i32) {
    %c0_i32 = arith.constant 0 : i32
    %c0_i32_0 = arith.constant 0 : i32
    %c0_i32_1 = arith.constant 0 : i32
    return %c0_i32, %c0_i32_0 : i32, i32
  }
  func.func @transform_2(%arg0: i32) -> (i32, i32) {
    %c0_i32 = arith.constant 0 : i32
    %c0_i32_0 = arith.constant 0 : i32
    %c0_i32_1 = arith.constant 0 : i32
    return %c0_i32, %c0_i32_0 : i32, i32
  }
  func.func @transform_3(%arg0: i32) -> (i32, i32) {
    %c0_i32 = arith.constant 0 : i32
    %c0_i32_0 = arith.constant 0 : i32
    return %arg0, %c0_i32 : i32, i32
  }
}

module attributes {stable_mosaic.version = 11 : i64} {
  func.func @_deconv_s2_kernel(%arg0: i32, %arg1: i32, %arg2: memref<1x1x66x4xbf16, #tpu.memory_space<vmem>>, %arg3: memref<1x1x66x4xbf16, #tpu.memory_space<vmem>>, %arg4: memref<1x1x66x4xbf16, #tpu.memory_space<vmem>>, %arg5: memref<4x16x3xbf16, #tpu.memory_space<vmem>>, %arg6: memref<1x1x64x12xbf16, #tpu.memory_space<vmem>>) attributes {dimension_semantics = [#tpu.dimension_semantics<parallel>, #tpu.dimension_semantics<parallel>], iteration_bounds = array<i64: 2, 64>, scalar_prefetch = 0 : i64, scratch_operands = 0 : i64, tpu.core_type = #tpu.core_type<tc>, window_params = [{transform_indices = @transform_0, window_bounds = array<i64: 1, 1, 66, 4>}, {transform_indices = @transform_1, window_bounds = array<i64: 1, 1, 66, 4>}, {transform_indices = @transform_2, window_bounds = array<i64: 1, 1, 66, 4>}, {pipeline_mode = #tpu.pipeline_mode<synchronous>, transform_indices = @transform_3, window_bounds = array<i64: 4, 16, 3>}, {transform_indices = @transform_4, window_bounds = array<i64: 1, 1, 64, 12>}]} {
    %c0 = arith.constant 0 : index
    %c0_0 = arith.constant 0 : index
    %c0_1 = arith.constant 0 : index
    %c0_2 = arith.constant 0 : index
    %0 = vector.load %arg2[%c0, %c0_0, %c0_1, %c0_2] : memref<1x1x66x4xbf16, #tpu.memory_space<vmem>>, vector<1x1x66x4xbf16>
    %1 = vector.shape_cast %0 : vector<1x1x66x4xbf16> to vector<66x4xbf16>
    %c0_3 = arith.constant 0 : index
    %c0_4 = arith.constant 0 : index
    %c0_5 = arith.constant 0 : index
    %c0_6 = arith.constant 0 : index
    %2 = vector.load %arg3[%c0_3, %c0_4, %c0_5, %c0_6] : memref<1x1x66x4xbf16, #tpu.memory_space<vmem>>, vector<1x1x66x4xbf16>
    %3 = vector.shape_cast %2 : vector<1x1x66x4xbf16> to vector<66x4xbf16>
    %c0_7 = arith.constant 0 : index
    %c0_8 = arith.constant 0 : index
    %c0_9 = arith.constant 0 : index
    %c0_10 = arith.constant 0 : index
    %4 = vector.load %arg4[%c0_7, %c0_8, %c0_9, %c0_10] : memref<1x1x66x4xbf16, #tpu.memory_space<vmem>>, vector<1x1x66x4xbf16>
    %5 = vector.shape_cast %4 : vector<1x1x66x4xbf16> to vector<66x4xbf16>
    %6 = vector.extract_strided_slice %1 {offsets = [0, 0], sizes = [64, 4], strides = [1, 1]} : vector<66x4xbf16> to vector<64x4xbf16>
    %7 = vector.extract_strided_slice %1 {offsets = [1, 0], sizes = [64, 4], strides = [1, 1]} : vector<66x4xbf16> to vector<64x4xbf16>
    %8 = vector.extract_strided_slice %1 {offsets = [2, 0], sizes = [64, 4], strides = [1, 1]} : vector<66x4xbf16> to vector<64x4xbf16>
    %9 = vector.extract_strided_slice %3 {offsets = [0, 0], sizes = [64, 4], strides = [1, 1]} : vector<66x4xbf16> to vector<64x4xbf16>
    %10 = vector.extract_strided_slice %3 {offsets = [1, 0], sizes = [64, 4], strides = [1, 1]} : vector<66x4xbf16> to vector<64x4xbf16>
    %11 = vector.extract_strided_slice %3 {offsets = [2, 0], sizes = [64, 4], strides = [1, 1]} : vector<66x4xbf16> to vector<64x4xbf16>
    %12 = vector.extract_strided_slice %5 {offsets = [0, 0], sizes = [64, 4], strides = [1, 1]} : vector<66x4xbf16> to vector<64x4xbf16>
    %13 = vector.extract_strided_slice %5 {offsets = [1, 0], sizes = [64, 4], strides = [1, 1]} : vector<66x4xbf16> to vector<64x4xbf16>
    %14 = vector.extract_strided_slice %5 {offsets = [2, 0], sizes = [64, 4], strides = [1, 1]} : vector<66x4xbf16> to vector<64x4xbf16>
    %15 = tpu.concatenate %6, %7, %9, %10 in 1 : vector<64x4xbf16>, vector<64x4xbf16>, vector<64x4xbf16>, vector<64x4xbf16> -> vector<64x16xbf16>
    %c0_11 = arith.constant 0 : index
    %c0_12 = arith.constant 0 : index
    %c0_13 = arith.constant 0 : index
    %16 = vector.load %arg5[%c0_11, %c0_12, %c0_13] : memref<4x16x3xbf16, #tpu.memory_space<vmem>>, vector<1x16x3xbf16>
    %17 = vector.shape_cast %16 : vector<1x16x3xbf16> to vector<16x3xbf16>
    %cst = arith.constant dense<0.000000e+00> : vector<64x3xf32>
    %18 = tpu.matmul %15, %17, %cst {dimension_numbers = #tpu.dot_dimension_numbers<[1], [0], [0], [1], [0, 0, 1, 1], [], []>} : vector<64x16xbf16>, vector<16x3xbf16>, vector<64x3xf32> -> vector<64x3xf32>
    %19 = tpu.concatenate %7, %8, %10, %11 in 1 : vector<64x4xbf16>, vector<64x4xbf16>, vector<64x4xbf16>, vector<64x4xbf16> -> vector<64x16xbf16>
    %c1 = arith.constant 1 : index
    %c0_14 = arith.constant 0 : index
    %c0_15 = arith.constant 0 : index
    %20 = vector.load %arg5[%c1, %c0_14, %c0_15] : memref<4x16x3xbf16, #tpu.memory_space<vmem>>, vector<1x16x3xbf16>
    %21 = vector.shape_cast %20 : vector<1x16x3xbf16> to vector<16x3xbf16>
    %cst_16 = arith.constant dense<0.000000e+00> : vector<64x3xf32>
    %22 = tpu.matmul %19, %21, %cst_16 {dimension_numbers = #tpu.dot_dimension_numbers<[1], [0], [0], [1], [0, 0, 1, 1], [], []>} : vector<64x16xbf16>, vector<16x3xbf16>, vector<64x3xf32> -> vector<64x3xf32>
    %23 = tpu.concatenate %9, %10, %12, %13 in 1 : vector<64x4xbf16>, vector<64x4xbf16>, vector<64x4xbf16>, vector<64x4xbf16> -> vector<64x16xbf16>
    %c2 = arith.constant 2 : index
    %c0_17 = arith.constant 0 : index
    %c0_18 = arith.constant 0 : index
    %24 = vector.load %arg5[%c2, %c0_17, %c0_18] : memref<4x16x3xbf16, #tpu.memory_space<vmem>>, vector<1x16x3xbf16>
    %25 = vector.shape_cast %24 : vector<1x16x3xbf16> to vector<16x3xbf16>
    %cst_19 = arith.constant dense<0.000000e+00> : vector<64x3xf32>
    %26 = tpu.matmul %23, %25, %cst_19 {dimension_numbers = #tpu.dot_dimension_numbers<[1], [0], [0], [1], [0, 0, 1, 1], [], []>} : vector<64x16xbf16>, vector<16x3xbf16>, vector<64x3xf32> -> vector<64x3xf32>
    %27 = tpu.concatenate %10, %11, %13, %14 in 1 : vector<64x4xbf16>, vector<64x4xbf16>, vector<64x4xbf16>, vector<64x4xbf16> -> vector<64x16xbf16>
    %c3 = arith.constant 3 : index
    %c0_20 = arith.constant 0 : index
    %c0_21 = arith.constant 0 : index
    %28 = vector.load %arg5[%c3, %c0_20, %c0_21] : memref<4x16x3xbf16, #tpu.memory_space<vmem>>, vector<1x16x3xbf16>
    %29 = vector.shape_cast %28 : vector<1x16x3xbf16> to vector<16x3xbf16>
    %cst_22 = arith.constant dense<0.000000e+00> : vector<64x3xf32>
    %30 = tpu.matmul %27, %29, %cst_22 {dimension_numbers = #tpu.dot_dimension_numbers<[1], [0], [0], [1], [0, 0, 1, 1], [], []>} : vector<64x16xbf16>, vector<16x3xbf16>, vector<64x3xf32> -> vector<64x3xf32>
    %31 = tpu.concatenate %18, %22, %26, %30 in 1 : vector<64x3xf32>, vector<64x3xf32>, vector<64x3xf32>, vector<64x3xf32> -> vector<64x12xf32>
    %32 = math.tanh %31 : vector<64x12xf32>
    %33 = arith.truncf %32 : vector<64x12xf32> to vector<64x12xbf16>
    %c0_23 = arith.constant 0 : index
    %c0_24 = arith.constant 0 : index
    %c0_25 = arith.constant 0 : index
    %c0_26 = arith.constant 0 : index
    %34 = vector.load %arg6[%c0_23, %c0_24, %c0_25, %c0_26] : memref<1x1x64x12xbf16, #tpu.memory_space<vmem>>, vector<1x1x64x12xbf16>
    %35 = vector.shape_cast %34 : vector<1x1x64x12xbf16> to vector<64x12xbf16>
    %36 = vector.shape_cast %33 : vector<64x12xbf16> to vector<1x1x64x12xbf16>
    tpu.vector_store %arg6[%c0_23, %c0_24, %c0_25, %c0_26], %36 {strides = array<i32>} : memref<1x1x64x12xbf16, #tpu.memory_space<vmem>>, vector<1x1x64x12xbf16>,
    return
  }
  func.func @transform_0(%arg0: i32, %arg1: i32) -> (i32, i32, i32, i32) {
    %c0_i32 = arith.constant 0 : i32
    %c0_i32_0 = arith.constant 0 : i32
    %c0_i32_1 = arith.constant 0 : i32
    return %arg0, %arg1, %c0_i32, %c0_i32_0 : i32, i32, i32, i32
  }
  func.func @transform_1(%arg0: i32, %arg1: i32) -> (i32, i32, i32, i32) {
    %c1_i32 = arith.constant 1 : i32
    %0 = arith.addi %arg1, %c1_i32 : i32
    %c0_i32 = arith.constant 0 : i32
    %c0_i32_0 = arith.constant 0 : i32
    %c0_i32_1 = arith.constant 0 : i32
    return %arg0, %0, %c0_i32, %c0_i32_0 : i32, i32, i32, i32
  }
  func.func @transform_2(%arg0: i32, %arg1: i32) -> (i32, i32, i32, i32) {
    %c2_i32 = arith.constant 2 : i32
    %0 = arith.addi %arg1, %c2_i32 : i32
    %c0_i32 = arith.constant 0 : i32
    %c0_i32_0 = arith.constant 0 : i32
    %c0_i32_1 = arith.constant 0 : i32
    return %arg0, %0, %c0_i32, %c0_i32_0 : i32, i32, i32, i32
  }
  func.func @transform_3(%arg0: i32, %arg1: i32) -> (i32, i32, i32) {
    %c0_i32 = arith.constant 0 : i32
    %c0_i32_0 = arith.constant 0 : i32
    %c0_i32_1 = arith.constant 0 : i32
    %c0_i32_2 = arith.constant 0 : i32
    return %c0_i32, %c0_i32_0, %c0_i32_1 : i32, i32, i32
  }
  func.func @transform_4(%arg0: i32, %arg1: i32) -> (i32, i32, i32, i32) {
    %c0_i32 = arith.constant 0 : i32
    %c0_i32_0 = arith.constant 0 : i32
    %c0_i32_1 = arith.constant 0 : i32
    return %arg0, %arg1, %c0_i32, %c0_i32_0 : i32, i32, i32, i32
  }
}

</mosaic_0001>

<llo_original>
// kernel: tile.59
$region0: #{tile.59}
  %s0 = inlined_call_operand.vmem [shape: f32[16,64], index: 0, kind: input, shape index: {}]
  %s1 = inlined_call_operand.vmem [shape: f32[1,1024], index: 1, kind: output, shape index: {}]
  $region1: #{tile.59} parent=0
    #allocation0 [shape = 'u8[32768]{0}', space=vmem, size = 0x8000, scoped, tag = 'scoped mem for output reshape']
    %v2 = vld [vmem:[%s0] ss:$2 sm:$0xff]
    %vm3 = vcmask 523264
    %4 = vst.msk [vmem:[#allocation0] ss:$8 sm:$0xf] %vm3, %v2
    %5 = vst.msk [vmem:[#allocation0] ss:$8 sm:$0xf0] %vm3, %v2
    %s6 = scalar_lea.vmem %s0, 1
    %v7 = vld [vmem:[%s6] ss:$2 sm:$0xff]
    %8 = vrot.lane.b32.xlu0 %v7, 64
    %v9 = vpop.permute.xlu0 %8
    %vm10 = vcmask 1048064
    %11 = vst.msk [vmem:[#allocation0] ss:$8 sm:$0xf] %vm10, %v9
    %12 = vst.msk [vmem:[#allocation0] ss:$8 sm:$0xf0] %vm10, %v9
    %s14 = sshllo.u32 0, 1
    %v16 = vld [vmem:[#allocation0] sm:%s14]
    %s17 = sshllo.u32 0, 1
    %18 = vst [vmem:[%s1] sm:%s17] %v16
    %s19 = scalar_lea.vmem [#allocation0], 8
    %v20 = vld [vmem:[%s19] sm:%s14]
    %s21 = sshllo.u32 0, 1
    %s22 = scalar_lea.vmem %s1, 1
    %23 = vst [vmem:[%s22] sm:%s21] %v20
    %s24 = scalar_lea.vmem [#allocation0], 16
    %v25 = vld [vmem:[%s24] sm:%s14]
    %s26 = sshllo.u32 0, 1
    %s27 = smul.addr 1, 2
    %s28 = scalar_lea.vmem %s1, %s27
    %29 = vst [vmem:[%s28] sm:%s26] %v25
    %s30 = scalar_lea.vmem [#allocation0], 24
    %v31 = vld [vmem:[%s30] sm:%s14]
    %s32 = sshllo.u32 0, 1
    %s33 = smul.addr 1, 3
    %s34 = scalar_lea.vmem %s1, %s33
    %35 = vst [vmem:[%s34] sm:%s32] %v31
    %s36 = scalar_lea.vmem [#allocation0], 32
    %v37 = vld [vmem:[%s36] sm:%s14]
    %s38 = sshllo.u32 0, 1
    %s39 = smul.addr 1, 4
    %s40 = scalar_lea.vmem %s1, %s39
    %41 = vst [vmem:[%s40] sm:%s38] %v37
    %s42 = scalar_lea.vmem [#allocation0], 40
    %v43 = vld [vmem:[%s42] sm:%s14]
    %s44 = sshllo.u32 0, 1
    %s45 = smul.addr 1, 5
    %s46 = scalar_lea.vmem %s1, %s45
    %47 = vst [vmem:[%s46] sm:%s44] %v43
    %s48 = scalar_lea.vmem [#allocation0], 48
    %v49 = vld [vmem:[%s48] sm:%s14]
    %s50 = sshllo.u32 0, 1
    %s51 = smul.addr 1, 6
    %s52 = scalar_lea.vmem %s1, %s51
    %53 = vst [vmem:[%s52] sm:%s50] %v49
    %s54 = scalar_lea.vmem [#allocation0], 56
    %v55 = vld [vmem:[%s54] sm:%s14]
    %s56 = sshllo.u32 0, 1
    %s57 = smul.addr 1, 7
    %s58 = scalar_lea.vmem %s1, %s57
    %59 = vst [vmem:[%s58] sm:%s56] %v55

// kernel: dcgan_generator_forward.11
$region0: #{dcgan_generator_forward.11}
  #allocation0 [shape = 'u32[]', space=smem, size = 0x4, offset = 0x4, fixed_abs, tag = 'smem constant byte address 0x4 - core index']
  #allocation1 [shape = 'u32[144,128]{1,0:T(1,128)}', space=vmem, size = 0x12000, scoped, tag = 'internal scratch']
  %s0 = inlined_call_operand.vmem [shape: bf16[2,16], index: 0, kind: input, shape index: {}]
  %s1 = inlined_call_operand.vmem [shape: bf16[16,1024], index: 1, kind: input, shape index: {}]
  %s2 = inlined_call_operand.vmem [shape: bf16[2,1024], index: 2, kind: output, shape index: {}]
  %s3 = sld [smem:[#allocation0]]
  $region18: #{dcgan_generator_forward.11} parent=0
    _
  %s5 = ssub.s32 1, %s3
  %s6 = scalar_select 0, %s5, %s3
  // Predicated region
  $region2: #{dcgan_generator_forward.11} parent=0 // pred_check
    _
  $region3: #{dcgan_generator_forward.11} parent=0 // pred_check_branch
    %8 = sbr.rel (0) target = $region5
  $region4: #{dcgan_generator_forward.11} parent=0 // pred_region
    _
  $region5: #{dcgan_generator_forward.11} parent=0 // pred_fallthru
    _
  // Predicated region
  $region6: #{dcgan_generator_forward.11} parent=0 // pred_check
    _
  $region7: #{dcgan_generator_forward.11} parent=0 // pred_check_branch
    %10 = sbr.rel (0) target = $region9
  $region8: #{dcgan_generator_forward.11} parent=0 // pred_region
    _
  $region9: #{dcgan_generator_forward.11} parent=0 // pred_fallthru
    _
  %v12 = vld [vmem:[%s0] sm:$0x1]
  %v13 = vld [vmem:[%s1] sm:$0xff]
  %v14 = vld [vmem:[%s1 + $0x8] sm:$0xff]
  %v15 = vld [vmem:[%s1 + $0x10] sm:$0xff]
  %v16 = vld [vmem:[%s1 + $0x18] sm:$0xff]
  %v17 = vld [vmem:[%s1 + $0x20] sm:$0xff]
  %v18 = vld [vmem:[%s1 + $0x28] sm:$0xff]
  %v19 = vld [vmem:[%s1 + $0x30] sm:$0xff]
  %v20 = vld [vmem:[%s1 + $0x38] sm:$0xff]
  %v29 = vunpack.c.l.b16 %v13
  %v30 = vunpack.c.h.b16 %v13
  %v31 = vunpack.c.l.b16 %v14
  %v32 = vunpack.c.h.b16 %v14
  %v33 = vunpack.c.l.b16 %v15
  %v34 = vunpack.c.h.b16 %v15
  %v35 = vunpack.c.l.b16 %v16
  %v36 = vunpack.c.h.b16 %v16
  %v37 = vunpack.c.l.b16 %v17
  %v38 = vunpack.c.h.b16 %v17
  %v39 = vunpack.c.l.b16 %v18
  %v40 = vunpack.c.h.b16 %v18
  %v41 = vunpack.c.l.b16 %v19
  %v42 = vunpack.c.h.b16 %v19
  %v43 = vunpack.c.l.b16 %v20
  %v44 = vunpack.c.h.b16 %v20
  %v45 = vpack.c.b16 %v37, %v29
  %v46 = vpack.c.b16 %v38, %v30
  %v47 = vpack.c.b16 %v39, %v31
  %v48 = vpack.c.b16 %v40, %v32
  %v49 = vpack.c.b16 %v41, %v33
  %v50 = vpack.c.b16 %v42, %v34
  %v51 = vpack.c.b16 %v43, %v35
  %v52 = vpack.c.b16 %v44, %v36
  %vm61 = vcmask 130048
  %v63 = vsel %vm61, %v12, 0
  %65 = vmatprep.subr.bf16.mxu0 %v46
  %66 = vmatpush1.bf16.msra.mxu0 %v45
  %67 = vmatprep.subr.bf16.mxu0 0
  %68 = vmatpush1.bf16.msra.mxu0 0
  %69 = vmatprep.subr.bf16.mxu0 0
  %70 = vmatpush1.bf16.msra.mxu0 0
  %71 = vmatprep.subr.bf16.mxu0 0
  %72 = vmatpush1.bf16.msra.mxu0 0
  %73 = vmatprep.subr.bf16.mxu0 0
  %74 = vmatpush1.bf16.msra.mxu0 0
  %75 = vmatprep.subr.bf16.mxu0 0
  %76 = vmatpush1.bf16.msra.mxu0 0
  %77 = vmatprep.subr.bf16.mxu0 0
  %78 = vmatpush1.bf16.msra.mxu0 0
  %79 = vmatprep.subr.bf16.mxu0 0
  %80 = vmatpush1.bf16.msra.mxu0 0
  %81 = vmatprep.subr.bf16.mxu0 0
  %82 = vmatpush1.bf16.msra.mxu0 0
  %83 = vmatprep.subr.bf16.mxu0 0
  %84 = vmatpush1.bf16.msra.mxu0 0
  %85 = vmatprep.subr.bf16.mxu0 0
  %86 = vmatpush1.bf16.msra.mxu0 0
  %87 = vmatprep.subr.bf16.mxu0 0
  %88 = vmatpush1.bf16.msra.mxu0 0
  %89 = vmatprep.subr.bf16.mxu0 0
  %90 = vmatpush1.bf16.msra.mxu0 0
  %91 = vmatprep.subr.bf16.mxu0 0
  %92 = vmatpush1.bf16.msra.mxu0 0
  %93 = vmatprep.subr.bf16.mxu0 0
  %94 = vmatpush1.bf16.msra.mxu0 0
  %95 = vmatprep.subr.bf16.mxu0 0
  %96 = vmatpush1.bf16.msra.mxu0 0
  %97 = vmatprep.mubr.bf16.mxu0 0
  %98 = vmatmul.mubr.bf16.gmra.mrb[0].mxu0 %v63
  %v99 = vpop.f32.mrb[0].mxu0
  %v100 = vadd.f32 0.0, %v99
  %v101 = vpop.f32.mrb[0].mxu0
  %v102 = vadd.f32 0.0, %v101
  %v103 = vpop.f32.mrb[0].mxu0
  %v104 = vpop.f32.mrb[0].mxu0
  %105 = vdwg.mxu0
  %106 = vmatprep.subr.bf16.mxu0 %v48
  %107 = vmatpush1.bf16.msra.mxu0 %v47
  %108 = vmatprep.subr.bf16.mxu0 0
  %109 = vmatpush1.bf16.msra.mxu0 0
  %110 = vmatprep.subr.bf16.mxu0 0
  %111 = vmatpush1.bf16.msra.mxu0 0
  %112 = vmatprep.subr.bf16.mxu0 0
  %113 = vmatpush1.bf16.msra.mxu0 0
  %114 = vmatprep.subr.bf16.mxu0 0
  %115 = vmatpush1.bf16.msra.mxu0 0
  %116 = vmatprep.subr.bf16.mxu0 0
  %117 = vmatpush1.bf16.msra.mxu0 0
  %118 = vmatprep.subr.bf16.mxu0 0
  %119 = vmatpush1.bf16.msra.mxu0 0
  %120 = vmatprep.subr.bf16.mxu0 0
  %121 = vmatpush1.bf16.msra.mxu0 0
  %122 = vmatprep.subr.bf16.mxu0 0
  %123 = vmatpush1.bf16.msra.mxu0 0
  %124 = vmatprep.subr.bf16.mxu0 0
  %125 = vmatpush1.bf16.msra.mxu0 0
  %126 = vmatprep.subr.bf16.mxu0 0
  %127 = vmatpush1.bf16.msra.mxu0 0
  %128 = vmatprep.subr.bf16.mxu0 0
  %129 = vmatpush1.bf16.msra.mxu0 0
  %130 = vmatprep.subr.bf16.mxu0 0
  %131 = vmatpush1.bf16.msra.mxu0 0
  %132 = vmatprep.subr.bf16.mxu0 0
  %133 = vmatpush1.bf16.msra.mxu0 0
  %134 = vmatprep.subr.bf16.mxu0 0
  %135 = vmatpush1.bf16.msra.mxu0 0
  %136 = vmatprep.subr.bf16.mxu0 0
  %137 = vmatpush1.bf16.msra.mxu0 0
  %138 = vmatprep.mubr.bf16.mxu0 0
  %139 = vmatmul.mubr.bf16.gmra.mrb[0].mxu0 %v63
  %v140 = vpop.f32.mrb[0].mxu0
  %v141 = vadd.f32 0.0, %v140
  %v142 = vpop.f32.mrb[0].mxu0
  %v143 = vadd.f32 0.0, %v142
  %v144 = vpop.f32.mrb[0].mxu0
  %v145 = vpop.f32.mrb[0].mxu0
  %146 = vdwg.mxu0
  %147 = vmatprep.subr.bf16.mxu0 %v50
  %148 = vmatpush1.bf16.msra.mxu0 %v49
  %149 = vmatprep.subr.bf16.mxu0 0
  %150 = vmatpush1.bf16.msra.mxu0 0
  %151 = vmatprep.subr.bf16.mxu0 0
  %152 = vmatpush1.bf16.msra.mxu0 0
  %153 = vmatprep.subr.bf16.mxu0 0
  %154 = vmatpush1.bf16.msra.mxu0 0
  %155 = vmatprep.subr.bf16.mxu0 0
  %156 = vmatpush1.bf16.msra.mxu0 0
  %157 = vmatprep.subr.bf16.mxu0 0
  %158 = vmatpush1.bf16.msra.mxu0 0
  %159 = vmatprep.subr.bf16.mxu0 0
  %160 = vmatpush1.bf16.msra.mxu0 0
  %161 = vmatprep.subr.bf16.mxu0 0
  %162 = vmatpush1.bf16.msra.mxu0 0
  %163 = vmatprep.subr.bf16.mxu0 0
  %164 = vmatpush1.bf16.msra.mxu0 0
  %165 = vmatprep.subr.bf16.mxu0 0
  %166 = vmatpush1.bf16.msra.mxu0 0
  %167 = vmatprep.subr.bf16.mxu0 0
  %168 = vmatpush1.bf16.msra.mxu0 0
  %169 = vmatprep.subr.bf16.mxu0 0
  %170 = vmatpush1.bf16.msra.mxu0 0
  %171 = vmatprep.subr.bf16.mxu0 0
  %172 = vmatpush1.bf16.msra.mxu0 0
  %173 = vmatprep.subr.bf16.mxu0 0
  %174 = vmatpush1.bf16.msra.mxu0 0
  %175 = vmatprep.subr.bf16.mxu0 0
  %176 = vmatpush1.bf16.msra.mxu0 0
  %177 = vmatprep.subr.bf16.mxu0 0
  %178 = vmatpush1.bf16.msra.mxu0 0
  %179 = vmatprep.mubr.bf16.mxu0 0
  %180 = vmatmul.mubr.bf16.gmra.mrb[0].mxu0 %v63
  %v181 = vpop.f32.mrb[0].mxu0
  %v182 = vadd.f32 0.0, %v181
  %v183 = vpop.f32.mrb[0].mxu0
  %v184 = vadd.f32 0.0, %v183
  %v185 = vpop.f32.mrb[0].mxu0
  %v186 = vpop.f32.mrb[0].mxu0
  %187 = vdwg.mxu0
  %188 = vmatprep.subr.bf16.mxu0 %v52
  %189 = vmatpush1.bf16.msra.mxu0 %v51
  %190 = vmatprep.subr.bf16.mxu0 0
  %191 = vmatpush1.bf16.msra.mxu0 0
  %192 = vmatprep.subr.bf16.mxu0 0
  %193 = vmatpush1.bf16.msra.mxu0 0
  %194 = vmatprep.subr.bf16.mxu0 0
  %195 = vmatpush1.bf16.msra.mxu0 0
  %196 = vmatprep.subr.bf16.mxu0 0
  %197 = vmatpush1.bf16.msra.mxu0 0
  %198 = vmatprep.subr.bf16.mxu0 0
  %199 = vmatpush1.bf16.msra.mxu0 0
  %200 = vmatprep.subr.bf16.mxu0 0
  %201 = vmatpush1.bf16.msra.mxu0 0
  %202 = vmatprep.subr.bf16.mxu0 0
  %203 = vmatpush1.bf16.msra.mxu0 0
  %204 = vmatprep.subr.bf16.mxu0 0
  %205 = vmatpush1.bf16.msra.mxu0 0
  %206 = vmatprep.subr.bf16.mxu0 0
  %207 = vmatpush1.bf16.msra.mxu0 0
  %208 = vmatprep.subr.bf16.mxu0 0
  %209 = vmatpush1.bf16.msra.mxu0 0
  %210 = vmatprep.subr.bf16.mxu0 0
  %211 = vmatpush1.bf16.msra.mxu0 0
  %212 = vmatprep.subr.bf16.mxu0 0
  %213 = vmatpush1.bf16.msra.mxu0 0
  %214 = vmatprep.subr.bf16.mxu0 0
  %215 = vmatpush1.bf16.msra.mxu0 0
  %216 = vmatprep.subr.bf16.mxu0 0
  %217 = vmatpush1.bf16.msra.mxu0 0
  %218 = vmatprep.subr.bf16.mxu0 0
  %219 = vmatpush1.bf16.msra.mxu0 0
  %220 = vmatprep.mubr.bf16.mxu0 0
  %221 = vmatmul.mubr.bf16.gmra.mrb[0].mxu0 %v63
  %v222 = vpop.f32.mrb[0].mxu0
  %v223 = vadd.f32 0.0, %v222
  %v224 = vpop.f32.mrb[0].mxu0
  %v225 = vadd.f32 0.0, %v224
  %v226 = vpop.f32.mrb[0].mxu0
  %v227 = vpop.f32.mrb[0].mxu0
  %228 = vdwg.mxu0
  %v229 = vpack.c.bf16 %v100, %v100
  %v230 = vpack.c.bf16 %v102, %v102
  %v231 = vpack.c.bf16 %v141, %v141
  %v232 = vpack.c.bf16 %v143, %v143
  %v233 = vpack.c.bf16 %v182, %v182
  %v234 = vpack.c.bf16 %v184, %v184
  %v235 = vpack.c.bf16 %v223, %v223
  %v236 = vpack.c.bf16 %v225, %v225
  %v245 = vcombine.low %v229, %v230
  %v246 = vcombine.low %v231, %v232
  %v247 = vcombine.low %v233, %v234
  %v248 = vcombine.low %v235, %v236
  %v250 = vunpack.c.l.s4 1966171168
  %v251 = vunpack.c.0.s8 %v250
  %v252 = vlaneseq
  %v253 = vshrl.u32 %v252, 7
  %v254 = vsub.s32 %v251, %v253
  %v255 = vrot.slane %v245, %v254
  %v257 = vunpack.c.l.s4 1966171168
  %v258 = vunpack.c.0.s8 %v257
  %v259 = vlaneseq
  %v260 = vshrl.u32 %v259, 7
  %v261 = vsub.s32 %v258, %v260
  %v262 = vrot.slane %v246, %v261
  %v264 = vunpack.c.l.s4 1966171168
  %v265 = vunpack.c.0.s8 %v264
  %v266 = vlaneseq
  %v267 = vshrl.u32 %v266, 7
  %v268 = vsub.s32 %v265, %v267
  %v269 = vrot.slane %v247, %v268
  %v271 = vunpack.c.l.s4 1966171168
  %v272 = vunpack.c.0.s8 %v271
  %v273 = vlaneseq
  %v274 = vshrl.u32 %v273, 7
  %v275 = vsub.s32 %v272, %v274
  %v276 = vrot.slane %v248, %v275
  %v277 = vcombine.low %v255, %v262
  %v278 = vcombine.low %v269, %v276
  %v280 = vunpack.c.l.s4 1966171168
  %v281 = vunpack.c.0.s8 %v280
  %v282 = vlaneseq
  %v283 = vshrl.u32 %v282, 7
  %v284 = vsub.s32 %v281, %v283
  %v285 = vrot.slane %v277, %v284
  %v287 = vunpack.c.l.s4 1966171168
  %v288 = vunpack.c.0.s8 %v287
  %v289 = vlaneseq
  %v290 = vshrl.u32 %v289, 7
  %v291 = vsub.s32 %v288, %v290
  %v292 = vrot.slane %v278, %v291
  %v293 = vcombine.low %v285, %v292
  %295 = vst [vmem:[%s2] sm:$0xff] %v293
  // Predicated region
  $region10: #{dcgan_generator_forward.11} parent=0 // pred_check
    _
  $region11: #{dcgan_generator_forward.11} parent=0 // pred_check_branch
    %297 = sbr.rel (0) target = $region13
  $region12: #{dcgan_generator_forward.11} parent=0 // pred_region
    _
  $region13: #{dcgan_generator_forward.11} parent=0 // pred_fallthru
    _
  // Predicated region
  $region14: #{dcgan_generator_forward.11} parent=0 // pred_check
    _
  $region15: #{dcgan_generator_forward.11} parent=0 // pred_check_branch
    %299 = sbr.rel (0) target = $region17
  $region16: #{dcgan_generator_forward.11} parent=0 // pred_region
    _
  $region17: #{dcgan_generator_forward.11} parent=0 // pred_fallthru
    _

// kernel: tile.68
$region0: #{tile.68}
  #allocation0 [shape = 's32[1]{0}', space=sflag, size = 0x4, scoped, tag = 'scoped memory for tile.68']
  %s0 = inlined_call_operand.vmem [shape: f32[32], index: 0, kind: input, shape index: {}]
  %s1 = inlined_call_operand.vmem [shape: f32[16,32], index: 1, kind: output, shape index: {}]
  // Predicated region
  $region2: #{tile.68} parent=0 // pred_check
    _
  $region3: #{tile.68} parent=0 // pred_check_branch
    %3 = sbr.rel (0) target = $region5
  $region4: #{tile.68} parent=0 // pred_region
    _
  $region5: #{tile.68} parent=0 // pred_fallthru
    _
  %v4 = vld [vmem:[%s0] ss:$0 sm:$0xff]
  %5 = vst [vmem:[%s1] sm:$0xff] %v4
  %s6 = scalar_lea.vmem %s1, 8
  %7 = vst [vmem:[%s6] sm:$0xff] %v4

// kernel: tile.69
$region0: #{tile.69}
  %s0 = inlined_call_operand.vmem [shape: f32[16,32], index: 0, kind: input, shape index: {}]
  %s1 = inlined_call_operand.vmem [shape: f32[1,512], index: 1, kind: output, shape index: {}]
  $region1: #{tile.69} parent=0
    #allocation0 [shape = 'u8[16384]{0}', space=vmem, size = 0x4000, scoped, tag = 'scoped mem for output reshape']
    %v2 = vld [vmem:[%s0] ss:$4 sm:$0xf]
    %vm3 = vcmask 261120
    %4 = vst.msk [vmem:[#allocation0] ss:$8 sm:$0xf] %vm3, %v2
    %s5 = scalar_lea.vmem %s0, 3
    %v6 = vld [vmem:[%s5] ss:$4 sm:$0xf]
    %7 = vrot.lane.b32.xlu0 %v6, 96
    %v8 = vpop.permute.xlu0 %7
    %vm9 = vcmask 1048320
    %10 = vst.msk [vmem:[#allocation0] ss:$8 sm:$0xf] %vm9, %v8
    %s11 = scalar_lea.vmem %s0, 2
    %v12 = vld [vmem:[%s11] ss:$4 sm:$0xf]
    %13 = vrot.lane.b32.xlu0 %v12, 64
    %v14 = vpop.permute.xlu0 %13
    %vm15 = vcmask 785920
    %16 = vst.msk [vmem:[#allocation0] ss:$8 sm:$0xf] %vm15, %v14
    %s17 = scalar_lea.vmem %s0, 1
    %v18 = vld [vmem:[%s17] ss:$4 sm:$0xf]
    %19 = vrot.lane.b32.xlu0 %v18, 32
    %v20 = vpop.permute.xlu0 %19
    %vm21 = vcmask 523520
    %22 = vst.msk [vmem:[#allocation0] ss:$8 sm:$0xf] %vm21, %v20
    %s24 = sshllo.u32 0, 1
    %v26 = vld [vmem:[#allocation0] sm:%s24]
    %s27 = sshllo.u32 0, 1
    %28 = vst [vmem:[%s1] sm:%s27] %v26
    %s29 = scalar_lea.vmem [#allocation0], 8
    %v30 = vld [vmem:[%s29] sm:%s24]
    %s31 = sshllo.u32 0, 1
    %s32 = scalar_lea.vmem %s1, 1
    %33 = vst [vmem:[%s32] sm:%s31] %v30
    %s34 = scalar_lea.vmem [#allocation0], 16
    %v35 = vld [vmem:[%s34] sm:%s24]
    %s36 = sshllo.u32 0, 1
    %s37 = smul.addr 1, 2
    %s38 = scalar_lea.vmem %s1, %s37
    %39 = vst [vmem:[%s38] sm:%s36] %v35
    %s40 = scalar_lea.vmem [#allocation0], 24
    %v41 = vld [vmem:[%s40] sm:%s24]
    %s42 = sshllo.u32 0, 1
    %s43 = smul.addr 1, 3
    %s44 = scalar_lea.vmem %s1, %s43
    %45 = vst [vmem:[%s44] sm:%s42] %v41

// kernel: dcgan_generator_forward.12
$region0: #{dcgan_generator_forward.12}
  #allocation0 [shape = 'u32[]', space=smem, size = 0x4, offset = 0x4, fixed_abs, tag = 'smem constant byte address 0x4 - core index']
  #allocation1 [shape = 'u32[144,128]{1,0:T(1,128)}', space=vmem, size = 0x12000, scoped, tag = 'internal scratch']
  %s0 = inlined_call_operand.vmem [shape: bf16[2,1024], index: 0, kind: input, shape index: {}]
  %s1 = inlined_call_operand.vmem [shape: f32[1,1024], index: 1, kind: input, shape index: {}]
  %s2 = inlined_call_operand.vmem [shape: f32[1,1024], index: 2, kind: input, shape index: {}]
  %s3 = inlined_call_operand.vmem [shape: bf16[2,1024], index: 3, kind: output, shape index: {}]
  %s4 = sld [smem:[#allocation0]]
  $region22: #{dcgan_generator_forward.12} parent=0
    _
  %s6 = ssub.s32 1, %s4
  %s7 = scalar_select 0, %s6, %s4
  // Predicated region
  $region2: #{dcgan_generator_forward.12} parent=0 // pred_check
    _
  $region3: #{dcgan_generator_forward.12} parent=0 // pred_check_branch
    %9 = sbr.rel (0) target = $region5
  $region4: #{dcgan_generator_forward.12} parent=0 // pred_region
    _
  $region5: #{dcgan_generator_forward.12} parent=0 // pred_fallthru
    _
  // Predicated region
  $region6: #{dcgan_generator_forward.12} parent=0 // pred_check
    _
  $region7: #{dcgan_generator_forward.12} parent=0 // pred_check_branch
    %11 = sbr.rel (0) target = $region9
  $region8: #{dcgan_generator_forward.12} parent=0 // pred_region
    _
  $region9: #{dcgan_generator_forward.12} parent=0 // pred_fallthru
    _
  // Predicated region
  $region10: #{dcgan_generator_forward.12} parent=0 // pred_check
    _
  $region11: #{dcgan_generator_forward.12} parent=0 // pred_check_branch
    %13 = sbr.rel (0) target = $region13
  $region12: #{dcgan_generator_forward.12} parent=0 // pred_region
    _
  $region13: #{dcgan_generator_forward.12} parent=0 // pred_fallthru
    _
  %v14 = vld [vmem:[%s0] sm:$0xff]
  %v15 = vunpack.c.l.bf16 %v14
  %v16 = vunpack.c.h.bf16 %v14
  %v17 = vld [vmem:[%s1] sm:$0xff]
  %v19 = vlaneseq
  %v20 = vshrl.u32 %v19, 7
  %v21 = vsub.s32 0, %v20
  %v22 = vrot.slane %v17, %v21
  %v23 = vlaneseq
  %v24 = vshrl.u32 %v23, 7
  %v25 = vsub.s32 1, %v24
  %v26 = vrot.slane %v17, %v25
  %v27 = vlaneseq
  %v28 = vshrl.u32 %v27, 7
  %v29 = vsub.s32 2, %v28
  %v30 = vrot.slane %v17, %v29
  %v31 = vlaneseq
  %v32 = vshrl.u32 %v31, 7
  %v33 = vsub.s32 3, %v32
  %v34 = vrot.slane %v17, %v33
  %v35 = vlaneseq
  %v36 = vshrl.u32 %v35, 7
  %v37 = vsub.s32 4, %v36
  %v38 = vrot.slane %v17, %v37
  %v39 = vlaneseq
  %v40 = vshrl.u32 %v39, 7
  %v41 = vsub.s32 5, %v40
  %v42 = vrot.slane %v17, %v41
  %v43 = vlaneseq
  %v44 = vshrl.u32 %v43, 7
  %v45 = vsub.s32 6, %v44
  %v46 = vrot.slane %v17, %v45
  %v47 = vlaneseq
  %v48 = vshrl.u32 %v47, 7
  %v49 = vsub.s32 7, %v48
  %v50 = vrot.slane %v17, %v49
  %v51 = vcombine.low %v22, %v26
  %v52 = vcombine.low %v30, %v34
  %v54 = vunpack.c.l.s4 1983009808
  %v55 = vunpack.c.0.s8 %v54
  %v56 = vlaneseq
  %v57 = vshrl.u32 %v56, 7
  %v58 = vsub.s32 %v55, %v57
  %v59 = vrot.slane %v51, %v58
  %v61 = vunpack.c.l.s4 1983009808
  %v62 = vunpack.c.0.s8 %v61
  %v63 = vlaneseq
  %v64 = vshrl.u32 %v63, 7
  %v65 = vsub.s32 %v62, %v64
  %v66 = vrot.slane %v52, %v65
  %v67 = vcombine.low %v59, %v66
  %v68 = vcombine.low %v38, %v42
  %v69 = vcombine.low %v46, %v50
  %v71 = vunpack.c.l.s4 1983009808
  %v72 = vunpack.c.0.s8 %v71
  %v73 = vlaneseq
  %v74 = vshrl.u32 %v73, 7
  %v75 = vsub.s32 %v72, %v74
  %v76 = vrot.slane %v68, %v75
  %v78 = vunpack.c.l.s4 1983009808
  %v79 = vunpack.c.0.s8 %v78
  %v80 = vlaneseq
  %v81 = vshrl.u32 %v80, 7
  %v82 = vsub.s32 %v79, %v81
  %v83 = vrot.slane %v69, %v82
  %v84 = vcombine.low %v76, %v83
  %v87 = vmul.f32 %v15, %v67
  %v88 = vmul.f32 %v16, %v84
  %v89 = vld [vmem:[%s2] sm:$0xff]
  %v91 = vlaneseq
  %v92 = vshrl.u32 %v91, 7
  %v93 = vsub.s32 0, %v92
  %v94 = vrot.slane %v89, %v93
  %v95 = vlaneseq
  %v96 = vshrl.u32 %v95, 7
  %v97 = vsub.s32 1, %v96
  %v98 = vrot.slane %v89, %v97
  %v99 = vlaneseq
  %v100 = vshrl.u32 %v99, 7
  %v101 = vsub.s32 2, %v100
  %v102 = vrot.slane %v89, %v101
  %v103 = vlaneseq
  %v104 = vshrl.u32 %v103, 7
  %v105 = vsub.s32 3, %v104
  %v106 = vrot.slane %v89, %v105
  %v107 = vlaneseq
  %v108 = vshrl.u32 %v107, 7
  %v109 = vsub.s32 4, %v108
  %v110 = vrot.slane %v89, %v109
  %v111 = vlaneseq
  %v112 = vshrl.u32 %v111, 7
  %v113 = vsub.s32 5, %v112
  %v114 = vrot.slane %v89, %v113
  %v115 = vlaneseq
  %v116 = vshrl.u32 %v115, 7
  %v117 = vsub.s32 6, %v116
  %v118 = vrot.slane %v89, %v117
  %v119 = vlaneseq
  %v120 = vshrl.u32 %v119, 7
  %v121 = vsub.s32 7, %v120
  %v122 = vrot.slane %v89, %v121
  %v123 = vcombine.low %v94, %v98
  %v124 = vcombine.low %v102, %v106
  %v126 = vunpack.c.l.s4 1983009808
  %v127 = vunpack.c.0.s8 %v126
  %v128 = vlaneseq
  %v129 = vshrl.u32 %v128, 7
  %v130 = vsub.s32 %v127, %v129
  %v131 = vrot.slane %v123, %v130
  %v133 = vunpack.c.l.s4 1983009808
  %v134 = vunpack.c.0.s8 %v133
  %v135 = vlaneseq
  %v136 = vshrl.u32 %v135, 7
  %v137 = vsub.s32 %v134, %v136
  %v138 = vrot.slane %v124, %v137
  %v139 = vcombine.low %v131, %v138
  %v140 = vcombine.low %v110, %v114
  %v141 = vcombine.low %v118, %v122
  %v143 = vunpack.c.l.s4 1983009808
  %v144 = vunpack.c.0.s8 %v143
  %v145 = vlaneseq
  %v146 = vshrl.u32 %v145, 7
  %v147 = vsub.s32 %v144, %v146
  %v148 = vrot.slane %v140, %v147
  %v150 = vunpack.c.l.s4 1983009808
  %v151 = vunpack.c.0.s8 %v150
  %v152 = vlaneseq
  %v153 = vshrl.u32 %v152, 7
  %v154 = vsub.s32 %v151, %v153
  %v155 = vrot.slane %v141, %v154
  %v156 = vcombine.low %v148, %v155
  %v159 = vadd.f32 %v87, %v139
  %v160 = vadd.f32 %v88, %v156
  %v161 = vmax.f32 %v159, 0.0
  %v162 = vmax.f32 %v160, 0.0
  %v165 = vcombine.high %v161, %v161
  %v167 = vunpack.c.l.s4 1983009808
  %v168 = vunpack.c.0.s8 %v167
  %v169 = vlaneseq
  %v170 = vshrl.u32 %v169, 7
  %v171 = vsub.s32 %v168, %v170
  %v172 = vrot.slane %v161, %v171
  %v174 = vunpack.c.l.s4 1983009808
  %v175 = vunpack.c.0.s8 %v174
  %v176 = vlaneseq
  %v177 = vshrl.u32 %v176, 7
  %v178 = vsub.s32 %v175, %v177
  %v179 = vrot.slane %v165, %v178
  %v180 = vcombine.high %v172, %v172
  %v181 = vcombine.high %v179, %v179
  %v182 = vcombine.high %v162, %v162
  %v184 = vunpack.c.l.s4 1983009808
  %v185 = vunpack.c.0.s8 %v184
  %v186 = vlaneseq
  %v187 = vshrl.u32 %v186, 7
  %v188 = vsub.s32 %v185, %v187
  %v189 = vrot.slane %v162, %v188
  %v191 = vunpack.c.l.s4 1983009808
  %v192 = vunpack.c.0.s8 %v191
  %v193 = vlaneseq
  %v194 = vshrl.u32 %v193, 7
  %v195 = vsub.s32 %v192, %v194
  %v196 = vrot.slane %v182, %v195
  %v197 = vcombine.high %v189, %v189
  %v198 = vcombine.high %v196, %v196
  %v207 = vpack.c.bf16 %v172, %v172
  %v208 = vpack.c.bf16 %v180, %v180
  %v209 = vpack.c.bf16 %v179, %v179
  %v210 = vpack.c.bf16 %v181, %v181
  %v211 = vpack.c.bf16 %v189, %v189
  %v212 = vpack.c.bf16 %v197, %v197
  %v213 = vpack.c.bf16 %v196, %v196
  %v214 = vpack.c.bf16 %v198, %v198
  %v223 = vcombine.low %v207, %v208
  %v224 = vcombine.low %v209, %v210
  %v225 = vcombine.low %v211, %v212
  %v226 = vcombine.low %v213, %v214
  %v228 = vunpack.c.l.s4 1966171168
  %v229 = vunpack.c.0.s8 %v228
  %v230 = vlaneseq
  %v231 = vshrl.u32 %v230, 7
  %v232 = vsub.s32 %v229, %v231
  %v233 = vrot.slane %v223, %v232
  %v235 = vunpack.c.l.s4 1966171168
  %v236 = vunpack.c.0.s8 %v235
  %v237 = vlaneseq
  %v238 = vshrl.u32 %v237, 7
  %v239 = vsub.s32 %v236, %v238
  %v240 = vrot.slane %v224, %v239
  %v242 = vunpack.c.l.s4 1966171168
  %v243 = vunpack.c.0.s8 %v242
  %v244 = vlaneseq
  %v245 = vshrl.u32 %v244, 7
  %v246 = vsub.s32 %v243, %v245
  %v247 = vrot.slane %v225, %v246
  %v249 = vunpack.c.l.s4 1966171168
  %v250 = vunpack.c.0.s8 %v249
  %v251 = vlaneseq
  %v252 = vshrl.u32 %v251, 7
  %v253 = vsub.s32 %v250, %v252
  %v254 = vrot.slane %v226, %v253
  %v255 = vcombine.low %v233, %v240
  %v256 = vcombine.low %v247, %v254
  %v258 = vunpack.c.l.s4 1966171168
  %v259 = vunpack.c.0.s8 %v258
  %v260 = vlaneseq
  %v261 = vshrl.u32 %v260, 7
  %v262 = vsub.s32 %v259, %v261
  %v263 = vrot.slane %v255, %v262
  %v265 = vunpack.c.l.s4 1966171168
  %v266 = vunpack.c.0.s8 %v265
  %v267 = vlaneseq
  %v268 = vshrl.u32 %v267, 7
  %v269 = vsub.s32 %v266, %v268
  %v270 = vrot.slane %v256, %v269
  %v271 = vcombine.low %v263, %v270
  %273 = vst [vmem:[%s3] sm:$0xff] %v271
  // Predicated region
  $region14: #{dcgan_generator_forward.12} parent=0 // pred_check
    _
  $region15: #{dcgan_generator_forward.12} parent=0 // pred_check_branch
    %275 = sbr.rel (0) target = $region17
  $region16: #{dcgan_generator_forward.12} parent=0 // pred_region
    _
  $region17: #{dcgan_generator_forward.12} parent=0 // pred_fallthru
    _
  // Predicated region
  $region18: #{dcgan_generator_forward.12} parent=0 // pred_check
    _
  $region19: #{dcgan_generator_forward.12} parent=0 // pred_check_branch
    %277 = sbr.rel (0) target = $region21
  $region20: #{dcgan_generator_forward.12} parent=0 // pred_region
    _
  $region21: #{dcgan_generator_forward.12} parent=0 // pred_fallthru
    _

// kernel: dcgan_generator_forward.14
$region0: #{dcgan_generator_forward.14}
  #allocation0 [shape = 'u32[]', space=smem, size = 0x4, offset = 0x4, fixed_abs, tag = 'smem constant byte address 0x4 - core index']
  #allocation1 [shape = 'u32[144,128]{1,0:T(1,128)}', space=vmem, size = 0x12000, scoped, tag = 'internal scratch']
  %s0 = inlined_call_operand.vmem [shape: bf16[8,512], index: 0, kind: input, shape index: {}]
  %s1 = inlined_call_operand.vmem [shape: f32[1,512], index: 1, kind: input, shape index: {}]
  %s2 = inlined_call_operand.vmem [shape: f32[1,512], index: 2, kind: input, shape index: {}]
  %s3 = inlined_call_operand.vmem [shape: bf16[8,512], index: 3, kind: output, shape index: {}]
  %s4 = sld [smem:[#allocation0]]
  $region22: #{dcgan_generator_forward.14} parent=0
    _
  %s6 = ssub.s32 1, %s4
  %s7 = scalar_select 0, %s6, %s4
  // Predicated region
  $region2: #{dcgan_generator_forward.14} parent=0 // pred_check
    _
  $region3: #{dcgan_generator_forward.14} parent=0 // pred_check_branch
    %9 = sbr.rel (0) target = $region5
  $region4: #{dcgan_generator_forward.14} parent=0 // pred_region
    _
  $region5: #{dcgan_generator_forward.14} parent=0 // pred_fallthru
    _
  // Predicated region
  $region6: #{dcgan_generator_forward.14} parent=0 // pred_check
    _
  $region7: #{dcgan_generator_forward.14} parent=0 // pred_check_branch
    %11 = sbr.rel (0) target = $region9
  $region8: #{dcgan_generator_forward.14} parent=0 // pred_region
    _
  $region9: #{dcgan_generator_forward.14} parent=0 // pred_fallthru
    _
  // Predicated region
  $region10: #{dcgan_generator_forward.14} parent=0 // pred_check
    _
  $region11: #{dcgan_generator_forward.14} parent=0 // pred_check_branch
    %13 = sbr.rel (0) target = $region13
  $region12: #{dcgan_generator_forward.14} parent=0 // pred_region
    _
  $region13: #{dcgan_generator_forward.14} parent=0 // pred_fallthru
    _
  %v14 = vld [vmem:[%s0] sm:$0xff]
  %v15 = vld [vmem:[%s0 + $0x8] sm:$0xff]
  %v16 = vunpack.c.l.bf16 %v14
  %v17 = vunpack.c.h.bf16 %v14
  %v18 = vunpack.c.l.bf16 %v15
  %v19 = vunpack.c.h.bf16 %v15
  %v20 = vld [vmem:[%s1] sm:$0xf]
  %v22 = vlaneseq
  %v23 = vshrl.u32 %v22, 7
  %v24 = vsub.s32 0, %v23
  %v25 = vrot.slane %v20, %v24
  %v26 = vlaneseq
  %v27 = vshrl.u32 %v26, 7
  %v28 = vsub.s32 1, %v27
  %v29 = vrot.slane %v20, %v28
  %v30 = vlaneseq
  %v31 = vshrl.u32 %v30, 7
  %v32 = vsub.s32 2, %v31
  %v33 = vrot.slane %v20, %v32
  %v34 = vlaneseq
  %v35 = vshrl.u32 %v34, 7
  %v36 = vsub.s32 3, %v35
  %v37 = vrot.slane %v20, %v36
  %v42 = vmul.f32 %v16, %v25
  %v43 = vmul.f32 %v17, %v29
  %v44 = vmul.f32 %v18, %v33
  %v45 = vmul.f32 %v19, %v37
  %v46 = vld [vmem:[%s2] sm:$0xf]
  %v48 = vlaneseq
  %v49 = vshrl.u32 %v48, 7
  %v50 = vsub.s32 0, %v49
  %v51 = vrot.slane %v46, %v50
  %v52 = vlaneseq
  %v53 = vshrl.u32 %v52, 7
  %v54 = vsub.s32 1, %v53
  %v55 = vrot.slane %v46, %v54
  %v56 = vlaneseq
  %v57 = vshrl.u32 %v56, 7
  %v58 = vsub.s32 2, %v57
  %v59 = vrot.slane %v46, %v58
  %v60 = vlaneseq
  %v61 = vshrl.u32 %v60, 7
  %v62 = vsub.s32 3, %v61
  %v63 = vrot.slane %v46, %v62
  %v68 = vadd.f32 %v42, %v51
  %v69 = vadd.f32 %v43, %v55
  %v70 = vadd.f32 %v44, %v59
  %v71 = vadd.f32 %v45, %v63
  %v72 = vmax.f32 %v68, 0.0
  %v73 = vmax.f32 %v69, 0.0
  %v74 = vmax.f32 %v70, 0.0
  %v75 = vmax.f32 %v71, 0.0
  %v76 = vpack.c.bf16 %v72, %v72
  %v77 = vpack.c.bf16 %v73, %v73
  %v78 = vpack.c.bf16 %v74, %v74
  %v79 = vpack.c.bf16 %v75, %v75
  %v84 = vunpack.c.l.b16 %v76
  %v85 = vunpack.c.l.b16 %v77
  %v86 = vunpack.c.l.b16 %v78
  %v87 = vunpack.c.l.b16 %v79
  %v88 = vpack.c.b16 %v85, %v84
  %v89 = vpack.c.b16 %v87, %v86
  %92 = vst [vmem:[%s3] sm:$0xff] %v88
  %93 = vst [vmem:[%s3 + $0x8] sm:$0xff] %v89
  // Predicated region
  $region14: #{dcgan_generator_forward.14} parent=0 // pred_check
    _
  $region15: #{dcgan_generator_forward.14} parent=0 // pred_check_branch
    %95 = sbr.rel (0) target = $region17
  $region16: #{dcgan_generator_forward.14} parent=0 // pred_region
    _
  $region17: #{dcgan_generator_forward.14} parent=0 // pred_fallthru
    _
  // Predicated region
  $region18: #{dcgan_generator_forward.14} parent=0 // pred_check
    _
  $region19: #{dcgan_generator_forward.14} parent=0 // pred_check_branch
    %97 = sbr.rel (0) target = $region21
  $region20: #{dcgan_generator_forward.14} parent=0 // pred_region
    _
  $region21: #{dcgan_generator_forward.14} parent=0 // pred_fallthru
    _

// kernel: tile.78
$region0: #{tile.78}
  #allocation0 [shape = 's32[1]{0}', space=sflag, size = 0x4, scoped, tag = 'scoped memory for tile.78']
  %s0 = inlined_call_operand.vmem [shape: f32[16], index: 0, kind: input, shape index: {}]
  %s1 = inlined_call_operand.vmem [shape: f32[32,16], index: 1, kind: output, shape index: {}]
  // Predicated region
  $region2: #{tile.78} parent=0 // pred_check
    _
  $region3: #{tile.78} parent=0 // pred_check_branch
    %3 = sbr.rel (0) target = $region5
  $region4: #{tile.78} parent=0 // pred_region
    _
  $region5: #{tile.78} parent=0 // pred_fallthru
    _
  %v4 = vld [vmem:[%s0] ss:$0 sm:$0xff]
  %5 = vst [vmem:[%s1] sm:$0xff] %v4
  %s6 = scalar_lea.vmem %s1, 8
  %7 = vst [vmem:[%s6] sm:$0xff] %v4
  %s8 = scalar_lea.vmem %s1, 16
  %9 = vst [vmem:[%s8] sm:$0xff] %v4
  %s10 = scalar_lea.vmem %s1, 24
  %11 = vst [vmem:[%s10] sm:$0xff] %v4

// kernel: tile.79
$region0: #{tile.79}
  %s0 = inlined_call_operand.vmem [shape: f32[32,16], index: 0, kind: input, shape index: {}]
  %s1 = inlined_call_operand.vmem [shape: f32[1,512], index: 1, kind: output, shape index: {}]
  $region1: #{tile.79} parent=0
    #allocation0 [shape = 'u8[16384]{0}', space=vmem, size = 0x4000, scoped, tag = 'scoped mem for output reshape']
    %v2 = vld [vmem:[%s0] ss:$8 sm:$0xf]
    %vm3 = vcmask 130048
    %4 = vst.msk [vmem:[#allocation0] ss:$8 sm:$0xf] %vm3, %v2
    %s5 = scalar_lea.vmem %s0, 7
    %v6 = vld [vmem:[%s5] ss:$8 sm:$0xf]
    %7 = vrot.lane.b32.xlu0 %v6, 112
    %v8 = vpop.permute.xlu0 %7
    %vm9 = vcmask 1048448
    %10 = vst.msk [vmem:[#allocation0] ss:$8 sm:$0xf] %vm9, %v8
    %s11 = scalar_lea.vmem %s0, 6
    %v12 = vld [vmem:[%s11] ss:$8 sm:$0xf]
    %13 = vrot.lane.b32.xlu0 %v12, 96
    %v14 = vpop.permute.xlu0 %13
    %vm15 = vcmask 917248
    %16 = vst.msk [vmem:[#allocation0] ss:$8 sm:$0xf] %vm15, %v14
    %s17 = scalar_lea.vmem %s0, 5
    %v18 = vld [vmem:[%s17] ss:$8 sm:$0xf]
    %19 = vrot.lane.b32.xlu0 %v18, 80
    %v20 = vpop.permute.xlu0 %19
    %vm21 = vcmask 786048
    %22 = vst.msk [vmem:[#allocation0] ss:$8 sm:$0xf] %vm21, %v20
    %s23 = scalar_lea.vmem %s0, 4
    %v24 = vld [vmem:[%s23] ss:$8 sm:$0xf]
    %25 = vrot.lane.b32.xlu0 %v24, 64
    %v26 = vpop.permute.xlu0 %25
    %vm27 = vcmask 654848
    %28 = vst.msk [vmem:[#allocation0] ss:$8 sm:$0xf] %vm27, %v26
    %s29 = scalar_lea.vmem %s0, 3
    %v30 = vld [vmem:[%s29] ss:$8 sm:$0xf]
    %31 = vrot.lane.b32.xlu0 %v30, 48
    %v32 = vpop.permute.xlu0 %31
    %vm33 = vcmask 523648
    %34 = vst.msk [vmem:[#allocation0] ss:$8 sm:$0xf] %vm33, %v32
    %s35 = scalar_lea.vmem %s0, 2
    %v36 = vld [vmem:[%s35] ss:$8 sm:$0xf]
    %37 = vrot.lane.b32.xlu0 %v36, 32
    %v38 = vpop.permute.xlu0 %37
    %vm39 = vcmask 392448
    %40 = vst.msk [vmem:[#allocation0] ss:$8 sm:$0xf] %vm39, %v38
    %s41 = scalar_lea.vmem %s0, 1
    %v42 = vld [vmem:[%s41] ss:$8 sm:$0xf]
    %43 = vrot.lane.b32.xlu0 %v42, 16
    %v44 = vpop.permute.xlu0 %43
    %vm45 = vcmask 261248
    %46 = vst.msk [vmem:[#allocation0] ss:$8 sm:$0xf] %vm45, %v44
    %s48 = sshllo.u32 0, 1
    %v50 = vld [vmem:[#allocation0] sm:%s48]
    %s51 = sshllo.u32 0, 1
    %52 = vst [vmem:[%s1] sm:%s51] %v50
    %s53 = scalar_lea.vmem [#allocation0], 8
    %v54 = vld [vmem:[%s53] sm:%s48]
    %s55 = sshllo.u32 0, 1
    %s56 = scalar_lea.vmem %s1, 1
    %57 = vst [vmem:[%s56] sm:%s55] %v54
    %s58 = scalar_lea.vmem [#allocation0], 16
    %v59 = vld [vmem:[%s58] sm:%s48]
    %s60 = sshllo.u32 0, 1
    %s61 = smul.addr 1, 2
    %s62 = scalar_lea.vmem %s1, %s61
    %63 = vst [vmem:[%s62] sm:%s60] %v59
    %s64 = scalar_lea.vmem [#allocation0], 24
    %v65 = vld [vmem:[%s64] sm:%s48]
    %s66 = sshllo.u32 0, 1
    %s67 = smul.addr 1, 3
    %s68 = scalar_lea.vmem %s1, %s67
    %69 = vst [vmem:[%s68] sm:%s66] %v65

// kernel: dcgan_generator_forward.13
$region0: #{dcgan_generator_forward.13}
  #allocation0 [shape = 'u32[]', space=smem, size = 0x4, offset = 0x4, fixed_abs, tag = 'smem constant byte address 0x4 - core index']
  #allocation1 [shape = 'u32[144,128]{1,0:T(1,128)}', space=vmem, size = 0x12000, scoped, tag = 'internal scratch']
  %s0 = inlined_call_operand.vmem [shape: bf16[2,6,6,64], index: 0, kind: input, shape index: {}, may-alias: {0,1,2}]
  %s1 = inlined_call_operand.vmem [shape: bf16[2,6,6,64], index: 1, kind: input, shape index: {}, may-alias: {0,1,2}]
  %s2 = inlined_call_operand.vmem [shape: bf16[2,6,6,64], index: 2, kind: input, shape index: {}, may-alias: {0,1,2}]
  %s3 = inlined_call_operand.hbm [shape: bf16[4,256,32], index: 3, kind: input, shape index: {}]
  %s4 = inlined_call_operand.vmem [shape: bf16[2,4,4,128], index: 4, kind: output, shape index: {0}]
  %s5 = inlined_call_operand.vmem [shape: f32[2,4,2,32], index: 5, kind: output, shape index: {1}]
  %6 = xla_tuple %s4, %s5
  %s7 = sld [smem:[#allocation0]]
  $region61: #{dcgan_generator_forward.13} parent=0
    _
  %s9 = ssub.s32 1, %s7
  %s10 = scalar_select 0, %s9, %s7
  $region1: #{dcgan_generator_forward.13} parent=0
    #allocation2 [shape = 'u8[262144]{0}', space=vmem, size = 0x40000, scoped, tag = 'input window, operand 3, single buffered']
    #allocation3 [shape = 's32[2]{0}', space=sflag, size = 0x8, scoped, tag = 'scoped memory for dcgan_generator_forward.13']
    %11 = vsyncpa [#allocation3], 0
    loop: start=0, step=1, limit=10
    $region2: #{dcgan_generator_forward.13} parent=1 // loop_pre_header
      _
    $region3: #{dcgan_generator_forward.13} parent=1 // loop_header
      %s13 = sphi 0, %s17
      %p14 = scmp.ge.s32.totalorder %s13, 10
      %s20 = sphi 0, %s32
      %s21 = sphi 0, %s28
      %s22 = sphi 0, %s20
      %s23 = sphi 0, %s21
      %s24 = sphi 0, %s22
      %s25 = sphi 0, %s23
      %s37 = sphi 0, %s39
      %s40 = sphi 0, %s37
      %s41 = sphi 0, %s40
      %s57 = sphi 0, %s41
      %s67 = sphi 0, %s69
      %s70 = sphi 0, %s67
      %s71 = sphi 0, %s70
      %s87 = sphi 0, %s71
      %s97 = sphi 0, %s99
      %s100 = sphi 0, %s97
      %s101 = sphi 0, %s100
      %s117 = sphi 0, %s101
      %s121 = sphi 0, %s121
      %s123 = sphi 0, %s121
      %s124 = sphi 0, %s123
      %s138 = sphi 0, %s124
      %s146 = sphi 0, %s148
      %s149 = sphi 0, %s146
      %s150 = sphi 0, %s149
      %s166 = sphi 0, %s150
      %s174 = sphi 0, %s176
      %s177 = sphi 0, %s174
      %s178 = sphi 0, %s177
      %s194 = sphi 0, %s178
    $region4: #{dcgan_generator_forward.13} parent=1 // loop_header_branch
      %16 = sbr.rel (%p14) target = $region8
    $region5: #{dcgan_generator_forward.13} parent=1 // loop_body
      %s18 = ssub.s32 %s13, 1
      %s19 = ssub.s32 %s13, 2
      %s26 = sadd.s32 1, %s21
      %p27 = scmp.ge.s32.totalorder %s26, 4
      %s28 = scalar_select %p27, 0, %s26
      %s29 = sadd.s32 1, %s20
      %s30 = scalar_select %p27, %s29, %s20
      %p31 = scmp.ge.s32.totalorder %s30, 2
      %s32 = scalar_select %p31, 0, %s30
      %s33 = ssub.s32 %s20, %s32
      %s34 = ssub.s32 %s21, %s28
      %s35 = sor.u32 %s33, %s34
      %p36 = scmp.eq.s32.totalorder %s35, 0
      %s38 = sadd.s32 %s37, 1
      %s39 = scalar_select %p36, %s37, %s38
      %p42 = pneg %p36
      %p43 = scmp.eq.s32.totalorder %s13, 7
      %p44 = por %p42, %p43
      %p45 = scmp.ne.s32.totalorder %s37, %s40
      %p46 = scmp.eq.s32.totalorder %s13, 0
      %p47 = por %p45, %p46
      %p48 = scmp.ne.s32.totalorder %s37, %s40
      %p49 = scmp.eq.s32.totalorder %s18, 7
      %p50 = por %p48, %p49
      %p51 = scmp.ne.s32.totalorder %s40, %s41
      %p52 = scmp.eq.s32.totalorder %s18, 0
      %p53 = por %p51, %p52
      %p54 = scmp.ne.s32.totalorder %s40, %s41
      %p55 = scmp.eq.s32.totalorder %s19, 7
      %p56 = por %p54, %p55
      %p58 = scmp.ne.s32.totalorder %s41, %s57
      %p59 = scmp.eq.s32.totalorder %s19, 0
      %p60 = por %p58, %p59
      %s61 = sadd.s32 %s21, 1
      %s62 = sadd.s32 %s28, 1
      %s63 = ssub.s32 %s20, %s32
      %s64 = ssub.s32 %s61, %s62
      %s65 = sor.u32 %s63, %s64
      %p66 = scmp.eq.s32.totalorder %s65, 0
      %s68 = sadd.s32 %s67, 1
      %s69 = scalar_select %p66, %s67, %s68
      %p72 = pneg %p66
      %p73 = scmp.eq.s32.totalorder %s13, 7
      %p74 = por %p72, %p73
      %p75 = scmp.ne.s32.totalorder %s67, %s70
      %p76 = scmp.eq.s32.totalorder %s13, 0
      %p77 = por %p75, %p76
      %p78 = scmp.ne.s32.totalorder %s67, %s70
      %p79 = scmp.eq.s32.totalorder %s18, 7
      %p80 = por %p78, %p79
      %p81 = scmp.ne.s32.totalorder %s70, %s71
      %p82 = scmp.eq.s32.totalorder %s18, 0
      %p83 = por %p81, %p82
      %p84 = scmp.ne.s32.totalorder %s70, %s71
      %p85 = scmp.eq.s32.totalorder %s19, 7
      %p86 = por %p84, %p85
      %p88 = scmp.ne.s32.totalorder %s71, %s87
      %p89 = scmp.eq.s32.totalorder %s19, 0
      %p90 = por %p88, %p89
      %s91 = sadd.s32 %s21, 2
      %s92 = sadd.s32 %s28, 2
      %s93 = ssub.s32 %s20, %s32
      %s94 = ssub.s32 %s91, %s92
      %s95 = sor.u32 %s93, %s94
      %p96 = scmp.eq.s32.totalorder %s95, 0
      %s98 = sadd.s32 %s97, 1
      %s99 = scalar_select %p96, %s97, %s98
      %p102 = pneg %p96
      %p103 = scmp.eq.s32.totalorder %s13, 7
      %p104 = por %p102, %p103
      %p105 = scmp.ne.s32.totalorder %s97, %s100
      %p106 = scmp.eq.s32.totalorder %s13, 0
      %p107 = por %p105, %p106
      %p108 = scmp.ne.s32.totalorder %s97, %s100
      %p109 = scmp.eq.s32.totalorder %s18, 7
      %p110 = por %p108, %p109
      %p111 = scmp.ne.s32.totalorder %s100, %s101
      %p112 = scmp.eq.s32.totalorder %s18, 0
      %p113 = por %p111, %p112
      %p114 = scmp.ne.s32.totalorder %s100, %s101
      %p115 = scmp.eq.s32.totalorder %s19, 7
      %p116 = por %p114, %p115
      %p118 = scmp.ne.s32.totalorder %s101, %s117
      %p119 = scmp.eq.s32.totalorder %s19, 0
      %p120 = por %p118, %p119
      %s122 = sadd.s32 %s121, 1
      %p125 = scmp.eq.s32.totalorder %s13, 7
      %p126 = scmp.ne.s32.totalorder %s121, %s123
      %p127 = scmp.eq.s32.totalorder %s13, 0
      %p128 = por %p126, %p127
      %p129 = scmp.ne.s32.totalorder %s121, %s123
      %p130 = scmp.eq.s32.totalorder %s18, 7
      %p131 = por %p129, %p130
      %p132 = scmp.ne.s32.totalorder %s123, %s124
      %p133 = scmp.eq.s32.totalorder %s18, 0
      %p134 = por %p132, %p133
      %p135 = scmp.ne.s32.totalorder %s123, %s124
      %p136 = scmp.eq.s32.totalorder %s19, 7
      %p137 = por %p135, %p136
      %p139 = scmp.ne.s32.totalorder %s124, %s138
      %p140 = scmp.eq.s32.totalorder %s19, 0
      %p141 = por %p139, %p140
      %s142 = ssub.s32 %s20, %s32
      %s143 = ssub.s32 %s21, %s28
      %s144 = sor.u32 %s142, %s143
      %p145 = scmp.eq.s32.totalorder %s144, 0
      %s147 = sadd.s32 %s146, 1
      %s148 = scalar_select %p145, %s146, %s147
      %p151 = pneg %p145
      %p152 = scmp.eq.s32.totalorder %s13, 7
      %p153 = por %p151, %p152
      %p154 = scmp.ne.s32.totalorder %s146, %s149
      %p155 = scmp.eq.s32.totalorder %s13, 0
      %p156 = por %p154, %p155
      %p157 = scmp.ne.s32.totalorder %s146, %s149
      %p158 = scmp.eq.s32.totalorder %s18, 7
      %p159 = por %p157, %p158
      %p160 = scmp.ne.s32.totalorder %s149, %s150
      %p161 = scmp.eq.s32.totalorder %s18, 0
      %p162 = por %p160, %p161
      %p163 = scmp.ne.s32.totalorder %s149, %s150
      %p164 = scmp.eq.s32.totalorder %s19, 7
      %p165 = por %p163, %p164
      %p167 = scmp.ne.s32.totalorder %s150, %s166
      %p168 = scmp.eq.s32.totalorder %s19, 0
      %p169 = por %p167, %p168
      %s170 = ssub.s32 %s20, %s32
      %s171 = ssub.s32 %s21, %s28
      %s172 = sor.u32 %s170, %s171
      %p173 = scmp.eq.s32.totalorder %s172, 0
      %s175 = sadd.s32 %s174, 1
      %s176 = scalar_select %p173, %s174, %s175
      %p179 = pneg %p173
      %p180 = scmp.eq.s32.totalorder %s13, 7
      %p181 = por %p179, %p180
      %p182 = scmp.ne.s32.totalorder %s174, %s177
      %p183 = scmp.eq.s32.totalorder %s13, 0
      %p184 = por %p182, %p183
      %p185 = scmp.ne.s32.totalorder %s174, %s177
      %p186 = scmp.eq.s32.totalorder %s18, 7
      %p187 = por %p185, %p186
      %p188 = scmp.ne.s32.totalorder %s177, %s178
      %p189 = scmp.eq.s32.totalorder %s18, 0
      %p190 = por %p188, %p189
      %p191 = scmp.ne.s32.totalorder %s177, %s178
      %p192 = scmp.eq.s32.totalorder %s19, 7
      %p193 = por %p191, %p192
      %p195 = scmp.ne.s32.totalorder %s178, %s194
      %p196 = scmp.eq.s32.totalorder %s19, 0
      %p197 = por %p195, %p196
      %p198 = scmp.le.s32.totalorder 1, %s13
      %p199 = scmp.lt.s32.totalorder %s13, 9
      %p200 = pnand %p198, %p199
      %p201 = pneg %p200
      // Predicated region
      $region9: #{dcgan_generator_forward.13} parent=5 // pred_check
        _
      $region10: #{dcgan_generator_forward.13} parent=5 // pred_check_branch
        %203 = sbr.rel (%p200) target = $region12
      $region11: #{dcgan_generator_forward.13} parent=5 // pred_region
        %s204 = ssub.s32 %s13, 1
        // Predicated region
        $region13: #{dcgan_generator_forward.13} parent=11 // pred_check
          %p205 = pneg %p134
        $region14: #{dcgan_generator_forward.13} parent=11 // pred_check_branch
          %207 = sbr.rel (%p205) target = $region16
        $region15: #{dcgan_generator_forward.13} parent=11 // pred_region
          %s209 = ssub.s32 8192, 8192
          %210 = vsyncadd [#allocation3], %s209
          %s211 = sshll.u32 [#allocation2], 4
          %s212 = int_to_ptr.vmem [resolvable:$true] %s211
          %217 = dma.hbm_to_vmem [thread:$0]  %s3, 8192, %s212, [#allocation3], 64, 64, 4
        $region16: #{dcgan_generator_forward.13} parent=11 // pred_fallthru
          _
      $region12: #{dcgan_generator_forward.13} parent=5 // pred_fallthru
        _
      %p218 = scmp.lt.s32.totalorder %s13, 8
      // Predicated region
      $region17: #{dcgan_generator_forward.13} parent=5 // pred_check
        %p219 = pneg %p218
      $region18: #{dcgan_generator_forward.13} parent=5 // pred_check_branch
        %221 = sbr.rel (%p219) target = $region20
      $region19: #{dcgan_generator_forward.13} parent=5 // pred_region
        // Predicated region
        $region21: #{dcgan_generator_forward.13} parent=19 // pred_check
          %p222 = pneg %p47
        $region22: #{dcgan_generator_forward.13} parent=19 // pred_check_branch
          %224 = sbr.rel (%p222) target = $region24
        $region23: #{dcgan_generator_forward.13} parent=19 // pred_region
          %p225 = scmp.lt.s32.totalorder %s20, 1
          %s226 = scalar_select %p225, %s20, 1
          %p227 = scmp.lt.s32.totalorder %s21, 5
          %s228 = scalar_select %p227, %s21, 5
          %s229 = smul.addr %s226, 6
          %s230 = sadd.s32 %s228, %s229
          %s231 = smul.addr %s230, 4
          %s232 = scalar_lea.vmem %s0, %s231
        $region24: #{dcgan_generator_forward.13} parent=19 // pred_fallthru
          _
        // Predicated region
        $region25: #{dcgan_generator_forward.13} parent=19 // pred_check
          %p233 = pneg %p77
        $region26: #{dcgan_generator_forward.13} parent=19 // pred_check_branch
          %235 = sbr.rel (%p233) target = $region28
        $region27: #{dcgan_generator_forward.13} parent=19 // pred_region
          %s236 = sadd.s32 %s21, 1
          %p237 = scmp.lt.s32.totalorder %s20, 1
          %s238 = scalar_select %p237, %s20, 1
          %p239 = scmp.lt.s32.totalorder %s236, 5
          %s240 = scalar_select %p239, %s236, 5
          %s241 = smul.addr %s238, 6
          %s242 = sadd.s32 %s240, %s241
          %s243 = smul.addr %s242, 4
          %s244 = scalar_lea.vmem %s1, %s243
          %s245 = sadd.s32 %s21, 1
        $region28: #{dcgan_generator_forward.13} parent=19 // pred_fallthru
          _
        // Predicated region
        $region29: #{dcgan_generator_forward.13} parent=19 // pred_check
          %p246 = pneg %p107
        $region30: #{dcgan_generator_forward.13} parent=19 // pred_check_branch
          %248 = sbr.rel (%p246) target = $region32
        $region31: #{dcgan_generator_forward.13} parent=19 // pred_region
          %s249 = sadd.s32 %s21, 2
          %p250 = scmp.lt.s32.totalorder %s20, 1
          %s251 = scalar_select %p250, %s20, 1
          %p252 = scmp.lt.s32.totalorder %s249, 5
          %s253 = scalar_select %p252, %s249, 5
          %s254 = smul.addr %s251, 6
          %s255 = sadd.s32 %s253, %s254
          %s256 = smul.addr %s255, 4
          %s257 = scalar_lea.vmem %s2, %s256
          %s258 = sadd.s32 %s21, 2
        $region32: #{dcgan_generator_forward.13} parent=19 // pred_fallthru
          _
      $region20: #{dcgan_generator_forward.13} parent=5 // pred_fallthru
        _
      %p259 = scmp.le.s32.totalorder 1, %s13
      %p260 = scmp.lt.s32.totalorder %s13, 9
      %p261 = pnand %p259, %p260
      %p262 = pneg %p261
      // Predicated region
      $region33: #{dcgan_generator_forward.13} parent=5 // pred_check
        _
      $region34: #{dcgan_generator_forward.13} parent=5 // pred_check_branch
        %264 = sbr.rel (%p261) target = $region36
      $region35: #{dcgan_generator_forward.13} parent=5 // pred_region
        %s265 = ssub.s32 %s13, 1
        // Predicated region
        $region37: #{dcgan_generator_forward.13} parent=35 // pred_check
          %p266 = pneg %p134
        $region38: #{dcgan_generator_forward.13} parent=35 // pred_check_branch
          %268 = sbr.rel (%p266) target = $region40
        $region39: #{dcgan_generator_forward.13} parent=35 // pred_region
          %269 = dma.done [#allocation3], 8192
        $region40: #{dcgan_generator_forward.13} parent=35 // pred_fallthru
          _
        %p270 = scmp.lt.s32.totalorder %s22, 1
        %s271 = scalar_select %p270, %s22, 1
        %p272 = scmp.lt.s32.totalorder %s23, 5
        %s273 = scalar_select %p272, %s23, 5
        %s274 = smul.addr %s271, 6
        %s275 = sadd.s32 %s273, %s274
        %s276 = smul.addr %s275, 4
        %s277 = scalar_lea.vmem %s0, %s276
        %p278 = pneg %p53
        %p279 = pneg %p50
        %s280 = sadd.s32 %s23, 1
        %p281 = scmp.lt.s32.totalorder %s22, 1
        %s282 = scalar_select %p281, %s22, 1
        %p283 = scmp.lt.s32.totalorder %s280, 5
        %s284 = scalar_select %p283, %s280, 5
        %s285 = smul.addr %s282, 6
        %s286 = sadd.s32 %s284, %s285
        %s287 = smul.addr %s286, 4
        %s288 = scalar_lea.vmem %s1, %s287
        %p289 = pneg %p83
        %p290 = pneg %p80
        %s291 = sadd.s32 %s23, 2
        %p292 = scmp.lt.s32.totalorder %s22, 1
        %s293 = scalar_select %p292, %s22, 1
        %p294 = scmp.lt.s32.totalorder %s291, 5
        %s295 = scalar_select %p294, %s291, 5
        %s296 = smul.addr %s293, 6
        %s297 = sadd.s32 %s295, %s296
        %s298 = smul.addr %s297, 4
        %s299 = scalar_lea.vmem %s2, %s298
        %p300 = pneg %p113
        %p301 = pneg %p110
        %p302 = pneg %p134
        %p303 = pneg %p131
        %p304 = pneg %p162
        %p305 = pneg %p159
        %p306 = scmp.lt.s32.totalorder %s22, 1
        %s307 = scalar_select %p306, %s22, 1
        %p308 = scmp.lt.s32.totalorder %s23, 3
        %s309 = scalar_select %p308, %s23, 3
        %s310 = smul.addr %s307, 4
        %s311 = sadd.s32 %s309, %s310
        %s312 = smul.addr %s311, 2
        %s313 = scalar_lea.vmem %s4, %s312
        %p314 = pneg %p190
        %p315 = pneg %p187
        %p316 = scmp.lt.s32.totalorder %s22, 1
        %s317 = scalar_select %p316, %s22, 1
        %p318 = scmp.lt.s32.totalorder %s23, 3
        %s319 = scalar_select %p318, %s23, 3
        %s320 = smul.addr %s317, 4
        %s321 = sadd.s32 %s319, %s320
        %s322 = smul.addr %s321, 2
        %s323 = scalar_lea.vmem %s5, %s322
        %p324 = scmp.lt.s32.totalorder %s22, 1
        %s325 = scalar_select %p324, %s22, 1
        %p326 = scmp.lt.s32.totalorder %s23, 5
        %s327 = scalar_select %p326, %s23, 5
        %s328 = smul.addr %s325, 6
        %s329 = sadd.s32 %s327, %s328
        %s330 = smul.addr %s329, 4
        %s331 = scalar_lea.vmem %s0, %s330
        %s332 = sadd.s32 %s23, 1
        %p333 = scmp.lt.s32.totalorder %s22, 1
        %s334 = scalar_select %p333, %s22, 1
        %p335 = scmp.lt.s32.totalorder %s332, 5
        %s336 = scalar_select %p335, %s332, 5
        %s337 = smul.addr %s334, 6
        %s338 = sadd.s32 %s336, %s337
        %s339 = smul.addr %s338, 4
        %s340 = scalar_lea.vmem %s1, %s339
        %s341 = sadd.s32 %s23, 1
        %s342 = sadd.s32 %s23, 2
        %p343 = scmp.lt.s32.totalorder %s22, 1
        %s344 = scalar_select %p343, %s22, 1
        %p345 = scmp.lt.s32.totalorder %s342, 5
        %s346 = scalar_select %p345, %s342, 5
        %s347 = smul.addr %s344, 6
        %s348 = sadd.s32 %s346, %s347
        %s349 = smul.addr %s348, 4
        %s350 = scalar_lea.vmem %s2, %s349
        %s351 = sadd.s32 %s23, 2
        %p352 = scmp.lt.s32.totalorder %s22, 1
        %s353 = scalar_select %p352, %s22, 1
        %p354 = scmp.lt.s32.totalorder %s23, 3
        %s355 = scalar_select %p354, %s23, 3
        %s356 = smul.addr %s353, 4
        %s357 = sadd.s32 %s355, %s356
        %s358 = smul.addr %s357, 2
        %s359 = scalar_lea.vmem %s4, %s358
        %p360 = scmp.lt.s32.totalorder %s22, 1
        %s361 = scalar_select %p360, %s22, 1
        %p362 = scmp.lt.s32.totalorder %s23, 3
        %s363 = scalar_select %p362, %s23, 3
        %s364 = smul.addr %s361, 4
        %s365 = sadd.s32 %s363, %s364
        %s366 = smul.addr %s365, 2
        %s367 = scalar_lea.vmem %s5, %s366
        %v369 = vld [vmem:[%s331] sm:$0x7]
        %v370 = vld [vmem:[%s340] sm:$0x7]
        %v371 = vld [vmem:[%s350] sm:$0x7]
        %v373 = vunpack.c.l.b16 %v369
        %v374 = vpack.c.b16 %v373, %v373
        %v376 = vshrl.u32 %v374, 16
        %v378 = vshll.u32 %v374, 16
        %v380 = vrot.slane %v378, 1
        %v381 = vor.u32 %v376, %v380
        %382 = vrot.lane.b32.xlu0 %v381, 64
        %v383 = vpop.permute.xlu0 %382
        %v385 = vunpack.c.l.b16 %v370
        %v386 = vpack.c.b16 %v385, %v385
        %v388 = vshrl.u32 %v386, 16
        %v390 = vshll.u32 %v386, 16
        %v392 = vrot.slane %v390, 1
        %v393 = vor.u32 %v388, %v392
        %394 = vrot.lane.b32.xlu0 %v393, 64
        %v395 = vpop.permute.xlu0 %394
        %vm396 = vcmask 523264
        %v399 = vsel %vm396, %v369, %v383
        %v403 = vsel %vm396, %v370, %v395
        %v405 = vld [vmem:[#allocation2] sm:$0xf]
        %v406 = vld [vmem:[#allocation2 + $0x4] sm:$0xf]
        %v407 = vld [vmem:[#allocation2 + $0x8] sm:$0xf]
        %v408 = vld [vmem:[#allocation2 + $0xc] sm:$0xf]
        %v409 = vld [vmem:[#allocation2 + $0x10] sm:$0xf]
        %v410 = vld [vmem:[#allocation2 + $0x14] sm:$0xf]
        %v411 = vld [vmem:[#allocation2 + $0x18] sm:$0xf]
        %v412 = vld [vmem:[#allocation2 + $0x1c] sm:$0xf]
        %v413 = vld [vmem:[#allocation2 + $0x20] sm:$0xf]
        %v414 = vld [vmem:[#allocation2 + $0x24] sm:$0xf]
        %v415 = vld [vmem:[#allocation2 + $0x28] sm:$0xf]
        %v416 = vld [vmem:[#allocation2 + $0x2c] sm:$0xf]
        %v417 = vld [vmem:[#allocation2 + $0x30] sm:$0xf]
        %v418 = vld [vmem:[#allocation2 + $0x34] sm:$0xf]
        %v419 = vld [vmem:[#allocation2 + $0x38] sm:$0xf]
        %v420 = vld [vmem:[#allocation2 + $0x3c] sm:$0xf]
        %v421 = vld [vmem:[#allocation2 + $0x40] sm:$0xf]
        %v422 = vld [vmem:[#allocation2 + $0x44] sm:$0xf]
        %v423 = vld [vmem:[#allocation2 + $0x48] sm:$0xf]
        %v424 = vld [vmem:[#allocation2 + $0x4c] sm:$0xf]
        %v425 = vld [vmem:[#allocation2 + $0x50] sm:$0xf]
        %v426 = vld [vmem:[#allocation2 + $0x54] sm:$0xf]
        %v427 = vld [vmem:[#allocation2 + $0x58] sm:$0xf]
        %v428 = vld [vmem:[#allocation2 + $0x5c] sm:$0xf]
        %v429 = vld [vmem:[#allocation2 + $0x60] sm:$0xf]
        %v430 = vld [vmem:[#allocation2 + $0x64] sm:$0xf]
        %v431 = vld [vmem:[#allocation2 + $0x68] sm:$0xf]
        %v432 = vld [vmem:[#allocation2 + $0x6c] sm:$0xf]
        %v433 = vld [vmem:[#allocation2 + $0x70] sm:$0xf]
        %v434 = vld [vmem:[#allocation2 + $0x74] sm:$0xf]
        %v435 = vld [vmem:[#allocation2 + $0x78] sm:$0xf]
        %v436 = vld [vmem:[#allocation2 + $0x7c] sm:$0xf]
        %v469 = vunpack.c.l.b16 %v405
        %v470 = vunpack.c.l.b16 %v406
        %v471 = vunpack.c.l.b16 %v407
        %v472 = vunpack.c.l.b16 %v408
        %v473 = vunpack.c.l.b16 %v409
        %v474 = vunpack.c.l.b16 %v410
        %v475 = vunpack.c.l.b16 %v411
        %v476 = vunpack.c.l.b16 %v412
        %v477 = vunpack.c.l.b16 %v413
        %v478 = vunpack.c.l.b16 %v414
        %v479 = vunpack.c.l.b16 %v415
        %v480 = vunpack.c.l.b16 %v416
        %v481 = vunpack.c.l.b16 %v417
        %v482 = vunpack.c.l.b16 %v418
        %v483 = vunpack.c.l.b16 %v419
        %v484 = vunpack.c.l.b16 %v420
        %v485 = vunpack.c.l.b16 %v421
        %v486 = vunpack.c.l.b16 %v422
        %v487 = vunpack.c.l.b16 %v423
        %v488 = vunpack.c.l.b16 %v424
        %v489 = vunpack.c.l.b16 %v425
        %v490 = vunpack.c.l.b16 %v426
        %v491 = vunpack.c.l.b16 %v427
        %v492 = vunpack.c.l.b16 %v428
        %v493 = vunpack.c.l.b16 %v429
        %v494 = vunpack.c.l.b16 %v430
        %v495 = vunpack.c.l.b16 %v431
        %v496 = vunpack.c.l.b16 %v432
        %v497 = vunpack.c.l.b16 %v433
        %v498 = vunpack.c.l.b16 %v434
        %v499 = vunpack.c.l.b16 %v435
        %v500 = vunpack.c.l.b16 %v436
        %v501 = vpack.c.b16 %v470, %v469
        %v502 = vpack.c.b16 %v472, %v471
        %v503 = vpack.c.b16 %v474, %v473
        %v504 = vpack.c.b16 %v476, %v475
        %v505 = vpack.c.b16 %v478, %v477
        %v506 = vpack.c.b16 %v480, %v479
        %v507 = vpack.c.b16 %v482, %v481
        %v508 = vpack.c.b16 %v484, %v483
        %v509 = vpack.c.b16 %v486, %v485
        %v510 = vpack.c.b16 %v488, %v487
        %v511 = vpack.c.b16 %v490, %v489
        %v512 = vpack.c.b16 %v492, %v491
        %v513 = vpack.c.b16 %v494, %v493
        %v514 = vpack.c.b16 %v496, %v495
        %v515 = vpack.c.b16 %v498, %v497
        %v516 = vpack.c.b16 %v500, %v499
        %533 = vmatprep.subr.bf16.mxu0 0
        %534 = vmatpush1.bf16.msra.mxu0 %v501
        %535 = vmatprep.subr.bf16.mxu0 0
        %536 = vmatpush1.bf16.msra.mxu0 %v502
        %537 = vmatprep.subr.bf16.mxu0 0
        %538 = vmatpush1.bf16.msra.mxu0 %v503
        %539 = vmatprep.subr.bf16.mxu0 0
        %540 = vmatpush1.bf16.msra.mxu0 %v504
        %541 = vmatprep.subr.bf16.mxu0 0
        %542 = vmatpush1.bf16.msra.mxu0 %v505
        %543 = vmatprep.subr.bf16.mxu0 0
        %544 = vmatpush1.bf16.msra.mxu0 %v506
        %545 = vmatprep.subr.bf16.mxu0 0
        %546 = vmatpush1.bf16.msra.mxu0 %v507
        %547 = vmatprep.subr.bf16.mxu0 0
        %548 = vmatpush1.bf16.msra.mxu0 %v508
        %549 = vmatprep.subr.bf16.mxu0 0
        %550 = vmatpush1.bf16.msra.mxu0 %v509
        %551 = vmatprep.subr.bf16.mxu0 0
        %552 = vmatpush1.bf16.msra.mxu0 %v510
        %553 = vmatprep.subr.bf16.mxu0 0
        %554 = vmatpush1.bf16.msra.mxu0 %v511
        %555 = vmatprep.subr.bf16.mxu0 0
        %556 = vmatpush1.bf16.msra.mxu0 %v512
        %557 = vmatprep.subr.bf16.mxu0 0
        %558 = vmatpush1.bf16.msra.mxu0 %v513
        %559 = vmatprep.subr.bf16.mxu0 0
        %560 = vmatpush1.bf16.msra.mxu0 %v514
        %561 = vmatprep.subr.bf16.mxu0 0
        %562 = vmatpush1.bf16.msra.mxu0 %v515
        %563 = vmatprep.subr.bf16.mxu0 0
        %564 = vmatpush1.bf16.msra.mxu0 %v516
        %565 = vmatprep.mubr.bf16.mxu0 %v403
        %566 = vmatmul.mubr.bf16.gmra.mrb[0].mxu0 %v399
        %v567 = vpop.f32.mrb[0].mxu0
        %v568 = vadd.f32 0.0, %v567
        %v569 = vpop.f32.mrb[0].mxu0
        %v570 = vpop.f32.mrb[0].mxu0
        %v571 = vpop.f32.mrb[0].mxu0
        %572 = vdwg.mxu0
        %s573 = scalar_lea.vmem [#allocation2], 128
        %v574 = vld [vmem:[%s573] sm:$0xf]
        %v575 = vld [vmem:[%s573 + $0x4] sm:$0xf]
        %v576 = vld [vmem:[%s573 + $0x8] sm:$0xf]
        %v577 = vld [vmem:[%s573 + $0xc] sm:$0xf]
        %v578 = vld [vmem:[%s573 + $0x10] sm:$0xf]
        %v579 = vld [vmem:[%s573 + $0x14] sm:$0xf]
        %v580 = vld [vmem:[%s573 + $0x18] sm:$0xf]
        %v581 = vld [vmem:[%s573 + $0x1c] sm:$0xf]
        %v582 = vld [vmem:[%s573 + $0x20] sm:$0xf]
        %v583 = vld [vmem:[%s573 + $0x24] sm:$0xf]
        %v584 = vld [vmem:[%s573 + $0x28] sm:$0xf]
        %v585 = vld [vmem:[%s573 + $0x2c] sm:$0xf]
        %v586 = vld [vmem:[%s573 + $0x30] sm:$0xf]
        %v587 = vld [vmem:[%s573 + $0x34] sm:$0xf]
        %v588 = vld [vmem:[%s573 + $0x38] sm:$0xf]
        %v589 = vld [vmem:[%s573 + $0x3c] sm:$0xf]
        %v590 = vld [vmem:[%s573 + $0x40] sm:$0xf]
        %v591 = vld [vmem:[%s573 + $0x44] sm:$0xf]
        %v592 = vld [vmem:[%s573 + $0x48] sm:$0xf]
        %v593 = vld [vmem:[%s573 + $0x4c] sm:$0xf]
        %v594 = vld [vmem:[%s573 + $0x50] sm:$0xf]
        %v595 = vld [vmem:[%s573 + $0x54] sm:$0xf]
        %v596 = vld [vmem:[%s573 + $0x58] sm:$0xf]
        %v597 = vld [vmem:[%s573 + $0x5c] sm:$0xf]
        %v598 = vld [vmem:[%s573 + $0x60] sm:$0xf]
        %v599 = vld [vmem:[%s573 + $0x64] sm:$0xf]
        %v600 = vld [vmem:[%s573 + $0x68] sm:$0xf]
        %v601 = vld [vmem:[%s573 + $0x6c] sm:$0xf]
        %v602 = vld [vmem:[%s573 + $0x70] sm:$0xf]
        %v603 = vld [vmem:[%s573 + $0x74] sm:$0xf]
        %v604 = vld [vmem:[%s573 + $0x78] sm:$0xf]
        %v605 = vld [vmem:[%s573 + $0x7c] sm:$0xf]
        %v606 = vshrl.u32 %v399, 16
        %v608 = vshll.u32 %v399, 16
        %v610 = vrot.slane %v608, 1
        %v611 = vor.u32 %v606, %v610
        %v612 = vshrl.u32 %v403, 16
        %v614 = vshll.u32 %v403, 16
        %v616 = vrot.slane %v614, 1
        %v617 = vor.u32 %v612, %v616
        %v652 = vunpack.c.l.b16 %v574
        %v653 = vunpack.c.l.b16 %v575
        %v654 = vunpack.c.l.b16 %v576
        %v655 = vunpack.c.l.b16 %v577
        %v656 = vunpack.c.l.b16 %v578
        %v657 = vunpack.c.l.b16 %v579
        %v658 = vunpack.c.l.b16 %v580
        %v659 = vunpack.c.l.b16 %v581
        %v660 = vunpack.c.l.b16 %v582
        %v661 = vunpack.c.l.b16 %v583
        %v662 = vunpack.c.l.b16 %v584
        %v663 = vunpack.c.l.b16 %v585
        %v664 = vunpack.c.l.b16 %v586
        %v665 = vunpack.c.l.b16 %v587
        %v666 = vunpack.c.l.b16 %v588
        %v667 = vunpack.c.l.b16 %v589
        %v668 = vunpack.c.l.b16 %v590
        %v669 = vunpack.c.l.b16 %v591
        %v670 = vunpack.c.l.b16 %v592
        %v671 = vunpack.c.l.b16 %v593
        %v672 = vunpack.c.l.b16 %v594
        %v673 = vunpack.c.l.b16 %v595
        %v674 = vunpack.c.l.b16 %v596
        %v675 = vunpack.c.l.b16 %v597
        %v676 = vunpack.c.l.b16 %v598
        %v677 = vunpack.c.l.b16 %v599
        %v678 = vunpack.c.l.b16 %v600
        %v679 = vunpack.c.l.b16 %v601
        %v680 = vunpack.c.l.b16 %v602
        %v681 = vunpack.c.l.b16 %v603
        %v682 = vunpack.c.l.b16 %v604
        %v683 = vunpack.c.l.b16 %v605
        %v684 = vpack.c.b16 %v653, %v652
        %v685 = vpack.c.b16 %v655, %v654
        %v686 = vpack.c.b16 %v657, %v656
        %v687 = vpack.c.b16 %v659, %v658
        %v688 = vpack.c.b16 %v661, %v660
        %v689 = vpack.c.b16 %v663, %v662
        %v690 = vpack.c.b16 %v665, %v664
        %v691 = vpack.c.b16 %v667, %v666
        %v692 = vpack.c.b16 %v669, %v668
        %v693 = vpack.c.b16 %v671, %v670
        %v694 = vpack.c.b16 %v673, %v672
        %v695 = vpack.c.b16 %v675, %v674
        %v696 = vpack.c.b16 %v677, %v676
        %v697 = vpack.c.b16 %v679, %v678
        %v698 = vpack.c.b16 %v681, %v680
        %v699 = vpack.c.b16 %v683, %v682
        %716 = vmatprep.subr.bf16.mxu0 0
        %717 = vmatpush1.bf16.msra.mxu0 %v684
        %718 = vmatprep.subr.bf16.mxu0 0
        %719 = vmatpush1.bf16.msra.mxu0 %v685
        %720 = vmatprep.subr.bf16.mxu0 0
        %721 = vmatpush1.bf16.msra.mxu0 %v686
        %722 = vmatprep.subr.bf16.mxu0 0
        %723 = vmatpush1.bf16.msra.mxu0 %v687
        %724 = vmatprep.subr.bf16.mxu0 0
        %725 = vmatpush1.bf16.msra.mxu0 %v688
        %726 = vmatprep.subr.bf16.mxu0 0
        %727 = vmatpush1.bf16.msra.mxu0 %v689
        %728 = vmatprep.subr.bf16.mxu0 0
        %729 = vmatpush1.bf16.msra.mxu0 %v690
        %730 = vmatprep.subr.bf16.mxu0 0
        %731 = vmatpush1.bf16.msra.mxu0 %v691
        %732 = vmatprep.subr.bf16.mxu0 0
        %733 = vmatpush1.bf16.msra.mxu0 %v692
        %734 = vmatprep.subr.bf16.mxu0 0
        %735 = vmatpush1.bf16.msra.mxu0 %v693
        %736 = vmatprep.subr.bf16.mxu0 0
        %737 = vmatpush1.bf16.msra.mxu0 %v694
        %738 = vmatprep.subr.bf16.mxu0 0
        %739 = vmatpush1.bf16.msra.mxu0 %v695
        %740 = vmatprep.subr.bf16.mxu0 0
        %741 = vmatpush1.bf16.msra.mxu0 %v696
        %742 = vmatprep.subr.bf16.mxu0 0
        %743 = vmatpush1.bf16.msra.mxu0 %v697
        %744 = vmatprep.subr.bf16.mxu0 0
        %745 = vmatpush1.bf16.msra.mxu0 %v698
        %746 = vmatprep.subr.bf16.mxu0 0
        %747 = vmatpush1.bf16.msra.mxu0 %v699
        %748 = vmatprep.mubr.bf16.mxu0 %v617
        %749 = vmatmul.mubr.bf16.gmra.mrb[0].mxu0 %v611
        %v750 = vpop.f32.mrb[0].mxu0
        %v751 = vadd.f32 0.0, %v750
        %v752 = vpop.f32.mrb[0].mxu0
        %v753 = vpop.f32.mrb[0].mxu0
        %v754 = vpop.f32.mrb[0].mxu0
        %755 = vdwg.mxu0
        %v757 = vunpack.c.l.b16 %v371
        %v758 = vpack.c.b16 %v757, %v757
        %v760 = vshrl.u32 %v758, 16
        %v762 = vshll.u32 %v758, 16
        %v764 = vrot.slane %v762, 1
        %v765 = vor.u32 %v760, %v764
        %766 = vrot.lane.b32.xlu0 %v765, 64
        %v767 = vpop.permute.xlu0 %766
        %v770 = vsel %vm396, %v371, %v767
        %s772 = scalar_lea.vmem [#allocation2], 256
        %v773 = vld [vmem:[%s772] sm:$0xf]
        %v774 = vld [vmem:[%s772 + $0x4] sm:$0xf]
        %v775 = vld [vmem:[%s772 + $0x8] sm:$0xf]
        %v776 = vld [vmem:[%s772 + $0xc] sm:$0xf]
        %v777 = vld [vmem:[%s772 + $0x10] sm:$0xf]
        %v778 = vld [vmem:[%s772 + $0x14] sm:$0xf]
        %v779 = vld [vmem:[%s772 + $0x18] sm:$0xf]
        %v780 = vld [vmem:[%s772 + $0x1c] sm:$0xf]
        %v781 = vld [vmem:[%s772 + $0x20] sm:$0xf]
        %v782 = vld [vmem:[%s772 + $0x24] sm:$0xf]
        %v783 = vld [vmem:[%s772 + $0x28] sm:$0xf]
        %v784 = vld [vmem:[%s772 + $0x2c] sm:$0xf]
        %v785 = vld [vmem:[%s772 + $0x30] sm:$0xf]
        %v786 = vld [vmem:[%s772 + $0x34] sm:$0xf]
        %v787 = vld [vmem:[%s772 + $0x38] sm:$0xf]
        %v788 = vld [vmem:[%s772 + $0x3c] sm:$0xf]
        %v789 = vld [vmem:[%s772 + $0x40] sm:$0xf]
        %v790 = vld [vmem:[%s772 + $0x44] sm:$0xf]
        %v791 = vld [vmem:[%s772 + $0x48] sm:$0xf]
        %v792 = vld [vmem:[%s772 + $0x4c] sm:$0xf]
        %v793 = vld [vmem:[%s772 + $0x50] sm:$0xf]
        %v794 = vld [vmem:[%s772 + $0x54] sm:$0xf]
        %v795 = vld [vmem:[%s772 + $0x58] sm:$0xf]
        %v796 = vld [vmem:[%s772 + $0x5c] sm:$0xf]
        %v797 = vld [vmem:[%s772 + $0x60] sm:$0xf]
        %v798 = vld [vmem:[%s772 + $0x64] sm:$0xf]
        %v799 = vld [vmem:[%s772 + $0x68] sm:$0xf]
        %v800 = vld [vmem:[%s772 + $0x6c] sm:$0xf]
        %v801 = vld [vmem:[%s772 + $0x70] sm:$0xf]
        %v802 = vld [vmem:[%s772 + $0x74] sm:$0xf]
        %v803 = vld [vmem:[%s772 + $0x78] sm:$0xf]
        %v804 = vld [vmem:[%s772 + $0x7c] sm:$0xf]
        %v837 = vunpack.c.l.b16 %v773
        %v838 = vunpack.c.l.b16 %v774
        %v839 = vunpack.c.l.b16 %v775
        %v840 = vunpack.c.l.b16 %v776
        %v841 = vunpack.c.l.b16 %v777
        %v842 = vunpack.c.l.b16 %v778
        %v843 = vunpack.c.l.b16 %v779
        %v844 = vunpack.c.l.b16 %v780
        %v845 = vunpack.c.l.b16 %v781
        %v846 = vunpack.c.l.b16 %v782
        %v847 = vunpack.c.l.b16 %v783
        %v848 = vunpack.c.l.b16 %v784
        %v849 = vunpack.c.l.b16 %v785
        %v850 = vunpack.c.l.b16 %v786
        %v851 = vunpack.c.l.b16 %v787
        %v852 = vunpack.c.l.b16 %v788
        %v853 = vunpack.c.l.b16 %v789
        %v854 = vunpack.c.l.b16 %v790
        %v855 = vunpack.c.l.b16 %v791
        %v856 = vunpack.c.l.b16 %v792
        %v857 = vunpack.c.l.b16 %v793
        %v858 = vunpack.c.l.b16 %v794
        %v859 = vunpack.c.l.b16 %v795
        %v860 = vunpack.c.l.b16 %v796
        %v861 = vunpack.c.l.b16 %v797
        %v862 = vunpack.c.l.b16 %v798
        %v863 = vunpack.c.l.b16 %v799
        %v864 = vunpack.c.l.b16 %v800
        %v865 = vunpack.c.l.b16 %v801
        %v866 = vunpack.c.l.b16 %v802
        %v867 = vunpack.c.l.b16 %v803
        %v868 = vunpack.c.l.b16 %v804
        %v869 = vpack.c.b16 %v838, %v837
        %v870 = vpack.c.b16 %v840, %v839
        %v871 = vpack.c.b16 %v842, %v841
        %v872 = vpack.c.b16 %v844, %v843
        %v873 = vpack.c.b16 %v846, %v845
        %v874 = vpack.c.b16 %v848, %v847
        %v875 = vpack.c.b16 %v850, %v849
        %v876 = vpack.c.b16 %v852, %v851
        %v877 = vpack.c.b16 %v854, %v853
        %v878 = vpack.c.b16 %v856, %v855
        %v879 = vpack.c.b16 %v858, %v857
        %v880 = vpack.c.b16 %v860, %v859
        %v881 = vpack.c.b16 %v862, %v861
        %v882 = vpack.c.b16 %v864, %v863
        %v883 = vpack.c.b16 %v866, %v865
        %v884 = vpack.c.b16 %v868, %v867
        %901 = vmatprep.subr.bf16.mxu0 0
        %902 = vmatpush1.bf16.msra.mxu0 %v869
        %903 = vmatprep.subr.bf16.mxu0 0
        %904 = vmatpush1.bf16.msra.mxu0 %v870
        %905 = vmatprep.subr.bf16.mxu0 0
        %906 = vmatpush1.bf16.msra.mxu0 %v871
        %907 = vmatprep.subr.bf16.mxu0 0
        %908 = vmatpush1.bf16.msra.mxu0 %v872
        %909 = vmatprep.subr.bf16.mxu0 0
        %910 = vmatpush1.bf16.msra.mxu0 %v873
        %911 = vmatprep.subr.bf16.mxu0 0
        %912 = vmatpush1.bf16.msra.mxu0 %v874
        %913 = vmatprep.subr.bf16.mxu0 0
        %914 = vmatpush1.bf16.msra.mxu0 %v875
        %915 = vmatprep.subr.bf16.mxu0 0
        %916 = vmatpush1.bf16.msra.mxu0 %v876
        %917 = vmatprep.subr.bf16.mxu0 0
        %918 = vmatpush1.bf16.msra.mxu0 %v877
        %919 = vmatprep.subr.bf16.mxu0 0
        %920 = vmatpush1.bf16.msra.mxu0 %v878
        %921 = vmatprep.subr.bf16.mxu0 0
        %922 = vmatpush1.bf16.msra.mxu0 %v879
        %923 = vmatprep.subr.bf16.mxu0 0
        %924 = vmatpush1.bf16.msra.mxu0 %v880
        %925 = vmatprep.subr.bf16.mxu0 0
        %926 = vmatpush1.bf16.msra.mxu0 %v881
        %927 = vmatprep.subr.bf16.mxu0 0
        %928 = vmatpush1.bf16.msra.mxu0 %v882
        %929 = vmatprep.subr.bf16.mxu0 0
        %930 = vmatpush1.bf16.msra.mxu0 %v883
        %931 = vmatprep.subr.bf16.mxu0 0
        %932 = vmatpush1.bf16.msra.mxu0 %v884
        %933 = vmatprep.mubr.bf16.mxu0 %v770
        %934 = vmatmul.mubr.bf16.gmra.mrb[0].mxu0 %v403
        %v935 = vpop.f32.mrb[0].mxu0
        %v936 = vadd.f32 0.0, %v935
        %v937 = vpop.f32.mrb[0].mxu0
        %v938 = vpop.f32.mrb[0].mxu0
        %v939 = vpop.f32.mrb[0].mxu0
        %940 = vdwg.mxu0
        %s941 = scalar_lea.vmem [#allocation2], 384
        %v942 = vld [vmem:[%s941] sm:$0xf]
        %v943 = vld [vmem:[%s941 + $0x4] sm:$0xf]
        %v944 = vld [vmem:[%s941 + $0x8] sm:$0xf]
        %v945 = vld [vmem:[%s941 + $0xc] sm:$0xf]
        %v946 = vld [vmem:[%s941 + $0x10] sm:$0xf]
        %v947 = vld [vmem:[%s941 + $0x14] sm:$0xf]
        %v948 = vld [vmem:[%s941 + $0x18] sm:$0xf]
        %v949 = vld [vmem:[%s941 + $0x1c] sm:$0xf]
        %v950 = vld [vmem:[%s941 + $0x20] sm:$0xf]
        %v951 = vld [vmem:[%s941 + $0x24] sm:$0xf]
        %v952 = vld [vmem:[%s941 + $0x28] sm:$0xf]
        %v953 = vld [vmem:[%s941 + $0x2c] sm:$0xf]
        %v954 = vld [vmem:[%s941 + $0x30] sm:$0xf]
        %v955 = vld [vmem:[%s941 + $0x34] sm:$0xf]
        %v956 = vld [vmem:[%s941 + $0x38] sm:$0xf]
        %v957 = vld [vmem:[%s941 + $0x3c] sm:$0xf]
        %v958 = vld [vmem:[%s941 + $0x40] sm:$0xf]
        %v959 = vld [vmem:[%s941 + $0x44] sm:$0xf]
        %v960 = vld [vmem:[%s941 + $0x48] sm:$0xf]
        %v961 = vld [vmem:[%s941 + $0x4c] sm:$0xf]
        %v962 = vld [vmem:[%s941 + $0x50] sm:$0xf]
        %v963 = vld [vmem:[%s941 + $0x54] sm:$0xf]
        %v964 = vld [vmem:[%s941 + $0x58] sm:$0xf]
        %v965 = vld [vmem:[%s941 + $0x5c] sm:$0xf]
        %v966 = vld [vmem:[%s941 + $0x60] sm:$0xf]
        %v967 = vld [vmem:[%s941 + $0x64] sm:$0xf]
        %v968 = vld [vmem:[%s941 + $0x68] sm:$0xf]
        %v969 = vld [vmem:[%s941 + $0x6c] sm:$0xf]
        %v970 = vld [vmem:[%s941 + $0x70] sm:$0xf]
        %v971 = vld [vmem:[%s941 + $0x74] sm:$0xf]
        %v972 = vld [vmem:[%s941 + $0x78] sm:$0xf]
        %v973 = vld [vmem:[%s941 + $0x7c] sm:$0xf]
        %v974 = vshrl.u32 %v770, 16
        %v976 = vshll.u32 %v770, 16
        %v978 = vrot.slane %v976, 1
        %v979 = vor.u32 %v974, %v978
        %v1013 = vunpack.c.l.b16 %v942
        %v1014 = vunpack.c.l.b16 %v943
        %v1015 = vunpack.c.l.b16 %v944
        %v1016 = vunpack.c.l.b16 %v945
        %v1017 = vunpack.c.l.b16 %v946
        %v1018 = vunpack.c.l.b16 %v947
        %v1019 = vunpack.c.l.b16 %v948
        %v1020 = vunpack.c.l.b16 %v949
        %v1021 = vunpack.c.l.b16 %v950
        %v1022 = vunpack.c.l.b16 %v951
        %v1023 = vunpack.c.l.b16 %v952
        %v1024 = vunpack.c.l.b16 %v953
        %v1025 = vunpack.c.l.b16 %v954
        %v1026 = vunpack.c.l.b16 %v955
        %v1027 = vunpack.c.l.b16 %v956
        %v1028 = vunpack.c.l.b16 %v957
        %v1029 = vunpack.c.l.b16 %v958
        %v1030 = vunpack.c.l.b16 %v959
        %v1031 = vunpack.c.l.b16 %v960
        %v1032 = vunpack.c.l.b16 %v961
        %v1033 = vunpack.c.l.b16 %v962
        %v1034 = vunpack.c.l.b16 %v963
        %v1035 = vunpack.c.l.b16 %v964
        %v1036 = vunpack.c.l.b16 %v965
        %v1037 = vunpack.c.l.b16 %v966
        %v1038 = vunpack.c.l.b16 %v967
        %v1039 = vunpack.c.l.b16 %v968
        %v1040 = vunpack.c.l.b16 %v969
        %v1041 = vunpack.c.l.b16 %v970
        %v1042 = vunpack.c.l.b16 %v971
        %v1043 = vunpack.c.l.b16 %v972
        %v1044 = vunpack.c.l.b16 %v973
        %v1045 = vpack.c.b16 %v1014, %v1013
        %v1046 = vpack.c.b16 %v1016, %v1015
        %v1047 = vpack.c.b16 %v1018, %v1017
        %v1048 = vpack.c.b16 %v1020, %v1019
        %v1049 = vpack.c.b16 %v1022, %v1021
        %v1050 = vpack.c.b16 %v1024, %v1023
        %v1051 = vpack.c.b16 %v1026, %v1025
        %v1052 = vpack.c.b16 %v1028, %v1027
        %v1053 = vpack.c.b16 %v1030, %v1029
        %v1054 = vpack.c.b16 %v1032, %v1031
        %v1055 = vpack.c.b16 %v1034, %v1033
        %v1056 = vpack.c.b16 %v1036, %v1035
        %v1057 = vpack.c.b16 %v1038, %v1037
        %v1058 = vpack.c.b16 %v1040, %v1039
        %v1059 = vpack.c.b16 %v1042, %v1041
        %v1060 = vpack.c.b16 %v1044, %v1043
        %1077 = vmatprep.subr.bf16.mxu0 0
        %1078 = vmatpush1.bf16.msra.mxu0 %v1045
        %1079 = vmatprep.subr.bf16.mxu0 0
        %1080 = vmatpush1.bf16.msra.mxu0 %v1046
        %1081 = vmatprep.subr.bf16.mxu0 0
        %1082 = vmatpush1.bf16.msra.mxu0 %v1047
        %1083 = vmatprep.subr.bf16.mxu0 0
        %1084 = vmatpush1.bf16.msra.mxu0 %v1048
        %1085 = vmatprep.subr.bf16.mxu0 0
        %1086 = vmatpush1.bf16.msra.mxu0 %v1049
        %1087 = vmatprep.subr.bf16.mxu0 0
        %1088 = vmatpush1.bf16.msra.mxu0 %v1050
        %1089 = vmatprep.subr.bf16.mxu0 0
        %1090 = vmatpush1.bf16.msra.mxu0 %v1051
        %1091 = vmatprep.subr.bf16.mxu0 0
        %1092 = vmatpush1.bf16.msra.mxu0 %v1052
        %1093 = vmatprep.subr.bf16.mxu0 0
        %1094 = vmatpush1.bf16.msra.mxu0 %v1053
        %1095 = vmatprep.subr.bf16.mxu0 0
        %1096 = vmatpush1.bf16.msra.mxu0 %v1054
        %1097 = vmatprep.subr.bf16.mxu0 0
        %1098 = vmatpush1.bf16.msra.mxu0 %v1055
        %1099 = vmatprep.subr.bf16.mxu0 0
        %1100 = vmatpush1.bf16.msra.mxu0 %v1056
        %1101 = vmatprep.subr.bf16.mxu0 0
        %1102 = vmatpush1.bf16.msra.mxu0 %v1057
        %1103 = vmatprep.subr.bf16.mxu0 0
        %1104 = vmatpush1.bf16.msra.mxu0 %v1058
        %1105 = vmatprep.subr.bf16.mxu0 0
        %1106 = vmatpush1.bf16.msra.mxu0 %v1059
        %1107 = vmatprep.subr.bf16.mxu0 0
        %1108 = vmatpush1.bf16.msra.mxu0 %v1060
        %1109 = vmatprep.mubr.bf16.mxu0 %v979
        %1110 = vmatmul.mubr.bf16.gmra.mrb[0].mxu0 %v617
        %v1111 = vpop.f32.mrb[0].mxu0
        %v1112 = vadd.f32 0.0, %v1111
        %v1113 = vpop.f32.mrb[0].mxu0
        %v1114 = vpop.f32.mrb[0].mxu0
        %v1115 = vpop.f32.mrb[0].mxu0
        %1116 = vdwg.mxu0
        %v1117 = vadd.f32 %v568, %v751
        %v1118 = vadd.f32 %v1117, %v936
        %v1119 = vadd.f32 %v1118, %v1112
        %v1120 = vmul.f32 %v568, %v568
        %v1121 = vmul.f32 %v751, %v751
        %v1122 = vadd.f32 %v1120, %v1121
        %v1123 = vmul.f32 %v936, %v936
        %v1124 = vadd.f32 %v1122, %v1123
        %v1125 = vmul.f32 %v1112, %v1112
        %v1126 = vadd.f32 %v1124, %v1125
        %vm1127 = vcmask 257024
        %v1128 = vsel %vm1127, %v1119, 0.0
        %v1129 = vrot.slane %v1128, 4
        %v1130 = vadd.f32 %v1128, %v1129
        %v1131 = vrot.slane %v1130, 2
        %v1132 = vadd.f32 %v1130, %v1131
        %v1133 = vrot.slane %v1132, 1
        %v1134 = vadd.f32 %v1132, %v1133
        %v1135 = vsel %vm1127, %v1126, 0.0
        %v1136 = vrot.slane %v1135, 4
        %v1137 = vadd.f32 %v1135, %v1136
        %v1138 = vrot.slane %v1137, 2
        %v1139 = vadd.f32 %v1137, %v1138
        %v1140 = vrot.slane %v1139, 1
        %v1141 = vadd.f32 %v1139, %v1140
        %vm1142 = vcmask 1040384
        %v1143 = vsel %vm1142, %v1134, %v1141
        %vm1144 = vcmask 254976
        %1145 = vst.msk [vmem:[%s367] sm:$0x3] %vm1144, %v1143
        %1147 = vrot.lane.b32.xlu0 %v751, 32
        %v1148 = vpop.permute.xlu0 %1147
        %1151 = vrot.lane.b32.xlu0 %v936, 64
        %v1152 = vpop.permute.xlu0 %1151
        %1155 = vrot.lane.b32.xlu0 %v1112, 96
        %v1156 = vpop.permute.xlu0 %1155
        %vm1158 = vcmask 261120
        %v1159 = vsel %vm1158, %v568, %v1148
        %v1160 = vsel %vm396, %v1159, %v1152
        %vm1161 = vcmask 785408
        %v1162 = vsel %vm1161, %v1160, %v1156
        %v1163 = vpack.c.bf16 %v1162, %v1162
        %1164 = vst [vmem:[%s359] sm:$0x3] %v1163
        %p1165 = scmp.lt.s32.totalorder %s22, 1
        %s1166 = scalar_select %p1165, %s22, 1
        %p1167 = scmp.lt.s32.totalorder %s23, 3
        %s1168 = scalar_select %p1167, %s23, 3
        %s1169 = smul.addr %s1166, 4
        %s1170 = sadd.s32 %s1168, %s1169
        %s1171 = smul.addr %s1170, 2
        %s1172 = scalar_lea.vmem %s4, %s1171
        %p1173 = scmp.lt.s32.totalorder %s22, 1
        %s1174 = scalar_select %p1173, %s22, 1
        %p1175 = scmp.lt.s32.totalorder %s23, 3
        %s1176 = scalar_select %p1175, %s23, 3
        %s1177 = smul.addr %s1174, 4
        %s1178 = sadd.s32 %s1176, %s1177
        %s1179 = smul.addr %s1178, 2
        %s1180 = scalar_lea.vmem %s5, %s1179
        // Predicated region
        $region41: #{dcgan_generator_forward.13} parent=35 // pred_check
          %p1181 = pneg %p159
        $region42: #{dcgan_generator_forward.13} parent=35 // pred_check_branch
          %1183 = sbr.rel (%p1181) target = $region44
        $region43: #{dcgan_generator_forward.13} parent=35 // pred_region
          _
        $region44: #{dcgan_generator_forward.13} parent=35 // pred_fallthru
          _
        // Predicated region
        $region45: #{dcgan_generator_forward.13} parent=35 // pred_check
          %p1184 = pneg %p187
        $region46: #{dcgan_generator_forward.13} parent=35 // pred_check_branch
          %1186 = sbr.rel (%p1184) target = $region48
        $region47: #{dcgan_generator_forward.13} parent=35 // pred_region
          _
        $region48: #{dcgan_generator_forward.13} parent=35 // pred_fallthru
          _
      $region36: #{dcgan_generator_forward.13} parent=5 // pred_fallthru
        _
      %p1187 = scmp.le.s32.totalorder 2, %s13
      // Predicated region
      $region49: #{dcgan_generator_forward.13} parent=5 // pred_check
        %p1188 = pneg %p1187
      $region50: #{dcgan_generator_forward.13} parent=5 // pred_check_branch
        %1190 = sbr.rel (%p1188) target = $region52
      $region51: #{dcgan_generator_forward.13} parent=5 // pred_region
        %s1191 = ssub.s32 %s13, 2
        // Predicated region
        $region53: #{dcgan_generator_forward.13} parent=51 // pred_check
          %p1192 = pneg %p165
        $region54: #{dcgan_generator_forward.13} parent=51 // pred_check_branch
          %1194 = sbr.rel (%p1192) target = $region56
        $region55: #{dcgan_generator_forward.13} parent=51 // pred_region
          %p1195 = scmp.lt.s32.totalorder %s24, 1
          %s1196 = scalar_select %p1195, %s24, 1
          %p1197 = scmp.lt.s32.totalorder %s25, 3
          %s1198 = scalar_select %p1197, %s25, 3
          %s1199 = smul.addr %s1196, 4
          %s1200 = sadd.s32 %s1198, %s1199
          %s1201 = smul.addr %s1200, 2
          %s1202 = scalar_lea.vmem %s4, %s1201
        $region56: #{dcgan_generator_forward.13} parent=51 // pred_fallthru
          _
        // Predicated region
        $region57: #{dcgan_generator_forward.13} parent=51 // pred_check
          %p1203 = pneg %p193
        $region58: #{dcgan_generator_forward.13} parent=51 // pred_check_branch
          %1205 = sbr.rel (%p1203) target = $region60
        $region59: #{dcgan_generator_forward.13} parent=51 // pred_region
          %p1206 = scmp.lt.s32.totalorder %s24, 1
          %s1207 = scalar_select %p1206, %s24, 1
          %p1208 = scmp.lt.s32.totalorder %s25, 3
          %s1209 = scalar_select %p1208, %s25, 3
          %s1210 = smul.addr %s1207, 4
          %s1211 = sadd.s32 %s1209, %s1210
          %s1212 = smul.addr %s1211, 2
          %s1213 = scalar_lea.vmem %s5, %s1212
        $region60: #{dcgan_generator_forward.13} parent=51 // pred_fallthru
          _
      $region52: #{dcgan_generator_forward.13} parent=5 // pred_fallthru
        _
    $region6: #{dcgan_generator_forward.13} parent=1 // loop_footer
      %s17 = sadd.s32 1, %s13
    $region7: #{dcgan_generator_forward.13} parent=1 // loop_footer_branch
      %12 = sbr.rel target = $region3
    $region8: #{dcgan_generator_forward.13} parent=1 // loop_exit
      _
    %1214 = vsyncpa [#allocation3], 1
    %s1215 = scalar_lea.sflag [#allocation3], 1
    %1216 = vsyncpa %s1215, 1

// kernel: dcgan_generator_forward.16
$region0: #{dcgan_generator_forward.16}
  #allocation0 [shape = 'u32[]', space=smem, size = 0x4, offset = 0x4, fixed_abs, tag = 'smem constant byte address 0x4 - core index']
  #allocation1 [shape = 'u32[144,128]{1,0:T(1,128)}', space=vmem, size = 0x12000, scoped, tag = 'internal scratch']
  %s0 = inlined_call_operand.vmem [shape: bf16[16,512], index: 0, kind: input, shape index: {}]
  %s1 = inlined_call_operand.vmem [shape: f32[1,512], index: 1, kind: input, shape index: {}]
  %s2 = inlined_call_operand.vmem [shape: f32[1,512], index: 2, kind: input, shape index: {}]
  %s3 = inlined_call_operand.vmem [shape: bf16[16,512], index: 3, kind: output, shape index: {}]
  %s4 = sld [smem:[#allocation0]]
  $region22: #{dcgan_generator_forward.16} parent=0
    _
  %s6 = ssub.s32 1, %s4
  %s7 = scalar_select 0, %s6, %s4
  // Predicated region
  $region2: #{dcgan_generator_forward.16} parent=0 // pred_check
    _
  $region3: #{dcgan_generator_forward.16} parent=0 // pred_check_branch
    %9 = sbr.rel (0) target = $region5
  $region4: #{dcgan_generator_forward.16} parent=0 // pred_region
    _
  $region5: #{dcgan_generator_forward.16} parent=0 // pred_fallthru
    _
  // Predicated region
  $region6: #{dcgan_generator_forward.16} parent=0 // pred_check
    _
  $region7: #{dcgan_generator_forward.16} parent=0 // pred_check_branch
    %11 = sbr.rel (0) target = $region9
  $region8: #{dcgan_generator_forward.16} parent=0 // pred_region
    _
  $region9: #{dcgan_generator_forward.16} parent=0 // pred_fallthru
    _
  // Predicated region
  $region10: #{dcgan_generator_forward.16} parent=0 // pred_check
    _
  $region11: #{dcgan_generator_forward.16} parent=0 // pred_check_branch
    %13 = sbr.rel (0) target = $region13
  $region12: #{dcgan_generator_forward.16} parent=0 // pred_region
    _
  $region13: #{dcgan_generator_forward.16} parent=0 // pred_fallthru
    _
  %v14 = vld [vmem:[%s0] sm:$0xff]
  %v15 = vld [vmem:[%s0 + $0x8] sm:$0xff]
  %v16 = vld [vmem:[%s0 + $0x10] sm:$0xff]
  %v17 = vld [vmem:[%s0 + $0x18] sm:$0xff]
  %v18 = vunpack.c.l.bf16 %v14
  %v19 = vunpack.c.h.bf16 %v14
  %v20 = vunpack.c.l.bf16 %v15
  %v21 = vunpack.c.h.bf16 %v15
  %v22 = vunpack.c.l.bf16 %v16
  %v23 = vunpack.c.h.bf16 %v16
  %v24 = vunpack.c.l.bf16 %v17
  %v25 = vunpack.c.h.bf16 %v17
  %v26 = vld [vmem:[%s1] sm:$0xf]
  %v28 = vlaneseq
  %v29 = vshrl.u32 %v28, 7
  %v30 = vsub.s32 0, %v29
  %v31 = vrot.slane %v26, %v30
  %v32 = vlaneseq
  %v33 = vshrl.u32 %v32, 7
  %v34 = vsub.s32 1, %v33
  %v35 = vrot.slane %v26, %v34
  %v36 = vlaneseq
  %v37 = vshrl.u32 %v36, 7
  %v38 = vsub.s32 2, %v37
  %v39 = vrot.slane %v26, %v38
  %v40 = vlaneseq
  %v41 = vshrl.u32 %v40, 7
  %v42 = vsub.s32 3, %v41
  %v43 = vrot.slane %v26, %v42
  %v48 = vmul.f32 %v18, %v31
  %v49 = vmul.f32 %v19, %v35
  %v50 = vmul.f32 %v20, %v39
  %v51 = vmul.f32 %v21, %v43
  %v52 = vmul.f32 %v22, %v31
  %v53 = vmul.f32 %v23, %v35
  %v54 = vmul.f32 %v24, %v39
  %v55 = vmul.f32 %v25, %v43
  %v56 = vld [vmem:[%s2] sm:$0xf]
  %v58 = vlaneseq
  %v59 = vshrl.u32 %v58, 7
  %v60 = vsub.s32 0, %v59
  %v61 = vrot.slane %v56, %v60
  %v62 = vlaneseq
  %v63 = vshrl.u32 %v62, 7
  %v64 = vsub.s32 1, %v63
  %v65 = vrot.slane %v56, %v64
  %v66 = vlaneseq
  %v67 = vshrl.u32 %v66, 7
  %v68 = vsub.s32 2, %v67
  %v69 = vrot.slane %v56, %v68
  %v70 = vlaneseq
  %v71 = vshrl.u32 %v70, 7
  %v72 = vsub.s32 3, %v71
  %v73 = vrot.slane %v56, %v72
  %v78 = vadd.f32 %v48, %v61
  %v79 = vadd.f32 %v49, %v65
  %v80 = vadd.f32 %v50, %v69
  %v81 = vadd.f32 %v51, %v73
  %v82 = vadd.f32 %v52, %v61
  %v83 = vadd.f32 %v53, %v65
  %v84 = vadd.f32 %v54, %v69
  %v85 = vadd.f32 %v55, %v73
  %v86 = vmax.f32 %v78, 0.0
  %v87 = vmax.f32 %v79, 0.0
  %v88 = vmax.f32 %v80, 0.0
  %v89 = vmax.f32 %v81, 0.0
  %v90 = vmax.f32 %v82, 0.0
  %v91 = vmax.f32 %v83, 0.0
  %v92 = vmax.f32 %v84, 0.0
  %v93 = vmax.f32 %v85, 0.0
  %v94 = vpack.c.bf16 %v90, %v86
  %v95 = vpack.c.bf16 %v91, %v87
  %v96 = vpack.c.bf16 %v92, %v88
  %v97 = vpack.c.bf16 %v93, %v89
  %v102 = vunpack.c.l.b16 %v94
  %v103 = vunpack.c.l.b16 %v95
  %v104 = vunpack.c.l.b16 %v96
  %v105 = vunpack.c.l.b16 %v97
  %v106 = vunpack.c.h.b16 %v94
  %v107 = vunpack.c.h.b16 %v95
  %v108 = vunpack.c.h.b16 %v96
  %v109 = vunpack.c.h.b16 %v97
  %v110 = vpack.c.b16 %v103, %v102
  %v111 = vpack.c.b16 %v105, %v104
  %v112 = vpack.c.b16 %v107, %v106
  %v113 = vpack.c.b16 %v109, %v108
  %118 = vst [vmem:[%s3] sm:$0xff] %v110
  %119 = vst [vmem:[%s3 + $0x8] sm:$0xff] %v111
  %120 = vst [vmem:[%s3 + $0x10] sm:$0xff] %v112
  %121 = vst [vmem:[%s3 + $0x18] sm:$0xff] %v113
  // Predicated region
  $region14: #{dcgan_generator_forward.16} parent=0 // pred_check
    _
  $region15: #{dcgan_generator_forward.16} parent=0 // pred_check_branch
    %123 = sbr.rel (0) target = $region17
  $region16: #{dcgan_generator_forward.16} parent=0 // pred_region
    _
  $region17: #{dcgan_generator_forward.16} parent=0 // pred_fallthru
    _
  // Predicated region
  $region18: #{dcgan_generator_forward.16} parent=0 // pred_check
    _
  $region19: #{dcgan_generator_forward.16} parent=0 // pred_check_branch
    %125 = sbr.rel (0) target = $region21
  $region20: #{dcgan_generator_forward.16} parent=0 // pred_region
    _
  $region21: #{dcgan_generator_forward.16} parent=0 // pred_fallthru
    _

// kernel: dcgan_generator_forward.15
$region0: #{dcgan_generator_forward.15}
  #allocation0 [shape = 'u32[]', space=smem, size = 0x4, offset = 0x4, fixed_abs, tag = 'smem constant byte address 0x4 - core index']
  #allocation1 [shape = 'u32[144,128]{1,0:T(1,128)}', space=vmem, size = 0x12000, scoped, tag = 'internal scratch']
  %s0 = inlined_call_operand.vmem [shape: bf16[2,10,10,32], index: 0, kind: input, shape index: {}, may-alias: {0,1,2}]
  %s1 = inlined_call_operand.vmem [shape: bf16[2,10,10,32], index: 1, kind: input, shape index: {}, may-alias: {0,1,2}]
  %s2 = inlined_call_operand.vmem [shape: bf16[2,10,10,32], index: 2, kind: input, shape index: {}, may-alias: {0,1,2}]
  %s3 = inlined_call_operand.hbm [shape: bf16[4,128,16], index: 3, kind: input, shape index: {}]
  %s4 = inlined_call_operand.vmem [shape: bf16[2,8,8,64], index: 4, kind: output, shape index: {0}]
  %s5 = inlined_call_operand.vmem [shape: f32[2,8,2,16], index: 5, kind: output, shape index: {1}]
  %6 = xla_tuple %s4, %s5
  %s7 = sld [smem:[#allocation0]]
  $region61: #{dcgan_generator_forward.15} parent=0
    _
  %s9 = ssub.s32 1, %s7
  %s10 = scalar_select 0, %s9, %s7
  $region1: #{dcgan_generator_forward.15} parent=0
    #allocation2 [shape = 'u8[131072]{0}', space=vmem, size = 0x20000, scoped, tag = 'input window, operand 3, single buffered']
    #allocation3 [shape = 's32[2]{0}', space=sflag, size = 0x8, scoped, tag = 'scoped memory for dcgan_generator_forward.15']
    %11 = vsyncpa [#allocation3], 0
    loop: start=0, step=1, limit=18
    $region2: #{dcgan_generator_forward.15} parent=1 // loop_pre_header
      _
    $region3: #{dcgan_generator_forward.15} parent=1 // loop_header
      %s13 = sphi 0, %s17
      %p14 = scmp.ge.s32.totalorder %s13, 18
      %s20 = sphi 0, %s32
      %s21 = sphi 0, %s28
      %s22 = sphi 0, %s20
      %s23 = sphi 0, %s21
      %s24 = sphi 0, %s22
      %s25 = sphi 0, %s23
      %s37 = sphi 0, %s39
      %s40 = sphi 0, %s37
      %s41 = sphi 0, %s40
      %s57 = sphi 0, %s41
      %s67 = sphi 0, %s69
      %s70 = sphi 0, %s67
      %s71 = sphi 0, %s70
      %s87 = sphi 0, %s71
      %s97 = sphi 0, %s99
      %s100 = sphi 0, %s97
      %s101 = sphi 0, %s100
      %s117 = sphi 0, %s101
      %s121 = sphi 0, %s121
      %s123 = sphi 0, %s121
      %s124 = sphi 0, %s123
      %s138 = sphi 0, %s124
      %s146 = sphi 0, %s148
      %s149 = sphi 0, %s146
      %s150 = sphi 0, %s149
      %s166 = sphi 0, %s150
      %s174 = sphi 0, %s176
      %s177 = sphi 0, %s174
      %s178 = sphi 0, %s177
      %s194 = sphi 0, %s178
    $region4: #{dcgan_generator_forward.15} parent=1 // loop_header_branch
      %16 = sbr.rel (%p14) target = $region8
    $region5: #{dcgan_generator_forward.15} parent=1 // loop_body
      %s18 = ssub.s32 %s13, 1
      %s19 = ssub.s32 %s13, 2
      %s26 = sadd.s32 1, %s21
      %p27 = scmp.ge.s32.totalorder %s26, 8
      %s28 = scalar_select %p27, 0, %s26
      %s29 = sadd.s32 1, %s20
      %s30 = scalar_select %p27, %s29, %s20
      %p31 = scmp.ge.s32.totalorder %s30, 2
      %s32 = scalar_select %p31, 0, %s30
      %s33 = ssub.s32 %s20, %s32
      %s34 = ssub.s32 %s21, %s28
      %s35 = sor.u32 %s33, %s34
      %p36 = scmp.eq.s32.totalorder %s35, 0
      %s38 = sadd.s32 %s37, 1
      %s39 = scalar_select %p36, %s37, %s38
      %p42 = pneg %p36
      %p43 = scmp.eq.s32.totalorder %s13, 15
      %p44 = por %p42, %p43
      %p45 = scmp.ne.s32.totalorder %s37, %s40
      %p46 = scmp.eq.s32.totalorder %s13, 0
      %p47 = por %p45, %p46
      %p48 = scmp.ne.s32.totalorder %s37, %s40
      %p49 = scmp.eq.s32.totalorder %s18, 15
      %p50 = por %p48, %p49
      %p51 = scmp.ne.s32.totalorder %s40, %s41
      %p52 = scmp.eq.s32.totalorder %s18, 0
      %p53 = por %p51, %p52
      %p54 = scmp.ne.s32.totalorder %s40, %s41
      %p55 = scmp.eq.s32.totalorder %s19, 15
      %p56 = por %p54, %p55
      %p58 = scmp.ne.s32.totalorder %s41, %s57
      %p59 = scmp.eq.s32.totalorder %s19, 0
      %p60 = por %p58, %p59
      %s61 = sadd.s32 %s21, 1
      %s62 = sadd.s32 %s28, 1
      %s63 = ssub.s32 %s20, %s32
      %s64 = ssub.s32 %s61, %s62
      %s65 = sor.u32 %s63, %s64
      %p66 = scmp.eq.s32.totalorder %s65, 0
      %s68 = sadd.s32 %s67, 1
      %s69 = scalar_select %p66, %s67, %s68
      %p72 = pneg %p66
      %p73 = scmp.eq.s32.totalorder %s13, 15
      %p74 = por %p72, %p73
      %p75 = scmp.ne.s32.totalorder %s67, %s70
      %p76 = scmp.eq.s32.totalorder %s13, 0
      %p77 = por %p75, %p76
      %p78 = scmp.ne.s32.totalorder %s67, %s70
      %p79 = scmp.eq.s32.totalorder %s18, 15
      %p80 = por %p78, %p79
      %p81 = scmp.ne.s32.totalorder %s70, %s71
      %p82 = scmp.eq.s32.totalorder %s18, 0
      %p83 = por %p81, %p82
      %p84 = scmp.ne.s32.totalorder %s70, %s71
      %p85 = scmp.eq.s32.totalorder %s19, 15
      %p86 = por %p84, %p85
      %p88 = scmp.ne.s32.totalorder %s71, %s87
      %p89 = scmp.eq.s32.totalorder %s19, 0
      %p90 = por %p88, %p89
      %s91 = sadd.s32 %s21, 2
      %s92 = sadd.s32 %s28, 2
      %s93 = ssub.s32 %s20, %s32
      %s94 = ssub.s32 %s91, %s92
      %s95 = sor.u32 %s93, %s94
      %p96 = scmp.eq.s32.totalorder %s95, 0
      %s98 = sadd.s32 %s97, 1
      %s99 = scalar_select %p96, %s97, %s98
      %p102 = pneg %p96
      %p103 = scmp.eq.s32.totalorder %s13, 15
      %p104 = por %p102, %p103
      %p105 = scmp.ne.s32.totalorder %s97, %s100
      %p106 = scmp.eq.s32.totalorder %s13, 0
      %p107 = por %p105, %p106
      %p108 = scmp.ne.s32.totalorder %s97, %s100
      %p109 = scmp.eq.s32.totalorder %s18, 15
      %p110 = por %p108, %p109
      %p111 = scmp.ne.s32.totalorder %s100, %s101
      %p112 = scmp.eq.s32.totalorder %s18, 0
      %p113 = por %p111, %p112
      %p114 = scmp.ne.s32.totalorder %s100, %s101
      %p115 = scmp.eq.s32.totalorder %s19, 15
      %p116 = por %p114, %p115
      %p118 = scmp.ne.s32.totalorder %s101, %s117
      %p119 = scmp.eq.s32.totalorder %s19, 0
      %p120 = por %p118, %p119
      %s122 = sadd.s32 %s121, 1
      %p125 = scmp.eq.s32.totalorder %s13, 15
      %p126 = scmp.ne.s32.totalorder %s121, %s123
      %p127 = scmp.eq.s32.totalorder %s13, 0
      %p128 = por %p126, %p127
      %p129 = scmp.ne.s32.totalorder %s121, %s123
      %p130 = scmp.eq.s32.totalorder %s18, 15
      %p131 = por %p129, %p130
      %p132 = scmp.ne.s32.totalorder %s123, %s124
      %p133 = scmp.eq.s32.totalorder %s18, 0
      %p134 = por %p132, %p133
      %p135 = scmp.ne.s32.totalorder %s123, %s124
      %p136 = scmp.eq.s32.totalorder %s19, 15
      %p137 = por %p135, %p136
      %p139 = scmp.ne.s32.totalorder %s124, %s138
      %p140 = scmp.eq.s32.totalorder %s19, 0
      %p141 = por %p139, %p140
      %s142 = ssub.s32 %s20, %s32
      %s143 = ssub.s32 %s21, %s28
      %s144 = sor.u32 %s142, %s143
      %p145 = scmp.eq.s32.totalorder %s144, 0
      %s147 = sadd.s32 %s146, 1
      %s148 = scalar_select %p145, %s146, %s147
      %p151 = pneg %p145
      %p152 = scmp.eq.s32.totalorder %s13, 15
      %p153 = por %p151, %p152
      %p154 = scmp.ne.s32.totalorder %s146, %s149
      %p155 = scmp.eq.s32.totalorder %s13, 0
      %p156 = por %p154, %p155
      %p157 = scmp.ne.s32.totalorder %s146, %s149
      %p158 = scmp.eq.s32.totalorder %s18, 15
      %p159 = por %p157, %p158
      %p160 = scmp.ne.s32.totalorder %s149, %s150
      %p161 = scmp.eq.s32.totalorder %s18, 0
      %p162 = por %p160, %p161
      %p163 = scmp.ne.s32.totalorder %s149, %s150
      %p164 = scmp.eq.s32.totalorder %s19, 15
      %p165 = por %p163, %p164
      %p167 = scmp.ne.s32.totalorder %s150, %s166
      %p168 = scmp.eq.s32.totalorder %s19, 0
      %p169 = por %p167, %p168
      %s170 = ssub.s32 %s20, %s32
      %s171 = ssub.s32 %s21, %s28
      %s172 = sor.u32 %s170, %s171
      %p173 = scmp.eq.s32.totalorder %s172, 0
      %s175 = sadd.s32 %s174, 1
      %s176 = scalar_select %p173, %s174, %s175
      %p179 = pneg %p173
      %p180 = scmp.eq.s32.totalorder %s13, 15
      %p181 = por %p179, %p180
      %p182 = scmp.ne.s32.totalorder %s174, %s177
      %p183 = scmp.eq.s32.totalorder %s13, 0
      %p184 = por %p182, %p183
      %p185 = scmp.ne.s32.totalorder %s174, %s177
      %p186 = scmp.eq.s32.totalorder %s18, 15
      %p187 = por %p185, %p186
      %p188 = scmp.ne.s32.totalorder %s177, %s178
      %p189 = scmp.eq.s32.totalorder %s18, 0
      %p190 = por %p188, %p189
      %p191 = scmp.ne.s32.totalorder %s177, %s178
      %p192 = scmp.eq.s32.totalorder %s19, 15
      %p193 = por %p191, %p192
      %p195 = scmp.ne.s32.totalorder %s178, %s194
      %p196 = scmp.eq.s32.totalorder %s19, 0
      %p197 = por %p195, %p196
      %p198 = scmp.le.s32.totalorder 1, %s13
      %p199 = scmp.lt.s32.totalorder %s13, 17
      %p200 = pnand %p198, %p199
      %p201 = pneg %p200
      // Predicated region
      $region9: #{dcgan_generator_forward.15} parent=5 // pred_check
        _
      $region10: #{dcgan_generator_forward.15} parent=5 // pred_check_branch
        %203 = sbr.rel (%p200) target = $region12
      $region11: #{dcgan_generator_forward.15} parent=5 // pred_region
        %s204 = ssub.s32 %s13, 1
        // Predicated region
        $region13: #{dcgan_generator_forward.15} parent=11 // pred_check
          %p205 = pneg %p134
        $region14: #{dcgan_generator_forward.15} parent=11 // pred_check_branch
          %207 = sbr.rel (%p205) target = $region16
        $region15: #{dcgan_generator_forward.15} parent=11 // pred_region
          %s209 = ssub.s32 4096, 4096
          %210 = vsyncadd [#allocation3], %s209
          %s211 = sshll.u32 [#allocation2], 4
          %s212 = int_to_ptr.vmem [resolvable:$true] %s211
          %217 = dma.hbm_to_vmem [thread:$0]  %s3, 4096, %s212, [#allocation3], 64, 64, 4
        $region16: #{dcgan_generator_forward.15} parent=11 // pred_fallthru
          _
      $region12: #{dcgan_generator_forward.15} parent=5 // pred_fallthru
        _
      %p218 = scmp.lt.s32.totalorder %s13, 16
      // Predicated region
      $region17: #{dcgan_generator_forward.15} parent=5 // pred_check
        %p219 = pneg %p218
      $region18: #{dcgan_generator_forward.15} parent=5 // pred_check_branch
        %221 = sbr.rel (%p219) target = $region20
      $region19: #{dcgan_generator_forward.15} parent=5 // pred_region
        // Predicated region
        $region21: #{dcgan_generator_forward.15} parent=19 // pred_check
          %p222 = pneg %p47
        $region22: #{dcgan_generator_forward.15} parent=19 // pred_check_branch
          %224 = sbr.rel (%p222) target = $region24
        $region23: #{dcgan_generator_forward.15} parent=19 // pred_region
          %p225 = scmp.lt.s32.totalorder %s20, 1
          %s226 = scalar_select %p225, %s20, 1
          %p227 = scmp.lt.s32.totalorder %s21, 9
          %s228 = scalar_select %p227, %s21, 9
          %s229 = smul.addr %s228, 2
          %s230 = smul.addr %s226, 20
          %s231 = sadd.s32 %s229, %s230
          %s232 = smul.addr %s231, 4
          %s233 = scalar_lea.vmem %s0, %s232
        $region24: #{dcgan_generator_forward.15} parent=19 // pred_fallthru
          _
        // Predicated region
        $region25: #{dcgan_generator_forward.15} parent=19 // pred_check
          %p234 = pneg %p77
        $region26: #{dcgan_generator_forward.15} parent=19 // pred_check_branch
          %236 = sbr.rel (%p234) target = $region28
        $region27: #{dcgan_generator_forward.15} parent=19 // pred_region
          %s237 = sadd.s32 %s21, 1
          %p238 = scmp.lt.s32.totalorder %s20, 1
          %s239 = scalar_select %p238, %s20, 1
          %p240 = scmp.lt.s32.totalorder %s237, 9
          %s241 = scalar_select %p240, %s237, 9
          %s242 = smul.addr %s241, 2
          %s243 = smul.addr %s239, 20
          %s244 = sadd.s32 %s242, %s243
          %s245 = smul.addr %s244, 4
          %s246 = scalar_lea.vmem %s1, %s245
          %s247 = sadd.s32 %s21, 1
        $region28: #{dcgan_generator_forward.15} parent=19 // pred_fallthru
          _
        // Predicated region
        $region29: #{dcgan_generator_forward.15} parent=19 // pred_check
          %p248 = pneg %p107
        $region30: #{dcgan_generator_forward.15} parent=19 // pred_check_branch
          %250 = sbr.rel (%p248) target = $region32
        $region31: #{dcgan_generator_forward.15} parent=19 // pred_region
          %s251 = sadd.s32 %s21, 2
          %p252 = scmp.lt.s32.totalorder %s20, 1
          %s253 = scalar_select %p252, %s20, 1
          %p254 = scmp.lt.s32.totalorder %s251, 9
          %s255 = scalar_select %p254, %s251, 9
          %s256 = smul.addr %s255, 2
          %s257 = smul.addr %s253, 20
          %s258 = sadd.s32 %s256, %s257
          %s259 = smul.addr %s258, 4
          %s260 = scalar_lea.vmem %s2, %s259
          %s261 = sadd.s32 %s21, 2
        $region32: #{dcgan_generator_forward.15} parent=19 // pred_fallthru
          _
      $region20: #{dcgan_generator_forward.15} parent=5 // pred_fallthru
        _
      %p262 = scmp.le.s32.totalorder 1, %s13
      %p263 = scmp.lt.s32.totalorder %s13, 17
      %p264 = pnand %p262, %p263
      %p265 = pneg %p264
      // Predicated region
      $region33: #{dcgan_generator_forward.15} parent=5 // pred_check
        _
      $region34: #{dcgan_generator_forward.15} parent=5 // pred_check_branch
        %267 = sbr.rel (%p264) target = $region36
      $region35: #{dcgan_generator_forward.15} parent=5 // pred_region
        %s268 = ssub.s32 %s13, 1
        // Predicated region
        $region37: #{dcgan_generator_forward.15} parent=35 // pred_check
          %p269 = pneg %p134
        $region38: #{dcgan_generator_forward.15} parent=35 // pred_check_branch
          %271 = sbr.rel (%p269) target = $region40
        $region39: #{dcgan_generator_forward.15} parent=35 // pred_region
          %272 = dma.done [#allocation3], 4096
        $region40: #{dcgan_generator_forward.15} parent=35 // pred_fallthru
          _
        %p273 = scmp.lt.s32.totalorder %s22, 1
        %s274 = scalar_select %p273, %s22, 1
        %p275 = scmp.lt.s32.totalorder %s23, 9
        %s276 = scalar_select %p275, %s23, 9
        %s277 = smul.addr %s276, 2
        %s278 = smul.addr %s274, 20
        %s279 = sadd.s32 %s277, %s278
        %s280 = smul.addr %s279, 4
        %s281 = scalar_lea.vmem %s0, %s280
        %p282 = pneg %p53
        %p283 = pneg %p50
        %s284 = sadd.s32 %s23, 1
        %p285 = scmp.lt.s32.totalorder %s22, 1
        %s286 = scalar_select %p285, %s22, 1
        %p287 = scmp.lt.s32.totalorder %s284, 9
        %s288 = scalar_select %p287, %s284, 9
        %s289 = smul.addr %s288, 2
        %s290 = smul.addr %s286, 20
        %s291 = sadd.s32 %s289, %s290
        %s292 = smul.addr %s291, 4
        %s293 = scalar_lea.vmem %s1, %s292
        %p294 = pneg %p83
        %p295 = pneg %p80
        %s296 = sadd.s32 %s23, 2
        %p297 = scmp.lt.s32.totalorder %s22, 1
        %s298 = scalar_select %p297, %s22, 1
        %p299 = scmp.lt.s32.totalorder %s296, 9
        %s300 = scalar_select %p299, %s296, 9
        %s301 = smul.addr %s300, 2
        %s302 = smul.addr %s298, 20
        %s303 = sadd.s32 %s301, %s302
        %s304 = smul.addr %s303, 4
        %s305 = scalar_lea.vmem %s2, %s304
        %p306 = pneg %p113
        %p307 = pneg %p110
        %p308 = pneg %p134
        %p309 = pneg %p131
        %p310 = pneg %p162
        %p311 = pneg %p159
        %p312 = scmp.lt.s32.totalorder %s22, 1
        %s313 = scalar_select %p312, %s22, 1
        %p314 = scmp.lt.s32.totalorder %s23, 7
        %s315 = scalar_select %p314, %s23, 7
        %s316 = smul.addr %s313, 8
        %s317 = sadd.s32 %s315, %s316
        %s318 = smul.addr %s317, 4
        %s319 = scalar_lea.vmem %s4, %s318
        %p320 = pneg %p190
        %p321 = pneg %p187
        %p322 = scmp.lt.s32.totalorder %s22, 1
        %s323 = scalar_select %p322, %s22, 1
        %p324 = scmp.lt.s32.totalorder %s23, 7
        %s325 = scalar_select %p324, %s23, 7
        %s326 = smul.addr %s323, 8
        %s327 = sadd.s32 %s325, %s326
        %s328 = smul.addr %s327, 2
        %s329 = scalar_lea.vmem %s5, %s328
        %p330 = scmp.lt.s32.totalorder %s22, 1
        %s331 = scalar_select %p330, %s22, 1
        %p332 = scmp.lt.s32.totalorder %s23, 9
        %s333 = scalar_select %p332, %s23, 9
        %s334 = smul.addr %s333, 2
        %s335 = smul.addr %s331, 20
        %s336 = sadd.s32 %s334, %s335
        %s337 = smul.addr %s336, 4
        %s338 = scalar_lea.vmem %s0, %s337
        %s339 = sadd.s32 %s23, 1
        %p340 = scmp.lt.s32.totalorder %s22, 1
        %s341 = scalar_select %p340, %s22, 1
        %p342 = scmp.lt.s32.totalorder %s339, 9
        %s343 = scalar_select %p342, %s339, 9
        %s344 = smul.addr %s343, 2
        %s345 = smul.addr %s341, 20
        %s346 = sadd.s32 %s344, %s345
        %s347 = smul.addr %s346, 4
        %s348 = scalar_lea.vmem %s1, %s347
        %s349 = sadd.s32 %s23, 1
        %s350 = sadd.s32 %s23, 2
        %p351 = scmp.lt.s32.totalorder %s22, 1
        %s352 = scalar_select %p351, %s22, 1
        %p353 = scmp.lt.s32.totalorder %s350, 9
        %s354 = scalar_select %p353, %s350, 9
        %s355 = smul.addr %s354, 2
        %s356 = smul.addr %s352, 20
        %s357 = sadd.s32 %s355, %s356
        %s358 = smul.addr %s357, 4
        %s359 = scalar_lea.vmem %s2, %s358
        %s360 = sadd.s32 %s23, 2
        %p361 = scmp.lt.s32.totalorder %s22, 1
        %s362 = scalar_select %p361, %s22, 1
        %p363 = scmp.lt.s32.totalorder %s23, 7
        %s364 = scalar_select %p363, %s23, 7
        %s365 = smul.addr %s362, 8
        %s366 = sadd.s32 %s364, %s365
        %s367 = smul.addr %s366, 4
        %s368 = scalar_lea.vmem %s4, %s367
        %p369 = scmp.lt.s32.totalorder %s22, 1
        %s370 = scalar_select %p369, %s22, 1
        %p371 = scmp.lt.s32.totalorder %s23, 7
        %s372 = scalar_select %p371, %s23, 7
        %s373 = smul.addr %s370, 8
        %s374 = sadd.s32 %s372, %s373
        %s375 = smul.addr %s374, 2
        %s376 = scalar_lea.vmem %s5, %s375
        %v378 = vld [vmem:[%s338] sm:$0xf]
        %v379 = vld [vmem:[%s338 + $0x4] sm:$0x1]
        %v380 = vld [vmem:[%s348] sm:$0xf]
        %v381 = vld [vmem:[%s348 + $0x4] sm:$0x1]
        %v382 = vld [vmem:[%s359] sm:$0xf]
        %v383 = vld [vmem:[%s359 + $0x4] sm:$0x1]
        %v386 = vunpack.c.l.b16 %v378
        %v387 = vunpack.c.l.b16 %v379
        %v388 = vpack.c.b16 %v387, %v386
        %v390 = vshrl.u32 %v388, 16
        %v392 = vshll.u32 %v388, 16
        %v394 = vrot.slane %v392, 1
        %v395 = vor.u32 %v390, %v394
        %396 = vrot.lane.b32.xlu0 %v395, 32
        %v397 = vpop.permute.xlu0 %396
        %v399 = vunpack.c.l.b16 %v380
        %v400 = vpack.c.b16 %v399, %v399
        %401 = vrot.lane.b32.xlu0 %v400, 64
        %v402 = vpop.permute.xlu0 %401
        %v404 = vunpack.c.l.b16 %v381
        %v405 = vpack.c.b16 %v404, %v399
        %v407 = vshrl.u32 %v405, 16
        %v409 = vshll.u32 %v405, 16
        %v411 = vrot.slane %v409, 1
        %v412 = vor.u32 %v407, %v411
        %413 = vrot.lane.b32.xlu0 %v412, 96
        %v414 = vpop.permute.xlu0 %413
        %vm415 = vcmask 261120
        %v418 = vsel %vm415, %v378, %v397
        %vm419 = vcmask 523264
        %v421 = vsel %vm419, %v418, %v402
        %vm422 = vcmask 785408
        %v424 = vsel %vm422, %v421, %v414
        %v426 = vld [vmem:[#allocation2] sm:$0xf]
        %v427 = vld [vmem:[#allocation2 + $0x4] sm:$0xf]
        %v428 = vld [vmem:[#allocation2 + $0x8] sm:$0xf]
        %v429 = vld [vmem:[#allocation2 + $0xc] sm:$0xf]
        %v430 = vld [vmem:[#allocation2 + $0x10] sm:$0xf]
        %v431 = vld [vmem:[#allocation2 + $0x14] sm:$0xf]
        %v432 = vld [vmem:[#allocation2 + $0x18] sm:$0xf]
        %v433 = vld [vmem:[#allocation2 + $0x1c] sm:$0xf]
        %v434 = vld [vmem:[#allocation2 + $0x20] sm:$0xf]
        %v435 = vld [vmem:[#allocation2 + $0x24] sm:$0xf]
        %v436 = vld [vmem:[#allocation2 + $0x28] sm:$0xf]
        %v437 = vld [vmem:[#allocation2 + $0x2c] sm:$0xf]
        %v438 = vld [vmem:[#allocation2 + $0x30] sm:$0xf]
        %v439 = vld [vmem:[#allocation2 + $0x34] sm:$0xf]
        %v440 = vld [vmem:[#allocation2 + $0x38] sm:$0xf]
        %v441 = vld [vmem:[#allocation2 + $0x3c] sm:$0xf]
        %v458 = vunpack.c.l.b16 %v426
        %v459 = vunpack.c.l.b16 %v427
        %v460 = vunpack.c.l.b16 %v428
        %v461 = vunpack.c.l.b16 %v429
        %v462 = vunpack.c.l.b16 %v430
        %v463 = vunpack.c.l.b16 %v431
        %v464 = vunpack.c.l.b16 %v432
        %v465 = vunpack.c.l.b16 %v433
        %v466 = vunpack.c.l.b16 %v434
        %v467 = vunpack.c.l.b16 %v435
        %v468 = vunpack.c.l.b16 %v436
        %v469 = vunpack.c.l.b16 %v437
        %v470 = vunpack.c.l.b16 %v438
        %v471 = vunpack.c.l.b16 %v439
        %v472 = vunpack.c.l.b16 %v440
        %v473 = vunpack.c.l.b16 %v441
        %v474 = vpack.c.b16 %v459, %v458
        %v475 = vpack.c.b16 %v461, %v460
        %v476 = vpack.c.b16 %v463, %v462
        %v477 = vpack.c.b16 %v465, %v464
        %v478 = vpack.c.b16 %v467, %v466
        %v479 = vpack.c.b16 %v469, %v468
        %v480 = vpack.c.b16 %v471, %v470
        %v481 = vpack.c.b16 %v473, %v472
        %490 = vmatprep.subr.bf16.mxu0 0
        %491 = vmatpush1.bf16.msra.mxu0 %v474
        %492 = vmatprep.subr.bf16.mxu0 0
        %493 = vmatpush1.bf16.msra.mxu0 %v475
        %494 = vmatprep.subr.bf16.mxu0 0
        %495 = vmatpush1.bf16.msra.mxu0 %v476
        %496 = vmatprep.subr.bf16.mxu0 0
        %497 = vmatpush1.bf16.msra.mxu0 %v477
        %498 = vmatprep.subr.bf16.mxu0 0
        %499 = vmatpush1.bf16.msra.mxu0 %v478
        %500 = vmatprep.subr.bf16.mxu0 0
        %501 = vmatpush1.bf16.msra.mxu0 %v479
        %502 = vmatprep.subr.bf16.mxu0 0
        %503 = vmatpush1.bf16.msra.mxu0 %v480
        %504 = vmatprep.subr.bf16.mxu0 0
        %505 = vmatpush1.bf16.msra.mxu0 %v481
        %506 = vmatprep.subr.bf16.mxu0 0
        %507 = vmatpush1.bf16.msra.mxu0 0
        %508 = vmatprep.subr.bf16.mxu0 0
        %509 = vmatpush1.bf16.msra.mxu0 0
        %510 = vmatprep.subr.bf16.mxu0 0
        %511 = vmatpush1.bf16.msra.mxu0 0
        %512 = vmatprep.subr.bf16.mxu0 0
        %513 = vmatpush1.bf16.msra.mxu0 0
        %514 = vmatprep.subr.bf16.mxu0 0
        %515 = vmatpush1.bf16.msra.mxu0 0
        %516 = vmatprep.subr.bf16.mxu0 0
        %517 = vmatpush1.bf16.msra.mxu0 0
        %518 = vmatprep.subr.bf16.mxu0 0
        %519 = vmatpush1.bf16.msra.mxu0 0
        %520 = vmatprep.subr.bf16.mxu0 0
        %521 = vmatpush1.bf16.msra.mxu0 0
        %522 = vmatprep.mubr.bf16.mxu0 0
        %523 = vmatmul.mubr.bf16.gmra.mrb[0].mxu0 %v424
        %v524 = vpop.f32.mrb[0].mxu0
        %v525 = vadd.f32 0.0, %v524
        %v526 = vpop.f32.mrb[0].mxu0
        %v527 = vpop.f32.mrb[0].mxu0
        %v528 = vpop.f32.mrb[0].mxu0
        %529 = vdwg.mxu0
        %530 = vrot.lane.b32.xlu0 %v405, 64
        %v531 = vpop.permute.xlu0 %530
        %v532 = vsel %vm415, %v388, %v397
        %v534 = vsel %vm419, %v532, %v531
        %v535 = vsel %vm422, %v534, %v414
        %s536 = scalar_lea.vmem [#allocation2], 64
        %v537 = vld [vmem:[%s536] sm:$0xf]
        %v538 = vld [vmem:[%s536 + $0x4] sm:$0xf]
        %v539 = vld [vmem:[%s536 + $0x8] sm:$0xf]
        %v540 = vld [vmem:[%s536 + $0xc] sm:$0xf]
        %v541 = vld [vmem:[%s536 + $0x10] sm:$0xf]
        %v542 = vld [vmem:[%s536 + $0x14] sm:$0xf]
        %v543 = vld [vmem:[%s536 + $0x18] sm:$0xf]
        %v544 = vld [vmem:[%s536 + $0x1c] sm:$0xf]
        %v545 = vld [vmem:[%s536 + $0x20] sm:$0xf]
        %v546 = vld [vmem:[%s536 + $0x24] sm:$0xf]
        %v547 = vld [vmem:[%s536 + $0x28] sm:$0xf]
        %v548 = vld [vmem:[%s536 + $0x2c] sm:$0xf]
        %v549 = vld [vmem:[%s536 + $0x30] sm:$0xf]
        %v550 = vld [vmem:[%s536 + $0x34] sm:$0xf]
        %v551 = vld [vmem:[%s536 + $0x38] sm:$0xf]
        %v552 = vld [vmem:[%s536 + $0x3c] sm:$0xf]
        %v553 = vshrl.u32 %v535, 16
        %v555 = vshll.u32 %v535, 16
        %v557 = vrot.slane %v555, 1
        %v558 = vor.u32 %v553, %v557
        %v576 = vunpack.c.l.b16 %v537
        %v577 = vunpack.c.l.b16 %v538
        %v578 = vunpack.c.l.b16 %v539
        %v579 = vunpack.c.l.b16 %v540
        %v580 = vunpack.c.l.b16 %v541
        %v581 = vunpack.c.l.b16 %v542
        %v582 = vunpack.c.l.b16 %v543
        %v583 = vunpack.c.l.b16 %v544
        %v584 = vunpack.c.l.b16 %v545
        %v585 = vunpack.c.l.b16 %v546
        %v586 = vunpack.c.l.b16 %v547
        %v587 = vunpack.c.l.b16 %v548
        %v588 = vunpack.c.l.b16 %v549
        %v589 = vunpack.c.l.b16 %v550
        %v590 = vunpack.c.l.b16 %v551
        %v591 = vunpack.c.l.b16 %v552
        %v592 = vpack.c.b16 %v577, %v576
        %v593 = vpack.c.b16 %v579, %v578
        %v594 = vpack.c.b16 %v581, %v580
        %v595 = vpack.c.b16 %v583, %v582
        %v596 = vpack.c.b16 %v585, %v584
        %v597 = vpack.c.b16 %v587, %v586
        %v598 = vpack.c.b16 %v589, %v588
        %v599 = vpack.c.b16 %v591, %v590
        %608 = vmatprep.subr.bf16.mxu0 0
        %609 = vmatpush1.bf16.msra.mxu0 %v592
        %610 = vmatprep.subr.bf16.mxu0 0
        %611 = vmatpush1.bf16.msra.mxu0 %v593
        %612 = vmatprep.subr.bf16.mxu0 0
        %613 = vmatpush1.bf16.msra.mxu0 %v594
        %614 = vmatprep.subr.bf16.mxu0 0
        %615 = vmatpush1.bf16.msra.mxu0 %v595
        %616 = vmatprep.subr.bf16.mxu0 0
        %617 = vmatpush1.bf16.msra.mxu0 %v596
        %618 = vmatprep.subr.bf16.mxu0 0
        %619 = vmatpush1.bf16.msra.mxu0 %v597
        %620 = vmatprep.subr.bf16.mxu0 0
        %621 = vmatpush1.bf16.msra.mxu0 %v598
        %622 = vmatprep.subr.bf16.mxu0 0
        %623 = vmatpush1.bf16.msra.mxu0 %v599
        %624 = vmatprep.subr.bf16.mxu0 0
        %625 = vmatpush1.bf16.msra.mxu0 0
        %626 = vmatprep.subr.bf16.mxu0 0
        %627 = vmatpush1.bf16.msra.mxu0 0
        %628 = vmatprep.subr.bf16.mxu0 0
        %629 = vmatpush1.bf16.msra.mxu0 0
        %630 = vmatprep.subr.bf16.mxu0 0
        %631 = vmatpush1.bf16.msra.mxu0 0
        %632 = vmatprep.subr.bf16.mxu0 0
        %633 = vmatpush1.bf16.msra.mxu0 0
        %634 = vmatprep.subr.bf16.mxu0 0
        %635 = vmatpush1.bf16.msra.mxu0 0
        %636 = vmatprep.subr.bf16.mxu0 0
        %637 = vmatpush1.bf16.msra.mxu0 0
        %638 = vmatprep.subr.bf16.mxu0 0
        %639 = vmatpush1.bf16.msra.mxu0 0
        %640 = vmatprep.mubr.bf16.mxu0 0
        %641 = vmatmul.mubr.bf16.gmra.mrb[0].mxu0 %v558
        %v642 = vpop.f32.mrb[0].mxu0
        %v643 = vadd.f32 0.0, %v642
        %v644 = vpop.f32.mrb[0].mxu0
        %v645 = vpop.f32.mrb[0].mxu0
        %v646 = vpop.f32.mrb[0].mxu0
        %647 = vdwg.mxu0
        %648 = vrot.lane.b32.xlu0 %v412, 32
        %v649 = vpop.permute.xlu0 %648
        %v651 = vunpack.c.l.b16 %v382
        %v652 = vpack.c.b16 %v651, %v651
        %653 = vrot.lane.b32.xlu0 %v652, 64
        %v654 = vpop.permute.xlu0 %653
        %v656 = vunpack.c.l.b16 %v383
        %v657 = vpack.c.b16 %v656, %v651
        %v659 = vshrl.u32 %v657, 16
        %v661 = vshll.u32 %v657, 16
        %v663 = vrot.slane %v661, 1
        %v664 = vor.u32 %v659, %v663
        %665 = vrot.lane.b32.xlu0 %v664, 96
        %v666 = vpop.permute.xlu0 %665
        %v669 = vsel %vm415, %v380, %v649
        %v671 = vsel %vm419, %v669, %v654
        %v673 = vsel %vm422, %v671, %v666
        %s675 = scalar_lea.vmem [#allocation2], 128
        %v676 = vld [vmem:[%s675] sm:$0xf]
        %v677 = vld [vmem:[%s675 + $0x4] sm:$0xf]
        %v678 = vld [vmem:[%s675 + $0x8] sm:$0xf]
        %v679 = vld [vmem:[%s675 + $0xc] sm:$0xf]
        %v680 = vld [vmem:[%s675 + $0x10] sm:$0xf]
        %v681 = vld [vmem:[%s675 + $0x14] sm:$0xf]
        %v682 = vld [vmem:[%s675 + $0x18] sm:$0xf]
        %v683 = vld [vmem:[%s675 + $0x1c] sm:$0xf]
        %v684 = vld [vmem:[%s675 + $0x20] sm:$0xf]
        %v685 = vld [vmem:[%s675 + $0x24] sm:$0xf]
        %v686 = vld [vmem:[%s675 + $0x28] sm:$0xf]
        %v687 = vld [vmem:[%s675 + $0x2c] sm:$0xf]
        %v688 = vld [vmem:[%s675 + $0x30] sm:$0xf]
        %v689 = vld [vmem:[%s675 + $0x34] sm:$0xf]
        %v690 = vld [vmem:[%s675 + $0x38] sm:$0xf]
        %v691 = vld [vmem:[%s675 + $0x3c] sm:$0xf]
        %v708 = vunpack.c.l.b16 %v676
        %v709 = vunpack.c.l.b16 %v677
        %v710 = vunpack.c.l.b16 %v678
        %v711 = vunpack.c.l.b16 %v679
        %v712 = vunpack.c.l.b16 %v680
        %v713 = vunpack.c.l.b16 %v681
        %v714 = vunpack.c.l.b16 %v682
        %v715 = vunpack.c.l.b16 %v683
        %v716 = vunpack.c.l.b16 %v684
        %v717 = vunpack.c.l.b16 %v685
        %v718 = vunpack.c.l.b16 %v686
        %v719 = vunpack.c.l.b16 %v687
        %v720 = vunpack.c.l.b16 %v688
        %v721 = vunpack.c.l.b16 %v689
        %v722 = vunpack.c.l.b16 %v690
        %v723 = vunpack.c.l.b16 %v691
        %v724 = vpack.c.b16 %v709, %v708
        %v725 = vpack.c.b16 %v711, %v710
        %v726 = vpack.c.b16 %v713, %v712
        %v727 = vpack.c.b16 %v715, %v714
        %v728 = vpack.c.b16 %v717, %v716
        %v729 = vpack.c.b16 %v719, %v718
        %v730 = vpack.c.b16 %v721, %v720
        %v731 = vpack.c.b16 %v723, %v722
        %740 = vmatprep.subr.bf16.mxu0 0
        %741 = vmatpush1.bf16.msra.mxu0 %v724
        %742 = vmatprep.subr.bf16.mxu0 0
        %743 = vmatpush1.bf16.msra.mxu0 %v725
        %744 = vmatprep.subr.bf16.mxu0 0
        %745 = vmatpush1.bf16.msra.mxu0 %v726
        %746 = vmatprep.subr.bf16.mxu0 0
        %747 = vmatpush1.bf16.msra.mxu0 %v727
        %748 = vmatprep.subr.bf16.mxu0 0
        %749 = vmatpush1.bf16.msra.mxu0 %v728
        %750 = vmatprep.subr.bf16.mxu0 0
        %751 = vmatpush1.bf16.msra.mxu0 %v729
        %752 = vmatprep.subr.bf16.mxu0 0
        %753 = vmatpush1.bf16.msra.mxu0 %v730
        %754 = vmatprep.subr.bf16.mxu0 0
        %755 = vmatpush1.bf16.msra.mxu0 %v731
        %756 = vmatprep.subr.bf16.mxu0 0
        %757 = vmatpush1.bf16.msra.mxu0 0
        %758 = vmatprep.subr.bf16.mxu0 0
        %759 = vmatpush1.bf16.msra.mxu0 0
        %760 = vmatprep.subr.bf16.mxu0 0
        %761 = vmatpush1.bf16.msra.mxu0 0
        %762 = vmatprep.subr.bf16.mxu0 0
        %763 = vmatpush1.bf16.msra.mxu0 0
        %764 = vmatprep.subr.bf16.mxu0 0
        %765 = vmatpush1.bf16.msra.mxu0 0
        %766 = vmatprep.subr.bf16.mxu0 0
        %767 = vmatpush1.bf16.msra.mxu0 0
        %768 = vmatprep.subr.bf16.mxu0 0
        %769 = vmatpush1.bf16.msra.mxu0 0
        %770 = vmatprep.subr.bf16.mxu0 0
        %771 = vmatpush1.bf16.msra.mxu0 0
        %772 = vmatprep.mubr.bf16.mxu0 0
        %773 = vmatmul.mubr.bf16.gmra.mrb[0].mxu0 %v673
        %v774 = vpop.f32.mrb[0].mxu0
        %v775 = vadd.f32 0.0, %v774
        %v776 = vpop.f32.mrb[0].mxu0
        %v777 = vpop.f32.mrb[0].mxu0
        %v778 = vpop.f32.mrb[0].mxu0
        %779 = vdwg.mxu0
        %780 = vrot.lane.b32.xlu0 %v657, 64
        %v781 = vpop.permute.xlu0 %780
        %v782 = vsel %vm415, %v405, %v649
        %v784 = vsel %vm419, %v782, %v781
        %v785 = vsel %vm422, %v784, %v666
        %s786 = scalar_lea.vmem [#allocation2], 192
        %v787 = vld [vmem:[%s786] sm:$0xf]
        %v788 = vld [vmem:[%s786 + $0x4] sm:$0xf]
        %v789 = vld [vmem:[%s786 + $0x8] sm:$0xf]
        %v790 = vld [vmem:[%s786 + $0xc] sm:$0xf]
        %v791 = vld [vmem:[%s786 + $0x10] sm:$0xf]
        %v792 = vld [vmem:[%s786 + $0x14] sm:$0xf]
        %v793 = vld [vmem:[%s786 + $0x18] sm:$0xf]
        %v794 = vld [vmem:[%s786 + $0x1c] sm:$0xf]
        %v795 = vld [vmem:[%s786 + $0x20] sm:$0xf]
        %v796 = vld [vmem:[%s786 + $0x24] sm:$0xf]
        %v797 = vld [vmem:[%s786 + $0x28] sm:$0xf]
        %v798 = vld [vmem:[%s786 + $0x2c] sm:$0xf]
        %v799 = vld [vmem:[%s786 + $0x30] sm:$0xf]
        %v800 = vld [vmem:[%s786 + $0x34] sm:$0xf]
        %v801 = vld [vmem:[%s786 + $0x38] sm:$0xf]
        %v802 = vld [vmem:[%s786 + $0x3c] sm:$0xf]
        %v803 = vshrl.u32 %v785, 16
        %v805 = vshll.u32 %v785, 16
        %v807 = vrot.slane %v805, 1
        %v808 = vor.u32 %v803, %v807
        %v826 = vunpack.c.l.b16 %v787
        %v827 = vunpack.c.l.b16 %v788
        %v828 = vunpack.c.l.b16 %v789
        %v829 = vunpack.c.l.b16 %v790
        %v830 = vunpack.c.l.b16 %v791
        %v831 = vunpack.c.l.b16 %v792
        %v832 = vunpack.c.l.b16 %v793
        %v833 = vunpack.c.l.b16 %v794
        %v834 = vunpack.c.l.b16 %v795
        %v835 = vunpack.c.l.b16 %v796
        %v836 = vunpack.c.l.b16 %v797
        %v837 = vunpack.c.l.b16 %v798
        %v838 = vunpack.c.l.b16 %v799
        %v839 = vunpack.c.l.b16 %v800
        %v840 = vunpack.c.l.b16 %v801
        %v841 = vunpack.c.l.b16 %v802
        %v842 = vpack.c.b16 %v827, %v826
        %v843 = vpack.c.b16 %v829, %v828
        %v844 = vpack.c.b16 %v831, %v830
        %v845 = vpack.c.b16 %v833, %v832
        %v846 = vpack.c.b16 %v835, %v834
        %v847 = vpack.c.b16 %v837, %v836
        %v848 = vpack.c.b16 %v839, %v838
        %v849 = vpack.c.b16 %v841, %v840
        %858 = vmatprep.subr.bf16.mxu0 0
        %859 = vmatpush1.bf16.msra.mxu0 %v842
        %860 = vmatprep.subr.bf16.mxu0 0
        %861 = vmatpush1.bf16.msra.mxu0 %v843
        %862 = vmatprep.subr.bf16.mxu0 0
        %863 = vmatpush1.bf16.msra.mxu0 %v844
        %864 = vmatprep.subr.bf16.mxu0 0
        %865 = vmatpush1.bf16.msra.mxu0 %v845
        %866 = vmatprep.subr.bf16.mxu0 0
        %867 = vmatpush1.bf16.msra.mxu0 %v846
        %868 = vmatprep.subr.bf16.mxu0 0
        %869 = vmatpush1.bf16.msra.mxu0 %v847
        %870 = vmatprep.subr.bf16.mxu0 0
        %871 = vmatpush1.bf16.msra.mxu0 %v848
        %872 = vmatprep.subr.bf16.mxu0 0
        %873 = vmatpush1.bf16.msra.mxu0 %v849
        %874 = vmatprep.subr.bf16.mxu0 0
        %875 = vmatpush1.bf16.msra.mxu0 0
        %876 = vmatprep.subr.bf16.mxu0 0
        %877 = vmatpush1.bf16.msra.mxu0 0
        %878 = vmatprep.subr.bf16.mxu0 0
        %879 = vmatpush1.bf16.msra.mxu0 0
        %880 = vmatprep.subr.bf16.mxu0 0
        %881 = vmatpush1.bf16.msra.mxu0 0
        %882 = vmatprep.subr.bf16.mxu0 0
        %883 = vmatpush1.bf16.msra.mxu0 0
        %884 = vmatprep.subr.bf16.mxu0 0
        %885 = vmatpush1.bf16.msra.mxu0 0
        %886 = vmatprep.subr.bf16.mxu0 0
        %887 = vmatpush1.bf16.msra.mxu0 0
        %888 = vmatprep.subr.bf16.mxu0 0
        %889 = vmatpush1.bf16.msra.mxu0 0
        %890 = vmatprep.mubr.bf16.mxu0 0
        %891 = vmatmul.mubr.bf16.gmra.mrb[0].mxu0 %v808
        %v892 = vpop.f32.mrb[0].mxu0
        %v893 = vadd.f32 0.0, %v892
        %v894 = vpop.f32.mrb[0].mxu0
        %v895 = vpop.f32.mrb[0].mxu0
        %v896 = vpop.f32.mrb[0].mxu0
        %897 = vdwg.mxu0
        %v898 = vadd.f32 %v525, %v643
        %v899 = vadd.f32 %v898, %v775
        %v900 = vadd.f32 %v899, %v893
        %v901 = vmul.f32 %v525, %v525
        %v902 = vmul.f32 %v643, %v643
        %v903 = vadd.f32 %v901, %v902
        %v904 = vmul.f32 %v775, %v775
        %v905 = vadd.f32 %v903, %v904
        %v906 = vmul.f32 %v893, %v893
        %v907 = vadd.f32 %v905, %v906
        %vm908 = vcmask 130048
        %v909 = vsel %vm908, %v900, 0.0
        %v910 = vrot.slane %v909, 4
        %v911 = vadd.f32 %v909, %v910
        %v912 = vrot.slane %v911, 2
        %v913 = vadd.f32 %v911, %v912
        %v914 = vrot.slane %v913, 1
        %v915 = vadd.f32 %v913, %v914
        %v916 = vsel %vm908, %v907, 0.0
        %v917 = vrot.slane %v916, 4
        %v918 = vadd.f32 %v916, %v917
        %v919 = vrot.slane %v918, 2
        %v920 = vadd.f32 %v918, %v919
        %v921 = vrot.slane %v920, 1
        %v922 = vadd.f32 %v920, %v921
        %vm923 = vcmask 1040384
        %v924 = vsel %vm923, %v915, %v922
        %vm925 = vcmask 123904
        %926 = vst.msk [vmem:[%s376] sm:$0x3] %vm925, %v924
        %928 = vrot.lane.b32.xlu0 %v643, 16
        %v929 = vpop.permute.xlu0 %928
        %932 = vrot.lane.b32.xlu0 %v775, 32
        %v933 = vpop.permute.xlu0 %932
        %936 = vrot.lane.b32.xlu0 %v893, 48
        %v937 = vpop.permute.xlu0 %936
        %v939 = vsel %vm908, %v525, %v929
        %v940 = vsel %vm415, %v939, %v933
        %vm941 = vcmask 392192
        %v942 = vsel %vm941, %v940, %v937
        %v943 = vpack.c.bf16 %v942, %v942
        %vm944 = vcmask 519168
        %945 = vst.msk [vmem:[%s368] sm:$0xf] %vm944, %v943
        %p946 = scmp.lt.s32.totalorder %s22, 1
        %s947 = scalar_select %p946, %s22, 1
        %p948 = scmp.lt.s32.totalorder %s23, 7
        %s949 = scalar_select %p948, %s23, 7
        %s950 = smul.addr %s947, 8
        %s951 = sadd.s32 %s949, %s950
        %s952 = smul.addr %s951, 4
        %s953 = scalar_lea.vmem %s4, %s952
        %p954 = scmp.lt.s32.totalorder %s22, 1
        %s955 = scalar_select %p954, %s22, 1
        %p956 = scmp.lt.s32.totalorder %s23, 7
        %s957 = scalar_select %p956, %s23, 7
        %s958 = smul.addr %s955, 8
        %s959 = sadd.s32 %s957, %s958
        %s960 = smul.addr %s959, 2
        %s961 = scalar_lea.vmem %s5, %s960
        // Predicated region
        $region41: #{dcgan_generator_forward.15} parent=35 // pred_check
          %p962 = pneg %p159
        $region42: #{dcgan_generator_forward.15} parent=35 // pred_check_branch
          %964 = sbr.rel (%p962) target = $region44
        $region43: #{dcgan_generator_forward.15} parent=35 // pred_region
          _
        $region44: #{dcgan_generator_forward.15} parent=35 // pred_fallthru
          _
        // Predicated region
        $region45: #{dcgan_generator_forward.15} parent=35 // pred_check
          %p965 = pneg %p187
        $region46: #{dcgan_generator_forward.15} parent=35 // pred_check_branch
          %967 = sbr.rel (%p965) target = $region48
        $region47: #{dcgan_generator_forward.15} parent=35 // pred_region
          _
        $region48: #{dcgan_generator_forward.15} parent=35 // pred_fallthru
          _
      $region36: #{dcgan_generator_forward.15} parent=5 // pred_fallthru
        _
      %p968 = scmp.le.s32.totalorder 2, %s13
      // Predicated region
      $region49: #{dcgan_generator_forward.15} parent=5 // pred_check
        %p969 = pneg %p968
      $region50: #{dcgan_generator_forward.15} parent=5 // pred_check_branch
        %971 = sbr.rel (%p969) target = $region52
      $region51: #{dcgan_generator_forward.15} parent=5 // pred_region
        %s972 = ssub.s32 %s13, 2
        // Predicated region
        $region53: #{dcgan_generator_forward.15} parent=51 // pred_check
          %p973 = pneg %p165
        $region54: #{dcgan_generator_forward.15} parent=51 // pred_check_branch
          %975 = sbr.rel (%p973) target = $region56
        $region55: #{dcgan_generator_forward.15} parent=51 // pred_region
          %p976 = scmp.lt.s32.totalorder %s24, 1
          %s977 = scalar_select %p976, %s24, 1
          %p978 = scmp.lt.s32.totalorder %s25, 7
          %s979 = scalar_select %p978, %s25, 7
          %s980 = smul.addr %s977, 8
          %s981 = sadd.s32 %s979, %s980
          %s982 = smul.addr %s981, 4
          %s983 = scalar_lea.vmem %s4, %s982
        $region56: #{dcgan_generator_forward.15} parent=51 // pred_fallthru
          _
        // Predicated region
        $region57: #{dcgan_generator_forward.15} parent=51 // pred_check
          %p984 = pneg %p193
        $region58: #{dcgan_generator_forward.15} parent=51 // pred_check_branch
          %986 = sbr.rel (%p984) target = $region60
        $region59: #{dcgan_generator_forward.15} parent=51 // pred_region
          %p987 = scmp.lt.s32.totalorder %s24, 1
          %s988 = scalar_select %p987, %s24, 1
          %p989 = scmp.lt.s32.totalorder %s25, 7
          %s990 = scalar_select %p989, %s25, 7
          %s991 = smul.addr %s988, 8
          %s992 = sadd.s32 %s990, %s991
          %s993 = smul.addr %s992, 2
          %s994 = scalar_lea.vmem %s5, %s993
        $region60: #{dcgan_generator_forward.15} parent=51 // pred_fallthru
          _
      $region52: #{dcgan_generator_forward.15} parent=5 // pred_fallthru
        _
    $region6: #{dcgan_generator_forward.15} parent=1 // loop_footer
      %s17 = sadd.s32 1, %s13
    $region7: #{dcgan_generator_forward.15} parent=1 // loop_footer_branch
      %12 = sbr.rel target = $region3
    $region8: #{dcgan_generator_forward.15} parent=1 // loop_exit
      _
    %995 = vsyncpa [#allocation3], 1
    %s996 = scalar_lea.sflag [#allocation3], 1
    %997 = vsyncpa %s996, 1

// kernel: tile.88
$region0: #{tile.88}
  #allocation0 [shape = 's32[1]{0}', space=sflag, size = 0x4, scoped, tag = 'scoped memory for tile.88']
  %s0 = inlined_call_operand.vmem [shape: f32[8], index: 0, kind: input, shape index: {}]
  %s1 = inlined_call_operand.vmem [shape: f32[64,8], index: 1, kind: output, shape index: {}]
  // Predicated region
  $region2: #{tile.88} parent=0 // pred_check
    _
  $region3: #{tile.88} parent=0 // pred_check_branch
    %3 = sbr.rel (0) target = $region5
  $region4: #{tile.88} parent=0 // pred_region
    _
  $region5: #{tile.88} parent=0 // pred_fallthru
    _
  %v4 = vld [vmem:[%s0] ss:$0 sm:$0xff]
  %5 = vst [vmem:[%s1] sm:$0xff] %v4
  %s6 = scalar_lea.vmem %s1, 8
  %7 = vst [vmem:[%s6] sm:$0xff] %v4
  %s8 = scalar_lea.vmem %s1, 16
  %9 = vst [vmem:[%s8] sm:$0xff] %v4
  %s10 = scalar_lea.vmem %s1, 24
  %11 = vst [vmem:[%s10] sm:$0xff] %v4
  %s12 = scalar_lea.vmem %s1, 32
  %13 = vst [vmem:[%s12] sm:$0xff] %v4
  %s14 = scalar_lea.vmem %s1, 40
  %15 = vst [vmem:[%s14] sm:$0xff] %v4
  %s16 = scalar_lea.vmem %s1, 48
  %17 = vst [vmem:[%s16] sm:$0xff] %v4
  %s18 = scalar_lea.vmem %s1, 56
  %19 = vst [vmem:[%s18] sm:$0xff] %v4

// kernel: dcgan_generator_forward.17
$region0: #{dcgan_generator_forward.17}
  #allocation0 [shape = 'u32[]', space=smem, size = 0x4, offset = 0x4, fixed_abs, tag = 'smem constant byte address 0x4 - core index']
  #allocation1 [shape = 'u32[144,128]{1,0:T(1,128)}', space=vmem, size = 0x12000, scoped, tag = 'internal scratch']
  %s0 = inlined_call_operand.vmem [shape: bf16[2,18,18,16], index: 0, kind: input, shape index: {}, may-alias: {0,1,2}]
  %s1 = inlined_call_operand.vmem [shape: bf16[2,18,18,16], index: 1, kind: input, shape index: {}, may-alias: {0,1,2}]
  %s2 = inlined_call_operand.vmem [shape: bf16[2,18,18,16], index: 2, kind: input, shape index: {}, may-alias: {0,1,2}]
  %s3 = inlined_call_operand.hbm [shape: bf16[4,64,8], index: 3, kind: input, shape index: {}]
  %s4 = inlined_call_operand.vmem [shape: bf16[2,16,16,32], index: 4, kind: output, shape index: {0}]
  %s5 = inlined_call_operand.vmem [shape: f32[2,16,2,8], index: 5, kind: output, shape index: {1}]
  %6 = xla_tuple %s4, %s5
  %s7 = sld [smem:[#allocation0]]
  $region61: #{dcgan_generator_forward.17} parent=0
    _
  %s9 = ssub.s32 1, %s7
  %s10 = scalar_select 0, %s9, %s7
  $region1: #{dcgan_generator_forward.17} parent=0
    #allocation2 [shape = 'u8[65536]{0}', space=vmem, size = 0x10000, scoped, tag = 'input window, operand 3, single buffered']
    #allocation3 [shape = 's32[2]{0}', space=sflag, size = 0x8, scoped, tag = 'scoped memory for dcgan_generator_forward.17']
    %11 = vsyncpa [#allocation3], 0
    loop: start=0, step=1, limit=34
    $region2: #{dcgan_generator_forward.17} parent=1 // loop_pre_header
      _
    $region3: #{dcgan_generator_forward.17} parent=1 // loop_header
      %s13 = sphi 0, %s17
      %p14 = scmp.ge.s32.totalorder %s13, 34
      %s20 = sphi 0, %s32
      %s21 = sphi 0, %s28
      %s22 = sphi 0, %s20
      %s23 = sphi 0, %s21
      %s24 = sphi 0, %s22
      %s25 = sphi 0, %s23
      %s37 = sphi 0, %s39
      %s40 = sphi 0, %s37
      %s41 = sphi 0, %s40
      %s57 = sphi 0, %s41
      %s67 = sphi 0, %s69
      %s70 = sphi 0, %s67
      %s71 = sphi 0, %s70
      %s87 = sphi 0, %s71
      %s97 = sphi 0, %s99
      %s100 = sphi 0, %s97
      %s101 = sphi 0, %s100
      %s117 = sphi 0, %s101
      %s121 = sphi 0, %s121
      %s123 = sphi 0, %s121
      %s124 = sphi 0, %s123
      %s138 = sphi 0, %s124
      %s146 = sphi 0, %s148
      %s149 = sphi 0, %s146
      %s150 = sphi 0, %s149
      %s166 = sphi 0, %s150
      %s174 = sphi 0, %s176
      %s177 = sphi 0, %s174
      %s178 = sphi 0, %s177
      %s194 = sphi 0, %s178
    $region4: #{dcgan_generator_forward.17} parent=1 // loop_header_branch
      %16 = sbr.rel (%p14) target = $region8
    $region5: #{dcgan_generator_forward.17} parent=1 // loop_body
      %s18 = ssub.s32 %s13, 1
      %s19 = ssub.s32 %s13, 2
      %s26 = sadd.s32 1, %s21
      %p27 = scmp.ge.s32.totalorder %s26, 16
      %s28 = scalar_select %p27, 0, %s26
      %s29 = sadd.s32 1, %s20
      %s30 = scalar_select %p27, %s29, %s20
      %p31 = scmp.ge.s32.totalorder %s30, 2
      %s32 = scalar_select %p31, 0, %s30
      %s33 = ssub.s32 %s20, %s32
      %s34 = ssub.s32 %s21, %s28
      %s35 = sor.u32 %s33, %s34
      %p36 = scmp.eq.s32.totalorder %s35, 0
      %s38 = sadd.s32 %s37, 1
      %s39 = scalar_select %p36, %s37, %s38
      %p42 = pneg %p36
      %p43 = scmp.eq.s32.totalorder %s13, 31
      %p44 = por %p42, %p43
      %p45 = scmp.ne.s32.totalorder %s37, %s40
      %p46 = scmp.eq.s32.totalorder %s13, 0
      %p47 = por %p45, %p46
      %p48 = scmp.ne.s32.totalorder %s37, %s40
      %p49 = scmp.eq.s32.totalorder %s18, 31
      %p50 = por %p48, %p49
      %p51 = scmp.ne.s32.totalorder %s40, %s41
      %p52 = scmp.eq.s32.totalorder %s18, 0
      %p53 = por %p51, %p52
      %p54 = scmp.ne.s32.totalorder %s40, %s41
      %p55 = scmp.eq.s32.totalorder %s19, 31
      %p56 = por %p54, %p55
      %p58 = scmp.ne.s32.totalorder %s41, %s57
      %p59 = scmp.eq.s32.totalorder %s19, 0
      %p60 = por %p58, %p59
      %s61 = sadd.s32 %s21, 1
      %s62 = sadd.s32 %s28, 1
      %s63 = ssub.s32 %s20, %s32
      %s64 = ssub.s32 %s61, %s62
      %s65 = sor.u32 %s63, %s64
      %p66 = scmp.eq.s32.totalorder %s65, 0
      %s68 = sadd.s32 %s67, 1
      %s69 = scalar_select %p66, %s67, %s68
      %p72 = pneg %p66
      %p73 = scmp.eq.s32.totalorder %s13, 31
      %p74 = por %p72, %p73
      %p75 = scmp.ne.s32.totalorder %s67, %s70
      %p76 = scmp.eq.s32.totalorder %s13, 0
      %p77 = por %p75, %p76
      %p78 = scmp.ne.s32.totalorder %s67, %s70
      %p79 = scmp.eq.s32.totalorder %s18, 31
      %p80 = por %p78, %p79
      %p81 = scmp.ne.s32.totalorder %s70, %s71
      %p82 = scmp.eq.s32.totalorder %s18, 0
      %p83 = por %p81, %p82
      %p84 = scmp.ne.s32.totalorder %s70, %s71
      %p85 = scmp.eq.s32.totalorder %s19, 31
      %p86 = por %p84, %p85
      %p88 = scmp.ne.s32.totalorder %s71, %s87
      %p89 = scmp.eq.s32.totalorder %s19, 0
      %p90 = por %p88, %p89
      %s91 = sadd.s32 %s21, 2
      %s92 = sadd.s32 %s28, 2
      %s93 = ssub.s32 %s20, %s32
      %s94 = ssub.s32 %s91, %s92
      %s95 = sor.u32 %s93, %s94
      %p96 = scmp.eq.s32.totalorder %s95, 0
      %s98 = sadd.s32 %s97, 1
      %s99 = scalar_select %p96, %s97, %s98
      %p102 = pneg %p96
      %p103 = scmp.eq.s32.totalorder %s13, 31
      %p104 = por %p102, %p103
      %p105 = scmp.ne.s32.totalorder %s97, %s100
      %p106 = scmp.eq.s32.totalorder %s13, 0
      %p107 = por %p105, %p106
      %p108 = scmp.ne.s32.totalorder %s97, %s100
      %p109 = scmp.eq.s32.totalorder %s18, 31
      %p110 = por %p108, %p109
      %p111 = scmp.ne.s32.totalorder %s100, %s101
      %p112 = scmp.eq.s32.totalorder %s18, 0
      %p113 = por %p111, %p112
      %p114 = scmp.ne.s32.totalorder %s100, %s101
      %p115 = scmp.eq.s32.totalorder %s19, 31
      %p116 = por %p114, %p115
      %p118 = scmp.ne.s32.totalorder %s101, %s117
      %p119 = scmp.eq.s32.totalorder %s19, 0
      %p120 = por %p118, %p119
      %s122 = sadd.s32 %s121, 1
      %p125 = scmp.eq.s32.totalorder %s13, 31
      %p126 = scmp.ne.s32.totalorder %s121, %s123
      %p127 = scmp.eq.s32.totalorder %s13, 0
      %p128 = por %p126, %p127
      %p129 = scmp.ne.s32.totalorder %s121, %s123
      %p130 = scmp.eq.s32.totalorder %s18, 31
      %p131 = por %p129, %p130
      %p132 = scmp.ne.s32.totalorder %s123, %s124
      %p133 = scmp.eq.s32.totalorder %s18, 0
      %p134 = por %p132, %p133
      %p135 = scmp.ne.s32.totalorder %s123, %s124
      %p136 = scmp.eq.s32.totalorder %s19, 31
      %p137 = por %p135, %p136
      %p139 = scmp.ne.s32.totalorder %s124, %s138
      %p140 = scmp.eq.s32.totalorder %s19, 0
      %p141 = por %p139, %p140
      %s142 = ssub.s32 %s20, %s32
      %s143 = ssub.s32 %s21, %s28
      %s144 = sor.u32 %s142, %s143
      %p145 = scmp.eq.s32.totalorder %s144, 0
      %s147 = sadd.s32 %s146, 1
      %s148 = scalar_select %p145, %s146, %s147
      %p151 = pneg %p145
      %p152 = scmp.eq.s32.totalorder %s13, 31
      %p153 = por %p151, %p152
      %p154 = scmp.ne.s32.totalorder %s146, %s149
      %p155 = scmp.eq.s32.totalorder %s13, 0
      %p156 = por %p154, %p155
      %p157 = scmp.ne.s32.totalorder %s146, %s149
      %p158 = scmp.eq.s32.totalorder %s18, 31
      %p159 = por %p157, %p158
      %p160 = scmp.ne.s32.totalorder %s149, %s150
      %p161 = scmp.eq.s32.totalorder %s18, 0
      %p162 = por %p160, %p161
      %p163 = scmp.ne.s32.totalorder %s149, %s150
      %p164 = scmp.eq.s32.totalorder %s19, 31
      %p165 = por %p163, %p164
      %p167 = scmp.ne.s32.totalorder %s150, %s166
      %p168 = scmp.eq.s32.totalorder %s19, 0
      %p169 = por %p167, %p168
      %s170 = ssub.s32 %s20, %s32
      %s171 = ssub.s32 %s21, %s28
      %s172 = sor.u32 %s170, %s171
      %p173 = scmp.eq.s32.totalorder %s172, 0
      %s175 = sadd.s32 %s174, 1
      %s176 = scalar_select %p173, %s174, %s175
      %p179 = pneg %p173
      %p180 = scmp.eq.s32.totalorder %s13, 31
      %p181 = por %p179, %p180
      %p182 = scmp.ne.s32.totalorder %s174, %s177
      %p183 = scmp.eq.s32.totalorder %s13, 0
      %p184 = por %p182, %p183
      %p185 = scmp.ne.s32.totalorder %s174, %s177
      %p186 = scmp.eq.s32.totalorder %s18, 31
      %p187 = por %p185, %p186
      %p188 = scmp.ne.s32.totalorder %s177, %s178
      %p189 = scmp.eq.s32.totalorder %s18, 0
      %p190 = por %p188, %p189
      %p191 = scmp.ne.s32.totalorder %s177, %s178
      %p192 = scmp.eq.s32.totalorder %s19, 31
      %p193 = por %p191, %p192
      %p195 = scmp.ne.s32.totalorder %s178, %s194
      %p196 = scmp.eq.s32.totalorder %s19, 0
      %p197 = por %p195, %p196
      %p198 = scmp.le.s32.totalorder 1, %s13
      %p199 = scmp.lt.s32.totalorder %s13, 33
      %p200 = pnand %p198, %p199
      %p201 = pneg %p200
      // Predicated region
      $region9: #{dcgan_generator_forward.17} parent=5 // pred_check
        _
      $region10: #{dcgan_generator_forward.17} parent=5 // pred_check_branch
        %203 = sbr.rel (%p200) target = $region12
      $region11: #{dcgan_generator_forward.17} parent=5 // pred_region
        %s204 = ssub.s32 %s13, 1
        // Predicated region
        $region13: #{dcgan_generator_forward.17} parent=11 // pred_check
          %p205 = pneg %p134
        $region14: #{dcgan_generator_forward.17} parent=11 // pred_check_branch
          %207 = sbr.rel (%p205) target = $region16
        $region15: #{dcgan_generator_forward.17} parent=11 // pred_region
          %s209 = ssub.s32 2048, 2048
          %210 = vsyncadd [#allocation3], %s209
          %s211 = sshll.u32 [#allocation2], 4
          %s212 = int_to_ptr.vmem [resolvable:$true] %s211
          %217 = dma.hbm_to_vmem [thread:$0]  %s3, 2048, %s212, [#allocation3], 64, 64, 4
        $region16: #{dcgan_generator_forward.17} parent=11 // pred_fallthru
          _
      $region12: #{dcgan_generator_forward.17} parent=5 // pred_fallthru
        _
      %p218 = scmp.lt.s32.totalorder %s13, 32
      // Predicated region
      $region17: #{dcgan_generator_forward.17} parent=5 // pred_check
        %p219 = pneg %p218
      $region18: #{dcgan_generator_forward.17} parent=5 // pred_check_branch
        %221 = sbr.rel (%p219) target = $region20
      $region19: #{dcgan_generator_forward.17} parent=5 // pred_region
        // Predicated region
        $region21: #{dcgan_generator_forward.17} parent=19 // pred_check
          %p222 = pneg %p47
        $region22: #{dcgan_generator_forward.17} parent=19 // pred_check_branch
          %224 = sbr.rel (%p222) target = $region24
        $region23: #{dcgan_generator_forward.17} parent=19 // pred_region
          %p225 = scmp.lt.s32.totalorder %s20, 1
          %s226 = scalar_select %p225, %s20, 1
          %p227 = scmp.lt.s32.totalorder %s21, 17
          %s228 = scalar_select %p227, %s21, 17
          %s229 = smul.addr %s228, 3
          %s230 = smul.addr %s226, 54
          %s231 = sadd.s32 %s229, %s230
          %s232 = smul.addr %s231, 4
          %s233 = scalar_lea.vmem %s0, %s232
        $region24: #{dcgan_generator_forward.17} parent=19 // pred_fallthru
          _
        // Predicated region
        $region25: #{dcgan_generator_forward.17} parent=19 // pred_check
          %p234 = pneg %p77
        $region26: #{dcgan_generator_forward.17} parent=19 // pred_check_branch
          %236 = sbr.rel (%p234) target = $region28
        $region27: #{dcgan_generator_forward.17} parent=19 // pred_region
          %s237 = sadd.s32 %s21, 1
          %p238 = scmp.lt.s32.totalorder %s20, 1
          %s239 = scalar_select %p238, %s20, 1
          %p240 = scmp.lt.s32.totalorder %s237, 17
          %s241 = scalar_select %p240, %s237, 17
          %s242 = smul.addr %s241, 3
          %s243 = smul.addr %s239, 54
          %s244 = sadd.s32 %s242, %s243
          %s245 = smul.addr %s244, 4
          %s246 = scalar_lea.vmem %s1, %s245
          %s247 = sadd.s32 %s21, 1
        $region28: #{dcgan_generator_forward.17} parent=19 // pred_fallthru
          _
        // Predicated region
        $region29: #{dcgan_generator_forward.17} parent=19 // pred_check
          %p248 = pneg %p107
        $region30: #{dcgan_generator_forward.17} parent=19 // pred_check_branch
          %250 = sbr.rel (%p248) target = $region32
        $region31: #{dcgan_generator_forward.17} parent=19 // pred_region
          %s251 = sadd.s32 %s21, 2
          %p252 = scmp.lt.s32.totalorder %s20, 1
          %s253 = scalar_select %p252, %s20, 1
          %p254 = scmp.lt.s32.totalorder %s251, 17
          %s255 = scalar_select %p254, %s251, 17
          %s256 = smul.addr %s255, 3
          %s257 = smul.addr %s253, 54
          %s258 = sadd.s32 %s256, %s257
          %s259 = smul.addr %s258, 4
          %s260 = scalar_lea.vmem %s2, %s259
          %s261 = sadd.s32 %s21, 2
        $region32: #{dcgan_generator_forward.17} parent=19 // pred_fallthru
          _
      $region20: #{dcgan_generator_forward.17} parent=5 // pred_fallthru
        _
      %p262 = scmp.le.s32.totalorder 1, %s13
      %p263 = scmp.lt.s32.totalorder %s13, 33
      %p264 = pnand %p262, %p263
      %p265 = pneg %p264
      // Predicated region
      $region33: #{dcgan_generator_forward.17} parent=5 // pred_check
        _
      $region34: #{dcgan_generator_forward.17} parent=5 // pred_check_branch
        %267 = sbr.rel (%p264) target = $region36
      $region35: #{dcgan_generator_forward.17} parent=5 // pred_region
        %s268 = ssub.s32 %s13, 1
        // Predicated region
        $region37: #{dcgan_generator_forward.17} parent=35 // pred_check
          %p269 = pneg %p134
        $region38: #{dcgan_generator_forward.17} parent=35 // pred_check_branch
          %271 = sbr.rel (%p269) target = $region40
        $region39: #{dcgan_generator_forward.17} parent=35 // pred_region
          %272 = dma.done [#allocation3], 2048
        $region40: #{dcgan_generator_forward.17} parent=35 // pred_fallthru
          _
        %p273 = scmp.lt.s32.totalorder %s22, 1
        %s274 = scalar_select %p273, %s22, 1
        %p275 = scmp.lt.s32.totalorder %s23, 17
        %s276 = scalar_select %p275, %s23, 17
        %s277 = smul.addr %s276, 3
        %s278 = smul.addr %s274, 54
        %s279 = sadd.s32 %s277, %s278
        %s280 = smul.addr %s279, 4
        %s281 = scalar_lea.vmem %s0, %s280
        %p282 = pneg %p53
        %p283 = pneg %p50
        %s284 = sadd.s32 %s23, 1
        %p285 = scmp.lt.s32.totalorder %s22, 1
        %s286 = scalar_select %p285, %s22, 1
        %p287 = scmp.lt.s32.totalorder %s284, 17
        %s288 = scalar_select %p287, %s284, 17
        %s289 = smul.addr %s288, 3
        %s290 = smul.addr %s286, 54
        %s291 = sadd.s32 %s289, %s290
        %s292 = smul.addr %s291, 4
        %s293 = scalar_lea.vmem %s1, %s292
        %p294 = pneg %p83
        %p295 = pneg %p80
        %s296 = sadd.s32 %s23, 2
        %p297 = scmp.lt.s32.totalorder %s22, 1
        %s298 = scalar_select %p297, %s22, 1
        %p299 = scmp.lt.s32.totalorder %s296, 17
        %s300 = scalar_select %p299, %s296, 17
        %s301 = smul.addr %s300, 3
        %s302 = smul.addr %s298, 54
        %s303 = sadd.s32 %s301, %s302
        %s304 = smul.addr %s303, 4
        %s305 = scalar_lea.vmem %s2, %s304
        %p306 = pneg %p113
        %p307 = pneg %p110
        %p308 = pneg %p134
        %p309 = pneg %p131
        %p310 = pneg %p162
        %p311 = pneg %p159
        %p312 = scmp.lt.s32.totalorder %s22, 1
        %s313 = scalar_select %p312, %s22, 1
        %p314 = scmp.lt.s32.totalorder %s23, 15
        %s315 = scalar_select %p314, %s23, 15
        %s316 = smul.addr %s315, 2
        %s317 = smul.addr %s313, 32
        %s318 = sadd.s32 %s316, %s317
        %s319 = smul.addr %s318, 4
        %s320 = scalar_lea.vmem %s4, %s319
        %p321 = pneg %p190
        %p322 = pneg %p187
        %p323 = scmp.lt.s32.totalorder %s22, 1
        %s324 = scalar_select %p323, %s22, 1
        %p325 = scmp.lt.s32.totalorder %s23, 15
        %s326 = scalar_select %p325, %s23, 15
        %s327 = smul.addr %s324, 16
        %s328 = sadd.s32 %s326, %s327
        %s329 = smul.addr %s328, 2
        %s330 = scalar_lea.vmem %s5, %s329
        %p331 = scmp.lt.s32.totalorder %s22, 1
        %s332 = scalar_select %p331, %s22, 1
        %p333 = scmp.lt.s32.totalorder %s23, 17
        %s334 = scalar_select %p333, %s23, 17
        %s335 = smul.addr %s334, 3
        %s336 = smul.addr %s332, 54
        %s337 = sadd.s32 %s335, %s336
        %s338 = smul.addr %s337, 4
        %s339 = scalar_lea.vmem %s0, %s338
        %s340 = sadd.s32 %s23, 1
        %p341 = scmp.lt.s32.totalorder %s22, 1
        %s342 = scalar_select %p341, %s22, 1
        %p343 = scmp.lt.s32.totalorder %s340, 17
        %s344 = scalar_select %p343, %s340, 17
        %s345 = smul.addr %s344, 3
        %s346 = smul.addr %s342, 54
        %s347 = sadd.s32 %s345, %s346
        %s348 = smul.addr %s347, 4
        %s349 = scalar_lea.vmem %s1, %s348
        %s350 = sadd.s32 %s23, 1
        %s351 = sadd.s32 %s23, 2
        %p352 = scmp.lt.s32.totalorder %s22, 1
        %s353 = scalar_select %p352, %s22, 1
        %p354 = scmp.lt.s32.totalorder %s351, 17
        %s355 = scalar_select %p354, %s351, 17
        %s356 = smul.addr %s355, 3
        %s357 = smul.addr %s353, 54
        %s358 = sadd.s32 %s356, %s357
        %s359 = smul.addr %s358, 4
        %s360 = scalar_lea.vmem %s2, %s359
        %s361 = sadd.s32 %s23, 2
        %p362 = scmp.lt.s32.totalorder %s22, 1
        %s363 = scalar_select %p362, %s22, 1
        %p364 = scmp.lt.s32.totalorder %s23, 15
        %s365 = scalar_select %p364, %s23, 15
        %s366 = smul.addr %s365, 2
        %s367 = smul.addr %s363, 32
        %s368 = sadd.s32 %s366, %s367
        %s369 = smul.addr %s368, 4
        %s370 = scalar_lea.vmem %s4, %s369
        %p371 = scmp.lt.s32.totalorder %s22, 1
        %s372 = scalar_select %p371, %s22, 1
        %p373 = scmp.lt.s32.totalorder %s23, 15
        %s374 = scalar_select %p373, %s23, 15
        %s375 = smul.addr %s372, 16
        %s376 = sadd.s32 %s374, %s375
        %s377 = smul.addr %s376, 2
        %s378 = scalar_lea.vmem %s5, %s377
        %v380 = vld [vmem:[%s339] sm:$0xf]
        %v381 = vld [vmem:[%s339 + $0x4] sm:$0xf]
        %v382 = vld [vmem:[%s339 + $0x8] sm:$0x1]
        %v383 = vld [vmem:[%s349] sm:$0xf]
        %v384 = vld [vmem:[%s349 + $0x4] sm:$0xf]
        %v385 = vld [vmem:[%s349 + $0x8] sm:$0x1]
        %v386 = vld [vmem:[%s360] sm:$0xf]
        %v387 = vld [vmem:[%s360 + $0x4] sm:$0xf]
        %v388 = vld [vmem:[%s360 + $0x8] sm:$0x1]
        %v391 = vunpack.c.l.b16 %v380
        %v392 = vunpack.c.l.b16 %v381
        %v393 = vpack.c.b16 %v392, %v391
        %v395 = vunpack.c.l.b16 %v382
        %v396 = vpack.c.b16 %v395, %v395
        %vm397 = vsmask.f32 7424
        %v399 = vshrl.u32 %v393, 16
        %v401 = vshll.u32 %v393, 16
        %v403 = vrot.slane %v401, 1
        %v404 = vor.u32 %v399, %v403
        %v406 = vshll.u32 %v396, 16
        %v408 = vrot.slane %v406, 1
        %v409 = vsel %vm397, %v404, %v408
        %410 = vrot.lane.b32.xlu0 %v409, 16
        %v411 = vpop.permute.xlu0 %410
        %v414 = vunpack.c.l.b16 %v383
        %v415 = vunpack.c.l.b16 %v384
        %v416 = vpack.c.b16 %v415, %v414
        %417 = vrot.lane.b32.xlu0 %v416, 32
        %v418 = vpop.permute.xlu0 %417
        %v420 = vunpack.c.l.b16 %v385
        %v421 = vpack.c.b16 %v420, %v420
        %v423 = vshrl.u32 %v416, 16
        %v425 = vshll.u32 %v416, 16
        %v427 = vrot.slane %v425, 1
        %v428 = vor.u32 %v423, %v427
        %v430 = vshll.u32 %v421, 16
        %v432 = vrot.slane %v430, 1
        %v433 = vsel %vm397, %v428, %v432
        %434 = vrot.lane.b32.xlu0 %v433, 48
        %v435 = vpop.permute.xlu0 %434
        %vm436 = vcmask 130048
        %v438 = vsel %vm436, %v393, %v411
        %vm439 = vcmask 261120
        %v441 = vsel %vm439, %v438, %v418
        %vm442 = vcmask 392192
        %v444 = vsel %vm442, %v441, %v435
        %v445 = vld [vmem:[#allocation2] sm:$0xf]
        %v446 = vld [vmem:[#allocation2 + $0x4] sm:$0xf]
        %v447 = vld [vmem:[#allocation2 + $0x8] sm:$0xf]
        %v448 = vld [vmem:[#allocation2 + $0xc] sm:$0xf]
        %v449 = vld [vmem:[#allocation2 + $0x10] sm:$0xf]
        %v450 = vld [vmem:[#allocation2 + $0x14] sm:$0xf]
        %v451 = vld [vmem:[#allocation2 + $0x18] sm:$0xf]
        %v452 = vld [vmem:[#allocation2 + $0x1c] sm:$0xf]
        %v461 = vunpack.c.l.b16 %v445
        %v462 = vunpack.c.l.b16 %v446
        %v463 = vunpack.c.l.b16 %v447
        %v464 = vunpack.c.l.b16 %v448
        %v465 = vunpack.c.l.b16 %v449
        %v466 = vunpack.c.l.b16 %v450
        %v467 = vunpack.c.l.b16 %v451
        %v468 = vunpack.c.l.b16 %v452
        %v469 = vpack.c.b16 %v462, %v461
        %v470 = vpack.c.b16 %v464, %v463
        %v471 = vpack.c.b16 %v466, %v465
        %v472 = vpack.c.b16 %v468, %v467
        %vm477 = vcmask 523264
        %v478 = vsel %vm477, %v444, 0
        %480 = vmatprep.subr.bf16.mxu0 0
        %481 = vmatpush1.bf16.msra.mxu0 %v469
        %482 = vmatprep.subr.bf16.mxu0 0
        %483 = vmatpush1.bf16.msra.mxu0 %v470
        %484 = vmatprep.subr.bf16.mxu0 0
        %485 = vmatpush1.bf16.msra.mxu0 %v471
        %486 = vmatprep.subr.bf16.mxu0 0
        %487 = vmatpush1.bf16.msra.mxu0 %v472
        %488 = vmatprep.subr.bf16.mxu0 0
        %489 = vmatpush1.bf16.msra.mxu0 0
        %490 = vmatprep.subr.bf16.mxu0 0
        %491 = vmatpush1.bf16.msra.mxu0 0
        %492 = vmatprep.subr.bf16.mxu0 0
        %493 = vmatpush1.bf16.msra.mxu0 0
        %494 = vmatprep.subr.bf16.mxu0 0
        %495 = vmatpush1.bf16.msra.mxu0 0
        %496 = vmatprep.subr.bf16.mxu0 0
        %497 = vmatpush1.bf16.msra.mxu0 0
        %498 = vmatprep.subr.bf16.mxu0 0
        %499 = vmatpush1.bf16.msra.mxu0 0
        %500 = vmatprep.subr.bf16.mxu0 0
        %501 = vmatpush1.bf16.msra.mxu0 0
        %502 = vmatprep.subr.bf16.mxu0 0
        %503 = vmatpush1.bf16.msra.mxu0 0
        %504 = vmatprep.subr.bf16.mxu0 0
        %505 = vmatpush1.bf16.msra.mxu0 0
        %506 = vmatprep.subr.bf16.mxu0 0
        %507 = vmatpush1.bf16.msra.mxu0 0
        %508 = vmatprep.subr.bf16.mxu0 0
        %509 = vmatpush1.bf16.msra.mxu0 0
        %510 = vmatprep.subr.bf16.mxu0 0
        %511 = vmatpush1.bf16.msra.mxu0 0
        %512 = vmatprep.mubr.bf16.mxu0 0
        %513 = vmatmul.mubr.bf16.gmra.mrb[0].mxu0 %v478
        %v514 = vpop.f32.mrb[0].mxu0
        %v515 = vadd.f32 0.0, %v514
        %v516 = vpop.f32.mrb[0].mxu0
        %v517 = vpop.f32.mrb[0].mxu0
        %v518 = vadd.f32 0.0, %v517
        %v519 = vpop.f32.mrb[0].mxu0
        %520 = vdwg.mxu0
        %v521 = vshrl.u32 %v396, 16
        %523 = vrot.lane.b32.xlu0 %v521, 16
        %v524 = vpop.permute.xlu0 %523
        %525 = vrot.lane.b32.xlu0 %v421, 32
        %v526 = vpop.permute.xlu0 %525
        %v527 = vshrl.u32 %v421, 16
        %529 = vrot.lane.b32.xlu0 %v527, 48
        %v530 = vpop.permute.xlu0 %529
        %v532 = vsel %vm436, %v396, %v524
        %v534 = vsel %vm439, %v532, %v526
        %v536 = vsel %vm442, %v534, %v530
        %s537 = scalar_lea.vmem [#allocation2], 32
        %v538 = vld [vmem:[%s537] sm:$0xf]
        %v539 = vld [vmem:[%s537 + $0x4] sm:$0xf]
        %v540 = vld [vmem:[%s537 + $0x8] sm:$0xf]
        %v541 = vld [vmem:[%s537 + $0xc] sm:$0xf]
        %v542 = vld [vmem:[%s537 + $0x10] sm:$0xf]
        %v543 = vld [vmem:[%s537 + $0x14] sm:$0xf]
        %v544 = vld [vmem:[%s537 + $0x18] sm:$0xf]
        %v545 = vld [vmem:[%s537 + $0x1c] sm:$0xf]
        %v546 = vshrl.u32 %v444, 16
        %v548 = vshll.u32 %v444, 16
        %v550 = vrot.slane %v548, 1
        %v551 = vor.u32 %v546, %v550
        %v552 = vshll.u32 %v536, 16
        %v554 = vrot.slane %v552, 1
        %v555 = vsel %vm397, %v551, %v554
        %v564 = vunpack.c.l.b16 %v538
        %v565 = vunpack.c.l.b16 %v539
        %v566 = vunpack.c.l.b16 %v540
        %v567 = vunpack.c.l.b16 %v541
        %v568 = vunpack.c.l.b16 %v542
        %v569 = vunpack.c.l.b16 %v543
        %v570 = vunpack.c.l.b16 %v544
        %v571 = vunpack.c.l.b16 %v545
        %v572 = vpack.c.b16 %v565, %v564
        %v573 = vpack.c.b16 %v567, %v566
        %v574 = vpack.c.b16 %v569, %v568
        %v575 = vpack.c.b16 %v571, %v570
        %v581 = vsel %vm477, %v555, 0
        %583 = vmatprep.subr.bf16.mxu0 0
        %584 = vmatpush1.bf16.msra.mxu0 %v572
        %585 = vmatprep.subr.bf16.mxu0 0
        %586 = vmatpush1.bf16.msra.mxu0 %v573
        %587 = vmatprep.subr.bf16.mxu0 0
        %588 = vmatpush1.bf16.msra.mxu0 %v574
        %589 = vmatprep.subr.bf16.mxu0 0
        %590 = vmatpush1.bf16.msra.mxu0 %v575
        %591 = vmatprep.subr.bf16.mxu0 0
        %592 = vmatpush1.bf16.msra.mxu0 0
        %593 = vmatprep.subr.bf16.mxu0 0
        %594 = vmatpush1.bf16.msra.mxu0 0
        %595 = vmatprep.subr.bf16.mxu0 0
        %596 = vmatpush1.bf16.msra.mxu0 0
        %597 = vmatprep.subr.bf16.mxu0 0
        %598 = vmatpush1.bf16.msra.mxu0 0
        %599 = vmatprep.subr.bf16.mxu0 0
        %600 = vmatpush1.bf16.msra.mxu0 0
        %601 = vmatprep.subr.bf16.mxu0 0
        %602 = vmatpush1.bf16.msra.mxu0 0
        %603 = vmatprep.subr.bf16.mxu0 0
        %604 = vmatpush1.bf16.msra.mxu0 0
        %605 = vmatprep.subr.bf16.mxu0 0
        %606 = vmatpush1.bf16.msra.mxu0 0
        %607 = vmatprep.subr.bf16.mxu0 0
        %608 = vmatpush1.bf16.msra.mxu0 0
        %609 = vmatprep.subr.bf16.mxu0 0
        %610 = vmatpush1.bf16.msra.mxu0 0
        %611 = vmatprep.subr.bf16.mxu0 0
        %612 = vmatpush1.bf16.msra.mxu0 0
        %613 = vmatprep.subr.bf16.mxu0 0
        %614 = vmatpush1.bf16.msra.mxu0 0
        %615 = vmatprep.mubr.bf16.mxu0 0
        %616 = vmatmul.mubr.bf16.gmra.mrb[0].mxu0 %v581
        %v617 = vpop.f32.mrb[0].mxu0
        %v618 = vadd.f32 0.0, %v617
        %v619 = vpop.f32.mrb[0].mxu0
        %v620 = vpop.f32.mrb[0].mxu0
        %v621 = vadd.f32 0.0, %v620
        %v622 = vpop.f32.mrb[0].mxu0
        %623 = vdwg.mxu0
        %624 = vrot.lane.b32.xlu0 %v433, 16
        %v625 = vpop.permute.xlu0 %624
        %v628 = vunpack.c.l.b16 %v386
        %v629 = vunpack.c.l.b16 %v387
        %v630 = vpack.c.b16 %v629, %v628
        %631 = vrot.lane.b32.xlu0 %v630, 32
        %v632 = vpop.permute.xlu0 %631
        %v634 = vunpack.c.l.b16 %v388
        %v635 = vpack.c.b16 %v634, %v634
        %v637 = vshrl.u32 %v630, 16
        %v639 = vshll.u32 %v630, 16
        %v641 = vrot.slane %v639, 1
        %v642 = vor.u32 %v637, %v641
        %v644 = vshll.u32 %v635, 16
        %v646 = vrot.slane %v644, 1
        %v647 = vsel %vm397, %v642, %v646
        %648 = vrot.lane.b32.xlu0 %v647, 48
        %v649 = vpop.permute.xlu0 %648
        %v651 = vsel %vm436, %v416, %v625
        %v653 = vsel %vm439, %v651, %v632
        %v655 = vsel %vm442, %v653, %v649
        %s656 = scalar_lea.vmem [#allocation2], 64
        %v657 = vld [vmem:[%s656] sm:$0xf]
        %v658 = vld [vmem:[%s656 + $0x4] sm:$0xf]
        %v659 = vld [vmem:[%s656 + $0x8] sm:$0xf]
        %v660 = vld [vmem:[%s656 + $0xc] sm:$0xf]
        %v661 = vld [vmem:[%s656 + $0x10] sm:$0xf]
        %v662 = vld [vmem:[%s656 + $0x14] sm:$0xf]
        %v663 = vld [vmem:[%s656 + $0x18] sm:$0xf]
        %v664 = vld [vmem:[%s656 + $0x1c] sm:$0xf]
        %v673 = vunpack.c.l.b16 %v657
        %v674 = vunpack.c.l.b16 %v658
        %v675 = vunpack.c.l.b16 %v659
        %v676 = vunpack.c.l.b16 %v660
        %v677 = vunpack.c.l.b16 %v661
        %v678 = vunpack.c.l.b16 %v662
        %v679 = vunpack.c.l.b16 %v663
        %v680 = vunpack.c.l.b16 %v664
        %v681 = vpack.c.b16 %v674, %v673
        %v682 = vpack.c.b16 %v676, %v675
        %v683 = vpack.c.b16 %v678, %v677
        %v684 = vpack.c.b16 %v680, %v679
        %v689 = vsel %vm477, %v655, 0
        %691 = vmatprep.subr.bf16.mxu0 0
        %692 = vmatpush1.bf16.msra.mxu0 %v681
        %693 = vmatprep.subr.bf16.mxu0 0
        %694 = vmatpush1.bf16.msra.mxu0 %v682
        %695 = vmatprep.subr.bf16.mxu0 0
        %696 = vmatpush1.bf16.msra.mxu0 %v683
        %697 = vmatprep.subr.bf16.mxu0 0
        %698 = vmatpush1.bf16.msra.mxu0 %v684
        %699 = vmatprep.subr.bf16.mxu0 0
        %700 = vmatpush1.bf16.msra.mxu0 0
        %701 = vmatprep.subr.bf16.mxu0 0
        %702 = vmatpush1.bf16.msra.mxu0 0
        %703 = vmatprep.subr.bf16.mxu0 0
        %704 = vmatpush1.bf16.msra.mxu0 0
        %705 = vmatprep.subr.bf16.mxu0 0
        %706 = vmatpush1.bf16.msra.mxu0 0
        %707 = vmatprep.subr.bf16.mxu0 0
        %708 = vmatpush1.bf16.msra.mxu0 0
        %709 = vmatprep.subr.bf16.mxu0 0
        %710 = vmatpush1.bf16.msra.mxu0 0
        %711 = vmatprep.subr.bf16.mxu0 0
        %712 = vmatpush1.bf16.msra.mxu0 0
        %713 = vmatprep.subr.bf16.mxu0 0
        %714 = vmatpush1.bf16.msra.mxu0 0
        %715 = vmatprep.subr.bf16.mxu0 0
        %716 = vmatpush1.bf16.msra.mxu0 0
        %717 = vmatprep.subr.bf16.mxu0 0
        %718 = vmatpush1.bf16.msra.mxu0 0
        %719 = vmatprep.subr.bf16.mxu0 0
        %720 = vmatpush1.bf16.msra.mxu0 0
        %721 = vmatprep.subr.bf16.mxu0 0
        %722 = vmatpush1.bf16.msra.mxu0 0
        %723 = vmatprep.mubr.bf16.mxu0 0
        %724 = vmatmul.mubr.bf16.gmra.mrb[0].mxu0 %v689
        %v725 = vpop.f32.mrb[0].mxu0
        %v726 = vadd.f32 0.0, %v725
        %v727 = vpop.f32.mrb[0].mxu0
        %v728 = vpop.f32.mrb[0].mxu0
        %v729 = vadd.f32 0.0, %v728
        %v730 = vpop.f32.mrb[0].mxu0
        %731 = vdwg.mxu0
        %732 = vrot.lane.b32.xlu0 %v527, 16
        %v733 = vpop.permute.xlu0 %732
        %734 = vrot.lane.b32.xlu0 %v635, 32
        %v735 = vpop.permute.xlu0 %734
        %v736 = vshrl.u32 %v635, 16
        %738 = vrot.lane.b32.xlu0 %v736, 48
        %v739 = vpop.permute.xlu0 %738
        %v741 = vsel %vm436, %v421, %v733
        %v743 = vsel %vm439, %v741, %v735
        %v745 = vsel %vm442, %v743, %v739
        %s746 = scalar_lea.vmem [#allocation2], 96
        %v747 = vld [vmem:[%s746] sm:$0xf]
        %v748 = vld [vmem:[%s746 + $0x4] sm:$0xf]
        %v749 = vld [vmem:[%s746 + $0x8] sm:$0xf]
        %v750 = vld [vmem:[%s746 + $0xc] sm:$0xf]
        %v751 = vld [vmem:[%s746 + $0x10] sm:$0xf]
        %v752 = vld [vmem:[%s746 + $0x14] sm:$0xf]
        %v753 = vld [vmem:[%s746 + $0x18] sm:$0xf]
        %v754 = vld [vmem:[%s746 + $0x1c] sm:$0xf]
        %v755 = vshrl.u32 %v655, 16
        %v757 = vshll.u32 %v655, 16
        %v759 = vrot.slane %v757, 1
        %v760 = vor.u32 %v755, %v759
        %v761 = vshll.u32 %v745, 16
        %v763 = vrot.slane %v761, 1
        %v764 = vsel %vm397, %v760, %v763
        %v773 = vunpack.c.l.b16 %v747
        %v774 = vunpack.c.l.b16 %v748
        %v775 = vunpack.c.l.b16 %v749
        %v776 = vunpack.c.l.b16 %v750
        %v777 = vunpack.c.l.b16 %v751
        %v778 = vunpack.c.l.b16 %v752
        %v779 = vunpack.c.l.b16 %v753
        %v780 = vunpack.c.l.b16 %v754
        %v781 = vpack.c.b16 %v774, %v773
        %v782 = vpack.c.b16 %v776, %v775
        %v783 = vpack.c.b16 %v778, %v777
        %v784 = vpack.c.b16 %v780, %v779
        %v790 = vsel %vm477, %v764, 0
        %792 = vmatprep.subr.bf16.mxu0 0
        %793 = vmatpush1.bf16.msra.mxu0 %v781
        %794 = vmatprep.subr.bf16.mxu0 0
        %795 = vmatpush1.bf16.msra.mxu0 %v782
        %796 = vmatprep.subr.bf16.mxu0 0
        %797 = vmatpush1.bf16.msra.mxu0 %v783
        %798 = vmatprep.subr.bf16.mxu0 0
        %799 = vmatpush1.bf16.msra.mxu0 %v784
        %800 = vmatprep.subr.bf16.mxu0 0
        %801 = vmatpush1.bf16.msra.mxu0 0
        %802 = vmatprep.subr.bf16.mxu0 0
        %803 = vmatpush1.bf16.msra.mxu0 0
        %804 = vmatprep.subr.bf16.mxu0 0
        %805 = vmatpush1.bf16.msra.mxu0 0
        %806 = vmatprep.subr.bf16.mxu0 0
        %807 = vmatpush1.bf16.msra.mxu0 0
        %808 = vmatprep.subr.bf16.mxu0 0
        %809 = vmatpush1.bf16.msra.mxu0 0
        %810 = vmatprep.subr.bf16.mxu0 0
        %811 = vmatpush1.bf16.msra.mxu0 0
        %812 = vmatprep.subr.bf16.mxu0 0
        %813 = vmatpush1.bf16.msra.mxu0 0
        %814 = vmatprep.subr.bf16.mxu0 0
        %815 = vmatpush1.bf16.msra.mxu0 0
        %816 = vmatprep.subr.bf16.mxu0 0
        %817 = vmatpush1.bf16.msra.mxu0 0
        %818 = vmatprep.subr.bf16.mxu0 0
        %819 = vmatpush1.bf16.msra.mxu0 0
        %820 = vmatprep.subr.bf16.mxu0 0
        %821 = vmatpush1.bf16.msra.mxu0 0
        %822 = vmatprep.subr.bf16.mxu0 0
        %823 = vmatpush1.bf16.msra.mxu0 0
        %824 = vmatprep.mubr.bf16.mxu0 0
        %825 = vmatmul.mubr.bf16.gmra.mrb[0].mxu0 %v790
        %v826 = vpop.f32.mrb[0].mxu0
        %v827 = vadd.f32 0.0, %v826
        %v828 = vpop.f32.mrb[0].mxu0
        %v829 = vpop.f32.mrb[0].mxu0
        %v830 = vadd.f32 0.0, %v829
        %v831 = vpop.f32.mrb[0].mxu0
        %832 = vdwg.mxu0
        %v833 = vadd.f32 %v515, %v618
        %v834 = vadd.f32 %v518, %v621
        %v835 = vadd.f32 %v833, %v726
        %v836 = vadd.f32 %v834, %v729
        %v837 = vadd.f32 %v835, %v827
        %v838 = vadd.f32 %v836, %v830
        %v839 = vmul.f32 %v515, %v515
        %v840 = vmul.f32 %v518, %v518
        %v841 = vmul.f32 %v618, %v618
        %v842 = vmul.f32 %v621, %v621
        %v843 = vadd.f32 %v839, %v841
        %v844 = vadd.f32 %v840, %v842
        %v845 = vmul.f32 %v726, %v726
        %v846 = vmul.f32 %v729, %v729
        %v847 = vadd.f32 %v843, %v845
        %v848 = vadd.f32 %v844, %v846
        %v849 = vmul.f32 %v827, %v827
        %v850 = vmul.f32 %v830, %v830
        %v851 = vadd.f32 %v847, %v849
        %v852 = vadd.f32 %v848, %v850
        %vm853 = vcmask 64512
        %v854 = vsel %vm853, %v837, 0.0
        %v855 = vsel %vm853, %v838, 0.0
        %v856 = vadd.f32 %v854, %v855
        %v857 = vrot.slane %v856, 4
        %v858 = vadd.f32 %v856, %v857
        %v859 = vrot.slane %v858, 2
        %v860 = vadd.f32 %v858, %v859
        %v861 = vrot.slane %v860, 1
        %v862 = vadd.f32 %v860, %v861
        %v863 = vsel %vm853, %v851, 0.0
        %v864 = vsel %vm853, %v852, 0.0
        %v865 = vadd.f32 %v863, %v864
        %v866 = vrot.slane %v865, 4
        %v867 = vadd.f32 %v865, %v866
        %v868 = vrot.slane %v867, 2
        %v869 = vadd.f32 %v867, %v868
        %v870 = vrot.slane %v869, 1
        %v871 = vadd.f32 %v869, %v870
        %vm872 = vcmask 1040384
        %v873 = vsel %vm872, %v862, %v871
        %vm874 = vcmask 58368
        %875 = vst.msk [vmem:[%s378] sm:$0x3] %vm874, %v873
        %878 = vrot.lane.b32.xlu0 %v618, 8
        %v879 = vpop.permute.xlu0 %878
        %880 = vrot.lane.b32.xlu0 %v621, 8
        %v881 = vpop.permute.xlu0 %880
        %886 = vrot.lane.b32.xlu0 %v726, 16
        %v887 = vpop.permute.xlu0 %886
        %888 = vrot.lane.b32.xlu0 %v729, 16
        %v889 = vpop.permute.xlu0 %888
        %894 = vrot.lane.b32.xlu0 %v827, 24
        %v895 = vpop.permute.xlu0 %894
        %896 = vrot.lane.b32.xlu0 %v830, 24
        %v897 = vpop.permute.xlu0 %896
        %v900 = vsel %vm853, %v515, %v879
        %v901 = vsel %vm853, %v518, %v881
        %v902 = vsel %vm436, %v900, %v887
        %v903 = vsel %vm436, %v901, %v889
        %vm904 = vcmask 195584
        %v905 = vsel %vm904, %v902, %v895
        %v906 = vsel %vm904, %v903, %v897
        %v907 = vpack.c.bf16 %v906, %v905
        %v909 = vunpack.c.l.b16 %v907
        %v910 = vunpack.c.h.b16 %v907
        %v911 = vpack.c.b16 %v909, %v909
        %v912 = vpack.c.b16 %v910, %v910
        %vm915 = vcmask 257024
        %916 = vst.msk [vmem:[%s370] sm:$0xf] %vm915, %v911
        %917 = vst.msk [vmem:[%s370 + $0x4] sm:$0xf] %vm915, %v912
        %p918 = scmp.lt.s32.totalorder %s22, 1
        %s919 = scalar_select %p918, %s22, 1
        %p920 = scmp.lt.s32.totalorder %s23, 15
        %s921 = scalar_select %p920, %s23, 15
        %s922 = smul.addr %s921, 2
        %s923 = smul.addr %s919, 32
        %s924 = sadd.s32 %s922, %s923
        %s925 = smul.addr %s924, 4
        %s926 = scalar_lea.vmem %s4, %s925
        %p927 = scmp.lt.s32.totalorder %s22, 1
        %s928 = scalar_select %p927, %s22, 1
        %p929 = scmp.lt.s32.totalorder %s23, 15
        %s930 = scalar_select %p929, %s23, 15
        %s931 = smul.addr %s928, 16
        %s932 = sadd.s32 %s930, %s931
        %s933 = smul.addr %s932, 2
        %s934 = scalar_lea.vmem %s5, %s933
        // Predicated region
        $region41: #{dcgan_generator_forward.17} parent=35 // pred_check
          %p935 = pneg %p159
        $region42: #{dcgan_generator_forward.17} parent=35 // pred_check_branch
          %937 = sbr.rel (%p935) target = $region44
        $region43: #{dcgan_generator_forward.17} parent=35 // pred_region
          _
        $region44: #{dcgan_generator_forward.17} parent=35 // pred_fallthru
          _
        // Predicated region
        $region45: #{dcgan_generator_forward.17} parent=35 // pred_check
          %p938 = pneg %p187
        $region46: #{dcgan_generator_forward.17} parent=35 // pred_check_branch
          %940 = sbr.rel (%p938) target = $region48
        $region47: #{dcgan_generator_forward.17} parent=35 // pred_region
          _
        $region48: #{dcgan_generator_forward.17} parent=35 // pred_fallthru
          _
      $region36: #{dcgan_generator_forward.17} parent=5 // pred_fallthru
        _
      %p941 = scmp.le.s32.totalorder 2, %s13
      // Predicated region
      $region49: #{dcgan_generator_forward.17} parent=5 // pred_check
        %p942 = pneg %p941
      $region50: #{dcgan_generator_forward.17} parent=5 // pred_check_branch
        %944 = sbr.rel (%p942) target = $region52
      $region51: #{dcgan_generator_forward.17} parent=5 // pred_region
        %s945 = ssub.s32 %s13, 2
        // Predicated region
        $region53: #{dcgan_generator_forward.17} parent=51 // pred_check
          %p946 = pneg %p165
        $region54: #{dcgan_generator_forward.17} parent=51 // pred_check_branch
          %948 = sbr.rel (%p946) target = $region56
        $region55: #{dcgan_generator_forward.17} parent=51 // pred_region
          %p949 = scmp.lt.s32.totalorder %s24, 1
          %s950 = scalar_select %p949, %s24, 1
          %p951 = scmp.lt.s32.totalorder %s25, 15
          %s952 = scalar_select %p951, %s25, 15
          %s953 = smul.addr %s952, 2
          %s954 = smul.addr %s950, 32
          %s955 = sadd.s32 %s953, %s954
          %s956 = smul.addr %s955, 4
          %s957 = scalar_lea.vmem %s4, %s956
        $region56: #{dcgan_generator_forward.17} parent=51 // pred_fallthru
          _
        // Predicated region
        $region57: #{dcgan_generator_forward.17} parent=51 // pred_check
          %p958 = pneg %p193
        $region58: #{dcgan_generator_forward.17} parent=51 // pred_check_branch
          %960 = sbr.rel (%p958) target = $region60
        $region59: #{dcgan_generator_forward.17} parent=51 // pred_region
          %p961 = scmp.lt.s32.totalorder %s24, 1
          %s962 = scalar_select %p961, %s24, 1
          %p963 = scmp.lt.s32.totalorder %s25, 15
          %s964 = scalar_select %p963, %s25, 15
          %s965 = smul.addr %s962, 16
          %s966 = sadd.s32 %s964, %s965
          %s967 = smul.addr %s966, 2
          %s968 = scalar_lea.vmem %s5, %s967
        $region60: #{dcgan_generator_forward.17} parent=51 // pred_fallthru
          _
      $region52: #{dcgan_generator_forward.17} parent=5 // pred_fallthru
        _
    $region6: #{dcgan_generator_forward.17} parent=1 // loop_footer
      %s17 = sadd.s32 1, %s13
    $region7: #{dcgan_generator_forward.17} parent=1 // loop_footer_branch
      %12 = sbr.rel target = $region3
    $region8: #{dcgan_generator_forward.17} parent=1 // loop_exit
      _
    %969 = vsyncpa [#allocation3], 1
    %s970 = scalar_lea.sflag [#allocation3], 1
    %971 = vsyncpa %s970, 1

// kernel: tile.89
$region0: #{tile.89}
  %s0 = inlined_call_operand.vmem [shape: f32[64,8], index: 0, kind: input, shape index: {}]
  %s1 = inlined_call_operand.vmem [shape: f32[1,512], index: 1, kind: output, shape index: {}]
  $region1: #{tile.89} parent=0
    #allocation0 [shape = 'u8[16384]{0}', space=vmem, size = 0x4000, scoped, tag = 'scoped mem for output reshape']
    %s2 = smov 3
    %v3 = vld [vmem:[%s0] ss:$16 sm:%s2]
    %s4 = smov 12
    %v5 = vld [vmem:[%s0] ss:$16 sm:%s4]
    %vm6 = vcmask 1043458
    %v7 = vsel %vm6, %v5, %v3
    %vm8 = vcmask 64512
    %9 = vst.msk [vmem:[#allocation0] ss:$8 sm:$0xf] %vm8, %v7
    %s10 = scalar_lea.vmem %s0, 15
    %s11 = smov 3
    %v12 = vld [vmem:[%s10] ss:$16 sm:%s11]
    %s13 = scalar_lea.vmem %s0, 15
    %s14 = smov 12
    %v15 = vld [vmem:[%s13] ss:$16 sm:%s14]
    %vm16 = vcmask 1043458
    %v17 = vsel %vm16, %v15, %v12
    %18 = vrot.lane.b32.xlu0 %v17, 120
    %v19 = vpop.permute.xlu0 %18
    %vm20 = vcmask 1048512
    %21 = vst.msk [vmem:[#allocation0] ss:$8 sm:$0xf] %vm20, %v19
    %s22 = scalar_lea.vmem %s0, 14
    %s23 = smov 3
    %v24 = vld [vmem:[%s22] ss:$16 sm:%s23]
    %s25 = scalar_lea.vmem %s0, 14
    %s26 = smov 12
    %v27 = vld [vmem:[%s25] ss:$16 sm:%s26]
    %vm28 = vcmask 1043458
    %v29 = vsel %vm28, %v27, %v24
    %30 = vrot.lane.b32.xlu0 %v29, 112
    %v31 = vpop.permute.xlu0 %30
    %vm32 = vcmask 982912
    %33 = vst.msk [vmem:[#allocation0] ss:$8 sm:$0xf] %vm32, %v31
    %s34 = scalar_lea.vmem %s0, 13
    %s35 = smov 3
    %v36 = vld [vmem:[%s34] ss:$16 sm:%s35]
    %s37 = scalar_lea.vmem %s0, 13
    %s38 = smov 12
    %v39 = vld [vmem:[%s37] ss:$16 sm:%s38]
    %vm40 = vcmask 1043458
    %v41 = vsel %vm40, %v39, %v36
    %42 = vrot.lane.b32.xlu0 %v41, 104
    %v43 = vpop.permute.xlu0 %42
    %vm44 = vcmask 917312
    %45 = vst.msk [vmem:[#allocation0] ss:$8 sm:$0xf] %vm44, %v43
    %s46 = scalar_lea.vmem %s0, 12
    %s47 = smov 3
    %v48 = vld [vmem:[%s46] ss:$16 sm:%s47]
    %s49 = scalar_lea.vmem %s0, 12
    %s50 = smov 12
    %v51 = vld [vmem:[%s49] ss:$16 sm:%s50]
    %vm52 = vcmask 1043458
    %v53 = vsel %vm52, %v51, %v48
    %54 = vrot.lane.b32.xlu0 %v53, 96
    %v55 = vpop.permute.xlu0 %54
    %vm56 = vcmask 851712
    %57 = vst.msk [vmem:[#allocation0] ss:$8 sm:$0xf] %vm56, %v55
    %s58 = scalar_lea.vmem %s0, 11
    %s59 = smov 3
    %v60 = vld [vmem:[%s58] ss:$16 sm:%s59]
    %s61 = scalar_lea.vmem %s0, 11
    %s62 = smov 12
    %v63 = vld [vmem:[%s61] ss:$16 sm:%s62]
    %vm64 = vcmask 1043458
    %v65 = vsel %vm64, %v63, %v60
    %66 = vrot.lane.b32.xlu0 %v65, 88
    %v67 = vpop.permute.xlu0 %66
    %vm68 = vcmask 786112
    %69 = vst.msk [vmem:[#allocation0] ss:$8 sm:$0xf] %vm68, %v67
    %s70 = scalar_lea.vmem %s0, 10
    %s71 = smov 3
    %v72 = vld [vmem:[%s70] ss:$16 sm:%s71]
    %s73 = scalar_lea.vmem %s0, 10
    %s74 = smov 12
    %v75 = vld [vmem:[%s73] ss:$16 sm:%s74]
    %vm76 = vcmask 1043458
    %v77 = vsel %vm76, %v75, %v72
    %78 = vrot.lane.b32.xlu0 %v77, 80
    %v79 = vpop.permute.xlu0 %78
    %vm80 = vcmask 720512
    %81 = vst.msk [vmem:[#allocation0] ss:$8 sm:$0xf] %vm80, %v79
    %s82 = scalar_lea.vmem %s0, 9
    %s83 = smov 3
    %v84 = vld [vmem:[%s82] ss:$16 sm:%s83]
    %s85 = scalar_lea.vmem %s0, 9
    %s86 = smov 12
    %v87 = vld [vmem:[%s85] ss:$16 sm:%s86]
    %vm88 = vcmask 1043458
    %v89 = vsel %vm88, %v87, %v84
    %90 = vrot.lane.b32.xlu0 %v89, 72
    %v91 = vpop.permute.xlu0 %90
    %vm92 = vcmask 654912
    %93 = vst.msk [vmem:[#allocation0] ss:$8 sm:$0xf] %vm92, %v91
    %s94 = scalar_lea.vmem %s0, 8
    %s95 = smov 3
    %v96 = vld [vmem:[%s94] ss:$16 sm:%s95]
    %s97 = scalar_lea.vmem %s0, 8
    %s98 = smov 12
    %v99 = vld [vmem:[%s97] ss:$16 sm:%s98]
    %vm100 = vcmask 1043458
    %v101 = vsel %vm100, %v99, %v96
    %102 = vrot.lane.b32.xlu0 %v101, 64
    %v103 = vpop.permute.xlu0 %102
    %vm104 = vcmask 589312
    %105 = vst.msk [vmem:[#allocation0] ss:$8 sm:$0xf] %vm104, %v103
    %s106 = scalar_lea.vmem %s0, 7
    %s107 = smov 3
    %v108 = vld [vmem:[%s106] ss:$16 sm:%s107]
    %s109 = scalar_lea.vmem %s0, 7
    %s110 = smov 12
    %v111 = vld [vmem:[%s109] ss:$16 sm:%s110]
    %vm112 = vcmask 1043458
    %v113 = vsel %vm112, %v111, %v108
    %114 = vrot.lane.b32.xlu0 %v113, 56
    %v115 = vpop.permute.xlu0 %114
    %vm116 = vcmask 523712
    %117 = vst.msk [vmem:[#allocation0] ss:$8 sm:$0xf] %vm116, %v115
    %s118 = scalar_lea.vmem %s0, 6
    %s119 = smov 3
    %v120 = vld [vmem:[%s118] ss:$16 sm:%s119]
    %s121 = scalar_lea.vmem %s0, 6
    %s122 = smov 12
    %v123 = vld [vmem:[%s121] ss:$16 sm:%s122]
    %vm124 = vcmask 1043458
    %v125 = vsel %vm124, %v123, %v120
    %126 = vrot.lane.b32.xlu0 %v125, 48
    %v127 = vpop.permute.xlu0 %126
    %vm128 = vcmask 458112
    %129 = vst.msk [vmem:[#allocation0] ss:$8 sm:$0xf] %vm128, %v127
    %s130 = scalar_lea.vmem %s0, 5
    %s131 = smov 3
    %v132 = vld [vmem:[%s130] ss:$16 sm:%s131]
    %s133 = scalar_lea.vmem %s0, 5
    %s134 = smov 12
    %v135 = vld [vmem:[%s133] ss:$16 sm:%s134]
    %vm136 = vcmask 1043458
    %v137 = vsel %vm136, %v135, %v132
    %138 = vrot.lane.b32.xlu0 %v137, 40
    %v139 = vpop.permute.xlu0 %138
    %vm140 = vcmask 392512
    %141 = vst.msk [vmem:[#allocation0] ss:$8 sm:$0xf] %vm140, %v139
    %s142 = scalar_lea.vmem %s0, 4
    %s143 = smov 3
    %v144 = vld [vmem:[%s142] ss:$16 sm:%s143]
    %s145 = scalar_lea.vmem %s0, 4
    %s146 = smov 12
    %v147 = vld [vmem:[%s145] ss:$16 sm:%s146]
    %vm148 = vcmask 1043458
    %v149 = vsel %vm148, %v147, %v144
    %150 = vrot.lane.b32.xlu0 %v149, 32
    %v151 = vpop.permute.xlu0 %150
    %vm152 = vcmask 326912
    %153 = vst.msk [vmem:[#allocation0] ss:$8 sm:$0xf] %vm152, %v151
    %s154 = scalar_lea.vmem %s0, 3
    %s155 = smov 3
    %v156 = vld [vmem:[%s154] ss:$16 sm:%s155]
    %s157 = scalar_lea.vmem %s0, 3
    %s158 = smov 12
    %v159 = vld [vmem:[%s157] ss:$16 sm:%s158]
    %vm160 = vcmask 1043458
    %v161 = vsel %vm160, %v159, %v156
    %162 = vrot.lane.b32.xlu0 %v161, 24
    %v163 = vpop.permute.xlu0 %162
    %vm164 = vcmask 261312
    %165 = vst.msk [vmem:[#allocation0] ss:$8 sm:$0xf] %vm164, %v163
    %s166 = scalar_lea.vmem %s0, 2
    %s167 = smov 3
    %v168 = vld [vmem:[%s166] ss:$16 sm:%s167]
    %s169 = scalar_lea.vmem %s0, 2
    %s170 = smov 12
    %v171 = vld [vmem:[%s169] ss:$16 sm:%s170]
    %vm172 = vcmask 1043458
    %v173 = vsel %vm172, %v171, %v168
    %174 = vrot.lane.b32.xlu0 %v173, 16
    %v175 = vpop.permute.xlu0 %174
    %vm176 = vcmask 195712
    %177 = vst.msk [vmem:[#allocation0] ss:$8 sm:$0xf] %vm176, %v175
    %s178 = scalar_lea.vmem %s0, 1
    %s179 = smov 3
    %v180 = vld [vmem:[%s178] ss:$16 sm:%s179]
    %s181 = scalar_lea.vmem %s0, 1
    %s182 = smov 12
    %v183 = vld [vmem:[%s181] ss:$16 sm:%s182]
    %vm184 = vcmask 1043458
    %v185 = vsel %vm184, %v183, %v180
    %186 = vrot.lane.b32.xlu0 %v185, 8
    %v187 = vpop.permute.xlu0 %186
    %vm188 = vcmask 130112
    %189 = vst.msk [vmem:[#allocation0] ss:$8 sm:$0xf] %vm188, %v187
    %s191 = sshllo.u32 0, 1
    %v193 = vld [vmem:[#allocation0] sm:%s191]
    %s194 = sshllo.u32 0, 1
    %195 = vst [vmem:[%s1] sm:%s194] %v193
    %s196 = scalar_lea.vmem [#allocation0], 8
    %v197 = vld [vmem:[%s196] sm:%s191]
    %s198 = sshllo.u32 0, 1
    %s199 = scalar_lea.vmem %s1, 1
    %200 = vst [vmem:[%s199] sm:%s198] %v197
    %s201 = scalar_lea.vmem [#allocation0], 16
    %v202 = vld [vmem:[%s201] sm:%s191]
    %s203 = sshllo.u32 0, 1
    %s204 = smul.addr 1, 2
    %s205 = scalar_lea.vmem %s1, %s204
    %206 = vst [vmem:[%s205] sm:%s203] %v202
    %s207 = scalar_lea.vmem [#allocation0], 24
    %v208 = vld [vmem:[%s207] sm:%s191]
    %s209 = sshllo.u32 0, 1
    %s210 = smul.addr 1, 3
    %s211 = scalar_lea.vmem %s1, %s210
    %212 = vst [vmem:[%s211] sm:%s209] %v208

// kernel: dcgan_generator_forward.18
$region0: #{dcgan_generator_forward.18}
  #allocation0 [shape = 'u32[]', space=smem, size = 0x4, offset = 0x4, fixed_abs, tag = 'smem constant byte address 0x4 - core index']
  #allocation1 [shape = 'u32[144,128]{1,0:T(1,128)}', space=vmem, size = 0x12000, scoped, tag = 'internal scratch']
  %s0 = inlined_call_operand.vmem [shape: bf16[32,512], index: 0, kind: input, shape index: {}]
  %s1 = inlined_call_operand.vmem [shape: f32[1,512], index: 1, kind: input, shape index: {}]
  %s2 = inlined_call_operand.vmem [shape: f32[1,512], index: 2, kind: input, shape index: {}]
  %s3 = inlined_call_operand.vmem [shape: bf16[32,512], index: 3, kind: output, shape index: {}]
  %s4 = sld [smem:[#allocation0]]
  $region22: #{dcgan_generator_forward.18} parent=0
    _
  %s6 = ssub.s32 1, %s4
  %s7 = scalar_select 0, %s6, %s4
  // Predicated region
  $region2: #{dcgan_generator_forward.18} parent=0 // pred_check
    _
  $region3: #{dcgan_generator_forward.18} parent=0 // pred_check_branch
    %9 = sbr.rel (0) target = $region5
  $region4: #{dcgan_generator_forward.18} parent=0 // pred_region
    _
  $region5: #{dcgan_generator_forward.18} parent=0 // pred_fallthru
    _
  // Predicated region
  $region6: #{dcgan_generator_forward.18} parent=0 // pred_check
    _
  $region7: #{dcgan_generator_forward.18} parent=0 // pred_check_branch
    %11 = sbr.rel (0) target = $region9
  $region8: #{dcgan_generator_forward.18} parent=0 // pred_region
    _
  $region9: #{dcgan_generator_forward.18} parent=0 // pred_fallthru
    _
  // Predicated region
  $region10: #{dcgan_generator_forward.18} parent=0 // pred_check
    _
  $region11: #{dcgan_generator_forward.18} parent=0 // pred_check_branch
    %13 = sbr.rel (0) target = $region13
  $region12: #{dcgan_generator_forward.18} parent=0 // pred_region
    _
  $region13: #{dcgan_generator_forward.18} parent=0 // pred_fallthru
    _
  %v14 = vld [vmem:[%s0] sm:$0xff]
  %v15 = vld [vmem:[%s0 + $0x8] sm:$0xff]
  %v16 = vld [vmem:[%s0 + $0x10] sm:$0xff]
  %v17 = vld [vmem:[%s0 + $0x18] sm:$0xff]
  %v18 = vld [vmem:[%s0 + $0x20] sm:$0xff]
  %v19 = vld [vmem:[%s0 + $0x28] sm:$0xff]
  %v20 = vld [vmem:[%s0 + $0x30] sm:$0xff]
  %v21 = vld [vmem:[%s0 + $0x38] sm:$0xff]
  %v22 = vunpack.c.l.bf16 %v14
  %v23 = vunpack.c.h.bf16 %v14
  %v24 = vunpack.c.l.bf16 %v15
  %v25 = vunpack.c.h.bf16 %v15
  %v26 = vunpack.c.l.bf16 %v16
  %v27 = vunpack.c.h.bf16 %v16
  %v28 = vunpack.c.l.bf16 %v17
  %v29 = vunpack.c.h.bf16 %v17
  %v30 = vunpack.c.l.bf16 %v18
  %v31 = vunpack.c.h.bf16 %v18
  %v32 = vunpack.c.l.bf16 %v19
  %v33 = vunpack.c.h.bf16 %v19
  %v34 = vunpack.c.l.bf16 %v20
  %v35 = vunpack.c.h.bf16 %v20
  %v36 = vunpack.c.l.bf16 %v21
  %v37 = vunpack.c.h.bf16 %v21
  %v38 = vld [vmem:[%s1] sm:$0xf]
  %v40 = vlaneseq
  %v41 = vshrl.u32 %v40, 7
  %v42 = vsub.s32 0, %v41
  %v43 = vrot.slane %v38, %v42
  %v44 = vlaneseq
  %v45 = vshrl.u32 %v44, 7
  %v46 = vsub.s32 1, %v45
  %v47 = vrot.slane %v38, %v46
  %v48 = vlaneseq
  %v49 = vshrl.u32 %v48, 7
  %v50 = vsub.s32 2, %v49
  %v51 = vrot.slane %v38, %v50
  %v52 = vlaneseq
  %v53 = vshrl.u32 %v52, 7
  %v54 = vsub.s32 3, %v53
  %v55 = vrot.slane %v38, %v54
  %v60 = vmul.f32 %v22, %v43
  %v61 = vmul.f32 %v23, %v47
  %v62 = vmul.f32 %v24, %v51
  %v63 = vmul.f32 %v25, %v55
  %v64 = vmul.f32 %v26, %v43
  %v65 = vmul.f32 %v27, %v47
  %v66 = vmul.f32 %v28, %v51
  %v67 = vmul.f32 %v29, %v55
  %v68 = vmul.f32 %v30, %v43
  %v69 = vmul.f32 %v31, %v47
  %v70 = vmul.f32 %v32, %v51
  %v71 = vmul.f32 %v33, %v55
  %v72 = vmul.f32 %v34, %v43
  %v73 = vmul.f32 %v35, %v47
  %v74 = vmul.f32 %v36, %v51
  %v75 = vmul.f32 %v37, %v55
  %v76 = vld [vmem:[%s2] sm:$0xf]
  %v78 = vlaneseq
  %v79 = vshrl.u32 %v78, 7
  %v80 = vsub.s32 0, %v79
  %v81 = vrot.slane %v76, %v80
  %v82 = vlaneseq
  %v83 = vshrl.u32 %v82, 7
  %v84 = vsub.s32 1, %v83
  %v85 = vrot.slane %v76, %v84
  %v86 = vlaneseq
  %v87 = vshrl.u32 %v86, 7
  %v88 = vsub.s32 2, %v87
  %v89 = vrot.slane %v76, %v88
  %v90 = vlaneseq
  %v91 = vshrl.u32 %v90, 7
  %v92 = vsub.s32 3, %v91
  %v93 = vrot.slane %v76, %v92
  %v98 = vadd.f32 %v60, %v81
  %v99 = vadd.f32 %v61, %v85
  %v100 = vadd.f32 %v62, %v89
  %v101 = vadd.f32 %v63, %v93
  %v102 = vadd.f32 %v64, %v81
  %v103 = vadd.f32 %v65, %v85
  %v104 = vadd.f32 %v66, %v89
  %v105 = vadd.f32 %v67, %v93
  %v106 = vadd.f32 %v68, %v81
  %v107 = vadd.f32 %v69, %v85
  %v108 = vadd.f32 %v70, %v89
  %v109 = vadd.f32 %v71, %v93
  %v110 = vadd.f32 %v72, %v81
  %v111 = vadd.f32 %v73, %v85
  %v112 = vadd.f32 %v74, %v89
  %v113 = vadd.f32 %v75, %v93
  %v114 = vmax.f32 %v98, 0.0
  %v115 = vmax.f32 %v99, 0.0
  %v116 = vmax.f32 %v100, 0.0
  %v117 = vmax.f32 %v101, 0.0
  %v118 = vmax.f32 %v102, 0.0
  %v119 = vmax.f32 %v103, 0.0
  %v120 = vmax.f32 %v104, 0.0
  %v121 = vmax.f32 %v105, 0.0
  %v122 = vmax.f32 %v106, 0.0
  %v123 = vmax.f32 %v107, 0.0
  %v124 = vmax.f32 %v108, 0.0
  %v125 = vmax.f32 %v109, 0.0
  %v126 = vmax.f32 %v110, 0.0
  %v127 = vmax.f32 %v111, 0.0
  %v128 = vmax.f32 %v112, 0.0
  %v129 = vmax.f32 %v113, 0.0
  %v130 = vpack.c.bf16 %v118, %v114
  %v131 = vpack.c.bf16 %v119, %v115
  %v132 = vpack.c.bf16 %v120, %v116
  %v133 = vpack.c.bf16 %v121, %v117
  %v134 = vpack.c.bf16 %v126, %v122
  %v135 = vpack.c.bf16 %v127, %v123
  %v136 = vpack.c.bf16 %v128, %v124
  %v137 = vpack.c.bf16 %v129, %v125
  %v146 = vunpack.c.l.b16 %v130
  %v147 = vunpack.c.l.b16 %v131
  %v148 = vunpack.c.l.b16 %v132
  %v149 = vunpack.c.l.b16 %v133
  %v150 = vunpack.c.h.b16 %v130
  %v151 = vunpack.c.h.b16 %v131
  %v152 = vunpack.c.h.b16 %v132
  %v153 = vunpack.c.h.b16 %v133
  %v154 = vunpack.c.l.b16 %v134
  %v155 = vunpack.c.l.b16 %v135
  %v156 = vunpack.c.l.b16 %v136
  %v157 = vunpack.c.l.b16 %v137
  %v158 = vunpack.c.h.b16 %v134
  %v159 = vunpack.c.h.b16 %v135
  %v160 = vunpack.c.h.b16 %v136
  %v161 = vunpack.c.h.b16 %v137
  %v162 = vpack.c.b16 %v147, %v146
  %v163 = vpack.c.b16 %v149, %v148
  %v164 = vpack.c.b16 %v151, %v150
  %v165 = vpack.c.b16 %v153, %v152
  %v166 = vpack.c.b16 %v155, %v154
  %v167 = vpack.c.b16 %v157, %v156
  %v168 = vpack.c.b16 %v159, %v158
  %v169 = vpack.c.b16 %v161, %v160
  %178 = vst [vmem:[%s3] sm:$0xff] %v162
  %179 = vst [vmem:[%s3 + $0x8] sm:$0xff] %v163
  %180 = vst [vmem:[%s3 + $0x10] sm:$0xff] %v164
  %181 = vst [vmem:[%s3 + $0x18] sm:$0xff] %v165
  %182 = vst [vmem:[%s3 + $0x20] sm:$0xff] %v166
  %183 = vst [vmem:[%s3 + $0x28] sm:$0xff] %v167
  %184 = vst [vmem:[%s3 + $0x30] sm:$0xff] %v168
  %185 = vst [vmem:[%s3 + $0x38] sm:$0xff] %v169
  // Predicated region
  $region14: #{dcgan_generator_forward.18} parent=0 // pred_check
    _
  $region15: #{dcgan_generator_forward.18} parent=0 // pred_check_branch
    %187 = sbr.rel (0) target = $region17
  $region16: #{dcgan_generator_forward.18} parent=0 // pred_region
    _
  $region17: #{dcgan_generator_forward.18} parent=0 // pred_fallthru
    _
  // Predicated region
  $region18: #{dcgan_generator_forward.18} parent=0 // pred_check
    _
  $region19: #{dcgan_generator_forward.18} parent=0 // pred_check_branch
    %189 = sbr.rel (0) target = $region21
  $region20: #{dcgan_generator_forward.18} parent=0 // pred_region
    _
  $region21: #{dcgan_generator_forward.18} parent=0 // pred_fallthru
    _

// kernel: dcgan_generator_forward.19
$region0: #{dcgan_generator_forward.19}
  #allocation0 [shape = 'u32[]', space=smem, size = 0x4, offset = 0x4, fixed_abs, tag = 'smem constant byte address 0x4 - core index']
  #allocation1 [shape = 'u32[144,128]{1,0:T(1,128)}', space=vmem, size = 0x12000, scoped, tag = 'internal scratch']
  %s0 = inlined_call_operand.vmem [shape: bf16[2,34,34,8], index: 0, kind: input, shape index: {}, may-alias: {0,1,2}]
  %s1 = inlined_call_operand.vmem [shape: bf16[2,34,34,8], index: 1, kind: input, shape index: {}, may-alias: {0,1,2}]
  %s2 = inlined_call_operand.vmem [shape: bf16[2,34,34,8], index: 2, kind: input, shape index: {}, may-alias: {0,1,2}]
  %s3 = inlined_call_operand.vmem [shape: bf16[4,32,4], index: 3, kind: input, shape index: {}]
  %s4 = inlined_call_operand.vmem [shape: bf16[2,32,32,16], index: 4, kind: output, shape index: {0}]
  %s5 = inlined_call_operand.vmem [shape: f32[2,32,2,4], index: 5, kind: output, shape index: {1}]
  %6 = xla_tuple %s4, %s5
  %s7 = sld [smem:[#allocation0]]
  $region57: #{dcgan_generator_forward.19} parent=0
    _
  %s9 = ssub.s32 1, %s7
  %s10 = scalar_select 0, %s9, %s7
  loop: start=0, step=1, limit=66
  $region2: #{dcgan_generator_forward.19} parent=0 // loop_pre_header
    _
  $region3: #{dcgan_generator_forward.19} parent=0 // loop_header
    %s12 = sphi 0, %s16
    %p13 = scmp.ge.s32.totalorder %s12, 66
    %s19 = sphi 0, %s31
    %s20 = sphi 0, %s27
    %s21 = sphi 0, %s19
    %s22 = sphi 0, %s20
    %s23 = sphi 0, %s21
    %s24 = sphi 0, %s22
    %s36 = sphi 0, %s38
    %s39 = sphi 0, %s36
    %s40 = sphi 0, %s39
    %s56 = sphi 0, %s40
    %s66 = sphi 0, %s68
    %s69 = sphi 0, %s66
    %s70 = sphi 0, %s69
    %s86 = sphi 0, %s70
    %s96 = sphi 0, %s98
    %s99 = sphi 0, %s96
    %s100 = sphi 0, %s99
    %s116 = sphi 0, %s100
    %s120 = sphi 0, %s120
    %s122 = sphi 0, %s120
    %s123 = sphi 0, %s122
    %s137 = sphi 0, %s123
    %s145 = sphi 0, %s147
    %s148 = sphi 0, %s145
    %s149 = sphi 0, %s148
    %s165 = sphi 0, %s149
    %s173 = sphi 0, %s175
    %s176 = sphi 0, %s173
    %s177 = sphi 0, %s176
    %s193 = sphi 0, %s177
  $region4: #{dcgan_generator_forward.19} parent=0 // loop_header_branch
    %15 = sbr.rel (%p13) target = $region8
  $region5: #{dcgan_generator_forward.19} parent=0 // loop_body
    %s17 = ssub.s32 %s12, 1
    %s18 = ssub.s32 %s12, 2
    %s25 = sadd.s32 1, %s20
    %p26 = scmp.ge.s32.totalorder %s25, 32
    %s27 = scalar_select %p26, 0, %s25
    %s28 = sadd.s32 1, %s19
    %s29 = scalar_select %p26, %s28, %s19
    %p30 = scmp.ge.s32.totalorder %s29, 2
    %s31 = scalar_select %p30, 0, %s29
    %s32 = ssub.s32 %s19, %s31
    %s33 = ssub.s32 %s20, %s27
    %s34 = sor.u32 %s32, %s33
    %p35 = scmp.eq.s32.totalorder %s34, 0
    %s37 = sadd.s32 %s36, 1
    %s38 = scalar_select %p35, %s36, %s37
    %p41 = pneg %p35
    %p42 = scmp.eq.s32.totalorder %s12, 63
    %p43 = por %p41, %p42
    %p44 = scmp.ne.s32.totalorder %s36, %s39
    %p45 = scmp.eq.s32.totalorder %s12, 0
    %p46 = por %p44, %p45
    %p47 = scmp.ne.s32.totalorder %s36, %s39
    %p48 = scmp.eq.s32.totalorder %s17, 63
    %p49 = por %p47, %p48
    %p50 = scmp.ne.s32.totalorder %s39, %s40
    %p51 = scmp.eq.s32.totalorder %s17, 0
    %p52 = por %p50, %p51
    %p53 = scmp.ne.s32.totalorder %s39, %s40
    %p54 = scmp.eq.s32.totalorder %s18, 63
    %p55 = por %p53, %p54
    %p57 = scmp.ne.s32.totalorder %s40, %s56
    %p58 = scmp.eq.s32.totalorder %s18, 0
    %p59 = por %p57, %p58
    %s60 = sadd.s32 %s20, 1
    %s61 = sadd.s32 %s27, 1
    %s62 = ssub.s32 %s19, %s31
    %s63 = ssub.s32 %s60, %s61
    %s64 = sor.u32 %s62, %s63
    %p65 = scmp.eq.s32.totalorder %s64, 0
    %s67 = sadd.s32 %s66, 1
    %s68 = scalar_select %p65, %s66, %s67
    %p71 = pneg %p65
    %p72 = scmp.eq.s32.totalorder %s12, 63
    %p73 = por %p71, %p72
    %p74 = scmp.ne.s32.totalorder %s66, %s69
    %p75 = scmp.eq.s32.totalorder %s12, 0
    %p76 = por %p74, %p75
    %p77 = scmp.ne.s32.totalorder %s66, %s69
    %p78 = scmp.eq.s32.totalorder %s17, 63
    %p79 = por %p77, %p78
    %p80 = scmp.ne.s32.totalorder %s69, %s70
    %p81 = scmp.eq.s32.totalorder %s17, 0
    %p82 = por %p80, %p81
    %p83 = scmp.ne.s32.totalorder %s69, %s70
    %p84 = scmp.eq.s32.totalorder %s18, 63
    %p85 = por %p83, %p84
    %p87 = scmp.ne.s32.totalorder %s70, %s86
    %p88 = scmp.eq.s32.totalorder %s18, 0
    %p89 = por %p87, %p88
    %s90 = sadd.s32 %s20, 2
    %s91 = sadd.s32 %s27, 2
    %s92 = ssub.s32 %s19, %s31
    %s93 = ssub.s32 %s90, %s91
    %s94 = sor.u32 %s92, %s93
    %p95 = scmp.eq.s32.totalorder %s94, 0
    %s97 = sadd.s32 %s96, 1
    %s98 = scalar_select %p95, %s96, %s97
    %p101 = pneg %p95
    %p102 = scmp.eq.s32.totalorder %s12, 63
    %p103 = por %p101, %p102
    %p104 = scmp.ne.s32.totalorder %s96, %s99
    %p105 = scmp.eq.s32.totalorder %s12, 0
    %p106 = por %p104, %p105
    %p107 = scmp.ne.s32.totalorder %s96, %s99
    %p108 = scmp.eq.s32.totalorder %s17, 63
    %p109 = por %p107, %p108
    %p110 = scmp.ne.s32.totalorder %s99, %s100
    %p111 = scmp.eq.s32.totalorder %s17, 0
    %p112 = por %p110, %p111
    %p113 = scmp.ne.s32.totalorder %s99, %s100
    %p114 = scmp.eq.s32.totalorder %s18, 63
    %p115 = por %p113, %p114
    %p117 = scmp.ne.s32.totalorder %s100, %s116
    %p118 = scmp.eq.s32.totalorder %s18, 0
    %p119 = por %p117, %p118
    %s121 = sadd.s32 %s120, 1
    %p124 = scmp.eq.s32.totalorder %s12, 63
    %p125 = scmp.ne.s32.totalorder %s120, %s122
    %p126 = scmp.eq.s32.totalorder %s12, 0
    %p127 = por %p125, %p126
    %p128 = scmp.ne.s32.totalorder %s120, %s122
    %p129 = scmp.eq.s32.totalorder %s17, 63
    %p130 = por %p128, %p129
    %p131 = scmp.ne.s32.totalorder %s122, %s123
    %p132 = scmp.eq.s32.totalorder %s17, 0
    %p133 = por %p131, %p132
    %p134 = scmp.ne.s32.totalorder %s122, %s123
    %p135 = scmp.eq.s32.totalorder %s18, 63
    %p136 = por %p134, %p135
    %p138 = scmp.ne.s32.totalorder %s123, %s137
    %p139 = scmp.eq.s32.totalorder %s18, 0
    %p140 = por %p138, %p139
    %s141 = ssub.s32 %s19, %s31
    %s142 = ssub.s32 %s20, %s27
    %s143 = sor.u32 %s141, %s142
    %p144 = scmp.eq.s32.totalorder %s143, 0
    %s146 = sadd.s32 %s145, 1
    %s147 = scalar_select %p144, %s145, %s146
    %p150 = pneg %p144
    %p151 = scmp.eq.s32.totalorder %s12, 63
    %p152 = por %p150, %p151
    %p153 = scmp.ne.s32.totalorder %s145, %s148
    %p154 = scmp.eq.s32.totalorder %s12, 0
    %p155 = por %p153, %p154
    %p156 = scmp.ne.s32.totalorder %s145, %s148
    %p157 = scmp.eq.s32.totalorder %s17, 63
    %p158 = por %p156, %p157
    %p159 = scmp.ne.s32.totalorder %s148, %s149
    %p160 = scmp.eq.s32.totalorder %s17, 0
    %p161 = por %p159, %p160
    %p162 = scmp.ne.s32.totalorder %s148, %s149
    %p163 = scmp.eq.s32.totalorder %s18, 63
    %p164 = por %p162, %p163
    %p166 = scmp.ne.s32.totalorder %s149, %s165
    %p167 = scmp.eq.s32.totalorder %s18, 0
    %p168 = por %p166, %p167
    %s169 = ssub.s32 %s19, %s31
    %s170 = ssub.s32 %s20, %s27
    %s171 = sor.u32 %s169, %s170
    %p172 = scmp.eq.s32.totalorder %s171, 0
    %s174 = sadd.s32 %s173, 1
    %s175 = scalar_select %p172, %s173, %s174
    %p178 = pneg %p172
    %p179 = scmp.eq.s32.totalorder %s12, 63
    %p180 = por %p178, %p179
    %p181 = scmp.ne.s32.totalorder %s173, %s176
    %p182 = scmp.eq.s32.totalorder %s12, 0
    %p183 = por %p181, %p182
    %p184 = scmp.ne.s32.totalorder %s173, %s176
    %p185 = scmp.eq.s32.totalorder %s17, 63
    %p186 = por %p184, %p185
    %p187 = scmp.ne.s32.totalorder %s176, %s177
    %p188 = scmp.eq.s32.totalorder %s17, 0
    %p189 = por %p187, %p188
    %p190 = scmp.ne.s32.totalorder %s176, %s177
    %p191 = scmp.eq.s32.totalorder %s18, 63
    %p192 = por %p190, %p191
    %p194 = scmp.ne.s32.totalorder %s177, %s193
    %p195 = scmp.eq.s32.totalorder %s18, 0
    %p196 = por %p194, %p195
    %p197 = scmp.le.s32.totalorder 1, %s12
    %p198 = scmp.lt.s32.totalorder %s12, 65
    %p199 = pnand %p197, %p198
    %p200 = pneg %p199
    // Predicated region
    $region9: #{dcgan_generator_forward.19} parent=5 // pred_check
      _
    $region10: #{dcgan_generator_forward.19} parent=5 // pred_check_branch
      %202 = sbr.rel (%p199) target = $region12
    $region11: #{dcgan_generator_forward.19} parent=5 // pred_region
      %s203 = ssub.s32 %s12, 1
      // Predicated region
      $region13: #{dcgan_generator_forward.19} parent=11 // pred_check
        %p204 = pneg %p133
      $region14: #{dcgan_generator_forward.19} parent=11 // pred_check_branch
        %206 = sbr.rel (%p204) target = $region16
      $region15: #{dcgan_generator_forward.19} parent=11 // pred_region
        _
      $region16: #{dcgan_generator_forward.19} parent=11 // pred_fallthru
        _
    $region12: #{dcgan_generator_forward.19} parent=5 // pred_fallthru
      _
    %p207 = scmp.lt.s32.totalorder %s12, 64
    // Predicated region
    $region17: #{dcgan_generator_forward.19} parent=5 // pred_check
      %p208 = pneg %p207
    $region18: #{dcgan_generator_forward.19} parent=5 // pred_check_branch
      %210 = sbr.rel (%p208) target = $region20
    $region19: #{dcgan_generator_forward.19} parent=5 // pred_region
      // Predicated region
      $region21: #{dcgan_generator_forward.19} parent=19 // pred_check
        %p211 = pneg %p46
      $region22: #{dcgan_generator_forward.19} parent=19 // pred_check_branch
        %213 = sbr.rel (%p211) target = $region24
      $region23: #{dcgan_generator_forward.19} parent=19 // pred_region
        %p214 = scmp.lt.s32.totalorder %s19, 1
        %s215 = scalar_select %p214, %s19, 1
        %p216 = scmp.lt.s32.totalorder %s20, 33
        %s217 = scalar_select %p216, %s20, 33
        %s218 = smul.addr %s217, 5
        %s219 = smul.addr %s215, 170
        %s220 = sadd.s32 %s218, %s219
        %s221 = smul.addr %s220, 4
        %s222 = scalar_lea.vmem %s0, %s221
      $region24: #{dcgan_generator_forward.19} parent=19 // pred_fallthru
        _
      // Predicated region
      $region25: #{dcgan_generator_forward.19} parent=19 // pred_check
        %p223 = pneg %p76
      $region26: #{dcgan_generator_forward.19} parent=19 // pred_check_branch
        %225 = sbr.rel (%p223) target = $region28
      $region27: #{dcgan_generator_forward.19} parent=19 // pred_region
        %s226 = sadd.s32 %s20, 1
        %p227 = scmp.lt.s32.totalorder %s19, 1
        %s228 = scalar_select %p227, %s19, 1
        %p229 = scmp.lt.s32.totalorder %s226, 33
        %s230 = scalar_select %p229, %s226, 33
        %s231 = smul.addr %s230, 5
        %s232 = smul.addr %s228, 170
        %s233 = sadd.s32 %s231, %s232
        %s234 = smul.addr %s233, 4
        %s235 = scalar_lea.vmem %s1, %s234
        %s236 = sadd.s32 %s20, 1
      $region28: #{dcgan_generator_forward.19} parent=19 // pred_fallthru
        _
      // Predicated region
      $region29: #{dcgan_generator_forward.19} parent=19 // pred_check
        %p237 = pneg %p106
      $region30: #{dcgan_generator_forward.19} parent=19 // pred_check_branch
        %239 = sbr.rel (%p237) target = $region32
      $region31: #{dcgan_generator_forward.19} parent=19 // pred_region
        %s240 = sadd.s32 %s20, 2
        %p241 = scmp.lt.s32.totalorder %s19, 1
        %s242 = scalar_select %p241, %s19, 1
        %p243 = scmp.lt.s32.totalorder %s240, 33
        %s244 = scalar_select %p243, %s240, 33
        %s245 = smul.addr %s244, 5
        %s246 = smul.addr %s242, 170
        %s247 = sadd.s32 %s245, %s246
        %s248 = smul.addr %s247, 4
        %s249 = scalar_lea.vmem %s2, %s248
        %s250 = sadd.s32 %s20, 2
      $region32: #{dcgan_generator_forward.19} parent=19 // pred_fallthru
        _
    $region20: #{dcgan_generator_forward.19} parent=5 // pred_fallthru
      _
    %p251 = scmp.le.s32.totalorder 1, %s12
    %p252 = scmp.lt.s32.totalorder %s12, 65
    %p253 = pnand %p251, %p252
    %p254 = pneg %p253
    // Predicated region
    $region33: #{dcgan_generator_forward.19} parent=5 // pred_check
      _
    $region34: #{dcgan_generator_forward.19} parent=5 // pred_check_branch
      %256 = sbr.rel (%p253) target = $region36
    $region35: #{dcgan_generator_forward.19} parent=5 // pred_region
      %s257 = ssub.s32 %s12, 1
      %p258 = scmp.lt.s32.totalorder %s21, 1
      %s259 = scalar_select %p258, %s21, 1
      %p260 = scmp.lt.s32.totalorder %s22, 33
      %s261 = scalar_select %p260, %s22, 33
      %s262 = smul.addr %s261, 5
      %s263 = smul.addr %s259, 170
      %s264 = sadd.s32 %s262, %s263
      %s265 = smul.addr %s264, 4
      %s266 = scalar_lea.vmem %s0, %s265
      %p267 = pneg %p52
      %p268 = pneg %p49
      %s269 = sadd.s32 %s22, 1
      %p270 = scmp.lt.s32.totalorder %s21, 1
      %s271 = scalar_select %p270, %s21, 1
      %p272 = scmp.lt.s32.totalorder %s269, 33
      %s273 = scalar_select %p272, %s269, 33
      %s274 = smul.addr %s273, 5
      %s275 = smul.addr %s271, 170
      %s276 = sadd.s32 %s274, %s275
      %s277 = smul.addr %s276, 4
      %s278 = scalar_lea.vmem %s1, %s277
      %p279 = pneg %p82
      %p280 = pneg %p79
      %s281 = sadd.s32 %s22, 2
      %p282 = scmp.lt.s32.totalorder %s21, 1
      %s283 = scalar_select %p282, %s21, 1
      %p284 = scmp.lt.s32.totalorder %s281, 33
      %s285 = scalar_select %p284, %s281, 33
      %s286 = smul.addr %s285, 5
      %s287 = smul.addr %s283, 170
      %s288 = sadd.s32 %s286, %s287
      %s289 = smul.addr %s288, 4
      %s290 = scalar_lea.vmem %s2, %s289
      %p291 = pneg %p112
      %p292 = pneg %p109
      %p293 = pneg %p133
      %p294 = pneg %p130
      %p295 = pneg %p161
      %p296 = pneg %p158
      %p297 = scmp.lt.s32.totalorder %s21, 1
      %s298 = scalar_select %p297, %s21, 1
      %p299 = scmp.lt.s32.totalorder %s22, 31
      %s300 = scalar_select %p299, %s22, 31
      %s301 = smul.addr %s300, 4
      %s302 = smul.addr %s298, 128
      %s303 = sadd.s32 %s301, %s302
      %s304 = smul.addr %s303, 4
      %s305 = scalar_lea.vmem %s4, %s304
      %p306 = pneg %p189
      %p307 = pneg %p186
      %p308 = scmp.lt.s32.totalorder %s21, 1
      %s309 = scalar_select %p308, %s21, 1
      %p310 = scmp.lt.s32.totalorder %s22, 31
      %s311 = scalar_select %p310, %s22, 31
      %s312 = smul.addr %s309, 32
      %s313 = sadd.s32 %s311, %s312
      %s314 = smul.addr %s313, 2
      %s315 = scalar_lea.vmem %s5, %s314
      %p316 = scmp.lt.s32.totalorder %s21, 1
      %s317 = scalar_select %p316, %s21, 1
      %p318 = scmp.lt.s32.totalorder %s22, 33
      %s319 = scalar_select %p318, %s22, 33
      %s320 = smul.addr %s319, 5
      %s321 = smul.addr %s317, 170
      %s322 = sadd.s32 %s320, %s321
      %s323 = smul.addr %s322, 4
      %s324 = scalar_lea.vmem %s0, %s323
      %s325 = sadd.s32 %s22, 1
      %p326 = scmp.lt.s32.totalorder %s21, 1
      %s327 = scalar_select %p326, %s21, 1
      %p328 = scmp.lt.s32.totalorder %s325, 33
      %s329 = scalar_select %p328, %s325, 33
      %s330 = smul.addr %s329, 5
      %s331 = smul.addr %s327, 170
      %s332 = sadd.s32 %s330, %s331
      %s333 = smul.addr %s332, 4
      %s334 = scalar_lea.vmem %s1, %s333
      %s335 = sadd.s32 %s22, 1
      %s336 = sadd.s32 %s22, 2
      %p337 = scmp.lt.s32.totalorder %s21, 1
      %s338 = scalar_select %p337, %s21, 1
      %p339 = scmp.lt.s32.totalorder %s336, 33
      %s340 = scalar_select %p339, %s336, 33
      %s341 = smul.addr %s340, 5
      %s342 = smul.addr %s338, 170
      %s343 = sadd.s32 %s341, %s342
      %s344 = smul.addr %s343, 4
      %s345 = scalar_lea.vmem %s2, %s344
      %s346 = sadd.s32 %s22, 2
      %p347 = scmp.lt.s32.totalorder %s21, 1
      %s348 = scalar_select %p347, %s21, 1
      %p349 = scmp.lt.s32.totalorder %s22, 31
      %s350 = scalar_select %p349, %s22, 31
      %s351 = smul.addr %s350, 4
      %s352 = smul.addr %s348, 128
      %s353 = sadd.s32 %s351, %s352
      %s354 = smul.addr %s353, 4
      %s355 = scalar_lea.vmem %s4, %s354
      %p356 = scmp.lt.s32.totalorder %s21, 1
      %s357 = scalar_select %p356, %s21, 1
      %p358 = scmp.lt.s32.totalorder %s22, 31
      %s359 = scalar_select %p358, %s22, 31
      %s360 = smul.addr %s357, 32
      %s361 = sadd.s32 %s359, %s360
      %s362 = smul.addr %s361, 2
      %s363 = scalar_lea.vmem %s5, %s362
      %v365 = vld [vmem:[%s324] sm:$0xf]
      %v366 = vld [vmem:[%s324 + $0x4] sm:$0xf]
      %v367 = vld [vmem:[%s324 + $0x8] sm:$0xf]
      %v368 = vld [vmem:[%s324 + $0xc] sm:$0xf]
      %v369 = vld [vmem:[%s324 + $0x10] sm:$0x1]
      %v370 = vld [vmem:[%s334] sm:$0xf]
      %v371 = vld [vmem:[%s334 + $0x4] sm:$0xf]
      %v372 = vld [vmem:[%s334 + $0x8] sm:$0xf]
      %v373 = vld [vmem:[%s334 + $0xc] sm:$0xf]
      %v374 = vld [vmem:[%s334 + $0x10] sm:$0x1]
      %v375 = vld [vmem:[%s345] sm:$0xf]
      %v376 = vld [vmem:[%s345 + $0x4] sm:$0xf]
      %v377 = vld [vmem:[%s345 + $0x8] sm:$0xf]
      %v378 = vld [vmem:[%s345 + $0xc] sm:$0xf]
      %v379 = vld [vmem:[%s345 + $0x10] sm:$0x1]
      %v384 = vunpack.c.l.b16 %v365
      %v385 = vunpack.c.l.b16 %v366
      %v386 = vunpack.c.l.b16 %v367
      %v387 = vunpack.c.l.b16 %v368
      %v388 = vpack.c.b16 %v385, %v384
      %v389 = vpack.c.b16 %v387, %v386
      %v391 = vunpack.c.l.b16 %v369
      %v392 = vpack.c.b16 %v391, %v391
      %vm393 = vsmask.f32 7424
      %v395 = vshrl.u32 %v388, 16
      %v397 = vshll.u32 %v388, 16
      %v399 = vrot.slane %v397, 1
      %v400 = vor.u32 %v395, %v399
      %v402 = vshll.u32 %v389, 16
      %v404 = vrot.slane %v402, 1
      %v405 = vsel %vm393, %v400, %v404
      %v406 = vshrl.u32 %v389, 16
      %v408 = vor.u32 %v406, %v404
      %v410 = vshll.u32 %v392, 16
      %v412 = vrot.slane %v410, 1
      %v413 = vsel %vm393, %v408, %v412
      %414 = vrot.lane.b32.xlu0 %v405, 8
      %v415 = vpop.permute.xlu0 %414
      %416 = vrot.lane.b32.xlu0 %v413, 8
      %v417 = vpop.permute.xlu0 %416
      %v422 = vunpack.c.l.b16 %v370
      %v423 = vunpack.c.l.b16 %v371
      %v424 = vunpack.c.l.b16 %v372
      %v425 = vunpack.c.l.b16 %v373
      %v426 = vpack.c.b16 %v423, %v422
      %v427 = vpack.c.b16 %v425, %v424
      %428 = vrot.lane.b32.xlu0 %v426, 16
      %v429 = vpop.permute.xlu0 %428
      %430 = vrot.lane.b32.xlu0 %v427, 16
      %v431 = vpop.permute.xlu0 %430
      %v433 = vunpack.c.l.b16 %v374
      %v434 = vpack.c.b16 %v433, %v433
      %v436 = vshrl.u32 %v426, 16
      %v438 = vshll.u32 %v426, 16
      %v440 = vrot.slane %v438, 1
      %v441 = vor.u32 %v436, %v440
      %v443 = vshll.u32 %v427, 16
      %v445 = vrot.slane %v443, 1
      %v446 = vsel %vm393, %v441, %v445
      %v447 = vshrl.u32 %v427, 16
      %v449 = vor.u32 %v447, %v445
      %v451 = vshll.u32 %v434, 16
      %v453 = vrot.slane %v451, 1
      %v454 = vsel %vm393, %v449, %v453
      %455 = vrot.lane.b32.xlu0 %v446, 24
      %v456 = vpop.permute.xlu0 %455
      %457 = vrot.lane.b32.xlu0 %v454, 24
      %v458 = vpop.permute.xlu0 %457
      %vm459 = vcmask 64512
      %v461 = vsel %vm459, %v388, %v415
      %v463 = vsel %vm459, %v389, %v417
      %vm464 = vcmask 130048
      %v466 = vsel %vm464, %v461, %v429
      %v468 = vsel %vm464, %v463, %v431
      %vm469 = vcmask 195584
      %v471 = vsel %vm469, %v466, %v456
      %v473 = vsel %vm469, %v468, %v458
      %v474 = vld [vmem:[%s3] sm:$0xf]
      %v475 = vld [vmem:[%s3 + $0x4] sm:$0xf]
      %v476 = vld [vmem:[%s3 + $0x8] sm:$0xf]
      %v477 = vld [vmem:[%s3 + $0xc] sm:$0xf]
      %v482 = vunpack.c.l.b16 %v474
      %v483 = vunpack.c.l.b16 %v475
      %v484 = vunpack.c.l.b16 %v476
      %v485 = vunpack.c.l.b16 %v477
      %v486 = vpack.c.b16 %v483, %v482
      %v487 = vpack.c.b16 %v485, %v484
      %vm490 = vcmask 261120
      %v491 = vsel %vm490, %v471, 0
      %v493 = vsel %vm490, %v473, 0
      %495 = vmatprep.subr.bf16.mxu0 0
      %496 = vmatpush1.bf16.msra.mxu0 %v486
      %497 = vmatprep.subr.bf16.mxu0 0
      %498 = vmatpush1.bf16.msra.mxu0 %v487
      %499 = vmatprep.subr.bf16.mxu0 0
      %500 = vmatpush1.bf16.msra.mxu0 0
      %501 = vmatprep.subr.bf16.mxu0 0
      %502 = vmatpush1.bf16.msra.mxu0 0
      %503 = vmatprep.subr.bf16.mxu0 0
      %504 = vmatpush1.bf16.msra.mxu0 0
      %505 = vmatprep.subr.bf16.mxu0 0
      %506 = vmatpush1.bf16.msra.mxu0 0
      %507 = vmatprep.subr.bf16.mxu0 0
      %508 = vmatpush1.bf16.msra.mxu0 0
      %509 = vmatprep.subr.bf16.mxu0 0
      %510 = vmatpush1.bf16.msra.mxu0 0
      %511 = vmatprep.subr.bf16.mxu0 0
      %512 = vmatpush1.bf16.msra.mxu0 0
      %513 = vmatprep.subr.bf16.mxu0 0
      %514 = vmatpush1.bf16.msra.mxu0 0
      %515 = vmatprep.subr.bf16.mxu0 0
      %516 = vmatpush1.bf16.msra.mxu0 0
      %517 = vmatprep.subr.bf16.mxu0 0
      %518 = vmatpush1.bf16.msra.mxu0 0
      %519 = vmatprep.subr.bf16.mxu0 0
      %520 = vmatpush1.bf16.msra.mxu0 0
      %521 = vmatprep.subr.bf16.mxu0 0
      %522 = vmatpush1.bf16.msra.mxu0 0
      %523 = vmatprep.subr.bf16.mxu0 0
      %524 = vmatpush1.bf16.msra.mxu0 0
      %525 = vmatprep.subr.bf16.mxu0 0
      %526 = vmatpush1.bf16.msra.mxu0 0
      %527 = vmatprep.mubr.bf16.mxu0 0
      %528 = vmatmul.mubr.bf16.gmra.mrb[0].mxu0 %v491
      %v529 = vpop.f32.mrb[0].mxu0
      %v530 = vadd.f32 0.0, %v529
      %v531 = vpop.f32.mrb[0].mxu0
      %v532 = vpop.f32.mrb[0].mxu0
      %v533 = vadd.f32 0.0, %v532
      %v534 = vpop.f32.mrb[0].mxu0
      %535 = vmatprep.mubr.bf16.mxu0 0
      %536 = vmatmul.mubr.bf16.gmra.mrb[0].mxu0 %v493
      %v537 = vpop.f32.mrb[0].mxu0
      %v538 = vadd.f32 0.0, %v537
      %v539 = vpop.f32.mrb[0].mxu0
      %v540 = vpop.f32.mrb[0].mxu0
      %v541 = vadd.f32 0.0, %v540
      %v542 = vpop.f32.mrb[0].mxu0
      %543 = vdwg.mxu0
      %v544 = vshrl.u32 %v392, 16
      %546 = vrot.lane.b32.xlu0 %v544, 8
      %v547 = vpop.permute.xlu0 %546
      %548 = vrot.lane.b32.xlu0 %v434, 16
      %v549 = vpop.permute.xlu0 %548
      %v550 = vshrl.u32 %v434, 16
      %552 = vrot.lane.b32.xlu0 %v550, 24
      %v553 = vpop.permute.xlu0 %552
      %v555 = vsel %vm459, %v392, %v547
      %v557 = vsel %vm464, %v555, %v549
      %v559 = vsel %vm469, %v557, %v553
      %s560 = scalar_lea.vmem %s3, 16
      %v561 = vld [vmem:[%s560] sm:$0xf]
      %v562 = vld [vmem:[%s560 + $0x4] sm:$0xf]
      %v563 = vld [vmem:[%s560 + $0x8] sm:$0xf]
      %v564 = vld [vmem:[%s560 + $0xc] sm:$0xf]
      %v565 = vshrl.u32 %v471, 16
      %v567 = vshll.u32 %v471, 16
      %v569 = vrot.slane %v567, 1
      %v570 = vor.u32 %v565, %v569
      %v571 = vshll.u32 %v473, 16
      %v573 = vrot.slane %v571, 1
      %v574 = vsel %vm393, %v570, %v573
      %v575 = vshrl.u32 %v473, 16
      %v577 = vor.u32 %v575, %v573
      %v578 = vshll.u32 %v559, 16
      %v580 = vrot.slane %v578, 1
      %v581 = vsel %vm393, %v577, %v580
      %v586 = vunpack.c.l.b16 %v561
      %v587 = vunpack.c.l.b16 %v562
      %v588 = vunpack.c.l.b16 %v563
      %v589 = vunpack.c.l.b16 %v564
      %v590 = vpack.c.b16 %v587, %v586
      %v591 = vpack.c.b16 %v589, %v588
      %v595 = vsel %vm490, %v574, 0
      %v598 = vsel %vm490, %v581, 0
      %600 = vmatprep.subr.bf16.mxu0 0
      %601 = vmatpush1.bf16.msra.mxu0 %v590
      %602 = vmatprep.subr.bf16.mxu0 0
      %603 = vmatpush1.bf16.msra.mxu0 %v591
      %604 = vmatprep.subr.bf16.mxu0 0
      %605 = vmatpush1.bf16.msra.mxu0 0
      %606 = vmatprep.subr.bf16.mxu0 0
      %607 = vmatpush1.bf16.msra.mxu0 0
      %608 = vmatprep.subr.bf16.mxu0 0
      %609 = vmatpush1.bf16.msra.mxu0 0
      %610 = vmatprep.subr.bf16.mxu0 0
      %611 = vmatpush1.bf16.msra.mxu0 0
      %612 = vmatprep.subr.bf16.mxu0 0
      %613 = vmatpush1.bf16.msra.mxu0 0
      %614 = vmatprep.subr.bf16.mxu0 0
      %615 = vmatpush1.bf16.msra.mxu0 0
      %616 = vmatprep.subr.bf16.mxu0 0
      %617 = vmatpush1.bf16.msra.mxu0 0
      %618 = vmatprep.subr.bf16.mxu0 0
      %619 = vmatpush1.bf16.msra.mxu0 0
      %620 = vmatprep.subr.bf16.mxu0 0
      %621 = vmatpush1.bf16.msra.mxu0 0
      %622 = vmatprep.subr.bf16.mxu0 0
      %623 = vmatpush1.bf16.msra.mxu0 0
      %624 = vmatprep.subr.bf16.mxu0 0
      %625 = vmatpush1.bf16.msra.mxu0 0
      %626 = vmatprep.subr.bf16.mxu0 0
      %627 = vmatpush1.bf16.msra.mxu0 0
      %628 = vmatprep.subr.bf16.mxu0 0
      %629 = vmatpush1.bf16.msra.mxu0 0
      %630 = vmatprep.subr.bf16.mxu0 0
      %631 = vmatpush1.bf16.msra.mxu0 0
      %632 = vmatprep.mubr.bf16.mxu0 0
      %633 = vmatmul.mubr.bf16.gmra.mrb[0].mxu0 %v595
      %v634 = vpop.f32.mrb[0].mxu0
      %v635 = vadd.f32 0.0, %v634
      %v636 = vpop.f32.mrb[0].mxu0
      %v637 = vpop.f32.mrb[0].mxu0
      %v638 = vadd.f32 0.0, %v637
      %v639 = vpop.f32.mrb[0].mxu0
      %640 = vmatprep.mubr.bf16.mxu0 0
      %641 = vmatmul.mubr.bf16.gmra.mrb[0].mxu0 %v598
      %v642 = vpop.f32.mrb[0].mxu0
      %v643 = vadd.f32 0.0, %v642
      %v644 = vpop.f32.mrb[0].mxu0
      %v645 = vpop.f32.mrb[0].mxu0
      %v646 = vadd.f32 0.0, %v645
      %v647 = vpop.f32.mrb[0].mxu0
      %648 = vdwg.mxu0
      %649 = vrot.lane.b32.xlu0 %v446, 8
      %v650 = vpop.permute.xlu0 %649
      %651 = vrot.lane.b32.xlu0 %v454, 8
      %v652 = vpop.permute.xlu0 %651
      %v657 = vunpack.c.l.b16 %v375
      %v658 = vunpack.c.l.b16 %v376
      %v659 = vunpack.c.l.b16 %v377
      %v660 = vunpack.c.l.b16 %v378
      %v661 = vpack.c.b16 %v658, %v657
      %v662 = vpack.c.b16 %v660, %v659
      %663 = vrot.lane.b32.xlu0 %v661, 16
      %v664 = vpop.permute.xlu0 %663
      %665 = vrot.lane.b32.xlu0 %v662, 16
      %v666 = vpop.permute.xlu0 %665
      %v668 = vunpack.c.l.b16 %v379
      %v669 = vpack.c.b16 %v668, %v668
      %v671 = vshrl.u32 %v661, 16
      %v673 = vshll.u32 %v661, 16
      %v675 = vrot.slane %v673, 1
      %v676 = vor.u32 %v671, %v675
      %v678 = vshll.u32 %v662, 16
      %v680 = vrot.slane %v678, 1
      %v681 = vsel %vm393, %v676, %v680
      %v682 = vshrl.u32 %v662, 16
      %v684 = vor.u32 %v682, %v680
      %v686 = vshll.u32 %v669, 16
      %v688 = vrot.slane %v686, 1
      %v689 = vsel %vm393, %v684, %v688
      %690 = vrot.lane.b32.xlu0 %v681, 24
      %v691 = vpop.permute.xlu0 %690
      %692 = vrot.lane.b32.xlu0 %v689, 24
      %v693 = vpop.permute.xlu0 %692
      %v695 = vsel %vm459, %v426, %v650
      %v697 = vsel %vm459, %v427, %v652
      %v699 = vsel %vm464, %v695, %v664
      %v701 = vsel %vm464, %v697, %v666
      %v703 = vsel %vm469, %v699, %v691
      %v705 = vsel %vm469, %v701, %v693
      %s706 = scalar_lea.vmem %s3, 32
      %v707 = vld [vmem:[%s706] sm:$0xf]
      %v708 = vld [vmem:[%s706 + $0x4] sm:$0xf]
      %v709 = vld [vmem:[%s706 + $0x8] sm:$0xf]
      %v710 = vld [vmem:[%s706 + $0xc] sm:$0xf]
      %v715 = vunpack.c.l.b16 %v707
      %v716 = vunpack.c.l.b16 %v708
      %v717 = vunpack.c.l.b16 %v709
      %v718 = vunpack.c.l.b16 %v710
      %v719 = vpack.c.b16 %v716, %v715
      %v720 = vpack.c.b16 %v718, %v717
      %v723 = vsel %vm490, %v703, 0
      %v725 = vsel %vm490, %v705, 0
      %727 = vmatprep.subr.bf16.mxu0 0
      %728 = vmatpush1.bf16.msra.mxu0 %v719
      %729 = vmatprep.subr.bf16.mxu0 0
      %730 = vmatpush1.bf16.msra.mxu0 %v720
      %731 = vmatprep.subr.bf16.mxu0 0
      %732 = vmatpush1.bf16.msra.mxu0 0
      %733 = vmatprep.subr.bf16.mxu0 0
      %734 = vmatpush1.bf16.msra.mxu0 0
      %735 = vmatprep.subr.bf16.mxu0 0
      %736 = vmatpush1.bf16.msra.mxu0 0
      %737 = vmatprep.subr.bf16.mxu0 0
      %738 = vmatpush1.bf16.msra.mxu0 0
      %739 = vmatprep.subr.bf16.mxu0 0
      %740 = vmatpush1.bf16.msra.mxu0 0
      %741 = vmatprep.subr.bf16.mxu0 0
      %742 = vmatpush1.bf16.msra.mxu0 0
      %743 = vmatprep.subr.bf16.mxu0 0
      %744 = vmatpush1.bf16.msra.mxu0 0
      %745 = vmatprep.subr.bf16.mxu0 0
      %746 = vmatpush1.bf16.msra.mxu0 0
      %747 = vmatprep.subr.bf16.mxu0 0
      %748 = vmatpush1.bf16.msra.mxu0 0
      %749 = vmatprep.subr.bf16.mxu0 0
      %750 = vmatpush1.bf16.msra.mxu0 0
      %751 = vmatprep.subr.bf16.mxu0 0
      %752 = vmatpush1.bf16.msra.mxu0 0
      %753 = vmatprep.subr.bf16.mxu0 0
      %754 = vmatpush1.bf16.msra.mxu0 0
      %755 = vmatprep.subr.bf16.mxu0 0
      %756 = vmatpush1.bf16.msra.mxu0 0
      %757 = vmatprep.subr.bf16.mxu0 0
      %758 = vmatpush1.bf16.msra.mxu0 0
      %759 = vmatprep.mubr.bf16.mxu0 0
      %760 = vmatmul.mubr.bf16.gmra.mrb[0].mxu0 %v723
      %v761 = vpop.f32.mrb[0].mxu0
      %v762 = vadd.f32 0.0, %v761
      %v763 = vpop.f32.mrb[0].mxu0
      %v764 = vpop.f32.mrb[0].mxu0
      %v765 = vadd.f32 0.0, %v764
      %v766 = vpop.f32.mrb[0].mxu0
      %767 = vmatprep.mubr.bf16.mxu0 0
      %768 = vmatmul.mubr.bf16.gmra.mrb[0].mxu0 %v725
      %v769 = vpop.f32.mrb[0].mxu0
      %v770 = vadd.f32 0.0, %v769
      %v771 = vpop.f32.mrb[0].mxu0
      %v772 = vpop.f32.mrb[0].mxu0
      %v773 = vadd.f32 0.0, %v772
      %v774 = vpop.f32.mrb[0].mxu0
      %775 = vdwg.mxu0
      %776 = vrot.lane.b32.xlu0 %v550, 8
      %v777 = vpop.permute.xlu0 %776
      %778 = vrot.lane.b32.xlu0 %v669, 16
      %v779 = vpop.permute.xlu0 %778
      %v780 = vshrl.u32 %v669, 16
      %782 = vrot.lane.b32.xlu0 %v780, 24
      %v783 = vpop.permute.xlu0 %782
      %v785 = vsel %vm459, %v434, %v777
      %v787 = vsel %vm464, %v785, %v779
      %v789 = vsel %vm469, %v787, %v783
      %s790 = scalar_lea.vmem %s3, 48
      %v791 = vld [vmem:[%s790] sm:$0xf]
      %v792 = vld [vmem:[%s790 + $0x4] sm:$0xf]
      %v793 = vld [vmem:[%s790 + $0x8] sm:$0xf]
      %v794 = vld [vmem:[%s790 + $0xc] sm:$0xf]
      %v795 = vshrl.u32 %v703, 16
      %v797 = vshll.u32 %v703, 16
      %v799 = vrot.slane %v797, 1
      %v800 = vor.u32 %v795, %v799
      %v801 = vshll.u32 %v705, 16
      %v803 = vrot.slane %v801, 1
      %v804 = vsel %vm393, %v800, %v803
      %v805 = vshrl.u32 %v705, 16
      %v807 = vor.u32 %v805, %v803
      %v808 = vshll.u32 %v789, 16
      %v810 = vrot.slane %v808, 1
      %v811 = vsel %vm393, %v807, %v810
      %v816 = vunpack.c.l.b16 %v791
      %v817 = vunpack.c.l.b16 %v792
      %v818 = vunpack.c.l.b16 %v793
      %v819 = vunpack.c.l.b16 %v794
      %v820 = vpack.c.b16 %v817, %v816
      %v821 = vpack.c.b16 %v819, %v818
      %v825 = vsel %vm490, %v804, 0
      %v828 = vsel %vm490, %v811, 0
      %830 = vmatprep.subr.bf16.mxu0 0
      %831 = vmatpush1.bf16.msra.mxu0 %v820
      %832 = vmatprep.subr.bf16.mxu0 0
      %833 = vmatpush1.bf16.msra.mxu0 %v821
      %834 = vmatprep.subr.bf16.mxu0 0
      %835 = vmatpush1.bf16.msra.mxu0 0
      %836 = vmatprep.subr.bf16.mxu0 0
      %837 = vmatpush1.bf16.msra.mxu0 0
      %838 = vmatprep.subr.bf16.mxu0 0
      %839 = vmatpush1.bf16.msra.mxu0 0
      %840 = vmatprep.subr.bf16.mxu0 0
      %841 = vmatpush1.bf16.msra.mxu0 0
      %842 = vmatprep.subr.bf16.mxu0 0
      %843 = vmatpush1.bf16.msra.mxu0 0
      %844 = vmatprep.subr.bf16.mxu0 0
      %845 = vmatpush1.bf16.msra.mxu0 0
      %846 = vmatprep.subr.bf16.mxu0 0
      %847 = vmatpush1.bf16.msra.mxu0 0
      %848 = vmatprep.subr.bf16.mxu0 0
      %849 = vmatpush1.bf16.msra.mxu0 0
      %850 = vmatprep.subr.bf16.mxu0 0
      %851 = vmatpush1.bf16.msra.mxu0 0
      %852 = vmatprep.subr.bf16.mxu0 0
      %853 = vmatpush1.bf16.msra.mxu0 0
      %854 = vmatprep.subr.bf16.mxu0 0
      %855 = vmatpush1.bf16.msra.mxu0 0
      %856 = vmatprep.subr.bf16.mxu0 0
      %857 = vmatpush1.bf16.msra.mxu0 0
      %858 = vmatprep.subr.bf16.mxu0 0
      %859 = vmatpush1.bf16.msra.mxu0 0
      %860 = vmatprep.subr.bf16.mxu0 0
      %861 = vmatpush1.bf16.msra.mxu0 0
      %862 = vmatprep.mubr.bf16.mxu0 0
      %863 = vmatmul.mubr.bf16.gmra.mrb[0].mxu0 %v825
      %v864 = vpop.f32.mrb[0].mxu0
      %v865 = vadd.f32 0.0, %v864
      %v866 = vpop.f32.mrb[0].mxu0
      %v867 = vpop.f32.mrb[0].mxu0
      %v868 = vadd.f32 0.0, %v867
      %v869 = vpop.f32.mrb[0].mxu0
      %870 = vmatprep.mubr.bf16.mxu0 0
      %871 = vmatmul.mubr.bf16.gmra.mrb[0].mxu0 %v828
      %v872 = vpop.f32.mrb[0].mxu0
      %v873 = vadd.f32 0.0, %v872
      %v874 = vpop.f32.mrb[0].mxu0
      %v875 = vpop.f32.mrb[0].mxu0
      %v876 = vadd.f32 0.0, %v875
      %v877 = vpop.f32.mrb[0].mxu0
      %878 = vdwg.mxu0
      %v879 = vadd.f32 %v530, %v635
      %v880 = vadd.f32 %v533, %v638
      %v881 = vadd.f32 %v538, %v643
      %v882 = vadd.f32 %v541, %v646
      %v883 = vadd.f32 %v879, %v762
      %v884 = vadd.f32 %v880, %v765
      %v885 = vadd.f32 %v881, %v770
      %v886 = vadd.f32 %v882, %v773
      %v887 = vadd.f32 %v883, %v865
      %v888 = vadd.f32 %v884, %v868
      %v889 = vadd.f32 %v885, %v873
      %v890 = vadd.f32 %v886, %v876
      %v891 = vmul.f32 %v530, %v530
      %v892 = vmul.f32 %v533, %v533
      %v893 = vmul.f32 %v538, %v538
      %v894 = vmul.f32 %v541, %v541
      %v895 = vmul.f32 %v635, %v635
      %v896 = vmul.f32 %v638, %v638
      %v897 = vmul.f32 %v643, %v643
      %v898 = vmul.f32 %v646, %v646
      %v899 = vadd.f32 %v891, %v895
      %v900 = vadd.f32 %v892, %v896
      %v901 = vadd.f32 %v893, %v897
      %v902 = vadd.f32 %v894, %v898
      %v903 = vmul.f32 %v762, %v762
      %v904 = vmul.f32 %v765, %v765
      %v905 = vmul.f32 %v770, %v770
      %v906 = vmul.f32 %v773, %v773
      %v907 = vadd.f32 %v899, %v903
      %v908 = vadd.f32 %v900, %v904
      %v909 = vadd.f32 %v901, %v905
      %v910 = vadd.f32 %v902, %v906
      %v911 = vmul.f32 %v865, %v865
      %v912 = vmul.f32 %v868, %v868
      %v913 = vmul.f32 %v873, %v873
      %v914 = vmul.f32 %v876, %v876
      %v915 = vadd.f32 %v907, %v911
      %v916 = vadd.f32 %v908, %v912
      %v917 = vadd.f32 %v909, %v913
      %v918 = vadd.f32 %v910, %v914
      %vm919 = vcmask 31744
      %v920 = vsel %vm919, %v887, 0.0
      %v921 = vsel %vm919, %v888, 0.0
      %v922 = vadd.f32 %v920, %v921
      %v923 = vsel %vm919, %v889, 0.0
      %v924 = vadd.f32 %v922, %v923
      %v925 = vsel %vm919, %v890, 0.0
      %v926 = vadd.f32 %v924, %v925
      %v927 = vrot.slane %v926, 4
      %v928 = vadd.f32 %v926, %v927
      %v929 = vrot.slane %v928, 2
      %v930 = vadd.f32 %v928, %v929
      %v931 = vrot.slane %v930, 1
      %v932 = vadd.f32 %v930, %v931
      %v933 = vsel %vm919, %v915, 0.0
      %v934 = vsel %vm919, %v916, 0.0
      %v935 = vadd.f32 %v933, %v934
      %v936 = vsel %vm919, %v917, 0.0
      %v937 = vadd.f32 %v935, %v936
      %v938 = vsel %vm919, %v918, 0.0
      %v939 = vadd.f32 %v937, %v938
      %v940 = vrot.slane %v939, 4
      %v941 = vadd.f32 %v939, %v940
      %v942 = vrot.slane %v941, 2
      %v943 = vadd.f32 %v941, %v942
      %v944 = vrot.slane %v943, 1
      %v945 = vadd.f32 %v943, %v944
      %vm946 = vcmask 1040384
      %v947 = vsel %vm946, %v932, %v945
      %vm948 = vcmask 25600
      %949 = vst.msk [vmem:[%s363] sm:$0x3] %vm948, %v947
      %954 = vrot.lane.b32.xlu0 %v635, 4
      %v955 = vpop.permute.xlu0 %954
      %956 = vrot.lane.b32.xlu0 %v638, 4
      %v957 = vpop.permute.xlu0 %956
      %958 = vrot.lane.b32.xlu0 %v643, 4
      %v959 = vpop.permute.xlu0 %958
      %960 = vrot.lane.b32.xlu0 %v646, 4
      %v961 = vpop.permute.xlu0 %960
      %970 = vrot.lane.b32.xlu0 %v762, 8
      %v971 = vpop.permute.xlu0 %970
      %972 = vrot.lane.b32.xlu0 %v765, 8
      %v973 = vpop.permute.xlu0 %972
      %974 = vrot.lane.b32.xlu0 %v770, 8
      %v975 = vpop.permute.xlu0 %974
      %976 = vrot.lane.b32.xlu0 %v773, 8
      %v977 = vpop.permute.xlu0 %976
      %986 = vrot.lane.b32.xlu0 %v865, 12
      %v987 = vpop.permute.xlu0 %986
      %988 = vrot.lane.b32.xlu0 %v868, 12
      %v989 = vpop.permute.xlu0 %988
      %990 = vrot.lane.b32.xlu0 %v873, 12
      %v991 = vpop.permute.xlu0 %990
      %992 = vrot.lane.b32.xlu0 %v876, 12
      %v993 = vpop.permute.xlu0 %992
      %v998 = vsel %vm919, %v530, %v955
      %v999 = vsel %vm919, %v533, %v957
      %v1000 = vsel %vm919, %v538, %v959
      %v1001 = vsel %vm919, %v541, %v961
      %v1002 = vsel %vm459, %v998, %v971
      %v1003 = vsel %vm459, %v999, %v973
      %v1004 = vsel %vm459, %v1000, %v975
      %v1005 = vsel %vm459, %v1001, %v977
      %vm1006 = vcmask 97280
      %v1007 = vsel %vm1006, %v1002, %v987
      %v1008 = vsel %vm1006, %v1003, %v989
      %v1009 = vsel %vm1006, %v1004, %v991
      %v1010 = vsel %vm1006, %v1005, %v993
      %v1011 = vpack.c.bf16 %v1008, %v1007
      %v1012 = vpack.c.bf16 %v1010, %v1009
      %v1015 = vunpack.c.l.b16 %v1011
      %v1016 = vunpack.c.h.b16 %v1011
      %v1017 = vunpack.c.l.b16 %v1012
      %v1018 = vunpack.c.h.b16 %v1012
      %v1019 = vpack.c.b16 %v1015, %v1015
      %v1020 = vpack.c.b16 %v1016, %v1016
      %v1021 = vpack.c.b16 %v1017, %v1017
      %v1022 = vpack.c.b16 %v1018, %v1018
      %vm1027 = vcmask 125952
      %1028 = vst.msk [vmem:[%s355] sm:$0xf] %vm1027, %v1019
      %1029 = vst.msk [vmem:[%s355 + $0x4] sm:$0xf] %vm1027, %v1020
      %1030 = vst.msk [vmem:[%s355 + $0x8] sm:$0xf] %vm1027, %v1021
      %1031 = vst.msk [vmem:[%s355 + $0xc] sm:$0xf] %vm1027, %v1022
      %p1032 = scmp.lt.s32.totalorder %s21, 1
      %s1033 = scalar_select %p1032, %s21, 1
      %p1034 = scmp.lt.s32.totalorder %s22, 31
      %s1035 = scalar_select %p1034, %s22, 31
      %s1036 = smul.addr %s1035, 4
      %s1037 = smul.addr %s1033, 128
      %s1038 = sadd.s32 %s1036, %s1037
      %s1039 = smul.addr %s1038, 4
      %s1040 = scalar_lea.vmem %s4, %s1039
      %p1041 = scmp.lt.s32.totalorder %s21, 1
      %s1042 = scalar_select %p1041, %s21, 1
      %p1043 = scmp.lt.s32.totalorder %s22, 31
      %s1044 = scalar_select %p1043, %s22, 31
      %s1045 = smul.addr %s1042, 32
      %s1046 = sadd.s32 %s1044, %s1045
      %s1047 = smul.addr %s1046, 2
      %s1048 = scalar_lea.vmem %s5, %s1047
      // Predicated region
      $region37: #{dcgan_generator_forward.19} parent=35 // pred_check
        %p1049 = pneg %p158
      $region38: #{dcgan_generator_forward.19} parent=35 // pred_check_branch
        %1051 = sbr.rel (%p1049) target = $region40
      $region39: #{dcgan_generator_forward.19} parent=35 // pred_region
        _
      $region40: #{dcgan_generator_forward.19} parent=35 // pred_fallthru
        _
      // Predicated region
      $region41: #{dcgan_generator_forward.19} parent=35 // pred_check
        %p1052 = pneg %p186
      $region42: #{dcgan_generator_forward.19} parent=35 // pred_check_branch
        %1054 = sbr.rel (%p1052) target = $region44
      $region43: #{dcgan_generator_forward.19} parent=35 // pred_region
        _
      $region44: #{dcgan_generator_forward.19} parent=35 // pred_fallthru
        _
    $region36: #{dcgan_generator_forward.19} parent=5 // pred_fallthru
      _
    %p1055 = scmp.le.s32.totalorder 2, %s12
    // Predicated region
    $region45: #{dcgan_generator_forward.19} parent=5 // pred_check
      %p1056 = pneg %p1055
    $region46: #{dcgan_generator_forward.19} parent=5 // pred_check_branch
      %1058 = sbr.rel (%p1056) target = $region48
    $region47: #{dcgan_generator_forward.19} parent=5 // pred_region
      %s1059 = ssub.s32 %s12, 2
      // Predicated region
      $region49: #{dcgan_generator_forward.19} parent=47 // pred_check
        %p1060 = pneg %p164
      $region50: #{dcgan_generator_forward.19} parent=47 // pred_check_branch
        %1062 = sbr.rel (%p1060) target = $region52
      $region51: #{dcgan_generator_forward.19} parent=47 // pred_region
        %p1063 = scmp.lt.s32.totalorder %s23, 1
        %s1064 = scalar_select %p1063, %s23, 1
        %p1065 = scmp.lt.s32.totalorder %s24, 31
        %s1066 = scalar_select %p1065, %s24, 31
        %s1067 = smul.addr %s1066, 4
        %s1068 = smul.addr %s1064, 128
        %s1069 = sadd.s32 %s1067, %s1068
        %s1070 = smul.addr %s1069, 4
        %s1071 = scalar_lea.vmem %s4, %s1070
      $region52: #{dcgan_generator_forward.19} parent=47 // pred_fallthru
        _
      // Predicated region
      $region53: #{dcgan_generator_forward.19} parent=47 // pred_check
        %p1072 = pneg %p192
      $region54: #{dcgan_generator_forward.19} parent=47 // pred_check_branch
        %1074 = sbr.rel (%p1072) target = $region56
      $region55: #{dcgan_generator_forward.19} parent=47 // pred_region
        %p1075 = scmp.lt.s32.totalorder %s23, 1
        %s1076 = scalar_select %p1075, %s23, 1
        %p1077 = scmp.lt.s32.totalorder %s24, 31
        %s1078 = scalar_select %p1077, %s24, 31
        %s1079 = smul.addr %s1076, 32
        %s1080 = sadd.s32 %s1078, %s1079
        %s1081 = smul.addr %s1080, 2
        %s1082 = scalar_lea.vmem %s5, %s1081
      $region56: #{dcgan_generator_forward.19} parent=47 // pred_fallthru
        _
    $region48: #{dcgan_generator_forward.19} parent=5 // pred_fallthru
      _
  $region6: #{dcgan_generator_forward.19} parent=0 // loop_footer
    %s16 = sadd.s32 1, %s12
  $region7: #{dcgan_generator_forward.19} parent=0 // loop_footer_branch
    %11 = sbr.rel target = $region3
  $region8: #{dcgan_generator_forward.19} parent=0 // loop_exit
    _

// kernel: tile.98
$region0: #{tile.98}
  #allocation0 [shape = 's32[1]{0}', space=sflag, size = 0x4, scoped, tag = 'scoped memory for tile.98']
  %s0 = inlined_call_operand.vmem [shape: f32[4], index: 0, kind: input, shape index: {}]
  %s1 = inlined_call_operand.vmem [shape: f32[128,4], index: 1, kind: output, shape index: {}]
  // Predicated region
  $region2: #{tile.98} parent=0 // pred_check
    _
  $region3: #{tile.98} parent=0 // pred_check_branch
    %3 = sbr.rel (0) target = $region5
  $region4: #{tile.98} parent=0 // pred_region
    _
  $region5: #{tile.98} parent=0 // pred_fallthru
    _
  %v4 = vld [vmem:[%s0] ss:$0 sm:$0xff]
  %5 = vst [vmem:[%s1] sm:$0xff] %v4
  %s6 = scalar_lea.vmem %s1, 8
  %7 = vst [vmem:[%s6] sm:$0xff] %v4
  %s8 = scalar_lea.vmem %s1, 16
  %9 = vst [vmem:[%s8] sm:$0xff] %v4
  %s10 = scalar_lea.vmem %s1, 24
  %11 = vst [vmem:[%s10] sm:$0xff] %v4
  %s12 = scalar_lea.vmem %s1, 32
  %13 = vst [vmem:[%s12] sm:$0xff] %v4
  %s14 = scalar_lea.vmem %s1, 40
  %15 = vst [vmem:[%s14] sm:$0xff] %v4
  %s16 = scalar_lea.vmem %s1, 48
  %17 = vst [vmem:[%s16] sm:$0xff] %v4
  %s18 = scalar_lea.vmem %s1, 56
  %19 = vst [vmem:[%s18] sm:$0xff] %v4
  %s20 = scalar_lea.vmem %s1, 64
  %21 = vst [vmem:[%s20] sm:$0xff] %v4
  %s22 = scalar_lea.vmem %s1, 72
  %23 = vst [vmem:[%s22] sm:$0xff] %v4
  %s24 = scalar_lea.vmem %s1, 80
  %25 = vst [vmem:[%s24] sm:$0xff] %v4
  %s26 = scalar_lea.vmem %s1, 88
  %27 = vst [vmem:[%s26] sm:$0xff] %v4
  %s28 = scalar_lea.vmem %s1, 96
  %29 = vst [vmem:[%s28] sm:$0xff] %v4
  %s30 = scalar_lea.vmem %s1, 104
  %31 = vst [vmem:[%s30] sm:$0xff] %v4
  %s32 = scalar_lea.vmem %s1, 112
  %33 = vst [vmem:[%s32] sm:$0xff] %v4
  %s34 = scalar_lea.vmem %s1, 120
  %35 = vst [vmem:[%s34] sm:$0xff] %v4

// kernel: tile.99
$region0: #{tile.99}
  %s0 = inlined_call_operand.vmem [shape: f32[128,4], index: 0, kind: input, shape index: {}]
  %s1 = inlined_call_operand.vmem [shape: f32[1,512], index: 1, kind: output, shape index: {}]
  $region1: #{tile.99} parent=0
    #allocation0 [shape = 'u8[16384]{0}', space=vmem, size = 0x4000, scoped, tag = 'scoped mem for output reshape']
    %v2 = vld [vmem:[%s0] sm:$0x1]
    %s3 = scalar_lea.vmem %s0, 31
    %v4 = vld [vmem:[%s3] sm:$0x2]
    %vm5 = vcmask 1041409
    %v6 = vsel %vm5, %v4, %v2
    %s7 = scalar_lea.vmem %s0, 62
    %v8 = vld [vmem:[%s7] sm:$0x4]
    %vm9 = vcmask 1042434
    %v10 = vsel %vm9, %v8, %v6
    %s11 = scalar_lea.vmem %s0, 93
    %v12 = vld [vmem:[%s11] sm:$0x8]
    %vm13 = vcmask 1043459
    %v14 = vsel %vm13, %v12, %v10
    %vm15 = vcmask 31744
    %16 = vst.msk [vmem:[#allocation0] ss:$8 sm:$0xf] %vm15, %v14
    %s17 = scalar_lea.vmem %s0, 31
    %v18 = vld [vmem:[%s17] sm:$0x1]
    %s19 = scalar_lea.vmem %s0, 62
    %v20 = vld [vmem:[%s19] sm:$0x2]
    %vm21 = vcmask 1041409
    %v22 = vsel %vm21, %v20, %v18
    %s23 = scalar_lea.vmem %s0, 93
    %v24 = vld [vmem:[%s23] sm:$0x4]
    %vm25 = vcmask 1042434
    %v26 = vsel %vm25, %v24, %v22
    %s27 = scalar_lea.vmem %s0, 124
    %v28 = vld [vmem:[%s27] sm:$0x8]
    %vm29 = vcmask 1043459
    %v30 = vsel %vm29, %v28, %v26
    %31 = vrot.lane.b32.xlu0 %v30, 124
    %v32 = vpop.permute.xlu0 %31
    %vm33 = vcmask 1048544
    %34 = vst.msk [vmem:[#allocation0] ss:$8 sm:$0xf] %vm33, %v32
    %s35 = scalar_lea.vmem %s0, 30
    %v36 = vld [vmem:[%s35] sm:$0x1]
    %s37 = scalar_lea.vmem %s0, 61
    %v38 = vld [vmem:[%s37] sm:$0x2]
    %vm39 = vcmask 1041409
    %v40 = vsel %vm39, %v38, %v36
    %s41 = scalar_lea.vmem %s0, 92
    %v42 = vld [vmem:[%s41] sm:$0x4]
    %vm43 = vcmask 1042434
    %v44 = vsel %vm43, %v42, %v40
    %s45 = scalar_lea.vmem %s0, 123
    %v46 = vld [vmem:[%s45] sm:$0x8]
    %vm47 = vcmask 1043459
    %v48 = vsel %vm47, %v46, %v44
    %49 = vrot.lane.b32.xlu0 %v48, 120
    %v50 = vpop.permute.xlu0 %49
    %vm51 = vcmask 1015744
    %52 = vst.msk [vmem:[#allocation0] ss:$8 sm:$0xf] %vm51, %v50
    %s53 = scalar_lea.vmem %s0, 29
    %v54 = vld [vmem:[%s53] sm:$0x1]
    %s55 = scalar_lea.vmem %s0, 60
    %v56 = vld [vmem:[%s55] sm:$0x2]
    %vm57 = vcmask 1041409
    %v58 = vsel %vm57, %v56, %v54
    %s59 = scalar_lea.vmem %s0, 91
    %v60 = vld [vmem:[%s59] sm:$0x4]
    %vm61 = vcmask 1042434
    %v62 = vsel %vm61, %v60, %v58
    %s63 = scalar_lea.vmem %s0, 122
    %v64 = vld [vmem:[%s63] sm:$0x8]
    %vm65 = vcmask 1043459
    %v66 = vsel %vm65, %v64, %v62
    %67 = vrot.lane.b32.xlu0 %v66, 116
    %v68 = vpop.permute.xlu0 %67
    %vm69 = vcmask 982944
    %70 = vst.msk [vmem:[#allocation0] ss:$8 sm:$0xf] %vm69, %v68
    %s71 = scalar_lea.vmem %s0, 28
    %v72 = vld [vmem:[%s71] sm:$0x1]
    %s73 = scalar_lea.vmem %s0, 59
    %v74 = vld [vmem:[%s73] sm:$0x2]
    %vm75 = vcmask 1041409
    %v76 = vsel %vm75, %v74, %v72
    %s77 = scalar_lea.vmem %s0, 90
    %v78 = vld [vmem:[%s77] sm:$0x4]
    %vm79 = vcmask 1042434
    %v80 = vsel %vm79, %v78, %v76
    %s81 = scalar_lea.vmem %s0, 121
    %v82 = vld [vmem:[%s81] sm:$0x8]
    %vm83 = vcmask 1043459
    %v84 = vsel %vm83, %v82, %v80
    %85 = vrot.lane.b32.xlu0 %v84, 112
    %v86 = vpop.permute.xlu0 %85
    %vm87 = vcmask 950144
    %88 = vst.msk [vmem:[#allocation0] ss:$8 sm:$0xf] %vm87, %v86
    %s89 = scalar_lea.vmem %s0, 27
    %v90 = vld [vmem:[%s89] sm:$0x1]
    %s91 = scalar_lea.vmem %s0, 58
    %v92 = vld [vmem:[%s91] sm:$0x2]
    %vm93 = vcmask 1041409
    %v94 = vsel %vm93, %v92, %v90
    %s95 = scalar_lea.vmem %s0, 89
    %v96 = vld [vmem:[%s95] sm:$0x4]
    %vm97 = vcmask 1042434
    %v98 = vsel %vm97, %v96, %v94
    %s99 = scalar_lea.vmem %s0, 120
    %v100 = vld [vmem:[%s99] sm:$0x8]
    %vm101 = vcmask 1043459
    %v102 = vsel %vm101, %v100, %v98
    %103 = vrot.lane.b32.xlu0 %v102, 108
    %v104 = vpop.permute.xlu0 %103
    %vm105 = vcmask 917344
    %106 = vst.msk [vmem:[#allocation0] ss:$8 sm:$0xf] %vm105, %v104
    %s107 = scalar_lea.vmem %s0, 26
    %v108 = vld [vmem:[%s107] sm:$0x1]
    %s109 = scalar_lea.vmem %s0, 57
    %v110 = vld [vmem:[%s109] sm:$0x2]
    %vm111 = vcmask 1041409
    %v112 = vsel %vm111, %v110, %v108
    %s113 = scalar_lea.vmem %s0, 88
    %v114 = vld [vmem:[%s113] sm:$0x4]
    %vm115 = vcmask 1042434
    %v116 = vsel %vm115, %v114, %v112
    %s117 = scalar_lea.vmem %s0, 119
    %v118 = vld [vmem:[%s117] sm:$0x8]
    %vm119 = vcmask 1043459
    %v120 = vsel %vm119, %v118, %v116
    %121 = vrot.lane.b32.xlu0 %v120, 104
    %v122 = vpop.permute.xlu0 %121
    %vm123 = vcmask 884544
    %124 = vst.msk [vmem:[#allocation0] ss:$8 sm:$0xf] %vm123, %v122
    %s125 = scalar_lea.vmem %s0, 25
    %v126 = vld [vmem:[%s125] sm:$0x1]
    %s127 = scalar_lea.vmem %s0, 56
    %v128 = vld [vmem:[%s127] sm:$0x2]
    %vm129 = vcmask 1041409
    %v130 = vsel %vm129, %v128, %v126
    %s131 = scalar_lea.vmem %s0, 87
    %v132 = vld [vmem:[%s131] sm:$0x4]
    %vm133 = vcmask 1042434
    %v134 = vsel %vm133, %v132, %v130
    %s135 = scalar_lea.vmem %s0, 118
    %v136 = vld [vmem:[%s135] sm:$0x8]
    %vm137 = vcmask 1043459
    %v138 = vsel %vm137, %v136, %v134
    %139 = vrot.lane.b32.xlu0 %v138, 100
    %v140 = vpop.permute.xlu0 %139
    %vm141 = vcmask 851744
    %142 = vst.msk [vmem:[#allocation0] ss:$8 sm:$0xf] %vm141, %v140
    %s143 = scalar_lea.vmem %s0, 24
    %v144 = vld [vmem:[%s143] sm:$0x1]
    %s145 = scalar_lea.vmem %s0, 55
    %v146 = vld [vmem:[%s145] sm:$0x2]
    %vm147 = vcmask 1041409
    %v148 = vsel %vm147, %v146, %v144
    %s149 = scalar_lea.vmem %s0, 86
    %v150 = vld [vmem:[%s149] sm:$0x4]
    %vm151 = vcmask 1042434
    %v152 = vsel %vm151, %v150, %v148
    %s153 = scalar_lea.vmem %s0, 117
    %v154 = vld [vmem:[%s153] sm:$0x8]
    %vm155 = vcmask 1043459
    %v156 = vsel %vm155, %v154, %v152
    %157 = vrot.lane.b32.xlu0 %v156, 96
    %v158 = vpop.permute.xlu0 %157
    %vm159 = vcmask 818944
    %160 = vst.msk [vmem:[#allocation0] ss:$8 sm:$0xf] %vm159, %v158
    %s161 = scalar_lea.vmem %s0, 23
    %v162 = vld [vmem:[%s161] sm:$0x1]
    %s163 = scalar_lea.vmem %s0, 54
    %v164 = vld [vmem:[%s163] sm:$0x2]
    %vm165 = vcmask 1041409
    %v166 = vsel %vm165, %v164, %v162
    %s167 = scalar_lea.vmem %s0, 85
    %v168 = vld [vmem:[%s167] sm:$0x4]
    %vm169 = vcmask 1042434
    %v170 = vsel %vm169, %v168, %v166
    %s171 = scalar_lea.vmem %s0, 116
    %v172 = vld [vmem:[%s171] sm:$0x8]
    %vm173 = vcmask 1043459
    %v174 = vsel %vm173, %v172, %v170
    %175 = vrot.lane.b32.xlu0 %v174, 92
    %v176 = vpop.permute.xlu0 %175
    %vm177 = vcmask 786144
    %178 = vst.msk [vmem:[#allocation0] ss:$8 sm:$0xf] %vm177, %v176
    %s179 = scalar_lea.vmem %s0, 22
    %v180 = vld [vmem:[%s179] sm:$0x1]
    %s181 = scalar_lea.vmem %s0, 53
    %v182 = vld [vmem:[%s181] sm:$0x2]
    %vm183 = vcmask 1041409
    %v184 = vsel %vm183, %v182, %v180
    %s185 = scalar_lea.vmem %s0, 84
    %v186 = vld [vmem:[%s185] sm:$0x4]
    %vm187 = vcmask 1042434
    %v188 = vsel %vm187, %v186, %v184
    %s189 = scalar_lea.vmem %s0, 115
    %v190 = vld [vmem:[%s189] sm:$0x8]
    %vm191 = vcmask 1043459
    %v192 = vsel %vm191, %v190, %v188
    %193 = vrot.lane.b32.xlu0 %v192, 88
    %v194 = vpop.permute.xlu0 %193
    %vm195 = vcmask 753344
    %196 = vst.msk [vmem:[#allocation0] ss:$8 sm:$0xf] %vm195, %v194
    %s197 = scalar_lea.vmem %s0, 21
    %v198 = vld [vmem:[%s197] sm:$0x1]
    %s199 = scalar_lea.vmem %s0, 52
    %v200 = vld [vmem:[%s199] sm:$0x2]
    %vm201 = vcmask 1041409
    %v202 = vsel %vm201, %v200, %v198
    %s203 = scalar_lea.vmem %s0, 83
    %v204 = vld [vmem:[%s203] sm:$0x4]
    %vm205 = vcmask 1042434
    %v206 = vsel %vm205, %v204, %v202
    %s207 = scalar_lea.vmem %s0, 114
    %v208 = vld [vmem:[%s207] sm:$0x8]
    %vm209 = vcmask 1043459
    %v210 = vsel %vm209, %v208, %v206
    %211 = vrot.lane.b32.xlu0 %v210, 84
    %v212 = vpop.permute.xlu0 %211
    %vm213 = vcmask 720544
    %214 = vst.msk [vmem:[#allocation0] ss:$8 sm:$0xf] %vm213, %v212
    %s215 = scalar_lea.vmem %s0, 20
    %v216 = vld [vmem:[%s215] sm:$0x1]
    %s217 = scalar_lea.vmem %s0, 51
    %v218 = vld [vmem:[%s217] sm:$0x2]
    %vm219 = vcmask 1041409
    %v220 = vsel %vm219, %v218, %v216
    %s221 = scalar_lea.vmem %s0, 82
    %v222 = vld [vmem:[%s221] sm:$0x4]
    %vm223 = vcmask 1042434
    %v224 = vsel %vm223, %v222, %v220
    %s225 = scalar_lea.vmem %s0, 113
    %v226 = vld [vmem:[%s225] sm:$0x8]
    %vm227 = vcmask 1043459
    %v228 = vsel %vm227, %v226, %v224
    %229 = vrot.lane.b32.xlu0 %v228, 80
    %v230 = vpop.permute.xlu0 %229
    %vm231 = vcmask 687744
    %232 = vst.msk [vmem:[#allocation0] ss:$8 sm:$0xf] %vm231, %v230
    %s233 = scalar_lea.vmem %s0, 19
    %v234 = vld [vmem:[%s233] sm:$0x1]
    %s235 = scalar_lea.vmem %s0, 50
    %v236 = vld [vmem:[%s235] sm:$0x2]
    %vm237 = vcmask 1041409
    %v238 = vsel %vm237, %v236, %v234
    %s239 = scalar_lea.vmem %s0, 81
    %v240 = vld [vmem:[%s239] sm:$0x4]
    %vm241 = vcmask 1042434
    %v242 = vsel %vm241, %v240, %v238
    %s243 = scalar_lea.vmem %s0, 112
    %v244 = vld [vmem:[%s243] sm:$0x8]
    %vm245 = vcmask 1043459
    %v246 = vsel %vm245, %v244, %v242
    %247 = vrot.lane.b32.xlu0 %v246, 76
    %v248 = vpop.permute.xlu0 %247
    %vm249 = vcmask 654944
    %250 = vst.msk [vmem:[#allocation0] ss:$8 sm:$0xf] %vm249, %v248
    %s251 = scalar_lea.vmem %s0, 18
    %v252 = vld [vmem:[%s251] sm:$0x1]
    %s253 = scalar_lea.vmem %s0, 49
    %v254 = vld [vmem:[%s253] sm:$0x2]
    %vm255 = vcmask 1041409
    %v256 = vsel %vm255, %v254, %v252
    %s257 = scalar_lea.vmem %s0, 80
    %v258 = vld [vmem:[%s257] sm:$0x4]
    %vm259 = vcmask 1042434
    %v260 = vsel %vm259, %v258, %v256
    %s261 = scalar_lea.vmem %s0, 111
    %v262 = vld [vmem:[%s261] sm:$0x8]
    %vm263 = vcmask 1043459
    %v264 = vsel %vm263, %v262, %v260
    %265 = vrot.lane.b32.xlu0 %v264, 72
    %v266 = vpop.permute.xlu0 %265
    %vm267 = vcmask 622144
    %268 = vst.msk [vmem:[#allocation0] ss:$8 sm:$0xf] %vm267, %v266
    %s269 = scalar_lea.vmem %s0, 17
    %v270 = vld [vmem:[%s269] sm:$0x1]
    %s271 = scalar_lea.vmem %s0, 48
    %v272 = vld [vmem:[%s271] sm:$0x2]
    %vm273 = vcmask 1041409
    %v274 = vsel %vm273, %v272, %v270
    %s275 = scalar_lea.vmem %s0, 79
    %v276 = vld [vmem:[%s275] sm:$0x4]
    %vm277 = vcmask 1042434
    %v278 = vsel %vm277, %v276, %v274
    %s279 = scalar_lea.vmem %s0, 110
    %v280 = vld [vmem:[%s279] sm:$0x8]
    %vm281 = vcmask 1043459
    %v282 = vsel %vm281, %v280, %v278
    %283 = vrot.lane.b32.xlu0 %v282, 68
    %v284 = vpop.permute.xlu0 %283
    %vm285 = vcmask 589344
    %286 = vst.msk [vmem:[#allocation0] ss:$8 sm:$0xf] %vm285, %v284
    %s287 = scalar_lea.vmem %s0, 16
    %v288 = vld [vmem:[%s287] sm:$0x1]
    %s289 = scalar_lea.vmem %s0, 47
    %v290 = vld [vmem:[%s289] sm:$0x2]
    %vm291 = vcmask 1041409
    %v292 = vsel %vm291, %v290, %v288
    %s293 = scalar_lea.vmem %s0, 78
    %v294 = vld [vmem:[%s293] sm:$0x4]
    %vm295 = vcmask 1042434
    %v296 = vsel %vm295, %v294, %v292
    %s297 = scalar_lea.vmem %s0, 109
    %v298 = vld [vmem:[%s297] sm:$0x8]
    %vm299 = vcmask 1043459
    %v300 = vsel %vm299, %v298, %v296
    %301 = vrot.lane.b32.xlu0 %v300, 64
    %v302 = vpop.permute.xlu0 %301
    %vm303 = vcmask 556544
    %304 = vst.msk [vmem:[#allocation0] ss:$8 sm:$0xf] %vm303, %v302
    %s305 = scalar_lea.vmem %s0, 15
    %v306 = vld [vmem:[%s305] sm:$0x1]
    %s307 = scalar_lea.vmem %s0, 46
    %v308 = vld [vmem:[%s307] sm:$0x2]
    %vm309 = vcmask 1041409
    %v310 = vsel %vm309, %v308, %v306
    %s311 = scalar_lea.vmem %s0, 77
    %v312 = vld [vmem:[%s311] sm:$0x4]
    %vm313 = vcmask 1042434
    %v314 = vsel %vm313, %v312, %v310
    %s315 = scalar_lea.vmem %s0, 108
    %v316 = vld [vmem:[%s315] sm:$0x8]
    %vm317 = vcmask 1043459
    %v318 = vsel %vm317, %v316, %v314
    %319 = vrot.lane.b32.xlu0 %v318, 60
    %v320 = vpop.permute.xlu0 %319
    %vm321 = vcmask 523744
    %322 = vst.msk [vmem:[#allocation0] ss:$8 sm:$0xf] %vm321, %v320
    %s323 = scalar_lea.vmem %s0, 14
    %v324 = vld [vmem:[%s323] sm:$0x1]
    %s325 = scalar_lea.vmem %s0, 45
    %v326 = vld [vmem:[%s325] sm:$0x2]
    %vm327 = vcmask 1041409
    %v328 = vsel %vm327, %v326, %v324
    %s329 = scalar_lea.vmem %s0, 76
    %v330 = vld [vmem:[%s329] sm:$0x4]
    %vm331 = vcmask 1042434
    %v332 = vsel %vm331, %v330, %v328
    %s333 = scalar_lea.vmem %s0, 107
    %v334 = vld [vmem:[%s333] sm:$0x8]
    %vm335 = vcmask 1043459
    %v336 = vsel %vm335, %v334, %v332
    %337 = vrot.lane.b32.xlu0 %v336, 56
    %v338 = vpop.permute.xlu0 %337
    %vm339 = vcmask 490944
    %340 = vst.msk [vmem:[#allocation0] ss:$8 sm:$0xf] %vm339, %v338
    %s341 = scalar_lea.vmem %s0, 13
    %v342 = vld [vmem:[%s341] sm:$0x1]
    %s343 = scalar_lea.vmem %s0, 44
    %v344 = vld [vmem:[%s343] sm:$0x2]
    %vm345 = vcmask 1041409
    %v346 = vsel %vm345, %v344, %v342
    %s347 = scalar_lea.vmem %s0, 75
    %v348 = vld [vmem:[%s347] sm:$0x4]
    %vm349 = vcmask 1042434
    %v350 = vsel %vm349, %v348, %v346
    %s351 = scalar_lea.vmem %s0, 106
    %v352 = vld [vmem:[%s351] sm:$0x8]
    %vm353 = vcmask 1043459
    %v354 = vsel %vm353, %v352, %v350
    %355 = vrot.lane.b32.xlu0 %v354, 52
    %v356 = vpop.permute.xlu0 %355
    %vm357 = vcmask 458144
    %358 = vst.msk [vmem:[#allocation0] ss:$8 sm:$0xf] %vm357, %v356
    %s359 = scalar_lea.vmem %s0, 12
    %v360 = vld [vmem:[%s359] sm:$0x1]
    %s361 = scalar_lea.vmem %s0, 43
    %v362 = vld [vmem:[%s361] sm:$0x2]
    %vm363 = vcmask 1041409
    %v364 = vsel %vm363, %v362, %v360
    %s365 = scalar_lea.vmem %s0, 74
    %v366 = vld [vmem:[%s365] sm:$0x4]
    %vm367 = vcmask 1042434
    %v368 = vsel %vm367, %v366, %v364
    %s369 = scalar_lea.vmem %s0, 105
    %v370 = vld [vmem:[%s369] sm:$0x8]
    %vm371 = vcmask 1043459
    %v372 = vsel %vm371, %v370, %v368
    %373 = vrot.lane.b32.xlu0 %v372, 48
    %v374 = vpop.permute.xlu0 %373
    %vm375 = vcmask 425344
    %376 = vst.msk [vmem:[#allocation0] ss:$8 sm:$0xf] %vm375, %v374
    %s377 = scalar_lea.vmem %s0, 11
    %v378 = vld [vmem:[%s377] sm:$0x1]
    %s379 = scalar_lea.vmem %s0, 42
    %v380 = vld [vmem:[%s379] sm:$0x2]
    %vm381 = vcmask 1041409
    %v382 = vsel %vm381, %v380, %v378
    %s383 = scalar_lea.vmem %s0, 73
    %v384 = vld [vmem:[%s383] sm:$0x4]
    %vm385 = vcmask 1042434
    %v386 = vsel %vm385, %v384, %v382
    %s387 = scalar_lea.vmem %s0, 104
    %v388 = vld [vmem:[%s387] sm:$0x8]
    %vm389 = vcmask 1043459
    %v390 = vsel %vm389, %v388, %v386
    %391 = vrot.lane.b32.xlu0 %v390, 44
    %v392 = vpop.permute.xlu0 %391
    %vm393 = vcmask 392544
    %394 = vst.msk [vmem:[#allocation0] ss:$8 sm:$0xf] %vm393, %v392
    %s395 = scalar_lea.vmem %s0, 10
    %v396 = vld [vmem:[%s395] sm:$0x1]
    %s397 = scalar_lea.vmem %s0, 41
    %v398 = vld [vmem:[%s397] sm:$0x2]
    %vm399 = vcmask 1041409
    %v400 = vsel %vm399, %v398, %v396
    %s401 = scalar_lea.vmem %s0, 72
    %v402 = vld [vmem:[%s401] sm:$0x4]
    %vm403 = vcmask 1042434
    %v404 = vsel %vm403, %v402, %v400
    %s405 = scalar_lea.vmem %s0, 103
    %v406 = vld [vmem:[%s405] sm:$0x8]
    %vm407 = vcmask 1043459
    %v408 = vsel %vm407, %v406, %v404
    %409 = vrot.lane.b32.xlu0 %v408, 40
    %v410 = vpop.permute.xlu0 %409
    %vm411 = vcmask 359744
    %412 = vst.msk [vmem:[#allocation0] ss:$8 sm:$0xf] %vm411, %v410
    %s413 = scalar_lea.vmem %s0, 9
    %v414 = vld [vmem:[%s413] sm:$0x1]
    %s415 = scalar_lea.vmem %s0, 40
    %v416 = vld [vmem:[%s415] sm:$0x2]
    %vm417 = vcmask 1041409
    %v418 = vsel %vm417, %v416, %v414
    %s419 = scalar_lea.vmem %s0, 71
    %v420 = vld [vmem:[%s419] sm:$0x4]
    %vm421 = vcmask 1042434
    %v422 = vsel %vm421, %v420, %v418
    %s423 = scalar_lea.vmem %s0, 102
    %v424 = vld [vmem:[%s423] sm:$0x8]
    %vm425 = vcmask 1043459
    %v426 = vsel %vm425, %v424, %v422
    %427 = vrot.lane.b32.xlu0 %v426, 36
    %v428 = vpop.permute.xlu0 %427
    %vm429 = vcmask 326944
    %430 = vst.msk [vmem:[#allocation0] ss:$8 sm:$0xf] %vm429, %v428
    %s431 = scalar_lea.vmem %s0, 8
    %v432 = vld [vmem:[%s431] sm:$0x1]
    %s433 = scalar_lea.vmem %s0, 39
    %v434 = vld [vmem:[%s433] sm:$0x2]
    %vm435 = vcmask 1041409
    %v436 = vsel %vm435, %v434, %v432
    %s437 = scalar_lea.vmem %s0, 70
    %v438 = vld [vmem:[%s437] sm:$0x4]
    %vm439 = vcmask 1042434
    %v440 = vsel %vm439, %v438, %v436
    %s441 = scalar_lea.vmem %s0, 101
    %v442 = vld [vmem:[%s441] sm:$0x8]
    %vm443 = vcmask 1043459
    %v444 = vsel %vm443, %v442, %v440
    %445 = vrot.lane.b32.xlu0 %v444, 32
    %v446 = vpop.permute.xlu0 %445
    %vm447 = vcmask 294144
    %448 = vst.msk [vmem:[#allocation0] ss:$8 sm:$0xf] %vm447, %v446
    %s449 = scalar_lea.vmem %s0, 7
    %v450 = vld [vmem:[%s449] sm:$0x1]
    %s451 = scalar_lea.vmem %s0, 38
    %v452 = vld [vmem:[%s451] sm:$0x2]
    %vm453 = vcmask 1041409
    %v454 = vsel %vm453, %v452, %v450
    %s455 = scalar_lea.vmem %s0, 69
    %v456 = vld [vmem:[%s455] sm:$0x4]
    %vm457 = vcmask 1042434
    %v458 = vsel %vm457, %v456, %v454
    %s459 = scalar_lea.vmem %s0, 100
    %v460 = vld [vmem:[%s459] sm:$0x8]
    %vm461 = vcmask 1043459
    %v462 = vsel %vm461, %v460, %v458
    %463 = vrot.lane.b32.xlu0 %v462, 28
    %v464 = vpop.permute.xlu0 %463
    %vm465 = vcmask 261344
    %466 = vst.msk [vmem:[#allocation0] ss:$8 sm:$0xf] %vm465, %v464
    %s467 = scalar_lea.vmem %s0, 6
    %v468 = vld [vmem:[%s467] sm:$0x1]
    %s469 = scalar_lea.vmem %s0, 37
    %v470 = vld [vmem:[%s469] sm:$0x2]
    %vm471 = vcmask 1041409
    %v472 = vsel %vm471, %v470, %v468
    %s473 = scalar_lea.vmem %s0, 68
    %v474 = vld [vmem:[%s473] sm:$0x4]
    %vm475 = vcmask 1042434
    %v476 = vsel %vm475, %v474, %v472
    %s477 = scalar_lea.vmem %s0, 99
    %v478 = vld [vmem:[%s477] sm:$0x8]
    %vm479 = vcmask 1043459
    %v480 = vsel %vm479, %v478, %v476
    %481 = vrot.lane.b32.xlu0 %v480, 24
    %v482 = vpop.permute.xlu0 %481
    %vm483 = vcmask 228544
    %484 = vst.msk [vmem:[#allocation0] ss:$8 sm:$0xf] %vm483, %v482
    %s485 = scalar_lea.vmem %s0, 5
    %v486 = vld [vmem:[%s485] sm:$0x1]
    %s487 = scalar_lea.vmem %s0, 36
    %v488 = vld [vmem:[%s487] sm:$0x2]
    %vm489 = vcmask 1041409
    %v490 = vsel %vm489, %v488, %v486
    %s491 = scalar_lea.vmem %s0, 67
    %v492 = vld [vmem:[%s491] sm:$0x4]
    %vm493 = vcmask 1042434
    %v494 = vsel %vm493, %v492, %v490
    %s495 = scalar_lea.vmem %s0, 98
    %v496 = vld [vmem:[%s495] sm:$0x8]
    %vm497 = vcmask 1043459
    %v498 = vsel %vm497, %v496, %v494
    %499 = vrot.lane.b32.xlu0 %v498, 20
    %v500 = vpop.permute.xlu0 %499
    %vm501 = vcmask 195744
    %502 = vst.msk [vmem:[#allocation0] ss:$8 sm:$0xf] %vm501, %v500
    %s503 = scalar_lea.vmem %s0, 4
    %v504 = vld [vmem:[%s503] sm:$0x1]
    %s505 = scalar_lea.vmem %s0, 35
    %v506 = vld [vmem:[%s505] sm:$0x2]
    %vm507 = vcmask 1041409
    %v508 = vsel %vm507, %v506, %v504
    %s509 = scalar_lea.vmem %s0, 66
    %v510 = vld [vmem:[%s509] sm:$0x4]
    %vm511 = vcmask 1042434
    %v512 = vsel %vm511, %v510, %v508
    %s513 = scalar_lea.vmem %s0, 97
    %v514 = vld [vmem:[%s513] sm:$0x8]
    %vm515 = vcmask 1043459
    %v516 = vsel %vm515, %v514, %v512
    %517 = vrot.lane.b32.xlu0 %v516, 16
    %v518 = vpop.permute.xlu0 %517
    %vm519 = vcmask 162944
    %520 = vst.msk [vmem:[#allocation0] ss:$8 sm:$0xf] %vm519, %v518
    %s521 = scalar_lea.vmem %s0, 3
    %v522 = vld [vmem:[%s521] sm:$0x1]
    %s523 = scalar_lea.vmem %s0, 34
    %v524 = vld [vmem:[%s523] sm:$0x2]
    %vm525 = vcmask 1041409
    %v526 = vsel %vm525, %v524, %v522
    %s527 = scalar_lea.vmem %s0, 65
    %v528 = vld [vmem:[%s527] sm:$0x4]
    %vm529 = vcmask 1042434
    %v530 = vsel %vm529, %v528, %v526
    %s531 = scalar_lea.vmem %s0, 96
    %v532 = vld [vmem:[%s531] sm:$0x8]
    %vm533 = vcmask 1043459
    %v534 = vsel %vm533, %v532, %v530
    %535 = vrot.lane.b32.xlu0 %v534, 12
    %v536 = vpop.permute.xlu0 %535
    %vm537 = vcmask 130144
    %538 = vst.msk [vmem:[#allocation0] ss:$8 sm:$0xf] %vm537, %v536
    %s539 = scalar_lea.vmem %s0, 2
    %v540 = vld [vmem:[%s539] sm:$0x1]
    %s541 = scalar_lea.vmem %s0, 33
    %v542 = vld [vmem:[%s541] sm:$0x2]
    %vm543 = vcmask 1041409
    %v544 = vsel %vm543, %v542, %v540
    %s545 = scalar_lea.vmem %s0, 64
    %v546 = vld [vmem:[%s545] sm:$0x4]
    %vm547 = vcmask 1042434
    %v548 = vsel %vm547, %v546, %v544
    %s549 = scalar_lea.vmem %s0, 95
    %v550 = vld [vmem:[%s549] sm:$0x8]
    %vm551 = vcmask 1043459
    %v552 = vsel %vm551, %v550, %v548
    %553 = vrot.lane.b32.xlu0 %v552, 8
    %v554 = vpop.permute.xlu0 %553
    %vm555 = vcmask 97344
    %556 = vst.msk [vmem:[#allocation0] ss:$8 sm:$0xf] %vm555, %v554
    %s557 = scalar_lea.vmem %s0, 1
    %v558 = vld [vmem:[%s557] sm:$0x1]
    %s559 = scalar_lea.vmem %s0, 32
    %v560 = vld [vmem:[%s559] sm:$0x2]
    %vm561 = vcmask 1041409
    %v562 = vsel %vm561, %v560, %v558
    %s563 = scalar_lea.vmem %s0, 63
    %v564 = vld [vmem:[%s563] sm:$0x4]
    %vm565 = vcmask 1042434
    %v566 = vsel %vm565, %v564, %v562
    %s567 = scalar_lea.vmem %s0, 94
    %v568 = vld [vmem:[%s567] sm:$0x8]
    %vm569 = vcmask 1043459
    %v570 = vsel %vm569, %v568, %v566
    %571 = vrot.lane.b32.xlu0 %v570, 4
    %v572 = vpop.permute.xlu0 %571
    %vm573 = vcmask 64544
    %574 = vst.msk [vmem:[#allocation0] ss:$8 sm:$0xf] %vm573, %v572
    %s576 = sshllo.u32 0, 1
    %v578 = vld [vmem:[#allocation0] sm:%s576]
    %s579 = sshllo.u32 0, 1
    %580 = vst [vmem:[%s1] sm:%s579] %v578
    %s581 = scalar_lea.vmem [#allocation0], 8
    %v582 = vld [vmem:[%s581] sm:%s576]
    %s583 = sshllo.u32 0, 1
    %s584 = scalar_lea.vmem %s1, 1
    %585 = vst [vmem:[%s584] sm:%s583] %v582
    %s586 = scalar_lea.vmem [#allocation0], 16
    %v587 = vld [vmem:[%s586] sm:%s576]
    %s588 = sshllo.u32 0, 1
    %s589 = smul.addr 1, 2
    %s590 = scalar_lea.vmem %s1, %s589
    %591 = vst [vmem:[%s590] sm:%s588] %v587
    %s592 = scalar_lea.vmem [#allocation0], 24
    %v593 = vld [vmem:[%s592] sm:%s576]
    %s594 = sshllo.u32 0, 1
    %s595 = smul.addr 1, 3
    %s596 = scalar_lea.vmem %s1, %s595
    %597 = vst [vmem:[%s596] sm:%s594] %v593

// kernel: dcgan_generator_forward.20
$region0: #{dcgan_generator_forward.20}
  #allocation0 [shape = 'u32[]', space=smem, size = 0x4, offset = 0x4, fixed_abs, tag = 'smem constant byte address 0x4 - core index']
  #allocation1 [shape = 'u32[144,128]{1,0:T(1,128)}', space=vmem, size = 0x12000, scoped, tag = 'internal scratch']
  %s0 = inlined_call_operand.vmem [shape: bf16[64,512], index: 0, kind: input, shape index: {}]
  %s1 = inlined_call_operand.vmem [shape: f32[1,512], index: 1, kind: input, shape index: {}]
  %s2 = inlined_call_operand.vmem [shape: f32[1,512], index: 2, kind: input, shape index: {}]
  %s3 = inlined_call_operand.vmem [shape: bf16[64,512], index: 3, kind: output, shape index: {}]
  %s4 = sld [smem:[#allocation0]]
  $region22: #{dcgan_generator_forward.20} parent=0
    _
  %s6 = ssub.s32 1, %s4
  %s7 = scalar_select 0, %s6, %s4
  // Predicated region
  $region2: #{dcgan_generator_forward.20} parent=0 // pred_check
    _
  $region3: #{dcgan_generator_forward.20} parent=0 // pred_check_branch
    %9 = sbr.rel (0) target = $region5
  $region4: #{dcgan_generator_forward.20} parent=0 // pred_region
    _
  $region5: #{dcgan_generator_forward.20} parent=0 // pred_fallthru
    _
  // Predicated region
  $region6: #{dcgan_generator_forward.20} parent=0 // pred_check
    _
  $region7: #{dcgan_generator_forward.20} parent=0 // pred_check_branch
    %11 = sbr.rel (0) target = $region9
  $region8: #{dcgan_generator_forward.20} parent=0 // pred_region
    _
  $region9: #{dcgan_generator_forward.20} parent=0 // pred_fallthru
    _
  // Predicated region
  $region10: #{dcgan_generator_forward.20} parent=0 // pred_check
    _
  $region11: #{dcgan_generator_forward.20} parent=0 // pred_check_branch
    %13 = sbr.rel (0) target = $region13
  $region12: #{dcgan_generator_forward.20} parent=0 // pred_region
    _
  $region13: #{dcgan_generator_forward.20} parent=0 // pred_fallthru
    _
  %v14 = vld [vmem:[%s0] sm:$0xff]
  %v15 = vld [vmem:[%s0 + $0x8] sm:$0xff]
  %v16 = vld [vmem:[%s0 + $0x10] sm:$0xff]
  %v17 = vld [vmem:[%s0 + $0x18] sm:$0xff]
  %v18 = vld [vmem:[%s0 + $0x20] sm:$0xff]
  %v19 = vld [vmem:[%s0 + $0x28] sm:$0xff]
  %v20 = vld [vmem:[%s0 + $0x30] sm:$0xff]
  %v21 = vld [vmem:[%s0 + $0x38] sm:$0xff]
  %v22 = vld [vmem:[%s0 + $0x40] sm:$0xff]
  %v23 = vld [vmem:[%s0 + $0x48] sm:$0xff]
  %v24 = vld [vmem:[%s0 + $0x50] sm:$0xff]
  %v25 = vld [vmem:[%s0 + $0x58] sm:$0xff]
  %v26 = vld [vmem:[%s0 + $0x60] sm:$0xff]
  %v27 = vld [vmem:[%s0 + $0x68] sm:$0xff]
  %v28 = vld [vmem:[%s0 + $0x70] sm:$0xff]
  %v29 = vld [vmem:[%s0 + $0x78] sm:$0xff]
  %v30 = vunpack.c.l.bf16 %v14
  %v31 = vunpack.c.h.bf16 %v14
  %v32 = vunpack.c.l.bf16 %v15
  %v33 = vunpack.c.h.bf16 %v15
  %v34 = vunpack.c.l.bf16 %v16
  %v35 = vunpack.c.h.bf16 %v16
  %v36 = vunpack.c.l.bf16 %v17
  %v37 = vunpack.c.h.bf16 %v17
  %v38 = vunpack.c.l.bf16 %v18
  %v39 = vunpack.c.h.bf16 %v18
  %v40 = vunpack.c.l.bf16 %v19
  %v41 = vunpack.c.h.bf16 %v19
  %v42 = vunpack.c.l.bf16 %v20
  %v43 = vunpack.c.h.bf16 %v20
  %v44 = vunpack.c.l.bf16 %v21
  %v45 = vunpack.c.h.bf16 %v21
  %v46 = vunpack.c.l.bf16 %v22
  %v47 = vunpack.c.h.bf16 %v22
  %v48 = vunpack.c.l.bf16 %v23
  %v49 = vunpack.c.h.bf16 %v23
  %v50 = vunpack.c.l.bf16 %v24
  %v51 = vunpack.c.h.bf16 %v24
  %v52 = vunpack.c.l.bf16 %v25
  %v53 = vunpack.c.h.bf16 %v25
  %v54 = vunpack.c.l.bf16 %v26
  %v55 = vunpack.c.h.bf16 %v26
  %v56 = vunpack.c.l.bf16 %v27
  %v57 = vunpack.c.h.bf16 %v27
  %v58 = vunpack.c.l.bf16 %v28
  %v59 = vunpack.c.h.bf16 %v28
  %v60 = vunpack.c.l.bf16 %v29
  %v61 = vunpack.c.h.bf16 %v29
  %v62 = vld [vmem:[%s1] sm:$0xf]
  %v64 = vlaneseq
  %v65 = vshrl.u32 %v64, 7
  %v66 = vsub.s32 0, %v65
  %v67 = vrot.slane %v62, %v66
  %v68 = vlaneseq
  %v69 = vshrl.u32 %v68, 7
  %v70 = vsub.s32 1, %v69
  %v71 = vrot.slane %v62, %v70
  %v72 = vlaneseq
  %v73 = vshrl.u32 %v72, 7
  %v74 = vsub.s32 2, %v73
  %v75 = vrot.slane %v62, %v74
  %v76 = vlaneseq
  %v77 = vshrl.u32 %v76, 7
  %v78 = vsub.s32 3, %v77
  %v79 = vrot.slane %v62, %v78
  %v84 = vmul.f32 %v30, %v67
  %v85 = vmul.f32 %v31, %v71
  %v86 = vmul.f32 %v32, %v75
  %v87 = vmul.f32 %v33, %v79
  %v88 = vmul.f32 %v34, %v67
  %v89 = vmul.f32 %v35, %v71
  %v90 = vmul.f32 %v36, %v75
  %v91 = vmul.f32 %v37, %v79
  %v92 = vmul.f32 %v38, %v67
  %v93 = vmul.f32 %v39, %v71
  %v94 = vmul.f32 %v40, %v75
  %v95 = vmul.f32 %v41, %v79
  %v96 = vmul.f32 %v42, %v67
  %v97 = vmul.f32 %v43, %v71
  %v98 = vmul.f32 %v44, %v75
  %v99 = vmul.f32 %v45, %v79
  %v100 = vmul.f32 %v46, %v67
  %v101 = vmul.f32 %v47, %v71
  %v102 = vmul.f32 %v48, %v75
  %v103 = vmul.f32 %v49, %v79
  %v104 = vmul.f32 %v50, %v67
  %v105 = vmul.f32 %v51, %v71
  %v106 = vmul.f32 %v52, %v75
  %v107 = vmul.f32 %v53, %v79
  %v108 = vmul.f32 %v54, %v67
  %v109 = vmul.f32 %v55, %v71
  %v110 = vmul.f32 %v56, %v75
  %v111 = vmul.f32 %v57, %v79
  %v112 = vmul.f32 %v58, %v67
  %v113 = vmul.f32 %v59, %v71
  %v114 = vmul.f32 %v60, %v75
  %v115 = vmul.f32 %v61, %v79
  %v116 = vld [vmem:[%s2] sm:$0xf]
  %v118 = vlaneseq
  %v119 = vshrl.u32 %v118, 7
  %v120 = vsub.s32 0, %v119
  %v121 = vrot.slane %v116, %v120
  %v122 = vlaneseq
  %v123 = vshrl.u32 %v122, 7
  %v124 = vsub.s32 1, %v123
  %v125 = vrot.slane %v116, %v124
  %v126 = vlaneseq
  %v127 = vshrl.u32 %v126, 7
  %v128 = vsub.s32 2, %v127
  %v129 = vrot.slane %v116, %v128
  %v130 = vlaneseq
  %v131 = vshrl.u32 %v130, 7
  %v132 = vsub.s32 3, %v131
  %v133 = vrot.slane %v116, %v132
  %v138 = vadd.f32 %v84, %v121
  %v139 = vadd.f32 %v85, %v125
  %v140 = vadd.f32 %v86, %v129
  %v141 = vadd.f32 %v87, %v133
  %v142 = vadd.f32 %v88, %v121
  %v143 = vadd.f32 %v89, %v125
  %v144 = vadd.f32 %v90, %v129
  %v145 = vadd.f32 %v91, %v133
  %v146 = vadd.f32 %v92, %v121
  %v147 = vadd.f32 %v93, %v125
  %v148 = vadd.f32 %v94, %v129
  %v149 = vadd.f32 %v95, %v133
  %v150 = vadd.f32 %v96, %v121
  %v151 = vadd.f32 %v97, %v125
  %v152 = vadd.f32 %v98, %v129
  %v153 = vadd.f32 %v99, %v133
  %v154 = vadd.f32 %v100, %v121
  %v155 = vadd.f32 %v101, %v125
  %v156 = vadd.f32 %v102, %v129
  %v157 = vadd.f32 %v103, %v133
  %v158 = vadd.f32 %v104, %v121
  %v159 = vadd.f32 %v105, %v125
  %v160 = vadd.f32 %v106, %v129
  %v161 = vadd.f32 %v107, %v133
  %v162 = vadd.f32 %v108, %v121
  %v163 = vadd.f32 %v109, %v125
  %v164 = vadd.f32 %v110, %v129
  %v165 = vadd.f32 %v111, %v133
  %v166 = vadd.f32 %v112, %v121
  %v167 = vadd.f32 %v113, %v125
  %v168 = vadd.f32 %v114, %v129
  %v169 = vadd.f32 %v115, %v133
  %v170 = vmax.f32 %v138, 0.0
  %v171 = vmax.f32 %v139, 0.0
  %v172 = vmax.f32 %v140, 0.0
  %v173 = vmax.f32 %v141, 0.0
  %v174 = vmax.f32 %v142, 0.0
  %v175 = vmax.f32 %v143, 0.0
  %v176 = vmax.f32 %v144, 0.0
  %v177 = vmax.f32 %v145, 0.0
  %v178 = vmax.f32 %v146, 0.0
  %v179 = vmax.f32 %v147, 0.0
  %v180 = vmax.f32 %v148, 0.0
  %v181 = vmax.f32 %v149, 0.0
  %v182 = vmax.f32 %v150, 0.0
  %v183 = vmax.f32 %v151, 0.0
  %v184 = vmax.f32 %v152, 0.0
  %v185 = vmax.f32 %v153, 0.0
  %v186 = vmax.f32 %v154, 0.0
  %v187 = vmax.f32 %v155, 0.0
  %v188 = vmax.f32 %v156, 0.0
  %v189 = vmax.f32 %v157, 0.0
  %v190 = vmax.f32 %v158, 0.0
  %v191 = vmax.f32 %v159, 0.0
  %v192 = vmax.f32 %v160, 0.0
  %v193 = vmax.f32 %v161, 0.0
  %v194 = vmax.f32 %v162, 0.0
  %v195 = vmax.f32 %v163, 0.0
  %v196 = vmax.f32 %v164, 0.0
  %v197 = vmax.f32 %v165, 0.0
  %v198 = vmax.f32 %v166, 0.0
  %v199 = vmax.f32 %v167, 0.0
  %v200 = vmax.f32 %v168, 0.0
  %v201 = vmax.f32 %v169, 0.0
  %v202 = vpack.c.bf16 %v174, %v170
  %v203 = vpack.c.bf16 %v175, %v171
  %v204 = vpack.c.bf16 %v176, %v172
  %v205 = vpack.c.bf16 %v177, %v173
  %v206 = vpack.c.bf16 %v182, %v178
  %v207 = vpack.c.bf16 %v183, %v179
  %v208 = vpack.c.bf16 %v184, %v180
  %v209 = vpack.c.bf16 %v185, %v181
  %v210 = vpack.c.bf16 %v190, %v186
  %v211 = vpack.c.bf16 %v191, %v187
  %v212 = vpack.c.bf16 %v192, %v188
  %v213 = vpack.c.bf16 %v193, %v189
  %v214 = vpack.c.bf16 %v198, %v194
  %v215 = vpack.c.bf16 %v199, %v195
  %v216 = vpack.c.bf16 %v200, %v196
  %v217 = vpack.c.bf16 %v201, %v197
  %v234 = vunpack.c.l.b16 %v202
  %v235 = vunpack.c.l.b16 %v203
  %v236 = vunpack.c.l.b16 %v204
  %v237 = vunpack.c.l.b16 %v205
  %v238 = vunpack.c.h.b16 %v202
  %v239 = vunpack.c.h.b16 %v203
  %v240 = vunpack.c.h.b16 %v204
  %v241 = vunpack.c.h.b16 %v205
  %v242 = vunpack.c.l.b16 %v206
  %v243 = vunpack.c.l.b16 %v207
  %v244 = vunpack.c.l.b16 %v208
  %v245 = vunpack.c.l.b16 %v209
  %v246 = vunpack.c.h.b16 %v206
  %v247 = vunpack.c.h.b16 %v207
  %v248 = vunpack.c.h.b16 %v208
  %v249 = vunpack.c.h.b16 %v209
  %v250 = vunpack.c.l.b16 %v210
  %v251 = vunpack.c.l.b16 %v211
  %v252 = vunpack.c.l.b16 %v212
  %v253 = vunpack.c.l.b16 %v213
  %v254 = vunpack.c.h.b16 %v210
  %v255 = vunpack.c.h.b16 %v211
  %v256 = vunpack.c.h.b16 %v212
  %v257 = vunpack.c.h.b16 %v213
  %v258 = vunpack.c.l.b16 %v214
  %v259 = vunpack.c.l.b16 %v215
  %v260 = vunpack.c.l.b16 %v216
  %v261 = vunpack.c.l.b16 %v217
  %v262 = vunpack.c.h.b16 %v214
  %v263 = vunpack.c.h.b16 %v215
  %v264 = vunpack.c.h.b16 %v216
  %v265 = vunpack.c.h.b16 %v217
  %v266 = vpack.c.b16 %v235, %v234
  %v267 = vpack.c.b16 %v237, %v236
  %v268 = vpack.c.b16 %v239, %v238
  %v269 = vpack.c.b16 %v241, %v240
  %v270 = vpack.c.b16 %v243, %v242
  %v271 = vpack.c.b16 %v245, %v244
  %v272 = vpack.c.b16 %v247, %v246
  %v273 = vpack.c.b16 %v249, %v248
  %v274 = vpack.c.b16 %v251, %v250
  %v275 = vpack.c.b16 %v253, %v252
  %v276 = vpack.c.b16 %v255, %v254
  %v277 = vpack.c.b16 %v257, %v256
  %v278 = vpack.c.b16 %v259, %v258
  %v279 = vpack.c.b16 %v261, %v260
  %v280 = vpack.c.b16 %v263, %v262
  %v281 = vpack.c.b16 %v265, %v264
  %298 = vst [vmem:[%s3] sm:$0xff] %v266
  %299 = vst [vmem:[%s3 + $0x8] sm:$0xff] %v267
  %300 = vst [vmem:[%s3 + $0x10] sm:$0xff] %v268
  %301 = vst [vmem:[%s3 + $0x18] sm:$0xff] %v269
  %302 = vst [vmem:[%s3 + $0x20] sm:$0xff] %v270
  %303 = vst [vmem:[%s3 + $0x28] sm:$0xff] %v271
  %304 = vst [vmem:[%s3 + $0x30] sm:$0xff] %v272
  %305 = vst [vmem:[%s3 + $0x38] sm:$0xff] %v273
  %306 = vst [vmem:[%s3 + $0x40] sm:$0xff] %v274
  %307 = vst [vmem:[%s3 + $0x48] sm:$0xff] %v275
  %308 = vst [vmem:[%s3 + $0x50] sm:$0xff] %v276
  %309 = vst [vmem:[%s3 + $0x58] sm:$0xff] %v277
  %310 = vst [vmem:[%s3 + $0x60] sm:$0xff] %v278
  %311 = vst [vmem:[%s3 + $0x68] sm:$0xff] %v279
  %312 = vst [vmem:[%s3 + $0x70] sm:$0xff] %v280
  %313 = vst [vmem:[%s3 + $0x78] sm:$0xff] %v281
  // Predicated region
  $region14: #{dcgan_generator_forward.20} parent=0 // pred_check
    _
  $region15: #{dcgan_generator_forward.20} parent=0 // pred_check_branch
    %315 = sbr.rel (0) target = $region17
  $region16: #{dcgan_generator_forward.20} parent=0 // pred_region
    _
  $region17: #{dcgan_generator_forward.20} parent=0 // pred_fallthru
    _
  // Predicated region
  $region18: #{dcgan_generator_forward.20} parent=0 // pred_check
    _
  $region19: #{dcgan_generator_forward.20} parent=0 // pred_check_branch
    %317 = sbr.rel (0) target = $region21
  $region20: #{dcgan_generator_forward.20} parent=0 // pred_region
    _
  $region21: #{dcgan_generator_forward.20} parent=0 // pred_fallthru
    _

// kernel: dcgan_generator_forward.21
$region0: #{dcgan_generator_forward.21}
  #allocation0 [shape = 'u32[]', space=smem, size = 0x4, offset = 0x4, fixed_abs, tag = 'smem constant byte address 0x4 - core index']
  #allocation1 [shape = 'u32[144,128]{1,0:T(1,128)}', space=vmem, size = 0x12000, scoped, tag = 'internal scratch']
  %s0 = inlined_call_operand.vmem [shape: bf16[2,66,66,4], index: 0, kind: input, shape index: {}, may-alias: {0,1,2}]
  %s1 = inlined_call_operand.vmem [shape: bf16[2,66,66,4], index: 1, kind: input, shape index: {}, may-alias: {0,1,2}]
  %s2 = inlined_call_operand.vmem [shape: bf16[2,66,66,4], index: 2, kind: input, shape index: {}, may-alias: {0,1,2}]
  %s3 = inlined_call_operand.vmem [shape: bf16[4,16,3], index: 3, kind: input, shape index: {}]
  %s4 = inlined_call_operand.vmem [shape: bf16[2,64,64,12], index: 4, kind: output, shape index: {}]
  %s5 = sld [smem:[#allocation0]]
  $region49: #{dcgan_generator_forward.21} parent=0
    _
  %s7 = ssub.s32 1, %s5
  %s8 = scalar_select 0, %s7, %s5
  loop: start=0, step=1, limit=130
  $region2: #{dcgan_generator_forward.21} parent=0 // loop_pre_header
    _
  $region3: #{dcgan_generator_forward.21} parent=0 // loop_header
    %s10 = sphi 0, %s14
    %p11 = scmp.ge.s32.totalorder %s10, 130
    %s17 = sphi 0, %s29
    %s18 = sphi 0, %s25
    %s19 = sphi 0, %s17
    %s20 = sphi 0, %s18
    %s21 = sphi 0, %s19
    %s22 = sphi 0, %s20
    %s34 = sphi 0, %s36
    %s37 = sphi 0, %s34
    %s38 = sphi 0, %s37
    %s54 = sphi 0, %s38
    %s64 = sphi 0, %s66
    %s67 = sphi 0, %s64
    %s68 = sphi 0, %s67
    %s84 = sphi 0, %s68
    %s94 = sphi 0, %s96
    %s97 = sphi 0, %s94
    %s98 = sphi 0, %s97
    %s114 = sphi 0, %s98
    %s118 = sphi 0, %s118
    %s120 = sphi 0, %s118
    %s121 = sphi 0, %s120
    %s135 = sphi 0, %s121
    %s143 = sphi 0, %s145
    %s146 = sphi 0, %s143
    %s147 = sphi 0, %s146
    %s163 = sphi 0, %s147
  $region4: #{dcgan_generator_forward.21} parent=0 // loop_header_branch
    %13 = sbr.rel (%p11) target = $region8
  $region5: #{dcgan_generator_forward.21} parent=0 // loop_body
    %s15 = ssub.s32 %s10, 1
    %s16 = ssub.s32 %s10, 2
    %s23 = sadd.s32 1, %s18
    %p24 = scmp.ge.s32.totalorder %s23, 64
    %s25 = scalar_select %p24, 0, %s23
    %s26 = sadd.s32 1, %s17
    %s27 = scalar_select %p24, %s26, %s17
    %p28 = scmp.ge.s32.totalorder %s27, 2
    %s29 = scalar_select %p28, 0, %s27
    %s30 = ssub.s32 %s17, %s29
    %s31 = ssub.s32 %s18, %s25
    %s32 = sor.u32 %s30, %s31
    %p33 = scmp.eq.s32.totalorder %s32, 0
    %s35 = sadd.s32 %s34, 1
    %s36 = scalar_select %p33, %s34, %s35
    %p39 = pneg %p33
    %p40 = scmp.eq.s32.totalorder %s10, 127
    %p41 = por %p39, %p40
    %p42 = scmp.ne.s32.totalorder %s34, %s37
    %p43 = scmp.eq.s32.totalorder %s10, 0
    %p44 = por %p42, %p43
    %p45 = scmp.ne.s32.totalorder %s34, %s37
    %p46 = scmp.eq.s32.totalorder %s15, 127
    %p47 = por %p45, %p46
    %p48 = scmp.ne.s32.totalorder %s37, %s38
    %p49 = scmp.eq.s32.totalorder %s15, 0
    %p50 = por %p48, %p49
    %p51 = scmp.ne.s32.totalorder %s37, %s38
    %p52 = scmp.eq.s32.totalorder %s16, 127
    %p53 = por %p51, %p52
    %p55 = scmp.ne.s32.totalorder %s38, %s54
    %p56 = scmp.eq.s32.totalorder %s16, 0
    %p57 = por %p55, %p56
    %s58 = sadd.s32 %s18, 1
    %s59 = sadd.s32 %s25, 1
    %s60 = ssub.s32 %s17, %s29
    %s61 = ssub.s32 %s58, %s59
    %s62 = sor.u32 %s60, %s61
    %p63 = scmp.eq.s32.totalorder %s62, 0
    %s65 = sadd.s32 %s64, 1
    %s66 = scalar_select %p63, %s64, %s65
    %p69 = pneg %p63
    %p70 = scmp.eq.s32.totalorder %s10, 127
    %p71 = por %p69, %p70
    %p72 = scmp.ne.s32.totalorder %s64, %s67
    %p73 = scmp.eq.s32.totalorder %s10, 0
    %p74 = por %p72, %p73
    %p75 = scmp.ne.s32.totalorder %s64, %s67
    %p76 = scmp.eq.s32.totalorder %s15, 127
    %p77 = por %p75, %p76
    %p78 = scmp.ne.s32.totalorder %s67, %s68
    %p79 = scmp.eq.s32.totalorder %s15, 0
    %p80 = por %p78, %p79
    %p81 = scmp.ne.s32.totalorder %s67, %s68
    %p82 = scmp.eq.s32.totalorder %s16, 127
    %p83 = por %p81, %p82
    %p85 = scmp.ne.s32.totalorder %s68, %s84
    %p86 = scmp.eq.s32.totalorder %s16, 0
    %p87 = por %p85, %p86
    %s88 = sadd.s32 %s18, 2
    %s89 = sadd.s32 %s25, 2
    %s90 = ssub.s32 %s17, %s29
    %s91 = ssub.s32 %s88, %s89
    %s92 = sor.u32 %s90, %s91
    %p93 = scmp.eq.s32.totalorder %s92, 0
    %s95 = sadd.s32 %s94, 1
    %s96 = scalar_select %p93, %s94, %s95
    %p99 = pneg %p93
    %p100 = scmp.eq.s32.totalorder %s10, 127
    %p101 = por %p99, %p100
    %p102 = scmp.ne.s32.totalorder %s94, %s97
    %p103 = scmp.eq.s32.totalorder %s10, 0
    %p104 = por %p102, %p103
    %p105 = scmp.ne.s32.totalorder %s94, %s97
    %p106 = scmp.eq.s32.totalorder %s15, 127
    %p107 = por %p105, %p106
    %p108 = scmp.ne.s32.totalorder %s97, %s98
    %p109 = scmp.eq.s32.totalorder %s15, 0
    %p110 = por %p108, %p109
    %p111 = scmp.ne.s32.totalorder %s97, %s98
    %p112 = scmp.eq.s32.totalorder %s16, 127
    %p113 = por %p111, %p112
    %p115 = scmp.ne.s32.totalorder %s98, %s114
    %p116 = scmp.eq.s32.totalorder %s16, 0
    %p117 = por %p115, %p116
    %s119 = sadd.s32 %s118, 1
    %p122 = scmp.eq.s32.totalorder %s10, 127
    %p123 = scmp.ne.s32.totalorder %s118, %s120
    %p124 = scmp.eq.s32.totalorder %s10, 0
    %p125 = por %p123, %p124
    %p126 = scmp.ne.s32.totalorder %s118, %s120
    %p127 = scmp.eq.s32.totalorder %s15, 127
    %p128 = por %p126, %p127
    %p129 = scmp.ne.s32.totalorder %s120, %s121
    %p130 = scmp.eq.s32.totalorder %s15, 0
    %p131 = por %p129, %p130
    %p132 = scmp.ne.s32.totalorder %s120, %s121
    %p133 = scmp.eq.s32.totalorder %s16, 127
    %p134 = por %p132, %p133
    %p136 = scmp.ne.s32.totalorder %s121, %s135
    %p137 = scmp.eq.s32.totalorder %s16, 0
    %p138 = por %p136, %p137
    %s139 = ssub.s32 %s17, %s29
    %s140 = ssub.s32 %s18, %s25
    %s141 = sor.u32 %s139, %s140
    %p142 = scmp.eq.s32.totalorder %s141, 0
    %s144 = sadd.s32 %s143, 1
    %s145 = scalar_select %p142, %s143, %s144
    %p148 = pneg %p142
    %p149 = scmp.eq.s32.totalorder %s10, 127
    %p150 = por %p148, %p149
    %p151 = scmp.ne.s32.totalorder %s143, %s146
    %p152 = scmp.eq.s32.totalorder %s10, 0
    %p153 = por %p151, %p152
    %p154 = scmp.ne.s32.totalorder %s143, %s146
    %p155 = scmp.eq.s32.totalorder %s15, 127
    %p156 = por %p154, %p155
    %p157 = scmp.ne.s32.totalorder %s146, %s147
    %p158 = scmp.eq.s32.totalorder %s15, 0
    %p159 = por %p157, %p158
    %p160 = scmp.ne.s32.totalorder %s146, %s147
    %p161 = scmp.eq.s32.totalorder %s16, 127
    %p162 = por %p160, %p161
    %p164 = scmp.ne.s32.totalorder %s147, %s163
    %p165 = scmp.eq.s32.totalorder %s16, 0
    %p166 = por %p164, %p165
    %p167 = scmp.le.s32.totalorder 1, %s10
    %p168 = scmp.lt.s32.totalorder %s10, 129
    %p169 = pnand %p167, %p168
    %p170 = pneg %p169
    // Predicated region
    $region9: #{dcgan_generator_forward.21} parent=5 // pred_check
      _
    $region10: #{dcgan_generator_forward.21} parent=5 // pred_check_branch
      %172 = sbr.rel (%p169) target = $region12
    $region11: #{dcgan_generator_forward.21} parent=5 // pred_region
      %s173 = ssub.s32 %s10, 1
      // Predicated region
      $region13: #{dcgan_generator_forward.21} parent=11 // pred_check
        %p174 = pneg %p131
      $region14: #{dcgan_generator_forward.21} parent=11 // pred_check_branch
        %176 = sbr.rel (%p174) target = $region16
      $region15: #{dcgan_generator_forward.21} parent=11 // pred_region
        _
      $region16: #{dcgan_generator_forward.21} parent=11 // pred_fallthru
        _
    $region12: #{dcgan_generator_forward.21} parent=5 // pred_fallthru
      _
    %p177 = scmp.lt.s32.totalorder %s10, 128
    // Predicated region
    $region17: #{dcgan_generator_forward.21} parent=5 // pred_check
      %p178 = pneg %p177
    $region18: #{dcgan_generator_forward.21} parent=5 // pred_check_branch
      %180 = sbr.rel (%p178) target = $region20
    $region19: #{dcgan_generator_forward.21} parent=5 // pred_region
      // Predicated region
      $region21: #{dcgan_generator_forward.21} parent=19 // pred_check
        %p181 = pneg %p44
      $region22: #{dcgan_generator_forward.21} parent=19 // pred_check_branch
        %183 = sbr.rel (%p181) target = $region24
      $region23: #{dcgan_generator_forward.21} parent=19 // pred_region
        %p184 = scmp.lt.s32.totalorder %s17, 1
        %s185 = scalar_select %p184, %s17, 1
        %p186 = scmp.lt.s32.totalorder %s18, 65
        %s187 = scalar_select %p186, %s18, 65
        %s188 = smul.addr %s187, 9
        %s189 = smul.addr %s185, 594
        %s190 = sadd.s32 %s188, %s189
        %s191 = smul.addr %s190, 4
        %s192 = scalar_lea.vmem %s0, %s191
      $region24: #{dcgan_generator_forward.21} parent=19 // pred_fallthru
        _
      // Predicated region
      $region25: #{dcgan_generator_forward.21} parent=19 // pred_check
        %p193 = pneg %p74
      $region26: #{dcgan_generator_forward.21} parent=19 // pred_check_branch
        %195 = sbr.rel (%p193) target = $region28
      $region27: #{dcgan_generator_forward.21} parent=19 // pred_region
        %s196 = sadd.s32 %s18, 1
        %p197 = scmp.lt.s32.totalorder %s17, 1
        %s198 = scalar_select %p197, %s17, 1
        %p199 = scmp.lt.s32.totalorder %s196, 65
        %s200 = scalar_select %p199, %s196, 65
        %s201 = smul.addr %s200, 9
        %s202 = smul.addr %s198, 594
        %s203 = sadd.s32 %s201, %s202
        %s204 = smul.addr %s203, 4
        %s205 = scalar_lea.vmem %s1, %s204
        %s206 = sadd.s32 %s18, 1
      $region28: #{dcgan_generator_forward.21} parent=19 // pred_fallthru
        _
      // Predicated region
      $region29: #{dcgan_generator_forward.21} parent=19 // pred_check
        %p207 = pneg %p104
      $region30: #{dcgan_generator_forward.21} parent=19 // pred_check_branch
        %209 = sbr.rel (%p207) target = $region32
      $region31: #{dcgan_generator_forward.21} parent=19 // pred_region
        %s210 = sadd.s32 %s18, 2
        %p211 = scmp.lt.s32.totalorder %s17, 1
        %s212 = scalar_select %p211, %s17, 1
        %p213 = scmp.lt.s32.totalorder %s210, 65
        %s214 = scalar_select %p213, %s210, 65
        %s215 = smul.addr %s214, 9
        %s216 = smul.addr %s212, 594
        %s217 = sadd.s32 %s215, %s216
        %s218 = smul.addr %s217, 4
        %s219 = scalar_lea.vmem %s2, %s218
        %s220 = sadd.s32 %s18, 2
      $region32: #{dcgan_generator_forward.21} parent=19 // pred_fallthru
        _
    $region20: #{dcgan_generator_forward.21} parent=5 // pred_fallthru
      _
    %p221 = scmp.le.s32.totalorder 1, %s10
    %p222 = scmp.lt.s32.totalorder %s10, 129
    %p223 = pnand %p221, %p222
    %p224 = pneg %p223
    // Predicated region
    $region33: #{dcgan_generator_forward.21} parent=5 // pred_check
      _
    $region34: #{dcgan_generator_forward.21} parent=5 // pred_check_branch
      %226 = sbr.rel (%p223) target = $region36
    $region35: #{dcgan_generator_forward.21} parent=5 // pred_region
      %s227 = ssub.s32 %s10, 1
      %p228 = scmp.lt.s32.totalorder %s19, 1
      %s229 = scalar_select %p228, %s19, 1
      %p230 = scmp.lt.s32.totalorder %s20, 65
      %s231 = scalar_select %p230, %s20, 65
      %s232 = smul.addr %s231, 9
      %s233 = smul.addr %s229, 594
      %s234 = sadd.s32 %s232, %s233
      %s235 = smul.addr %s234, 4
      %s236 = scalar_lea.vmem %s0, %s235
      %p237 = pneg %p50
      %p238 = pneg %p47
      %s239 = sadd.s32 %s20, 1
      %p240 = scmp.lt.s32.totalorder %s19, 1
      %s241 = scalar_select %p240, %s19, 1
      %p242 = scmp.lt.s32.totalorder %s239, 65
      %s243 = scalar_select %p242, %s239, 65
      %s244 = smul.addr %s243, 9
      %s245 = smul.addr %s241, 594
      %s246 = sadd.s32 %s244, %s245
      %s247 = smul.addr %s246, 4
      %s248 = scalar_lea.vmem %s1, %s247
      %p249 = pneg %p80
      %p250 = pneg %p77
      %s251 = sadd.s32 %s20, 2
      %p252 = scmp.lt.s32.totalorder %s19, 1
      %s253 = scalar_select %p252, %s19, 1
      %p254 = scmp.lt.s32.totalorder %s251, 65
      %s255 = scalar_select %p254, %s251, 65
      %s256 = smul.addr %s255, 9
      %s257 = smul.addr %s253, 594
      %s258 = sadd.s32 %s256, %s257
      %s259 = smul.addr %s258, 4
      %s260 = scalar_lea.vmem %s2, %s259
      %p261 = pneg %p110
      %p262 = pneg %p107
      %p263 = pneg %p131
      %p264 = pneg %p128
      %p265 = pneg %p159
      %p266 = pneg %p156
      %p267 = scmp.lt.s32.totalorder %s19, 1
      %s268 = scalar_select %p267, %s19, 1
      %p269 = scmp.lt.s32.totalorder %s20, 63
      %s270 = scalar_select %p269, %s20, 63
      %s271 = smul.addr %s270, 8
      %s272 = smul.addr %s268, 512
      %s273 = sadd.s32 %s271, %s272
      %s274 = smul.addr %s273, 4
      %s275 = scalar_lea.vmem %s4, %s274
      %p276 = scmp.lt.s32.totalorder %s19, 1
      %s277 = scalar_select %p276, %s19, 1
      %p278 = scmp.lt.s32.totalorder %s20, 65
      %s279 = scalar_select %p278, %s20, 65
      %s280 = smul.addr %s279, 9
      %s281 = smul.addr %s277, 594
      %s282 = sadd.s32 %s280, %s281
      %s283 = smul.addr %s282, 4
      %s284 = scalar_lea.vmem %s0, %s283
      %s285 = sadd.s32 %s20, 1
      %p286 = scmp.lt.s32.totalorder %s19, 1
      %s287 = scalar_select %p286, %s19, 1
      %p288 = scmp.lt.s32.totalorder %s285, 65
      %s289 = scalar_select %p288, %s285, 65
      %s290 = smul.addr %s289, 9
      %s291 = smul.addr %s287, 594
      %s292 = sadd.s32 %s290, %s291
      %s293 = smul.addr %s292, 4
      %s294 = scalar_lea.vmem %s1, %s293
      %s295 = sadd.s32 %s20, 1
      %s296 = sadd.s32 %s20, 2
      %p297 = scmp.lt.s32.totalorder %s19, 1
      %s298 = scalar_select %p297, %s19, 1
      %p299 = scmp.lt.s32.totalorder %s296, 65
      %s300 = scalar_select %p299, %s296, 65
      %s301 = smul.addr %s300, 9
      %s302 = smul.addr %s298, 594
      %s303 = sadd.s32 %s301, %s302
      %s304 = smul.addr %s303, 4
      %s305 = scalar_lea.vmem %s2, %s304
      %s306 = sadd.s32 %s20, 2
      %p307 = scmp.lt.s32.totalorder %s19, 1
      %s308 = scalar_select %p307, %s19, 1
      %p309 = scmp.lt.s32.totalorder %s20, 63
      %s310 = scalar_select %p309, %s20, 63
      %s311 = smul.addr %s310, 8
      %s312 = smul.addr %s308, 512
      %s313 = sadd.s32 %s311, %s312
      %s314 = smul.addr %s313, 4
      %s315 = scalar_lea.vmem %s4, %s314
      %v317 = vld [vmem:[%s284] sm:$0xf]
      %v318 = vld [vmem:[%s284 + $0x4] sm:$0xf]
      %v319 = vld [vmem:[%s284 + $0x8] sm:$0xf]
      %v320 = vld [vmem:[%s284 + $0xc] sm:$0xf]
      %v321 = vld [vmem:[%s284 + $0x10] sm:$0xf]
      %v322 = vld [vmem:[%s284 + $0x14] sm:$0xf]
      %v323 = vld [vmem:[%s284 + $0x18] sm:$0xf]
      %v324 = vld [vmem:[%s284 + $0x1c] sm:$0xf]
      %v325 = vld [vmem:[%s284 + $0x20] sm:$0x1]
      %v326 = vld [vmem:[%s294] sm:$0xf]
      %v327 = vld [vmem:[%s294 + $0x4] sm:$0xf]
      %v328 = vld [vmem:[%s294 + $0x8] sm:$0xf]
      %v329 = vld [vmem:[%s294 + $0xc] sm:$0xf]
      %v330 = vld [vmem:[%s294 + $0x10] sm:$0xf]
      %v331 = vld [vmem:[%s294 + $0x14] sm:$0xf]
      %v332 = vld [vmem:[%s294 + $0x18] sm:$0xf]
      %v333 = vld [vmem:[%s294 + $0x1c] sm:$0xf]
      %v334 = vld [vmem:[%s294 + $0x20] sm:$0x1]
      %v335 = vld [vmem:[%s305] sm:$0xf]
      %v336 = vld [vmem:[%s305 + $0x4] sm:$0xf]
      %v337 = vld [vmem:[%s305 + $0x8] sm:$0xf]
      %v338 = vld [vmem:[%s305 + $0xc] sm:$0xf]
      %v339 = vld [vmem:[%s305 + $0x10] sm:$0xf]
      %v340 = vld [vmem:[%s305 + $0x14] sm:$0xf]
      %v341 = vld [vmem:[%s305 + $0x18] sm:$0xf]
      %v342 = vld [vmem:[%s305 + $0x1c] sm:$0xf]
      %v343 = vld [vmem:[%s305 + $0x20] sm:$0x1]
      %v352 = vunpack.c.l.b16 %v317
      %v353 = vunpack.c.l.b16 %v318
      %v354 = vunpack.c.l.b16 %v319
      %v355 = vunpack.c.l.b16 %v320
      %v356 = vunpack.c.l.b16 %v321
      %v357 = vunpack.c.l.b16 %v322
      %v358 = vunpack.c.l.b16 %v323
      %v359 = vunpack.c.l.b16 %v324
      %v360 = vpack.c.b16 %v353, %v352
      %v361 = vpack.c.b16 %v355, %v354
      %v362 = vpack.c.b16 %v357, %v356
      %v363 = vpack.c.b16 %v359, %v358
      %v365 = vunpack.c.l.b16 %v325
      %v366 = vpack.c.b16 %v365, %v365
      %vm367 = vsmask.f32 7424
      %v369 = vshrl.u32 %v360, 16
      %v371 = vshll.u32 %v360, 16
      %v373 = vrot.slane %v371, 1
      %v374 = vor.u32 %v369, %v373
      %v376 = vshll.u32 %v361, 16
      %v378 = vrot.slane %v376, 1
      %v379 = vsel %vm367, %v374, %v378
      %v380 = vshrl.u32 %v361, 16
      %v382 = vor.u32 %v380, %v378
      %v384 = vshll.u32 %v362, 16
      %v386 = vrot.slane %v384, 1
      %v387 = vsel %vm367, %v382, %v386
      %v388 = vshrl.u32 %v362, 16
      %v390 = vor.u32 %v388, %v386
      %v392 = vshll.u32 %v363, 16
      %v394 = vrot.slane %v392, 1
      %v395 = vsel %vm367, %v390, %v394
      %v396 = vshrl.u32 %v363, 16
      %v398 = vor.u32 %v396, %v394
      %v400 = vshll.u32 %v366, 16
      %v402 = vrot.slane %v400, 1
      %v403 = vsel %vm367, %v398, %v402
      %404 = vrot.lane.b32.xlu0 %v379, 4
      %v405 = vpop.permute.xlu0 %404
      %406 = vrot.lane.b32.xlu0 %v387, 4
      %v407 = vpop.permute.xlu0 %406
      %408 = vrot.lane.b32.xlu0 %v395, 4
      %v409 = vpop.permute.xlu0 %408
      %410 = vrot.lane.b32.xlu0 %v403, 4
      %v411 = vpop.permute.xlu0 %410
      %v420 = vunpack.c.l.b16 %v326
      %v421 = vunpack.c.l.b16 %v327
      %v422 = vunpack.c.l.b16 %v328
      %v423 = vunpack.c.l.b16 %v329
      %v424 = vunpack.c.l.b16 %v330
      %v425 = vunpack.c.l.b16 %v331
      %v426 = vunpack.c.l.b16 %v332
      %v427 = vunpack.c.l.b16 %v333
      %v428 = vpack.c.b16 %v421, %v420
      %v429 = vpack.c.b16 %v423, %v422
      %v430 = vpack.c.b16 %v425, %v424
      %v431 = vpack.c.b16 %v427, %v426
      %432 = vrot.lane.b32.xlu0 %v428, 8
      %v433 = vpop.permute.xlu0 %432
      %434 = vrot.lane.b32.xlu0 %v429, 8
      %v435 = vpop.permute.xlu0 %434
      %436 = vrot.lane.b32.xlu0 %v430, 8
      %v437 = vpop.permute.xlu0 %436
      %438 = vrot.lane.b32.xlu0 %v431, 8
      %v439 = vpop.permute.xlu0 %438
      %v441 = vunpack.c.l.b16 %v334
      %v442 = vpack.c.b16 %v441, %v441
      %v444 = vshrl.u32 %v428, 16
      %v446 = vshll.u32 %v428, 16
      %v448 = vrot.slane %v446, 1
      %v449 = vor.u32 %v444, %v448
      %v451 = vshll.u32 %v429, 16
      %v453 = vrot.slane %v451, 1
      %v454 = vsel %vm367, %v449, %v453
      %v455 = vshrl.u32 %v429, 16
      %v457 = vor.u32 %v455, %v453
      %v459 = vshll.u32 %v430, 16
      %v461 = vrot.slane %v459, 1
      %v462 = vsel %vm367, %v457, %v461
      %v463 = vshrl.u32 %v430, 16
      %v465 = vor.u32 %v463, %v461
      %v467 = vshll.u32 %v431, 16
      %v469 = vrot.slane %v467, 1
      %v470 = vsel %vm367, %v465, %v469
      %v471 = vshrl.u32 %v431, 16
      %v473 = vor.u32 %v471, %v469
      %v475 = vshll.u32 %v442, 16
      %v477 = vrot.slane %v475, 1
      %v478 = vsel %vm367, %v473, %v477
      %479 = vrot.lane.b32.xlu0 %v454, 12
      %v480 = vpop.permute.xlu0 %479
      %481 = vrot.lane.b32.xlu0 %v462, 12
      %v482 = vpop.permute.xlu0 %481
      %483 = vrot.lane.b32.xlu0 %v470, 12
      %v484 = vpop.permute.xlu0 %483
      %485 = vrot.lane.b32.xlu0 %v478, 12
      %v486 = vpop.permute.xlu0 %485
      %vm487 = vcmask 31744
      %v489 = vsel %vm487, %v360, %v405
      %v491 = vsel %vm487, %v361, %v407
      %v493 = vsel %vm487, %v362, %v409
      %v495 = vsel %vm487, %v363, %v411
      %vm496 = vcmask 64512
      %v498 = vsel %vm496, %v489, %v433
      %v500 = vsel %vm496, %v491, %v435
      %v502 = vsel %vm496, %v493, %v437
      %v504 = vsel %vm496, %v495, %v439
      %vm505 = vcmask 97280
      %v507 = vsel %vm505, %v498, %v480
      %v509 = vsel %vm505, %v500, %v482
      %v511 = vsel %vm505, %v502, %v484
      %v513 = vsel %vm505, %v504, %v486
      %v514 = vld [vmem:[%s3] sm:$0xf]
      %v515 = vld [vmem:[%s3 + $0x4] sm:$0xf]
      %v518 = vunpack.c.l.b16 %v514
      %v519 = vunpack.c.l.b16 %v515
      %v520 = vpack.c.b16 %v519, %v518
      %vm522 = vcmask 130048
      %v523 = vsel %vm522, %v507, 0
      %v525 = vsel %vm522, %v509, 0
      %v527 = vsel %vm522, %v511, 0
      %v529 = vsel %vm522, %v513, 0
      %531 = vmatprep.subr.bf16.mxu0 0
      %532 = vmatpush1.bf16.msra.mxu0 %v520
      %533 = vmatprep.subr.bf16.mxu0 0
      %534 = vmatpush1.bf16.msra.mxu0 0
      %535 = vmatprep.subr.bf16.mxu0 0
      %536 = vmatpush1.bf16.msra.mxu0 0
      %537 = vmatprep.subr.bf16.mxu0 0
      %538 = vmatpush1.bf16.msra.mxu0 0
      %539 = vmatprep.subr.bf16.mxu0 0
      %540 = vmatpush1.bf16.msra.mxu0 0
      %541 = vmatprep.subr.bf16.mxu0 0
      %542 = vmatpush1.bf16.msra.mxu0 0
      %543 = vmatprep.subr.bf16.mxu0 0
      %544 = vmatpush1.bf16.msra.mxu0 0
      %545 = vmatprep.subr.bf16.mxu0 0
      %546 = vmatpush1.bf16.msra.mxu0 0
      %547 = vmatprep.subr.bf16.mxu0 0
      %548 = vmatpush1.bf16.msra.mxu0 0
      %549 = vmatprep.subr.bf16.mxu0 0
      %550 = vmatpush1.bf16.msra.mxu0 0
      %551 = vmatprep.subr.bf16.mxu0 0
      %552 = vmatpush1.bf16.msra.mxu0 0
      %553 = vmatprep.subr.bf16.mxu0 0
      %554 = vmatpush1.bf16.msra.mxu0 0
      %555 = vmatprep.subr.bf16.mxu0 0
      %556 = vmatpush1.bf16.msra.mxu0 0
      %557 = vmatprep.subr.bf16.mxu0 0
      %558 = vmatpush1.bf16.msra.mxu0 0
      %559 = vmatprep.subr.bf16.mxu0 0
      %560 = vmatpush1.bf16.msra.mxu0 0
      %561 = vmatprep.subr.bf16.mxu0 0
      %562 = vmatpush1.bf16.msra.mxu0 0
      %563 = vmatprep.mubr.bf16.mxu0 0
      %564 = vmatmul.mubr.bf16.gmra.mrb[0].mxu0 %v523
      %v565 = vpop.f32.mrb[0].mxu0
      %v566 = vadd.f32 0.0, %v565
      %v567 = vpop.f32.mrb[0].mxu0
      %v568 = vpop.f32.mrb[0].mxu0
      %v569 = vadd.f32 0.0, %v568
      %v570 = vpop.f32.mrb[0].mxu0
      %571 = vmatprep.mubr.bf16.mxu0 0
      %572 = vmatmul.mubr.bf16.gmra.mrb[0].mxu0 %v525
      %v573 = vpop.f32.mrb[0].mxu0
      %v574 = vadd.f32 0.0, %v573
      %v575 = vpop.f32.mrb[0].mxu0
      %v576 = vpop.f32.mrb[0].mxu0
      %v577 = vadd.f32 0.0, %v576
      %v578 = vpop.f32.mrb[0].mxu0
      %579 = vmatprep.mubr.bf16.mxu0 0
      %580 = vmatmul.mubr.bf16.gmra.mrb[0].mxu0 %v527
      %v581 = vpop.f32.mrb[0].mxu0
      %v582 = vadd.f32 0.0, %v581
      %v583 = vpop.f32.mrb[0].mxu0
      %v584 = vpop.f32.mrb[0].mxu0
      %v585 = vadd.f32 0.0, %v584
      %v586 = vpop.f32.mrb[0].mxu0
      %587 = vmatprep.mubr.bf16.mxu0 0
      %588 = vmatmul.mubr.bf16.gmra.mrb[0].mxu0 %v529
      %v589 = vpop.f32.mrb[0].mxu0
      %v590 = vadd.f32 0.0, %v589
      %v591 = vpop.f32.mrb[0].mxu0
      %v592 = vpop.f32.mrb[0].mxu0
      %v593 = vadd.f32 0.0, %v592
      %v594 = vpop.f32.mrb[0].mxu0
      %595 = vdwg.mxu0
      %v596 = vshrl.u32 %v366, 16
      %598 = vrot.lane.b32.xlu0 %v596, 4
      %v599 = vpop.permute.xlu0 %598
      %600 = vrot.lane.b32.xlu0 %v442, 8
      %v601 = vpop.permute.xlu0 %600
      %v602 = vshrl.u32 %v442, 16
      %604 = vrot.lane.b32.xlu0 %v602, 12
      %v605 = vpop.permute.xlu0 %604
      %v607 = vsel %vm487, %v366, %v599
      %v609 = vsel %vm496, %v607, %v601
      %v611 = vsel %vm505, %v609, %v605
      %s612 = scalar_lea.vmem %s3, 8
      %v613 = vld [vmem:[%s612] sm:$0xf]
      %v614 = vld [vmem:[%s612 + $0x4] sm:$0xf]
      %v615 = vshrl.u32 %v507, 16
      %v617 = vshll.u32 %v507, 16
      %v619 = vrot.slane %v617, 1
      %v620 = vor.u32 %v615, %v619
      %v621 = vshll.u32 %v509, 16
      %v623 = vrot.slane %v621, 1
      %v624 = vsel %vm367, %v620, %v623
      %v625 = vshrl.u32 %v509, 16
      %v627 = vor.u32 %v625, %v623
      %v628 = vshll.u32 %v511, 16
      %v630 = vrot.slane %v628, 1
      %v631 = vsel %vm367, %v627, %v630
      %v632 = vshrl.u32 %v511, 16
      %v634 = vor.u32 %v632, %v630
      %v635 = vshll.u32 %v513, 16
      %v637 = vrot.slane %v635, 1
      %v638 = vsel %vm367, %v634, %v637
      %v639 = vshrl.u32 %v513, 16
      %v641 = vor.u32 %v639, %v637
      %v642 = vshll.u32 %v611, 16
      %v644 = vrot.slane %v642, 1
      %v645 = vsel %vm367, %v641, %v644
      %v648 = vunpack.c.l.b16 %v613
      %v649 = vunpack.c.l.b16 %v614
      %v650 = vpack.c.b16 %v649, %v648
      %v653 = vsel %vm522, %v624, 0
      %v656 = vsel %vm522, %v631, 0
      %v659 = vsel %vm522, %v638, 0
      %v662 = vsel %vm522, %v645, 0
      %664 = vmatprep.subr.bf16.mxu0 0
      %665 = vmatpush1.bf16.msra.mxu0 %v650
      %666 = vmatprep.subr.bf16.mxu0 0
      %667 = vmatpush1.bf16.msra.mxu0 0
      %668 = vmatprep.subr.bf16.mxu0 0
      %669 = vmatpush1.bf16.msra.mxu0 0
      %670 = vmatprep.subr.bf16.mxu0 0
      %671 = vmatpush1.bf16.msra.mxu0 0
      %672 = vmatprep.subr.bf16.mxu0 0
      %673 = vmatpush1.bf16.msra.mxu0 0
      %674 = vmatprep.subr.bf16.mxu0 0
      %675 = vmatpush1.bf16.msra.mxu0 0
      %676 = vmatprep.subr.bf16.mxu0 0
      %677 = vmatpush1.bf16.msra.mxu0 0
      %678 = vmatprep.subr.bf16.mxu0 0
      %679 = vmatpush1.bf16.msra.mxu0 0
      %680 = vmatprep.subr.bf16.mxu0 0
      %681 = vmatpush1.bf16.msra.mxu0 0
      %682 = vmatprep.subr.bf16.mxu0 0
      %683 = vmatpush1.bf16.msra.mxu0 0
      %684 = vmatprep.subr.bf16.mxu0 0
      %685 = vmatpush1.bf16.msra.mxu0 0
      %686 = vmatprep.subr.bf16.mxu0 0
      %687 = vmatpush1.bf16.msra.mxu0 0
      %688 = vmatprep.subr.bf16.mxu0 0
      %689 = vmatpush1.bf16.msra.mxu0 0
      %690 = vmatprep.subr.bf16.mxu0 0
      %691 = vmatpush1.bf16.msra.mxu0 0
      %692 = vmatprep.subr.bf16.mxu0 0
      %693 = vmatpush1.bf16.msra.mxu0 0
      %694 = vmatprep.subr.bf16.mxu0 0
      %695 = vmatpush1.bf16.msra.mxu0 0
      %696 = vmatprep.mubr.bf16.mxu0 0
      %697 = vmatmul.mubr.bf16.gmra.mrb[0].mxu0 %v653
      %v698 = vpop.f32.mrb[0].mxu0
      %v699 = vadd.f32 0.0, %v698
      %v700 = vpop.f32.mrb[0].mxu0
      %v701 = vpop.f32.mrb[0].mxu0
      %v702 = vadd.f32 0.0, %v701
      %v703 = vpop.f32.mrb[0].mxu0
      %704 = vmatprep.mubr.bf16.mxu0 0
      %705 = vmatmul.mubr.bf16.gmra.mrb[0].mxu0 %v656
      %v706 = vpop.f32.mrb[0].mxu0
      %v707 = vadd.f32 0.0, %v706
      %v708 = vpop.f32.mrb[0].mxu0
      %v709 = vpop.f32.mrb[0].mxu0
      %v710 = vadd.f32 0.0, %v709
      %v711 = vpop.f32.mrb[0].mxu0
      %712 = vmatprep.mubr.bf16.mxu0 0
      %713 = vmatmul.mubr.bf16.gmra.mrb[0].mxu0 %v659
      %v714 = vpop.f32.mrb[0].mxu0
      %v715 = vadd.f32 0.0, %v714
      %v716 = vpop.f32.mrb[0].mxu0
      %v717 = vpop.f32.mrb[0].mxu0
      %v718 = vadd.f32 0.0, %v717
      %v719 = vpop.f32.mrb[0].mxu0
      %720 = vmatprep.mubr.bf16.mxu0 0
      %721 = vmatmul.mubr.bf16.gmra.mrb[0].mxu0 %v662
      %v722 = vpop.f32.mrb[0].mxu0
      %v723 = vadd.f32 0.0, %v722
      %v724 = vpop.f32.mrb[0].mxu0
      %v725 = vpop.f32.mrb[0].mxu0
      %v726 = vadd.f32 0.0, %v725
      %v727 = vpop.f32.mrb[0].mxu0
      %728 = vdwg.mxu0
      %729 = vrot.lane.b32.xlu0 %v454, 4
      %v730 = vpop.permute.xlu0 %729
      %731 = vrot.lane.b32.xlu0 %v462, 4
      %v732 = vpop.permute.xlu0 %731
      %733 = vrot.lane.b32.xlu0 %v470, 4
      %v734 = vpop.permute.xlu0 %733
      %735 = vrot.lane.b32.xlu0 %v478, 4
      %v736 = vpop.permute.xlu0 %735
      %v745 = vunpack.c.l.b16 %v335
      %v746 = vunpack.c.l.b16 %v336
      %v747 = vunpack.c.l.b16 %v337
      %v748 = vunpack.c.l.b16 %v338
      %v749 = vunpack.c.l.b16 %v339
      %v750 = vunpack.c.l.b16 %v340
      %v751 = vunpack.c.l.b16 %v341
      %v752 = vunpack.c.l.b16 %v342
      %v753 = vpack.c.b16 %v746, %v745
      %v754 = vpack.c.b16 %v748, %v747
      %v755 = vpack.c.b16 %v750, %v749
      %v756 = vpack.c.b16 %v752, %v751
      %757 = vrot.lane.b32.xlu0 %v753, 8
      %v758 = vpop.permute.xlu0 %757
      %759 = vrot.lane.b32.xlu0 %v754, 8
      %v760 = vpop.permute.xlu0 %759
      %761 = vrot.lane.b32.xlu0 %v755, 8
      %v762 = vpop.permute.xlu0 %761
      %763 = vrot.lane.b32.xlu0 %v756, 8
      %v764 = vpop.permute.xlu0 %763
      %v766 = vunpack.c.l.b16 %v343
      %v767 = vpack.c.b16 %v766, %v766
      %v769 = vshrl.u32 %v753, 16
      %v771 = vshll.u32 %v753, 16
      %v773 = vrot.slane %v771, 1
      %v774 = vor.u32 %v769, %v773
      %v776 = vshll.u32 %v754, 16
      %v778 = vrot.slane %v776, 1
      %v779 = vsel %vm367, %v774, %v778
      %v780 = vshrl.u32 %v754, 16
      %v782 = vor.u32 %v780, %v778
      %v784 = vshll.u32 %v755, 16
      %v786 = vrot.slane %v784, 1
      %v787 = vsel %vm367, %v782, %v786
      %v788 = vshrl.u32 %v755, 16
      %v790 = vor.u32 %v788, %v786
      %v792 = vshll.u32 %v756, 16
      %v794 = vrot.slane %v792, 1
      %v795 = vsel %vm367, %v790, %v794
      %v796 = vshrl.u32 %v756, 16
      %v798 = vor.u32 %v796, %v794
      %v800 = vshll.u32 %v767, 16
      %v802 = vrot.slane %v800, 1
      %v803 = vsel %vm367, %v798, %v802
      %804 = vrot.lane.b32.xlu0 %v779, 12
      %v805 = vpop.permute.xlu0 %804
      %806 = vrot.lane.b32.xlu0 %v787, 12
      %v807 = vpop.permute.xlu0 %806
      %808 = vrot.lane.b32.xlu0 %v795, 12
      %v809 = vpop.permute.xlu0 %808
      %810 = vrot.lane.b32.xlu0 %v803, 12
      %v811 = vpop.permute.xlu0 %810
      %v813 = vsel %vm487, %v428, %v730
      %v815 = vsel %vm487, %v429, %v732
      %v817 = vsel %vm487, %v430, %v734
      %v819 = vsel %vm487, %v431, %v736
      %v821 = vsel %vm496, %v813, %v758
      %v823 = vsel %vm496, %v815, %v760
      %v825 = vsel %vm496, %v817, %v762
      %v827 = vsel %vm496, %v819, %v764
      %v829 = vsel %vm505, %v821, %v805
      %v831 = vsel %vm505, %v823, %v807
      %v833 = vsel %vm505, %v825, %v809
      %v835 = vsel %vm505, %v827, %v811
      %s836 = scalar_lea.vmem %s3, 16
      %v837 = vld [vmem:[%s836] sm:$0xf]
      %v838 = vld [vmem:[%s836 + $0x4] sm:$0xf]
      %v841 = vunpack.c.l.b16 %v837
      %v842 = vunpack.c.l.b16 %v838
      %v843 = vpack.c.b16 %v842, %v841
      %v845 = vsel %vm522, %v829, 0
      %v847 = vsel %vm522, %v831, 0
      %v849 = vsel %vm522, %v833, 0
      %v851 = vsel %vm522, %v835, 0
      %853 = vmatprep.subr.bf16.mxu0 0
      %854 = vmatpush1.bf16.msra.mxu0 %v843
      %855 = vmatprep.subr.bf16.mxu0 0
      %856 = vmatpush1.bf16.msra.mxu0 0
      %857 = vmatprep.subr.bf16.mxu0 0
      %858 = vmatpush1.bf16.msra.mxu0 0
      %859 = vmatprep.subr.bf16.mxu0 0
      %860 = vmatpush1.bf16.msra.mxu0 0
      %861 = vmatprep.subr.bf16.mxu0 0
      %862 = vmatpush1.bf16.msra.mxu0 0
      %863 = vmatprep.subr.bf16.mxu0 0
      %864 = vmatpush1.bf16.msra.mxu0 0
      %865 = vmatprep.subr.bf16.mxu0 0
      %866 = vmatpush1.bf16.msra.mxu0 0
      %867 = vmatprep.subr.bf16.mxu0 0
      %868 = vmatpush1.bf16.msra.mxu0 0
      %869 = vmatprep.subr.bf16.mxu0 0
      %870 = vmatpush1.bf16.msra.mxu0 0
      %871 = vmatprep.subr.bf16.mxu0 0
      %872 = vmatpush1.bf16.msra.mxu0 0
      %873 = vmatprep.subr.bf16.mxu0 0
      %874 = vmatpush1.bf16.msra.mxu0 0
      %875 = vmatprep.subr.bf16.mxu0 0
      %876 = vmatpush1.bf16.msra.mxu0 0
      %877 = vmatprep.subr.bf16.mxu0 0
      %878 = vmatpush1.bf16.msra.mxu0 0
      %879 = vmatprep.subr.bf16.mxu0 0
      %880 = vmatpush1.bf16.msra.mxu0 0
      %881 = vmatprep.subr.bf16.mxu0 0
      %882 = vmatpush1.bf16.msra.mxu0 0
      %883 = vmatprep.subr.bf16.mxu0 0
      %884 = vmatpush1.bf16.msra.mxu0 0
      %885 = vmatprep.mubr.bf16.mxu0 0
      %886 = vmatmul.mubr.bf16.gmra.mrb[0].mxu0 %v845
      %v887 = vpop.f32.mrb[0].mxu0
      %v888 = vadd.f32 0.0, %v887
      %v889 = vpop.f32.mrb[0].mxu0
      %v890 = vpop.f32.mrb[0].mxu0
      %v891 = vadd.f32 0.0, %v890
      %v892 = vpop.f32.mrb[0].mxu0
      %893 = vmatprep.mubr.bf16.mxu0 0
      %894 = vmatmul.mubr.bf16.gmra.mrb[0].mxu0 %v847
      %v895 = vpop.f32.mrb[0].mxu0
      %v896 = vadd.f32 0.0, %v895
      %v897 = vpop.f32.mrb[0].mxu0
      %v898 = vpop.f32.mrb[0].mxu0
      %v899 = vadd.f32 0.0, %v898
      %v900 = vpop.f32.mrb[0].mxu0
      %901 = vmatprep.mubr.bf16.mxu0 0
      %902 = vmatmul.mubr.bf16.gmra.mrb[0].mxu0 %v849
      %v903 = vpop.f32.mrb[0].mxu0
      %v904 = vadd.f32 0.0, %v903
      %v905 = vpop.f32.mrb[0].mxu0
      %v906 = vpop.f32.mrb[0].mxu0
      %v907 = vadd.f32 0.0, %v906
      %v908 = vpop.f32.mrb[0].mxu0
      %909 = vmatprep.mubr.bf16.mxu0 0
      %910 = vmatmul.mubr.bf16.gmra.mrb[0].mxu0 %v851
      %v911 = vpop.f32.mrb[0].mxu0
      %v912 = vadd.f32 0.0, %v911
      %v913 = vpop.f32.mrb[0].mxu0
      %v914 = vpop.f32.mrb[0].mxu0
      %v915 = vadd.f32 0.0, %v914
      %v916 = vpop.f32.mrb[0].mxu0
      %917 = vdwg.mxu0
      %918 = vrot.lane.b32.xlu0 %v602, 4
      %v919 = vpop.permute.xlu0 %918
      %920 = vrot.lane.b32.xlu0 %v767, 8
      %v921 = vpop.permute.xlu0 %920
      %v922 = vshrl.u32 %v767, 16
      %924 = vrot.lane.b32.xlu0 %v922, 12
      %v925 = vpop.permute.xlu0 %924
      %v927 = vsel %vm487, %v442, %v919
      %v929 = vsel %vm496, %v927, %v921
      %v931 = vsel %vm505, %v929, %v925
      %s932 = scalar_lea.vmem %s3, 24
      %v933 = vld [vmem:[%s932] sm:$0xf]
      %v934 = vld [vmem:[%s932 + $0x4] sm:$0xf]
      %v935 = vshrl.u32 %v829, 16
      %v937 = vshll.u32 %v829, 16
      %v939 = vrot.slane %v937, 1
      %v940 = vor.u32 %v935, %v939
      %v941 = vshll.u32 %v831, 16
      %v943 = vrot.slane %v941, 1
      %v944 = vsel %vm367, %v940, %v943
      %v945 = vshrl.u32 %v831, 16
      %v947 = vor.u32 %v945, %v943
      %v948 = vshll.u32 %v833, 16
      %v950 = vrot.slane %v948, 1
      %v951 = vsel %vm367, %v947, %v950
      %v952 = vshrl.u32 %v833, 16
      %v954 = vor.u32 %v952, %v950
      %v955 = vshll.u32 %v835, 16
      %v957 = vrot.slane %v955, 1
      %v958 = vsel %vm367, %v954, %v957
      %v959 = vshrl.u32 %v835, 16
      %v961 = vor.u32 %v959, %v957
      %v962 = vshll.u32 %v931, 16
      %v964 = vrot.slane %v962, 1
      %v965 = vsel %vm367, %v961, %v964
      %v968 = vunpack.c.l.b16 %v933
      %v969 = vunpack.c.l.b16 %v934
      %v970 = vpack.c.b16 %v969, %v968
      %v973 = vsel %vm522, %v944, 0
      %v976 = vsel %vm522, %v951, 0
      %v979 = vsel %vm522, %v958, 0
      %v982 = vsel %vm522, %v965, 0
      %984 = vmatprep.subr.bf16.mxu0 0
      %985 = vmatpush1.bf16.msra.mxu0 %v970
      %986 = vmatprep.subr.bf16.mxu0 0
      %987 = vmatpush1.bf16.msra.mxu0 0
      %988 = vmatprep.subr.bf16.mxu0 0
      %989 = vmatpush1.bf16.msra.mxu0 0
      %990 = vmatprep.subr.bf16.mxu0 0
      %991 = vmatpush1.bf16.msra.mxu0 0
      %992 = vmatprep.subr.bf16.mxu0 0
      %993 = vmatpush1.bf16.msra.mxu0 0
      %994 = vmatprep.subr.bf16.mxu0 0
      %995 = vmatpush1.bf16.msra.mxu0 0
      %996 = vmatprep.subr.bf16.mxu0 0
      %997 = vmatpush1.bf16.msra.mxu0 0
      %998 = vmatprep.subr.bf16.mxu0 0
      %999 = vmatpush1.bf16.msra.mxu0 0
      %1000 = vmatprep.subr.bf16.mxu0 0
      %1001 = vmatpush1.bf16.msra.mxu0 0
      %1002 = vmatprep.subr.bf16.mxu0 0
      %1003 = vmatpush1.bf16.msra.mxu0 0
      %1004 = vmatprep.subr.bf16.mxu0 0
      %1005 = vmatpush1.bf16.msra.mxu0 0
      %1006 = vmatprep.subr.bf16.mxu0 0
      %1007 = vmatpush1.bf16.msra.mxu0 0
      %1008 = vmatprep.subr.bf16.mxu0 0
      %1009 = vmatpush1.bf16.msra.mxu0 0
      %1010 = vmatprep.subr.bf16.mxu0 0
      %1011 = vmatpush1.bf16.msra.mxu0 0
      %1012 = vmatprep.subr.bf16.mxu0 0
      %1013 = vmatpush1.bf16.msra.mxu0 0
      %1014 = vmatprep.subr.bf16.mxu0 0
      %1015 = vmatpush1.bf16.msra.mxu0 0
      %1016 = vmatprep.mubr.bf16.mxu0 0
      %1017 = vmatmul.mubr.bf16.gmra.mrb[0].mxu0 %v973
      %v1018 = vpop.f32.mrb[0].mxu0
      %v1019 = vadd.f32 0.0, %v1018
      %v1020 = vpop.f32.mrb[0].mxu0
      %v1021 = vpop.f32.mrb[0].mxu0
      %v1022 = vadd.f32 0.0, %v1021
      %v1023 = vpop.f32.mrb[0].mxu0
      %1024 = vmatprep.mubr.bf16.mxu0 0
      %1025 = vmatmul.mubr.bf16.gmra.mrb[0].mxu0 %v976
      %v1026 = vpop.f32.mrb[0].mxu0
      %v1027 = vadd.f32 0.0, %v1026
      %v1028 = vpop.f32.mrb[0].mxu0
      %v1029 = vpop.f32.mrb[0].mxu0
      %v1030 = vadd.f32 0.0, %v1029
      %v1031 = vpop.f32.mrb[0].mxu0
      %1032 = vmatprep.mubr.bf16.mxu0 0
      %1033 = vmatmul.mubr.bf16.gmra.mrb[0].mxu0 %v979
      %v1034 = vpop.f32.mrb[0].mxu0
      %v1035 = vadd.f32 0.0, %v1034
      %v1036 = vpop.f32.mrb[0].mxu0
      %v1037 = vpop.f32.mrb[0].mxu0
      %v1038 = vadd.f32 0.0, %v1037
      %v1039 = vpop.f32.mrb[0].mxu0
      %1040 = vmatprep.mubr.bf16.mxu0 0
      %1041 = vmatmul.mubr.bf16.gmra.mrb[0].mxu0 %v982
      %v1042 = vpop.f32.mrb[0].mxu0
      %v1043 = vadd.f32 0.0, %v1042
      %v1044 = vpop.f32.mrb[0].mxu0
      %v1045 = vpop.f32.mrb[0].mxu0
      %v1046 = vadd.f32 0.0, %v1045
      %v1047 = vpop.f32.mrb[0].mxu0
      %1048 = vdwg.mxu0
      %1057 = vrot.lane.b32.xlu0 %v699, 3
      %v1058 = vpop.permute.xlu0 %1057
      %1059 = vrot.lane.b32.xlu0 %v702, 3
      %v1060 = vpop.permute.xlu0 %1059
      %1061 = vrot.lane.b32.xlu0 %v707, 3
      %v1062 = vpop.permute.xlu0 %1061
      %1063 = vrot.lane.b32.xlu0 %v710, 3
      %v1064 = vpop.permute.xlu0 %1063
      %1065 = vrot.lane.b32.xlu0 %v715, 3
      %v1066 = vpop.permute.xlu0 %1065
      %1067 = vrot.lane.b32.xlu0 %v718, 3
      %v1068 = vpop.permute.xlu0 %1067
      %1069 = vrot.lane.b32.xlu0 %v723, 3
      %v1070 = vpop.permute.xlu0 %1069
      %1071 = vrot.lane.b32.xlu0 %v726, 3
      %v1072 = vpop.permute.xlu0 %1071
      %1089 = vrot.lane.b32.xlu0 %v888, 6
      %v1090 = vpop.permute.xlu0 %1089
      %1091 = vrot.lane.b32.xlu0 %v891, 6
      %v1092 = vpop.permute.xlu0 %1091
      %1093 = vrot.lane.b32.xlu0 %v896, 6
      %v1094 = vpop.permute.xlu0 %1093
      %1095 = vrot.lane.b32.xlu0 %v899, 6
      %v1096 = vpop.permute.xlu0 %1095
      %1097 = vrot.lane.b32.xlu0 %v904, 6
      %v1098 = vpop.permute.xlu0 %1097
      %1099 = vrot.lane.b32.xlu0 %v907, 6
      %v1100 = vpop.permute.xlu0 %1099
      %1101 = vrot.lane.b32.xlu0 %v912, 6
      %v1102 = vpop.permute.xlu0 %1101
      %1103 = vrot.lane.b32.xlu0 %v915, 6
      %v1104 = vpop.permute.xlu0 %1103
      %1121 = vrot.lane.b32.xlu0 %v1019, 9
      %v1122 = vpop.permute.xlu0 %1121
      %1123 = vrot.lane.b32.xlu0 %v1022, 9
      %v1124 = vpop.permute.xlu0 %1123
      %1125 = vrot.lane.b32.xlu0 %v1027, 9
      %v1126 = vpop.permute.xlu0 %1125
      %1127 = vrot.lane.b32.xlu0 %v1030, 9
      %v1128 = vpop.permute.xlu0 %1127
      %1129 = vrot.lane.b32.xlu0 %v1035, 9
      %v1130 = vpop.permute.xlu0 %1129
      %1131 = vrot.lane.b32.xlu0 %v1038, 9
      %v1132 = vpop.permute.xlu0 %1131
      %1133 = vrot.lane.b32.xlu0 %v1043, 9
      %v1134 = vpop.permute.xlu0 %1133
      %1135 = vrot.lane.b32.xlu0 %v1046, 9
      %v1136 = vpop.permute.xlu0 %1135
      %vm1145 = vcmask 23552
      %v1146 = vsel %vm1145, %v566, %v1058
      %v1147 = vsel %vm1145, %v569, %v1060
      %v1148 = vsel %vm1145, %v574, %v1062
      %v1149 = vsel %vm1145, %v577, %v1064
      %v1150 = vsel %vm1145, %v582, %v1066
      %v1151 = vsel %vm1145, %v585, %v1068
      %v1152 = vsel %vm1145, %v590, %v1070
      %v1153 = vsel %vm1145, %v593, %v1072
      %vm1154 = vcmask 48128
      %v1155 = vsel %vm1154, %v1146, %v1090
      %v1156 = vsel %vm1154, %v1147, %v1092
      %v1157 = vsel %vm1154, %v1148, %v1094
      %v1158 = vsel %vm1154, %v1149, %v1096
      %v1159 = vsel %vm1154, %v1150, %v1098
      %v1160 = vsel %vm1154, %v1151, %v1100
      %v1161 = vsel %vm1154, %v1152, %v1102
      %v1162 = vsel %vm1154, %v1153, %v1104
      %vm1163 = vcmask 72704
      %v1164 = vsel %vm1163, %v1155, %v1122
      %v1165 = vsel %vm1163, %v1156, %v1124
      %v1166 = vsel %vm1163, %v1157, %v1126
      %v1167 = vsel %vm1163, %v1158, %v1128
      %v1168 = vsel %vm1163, %v1159, %v1130
      %v1169 = vsel %vm1163, %v1160, %v1132
      %v1170 = vsel %vm1163, %v1161, %v1134
      %v1171 = vsel %vm1163, %v1162, %v1136
      %v1172 = vtanh.pop %v1164
      %v1173 = vtanh.pop %v1165
      %v1174 = vtanh.pop %v1166
      %v1175 = vtanh.pop %v1167
      %v1176 = vtanh.pop %v1168
      %v1177 = vtanh.pop %v1169
      %v1178 = vtanh.pop %v1170
      %v1179 = vtanh.pop %v1171
      %v1180 = vpack.c.bf16 %v1173, %v1172
      %v1181 = vpack.c.bf16 %v1175, %v1174
      %v1182 = vpack.c.bf16 %v1177, %v1176
      %v1183 = vpack.c.bf16 %v1179, %v1178
      %v1188 = vunpack.c.l.b16 %v1180
      %v1189 = vunpack.c.h.b16 %v1180
      %v1190 = vunpack.c.l.b16 %v1181
      %v1191 = vunpack.c.h.b16 %v1181
      %v1192 = vunpack.c.l.b16 %v1182
      %v1193 = vunpack.c.h.b16 %v1182
      %v1194 = vunpack.c.l.b16 %v1183
      %v1195 = vunpack.c.h.b16 %v1183
      %v1196 = vpack.c.b16 %v1188, %v1188
      %v1197 = vpack.c.b16 %v1189, %v1189
      %v1198 = vpack.c.b16 %v1190, %v1190
      %v1199 = vpack.c.b16 %v1191, %v1191
      %v1200 = vpack.c.b16 %v1192, %v1192
      %v1201 = vpack.c.b16 %v1193, %v1193
      %v1202 = vpack.c.b16 %v1194, %v1194
      %v1203 = vpack.c.b16 %v1195, %v1195
      %vm1212 = vcmask 93184
      %1213 = vst.msk [vmem:[%s315] sm:$0xf] %vm1212, %v1196
      %1214 = vst.msk [vmem:[%s315 + $0x4] sm:$0xf] %vm1212, %v1197
      %1215 = vst.msk [vmem:[%s315 + $0x8] sm:$0xf] %vm1212, %v1198
      %1216 = vst.msk [vmem:[%s315 + $0xc] sm:$0xf] %vm1212, %v1199
      %1217 = vst.msk [vmem:[%s315 + $0x10] sm:$0xf] %vm1212, %v1200
      %1218 = vst.msk [vmem:[%s315 + $0x14] sm:$0xf] %vm1212, %v1201
      %1219 = vst.msk [vmem:[%s315 + $0x18] sm:$0xf] %vm1212, %v1202
      %1220 = vst.msk [vmem:[%s315 + $0x1c] sm:$0xf] %vm1212, %v1203
      %p1221 = scmp.lt.s32.totalorder %s19, 1
      %s1222 = scalar_select %p1221, %s19, 1
      %p1223 = scmp.lt.s32.totalorder %s20, 63
      %s1224 = scalar_select %p1223, %s20, 63
      %s1225 = smul.addr %s1224, 8
      %s1226 = smul.addr %s1222, 512
      %s1227 = sadd.s32 %s1225, %s1226
      %s1228 = smul.addr %s1227, 4
      %s1229 = scalar_lea.vmem %s4, %s1228
      // Predicated region
      $region37: #{dcgan_generator_forward.21} parent=35 // pred_check
        %p1230 = pneg %p156
      $region38: #{dcgan_generator_forward.21} parent=35 // pred_check_branch
        %1232 = sbr.rel (%p1230) target = $region40
      $region39: #{dcgan_generator_forward.21} parent=35 // pred_region
        _
      $region40: #{dcgan_generator_forward.21} parent=35 // pred_fallthru
        _
    $region36: #{dcgan_generator_forward.21} parent=5 // pred_fallthru
      _
    %p1233 = scmp.le.s32.totalorder 2, %s10
    // Predicated region
    $region41: #{dcgan_generator_forward.21} parent=5 // pred_check
      %p1234 = pneg %p1233
    $region42: #{dcgan_generator_forward.21} parent=5 // pred_check_branch
      %1236 = sbr.rel (%p1234) target = $region44
    $region43: #{dcgan_generator_forward.21} parent=5 // pred_region
      %s1237 = ssub.s32 %s10, 2
      // Predicated region
      $region45: #{dcgan_generator_forward.21} parent=43 // pred_check
        %p1238 = pneg %p162
      $region46: #{dcgan_generator_forward.21} parent=43 // pred_check_branch
        %1240 = sbr.rel (%p1238) target = $region48
      $region47: #{dcgan_generator_forward.21} parent=43 // pred_region
        %p1241 = scmp.lt.s32.totalorder %s21, 1
        %s1242 = scalar_select %p1241, %s21, 1
        %p1243 = scmp.lt.s32.totalorder %s22, 63
        %s1244 = scalar_select %p1243, %s22, 63
        %s1245 = smul.addr %s1244, 8
        %s1246 = smul.addr %s1242, 512
        %s1247 = sadd.s32 %s1245, %s1246
        %s1248 = smul.addr %s1247, 4
        %s1249 = scalar_lea.vmem %s4, %s1248
      $region48: #{dcgan_generator_forward.21} parent=43 // pred_fallthru
        _
    $region44: #{dcgan_generator_forward.21} parent=5 // pred_fallthru
      _
  $region6: #{dcgan_generator_forward.21} parent=0 // loop_footer
    %s14 = sadd.s32 1, %s10
  $region7: #{dcgan_generator_forward.21} parent=0 // loop_footer_branch
    %9 = sbr.rel target = $region3
  $region8: #{dcgan_generator_forward.21} parent=0 // loop_exit
    _

</llo_original>
